<compile_context>
chip_gen: v7x
topology: tpu7x:2x2x1
jax: 0.10.0
libtpu: 0.0.40
codegen_flags: <defaults>
</compile_context>

<pallas_src>
import math

import numpy as np
import jax
import jax.numpy as jnp
from jax import lax
from jax.experimental import pallas as pl
from jax.experimental.pallas import tpu as pltpu

NEG_SLOPE = 0.2
ACT_SCALE = math.sqrt(2.0)
INV_SQRT2 = 1.0 / math.sqrt(2.0)
# separable blur taps: [1,3,3,1]/8 per axis (symmetric, so flip == identity)
K0, K1, K2, K3 = 1.0 / 8.0, 3.0 / 8.0, 3.0 / 8.0, 1.0 / 8.0


def _leaky(v):
    return jnp.where(v >= 0, v, NEG_SLOPE * v)


# ---------------------------------------------------------------------------
# Fused ResBlock kernel (one batch element per grid step).
# Inputs are the even / odd column planes of the NHWC image (bf16):
#   xe[h, u, c] = x[h, 2u, c],  xo[h, u, c] = x[h, 2u+1, c]
# Output block is (1, Cout, Ho*Wo): channels-major, lane-dense spatial axis.
# ---------------------------------------------------------------------------
def resblock_kernel(xe_ref, xo_ref, w1f_ref, b1_ref, w2f_ref, b2_ref, ws_ref,
                    o_ref, xe_pad, xo_pad, oe_pad, oo_pad):
    H, Wo, Cin = xe_ref.shape[1], xe_ref.shape[2], xe_ref.shape[3]
    Ho = H // 2
    f32 = jnp.float32
    bf16 = jnp.bfloat16

    def cat_k(parts, m):
        # fold taps into the contraction dim: (m, Cin) pieces -> (m, T*Cin)
        return jnp.concatenate([p.reshape(m, Cin) for p in parts], axis=1)

    # ---- zero ONLY the halo ring of the padded scratch buffers -------------
    def zero_halo(buf, top):
        R, C = buf.shape[0], buf.shape[1]
        buf[0:top, :, :] = jnp.zeros((top, C, Cin), bf16)
        buf[R - top:R, :, :] = jnp.zeros((top, C, Cin), bf16)
        buf[:, 0:1, :] = jnp.zeros((R, 1, Cin), bf16)
        buf[:, C - 1:C, :] = jnp.zeros((R, 1, Cin), bf16)

    zero_halo(xe_pad, 1)
    zero_halo(xo_pad, 1)
    zero_halo(oe_pad, 2)
    zero_halo(oo_pad, 2)

    # ---- interior writes (inputs already bf16; written exactly once) -------
    xe_pad[1:H + 1, 1:Wo + 1, :] = xe_ref[0]
    xo_pad[1:H + 1, 1:Wo + 1, :] = xo_ref[0]
    XE = xe_pad[...]            # (H+2, Wo+2, Cin); XE[r, u] = x[r-1, 2(u-1)]
    XO = xo_pad[...]            #                   XO[r, u] = x[r-1, 2(u-1)+1]

    # ---- conv1: 3x3 / pad 1 / stride 1 --------------------------------------
    # dw taps folded into K, the two output-column parities merged along M.
    acc1 = jnp.zeros((2 * H * Wo, Cin), f32)
    for dh in range(3):
        xo_l = XO[dh:dh + H, 0:Wo]          # x[.., 2u-1]
        xe_c = XE[dh:dh + H, 1:Wo + 1]      # x[.., 2u]
        xo_c = XO[dh:dh + H, 1:Wo + 1]      # x[.., 2u+1]
        xe_r = XE[dh:dh + H, 2:Wo + 2]      # x[.., 2u+2]
        pe = cat_k([xo_l, xe_c, xo_c], H * Wo)        # even columns patch
        po = cat_k([xe_c, xo_c, xe_r], H * Wo)        # odd  columns patch
        patch = jnp.concatenate([pe, po], axis=0)     # (2*H*Wo, 3*Cin)
        acc1 += jnp.dot(patch, w1f_ref[dh], preferred_element_type=f32)
    out1 = _leaky(acc1 + b1_ref[...].astype(f32)) * ACT_SCALE
    out1_e = out1[:H * Wo].reshape(H, Wo, Cin).astype(bf16)   # one-time cast
    out1_o = out1[H * Wo:].reshape(H, Wo, Cin).astype(bf16)

    # ---- write conv1 output into blur halo scratch (2 rows / 1 col pad) -----
    oe_pad[2:H + 2, 1:Wo + 1, :] = out1_e
    oo_pad[2:H + 2, 1:Wo + 1, :] = out1_o
    OEf = oe_pad[...].astype(f32)            # (H+4, Wo+2, Cin), blur math in f32
    OOf = oo_pad[...].astype(f32)

    # ---- separable blur([1,3,3,1], pad=2) of out1, kept in polyphase form ----
    GE = (K0 * OEf[:, 0:Wo + 1] + K1 * OOf[:, 0:Wo + 1]
          + K2 * OEf[:, 1:Wo + 2] + K3 * OOf[:, 1:Wo + 2])   # (H+4, Wo+1, C)
    GO = (K0 * OOf[:, 0:Wo] + K1 * OEf[:, 1:Wo + 1]
          + K2 * OOf[:, 1:Wo + 1] + K3 * OEf[:, 2:Wo + 2])   # (H+4, Wo,   C)
    GEr = GE.reshape(Ho + 2, 2, Wo + 1, Cin)
    GOr = GO.reshape(Ho + 2, 2, Wo, Cin)
    GEe, GEo = GEr[:, 0], GEr[:, 1]
    GOe, GOo = GOr[:, 0], GOr[:, 1]
    BEe = (K0 * GEe[0:Ho + 1] + K1 * GEo[0:Ho + 1]
           + K2 * GEe[1:Ho + 2] + K3 * GEo[1:Ho + 2]).astype(bf16)
    BEo = (K0 * GEo[0:Ho] + K1 * GEe[1:Ho + 1]
           + K2 * GEo[1:Ho + 1] + K3 * GEe[2:Ho + 2]).astype(bf16)
    BOe = (K0 * GOe[0:Ho + 1] + K1 * GOo[0:Ho + 1]
           + K2 * GOe[1:Ho + 2] + K3 * GOo[1:Ho + 2]).astype(bf16)
    BOo = (K0 * GOo[0:Ho] + K1 * GOe[1:Ho + 1]
           + K2 * GOo[1:Ho + 1] + K3 * GOe[2:Ho + 2]).astype(bf16)
    # BEe[i, j] = blur[2i, 2j], BEo[i, j] = blur[2i+1, 2j],
    # BOe[i, j] = blur[2i, 2j+1], BOo[i, j] = blur[2i+1, 2j+1]

    # ---- conv2: 3x3 stride-2 conv, all 9 taps folded into ONE dot -----------
    taps = [
        BEe[0:Ho, 0:Wo], BOe[0:Ho], BEe[0:Ho, 1:Wo + 1],             # dh = 0
        BEo[:, 0:Wo], BOo, BEo[:, 1:Wo + 1],                         # dh = 1
        BEe[1:Ho + 1, 0:Wo], BOe[1:Ho + 1], BEe[1:Ho + 1, 1:Wo + 1], # dh = 2
    ]
    patch2 = cat_k(taps, Ho * Wo)                                    # (Ho*Wo, 9*Cin)
    acc2 = jnp.dot(patch2, w2f_ref[...], preferred_element_type=f32)
    act2 = _leaky(acc2 + b2_ref[...].astype(f32)) * ACT_SCALE        # (Ho*Wo, Cout)

    # ---- skip path: blur(x, pad=1) sampled at even positions, 1x1 conv ------
    XEf = XE.astype(f32)
    XOf = XO.astype(f32)
    hs = (K0 * XOf[:, 0:Wo] + K1 * XEf[:, 1:Wo + 1]
          + K2 * XOf[:, 1:Wo + 1] + K3 * XEf[:, 2:Wo + 2])           # (H+2, Wo, C)
    hsr = hs.reshape(Ho + 1, 2, Wo, Cin)
    hsE, hsO = hsr[:, 0], hsr[:, 1]
    blurs = (K0 * hsE[0:Ho] + K1 * hsO[0:Ho]
             + K2 * hsE[1:Ho + 1] + K3 * hsO[1:Ho + 1]).astype(bf16)
    skip = jnp.dot(blurs.reshape(Ho * Wo, Cin), ws_ref[...],
                   preferred_element_type=f32)                       # (Ho*Wo, Cout)

    # ---- combine; emit channels-major, lane-dense (Cout, Ho*Wo) -------------
    final = (act2 + skip) * INV_SQRT2
    o_ref[0] = jnp.transpose(final, (1, 0)).astype(o_ref.dtype)


# ---------------------------------------------------------------------------
# pallas_call wrapper
# ---------------------------------------------------------------------------
def _resblock_pallas(xe, xo, w1f, b1, w2f, b2, wskip):
    B, H, Wo, Cin = xe.shape
    Ho = H // 2
    Cout = w2f.shape[-1]

    def full_spec(arr):
        return pl.BlockSpec(tuple(arr.shape), lambda b, n=arr.ndim: (0,) * n)

    return pl.pallas_call(
        resblock_kernel,
        out_shape=jax.ShapeDtypeStruct((B, Cout, Ho * Wo), jnp.float32),
        grid=(B,),
        in_specs=[pl.BlockSpec((1, H, Wo, Cin), lambda b: (b, 0, 0, 0)),
                  pl.BlockSpec((1, H, Wo, Cin), lambda b: (b, 0, 0, 0)),
                  full_spec(w1f), full_spec(b1),
                  full_spec(w2f), full_spec(b2), full_spec(wskip)],
        out_specs=pl.BlockSpec((1, Cout, Ho * Wo), lambda b: (b, 0, 0)),
        scratch_shapes=[
            pltpu.VMEM((H + 2, Wo + 2, Cin), jnp.bfloat16),  # padded even-col input
            pltpu.VMEM((H + 2, Wo + 2, Cin), jnp.bfloat16),  # padded odd-col input
            pltpu.VMEM((H + 4, Wo + 2, Cin), jnp.bfloat16),  # padded even-col conv1 out
            pltpu.VMEM((H + 4, Wo + 2, Cin), jnp.bfloat16),  # padded odd-col conv1 out
        ],
        compiler_params=pltpu.CompilerParams(
            dimension_semantics=("parallel",),
            # safe on v5e/v6e (128 MiB) and v7x (64 MiB) physical VMEM
            vmem_limit_bytes=48 * 1024 * 1024),
    )(xe, xo, w1f, b1, w2f, b2, wskip)


@jax.jit
def resblock_forward(x_nchw, params):
    B, Cin, H, W = x_nchw.shape
    assert H % 2 == 0 and W % 2 == 0, "spatial dims must be even"
    Wo = W // 2
    Cout = params["b2"].shape[-1]
    # NCHW -> column-parity NHWC planes (one fused XLA transpose each), cast to
    # bf16 once here so the kernel never casts activations again.
    xr = x_nchw.astype(jnp.float32).reshape(B, Cin, H, Wo, 2)
    xe = jnp.transpose(xr[..., 0], (0, 2, 3, 1)).astype(jnp.bfloat16)  # even cols
    xo = jnp.transpose(xr[..., 1], (0, 2, 3, 1)).astype(jnp.bfloat16)  # odd  cols
    # pre-folded weights: dw (conv1) / (dh,dw) (conv2) taps stacked along K
    w1f = params["w1"].reshape(3, 3 * Cin, Cin).astype(jnp.bfloat16)   # (3, 3Cin, Cin)
    w2f = params["w2"].reshape(9 * Cin, Cout).astype(jnp.bfloat16)     # (9Cin, Cout)
    ws = params["wskip"].astype(jnp.bfloat16)                          # (Cin, Cout)
    out = _resblock_pallas(xe, xo, w1f, params["b1"], w2f, params["b2"], ws)
    # kernel already emits channels-major; only a free reshape remains.
    return out.reshape(B, Cout, H // 2, Wo)


def init_params(key, in_c, out_c):
    k1, k2, k3, k4, k5 = jax.random.split(key, 5)
    w1 = jax.random.normal(k1, (in_c, in_c, 3, 3), jnp.float32)   # OIHW like torch
    w2 = jax.random.normal(k2, (out_c, in_c, 3, 3), jnp.float32)
    ws = jax.random.normal(k3, (out_c, in_c, 1, 1), jnp.float32)
    s1 = 1.0 / math.sqrt(in_c * 3 * 3)
    s2 = 1.0 / math.sqrt(in_c * 3 * 3)
    ss = 1.0 / math.sqrt(in_c * 1 * 1)
    return {
        "w1": jnp.transpose(w1, (2, 3, 1, 0)) * s1,                   # HWIO
        "b1": 0.1 * jax.random.normal(k4, (1, in_c), jnp.float32),    # FusedLeakyReLU bias
        "w2": jnp.transpose(w2, (2, 3, 1, 0)) * s2,                   # HWIO
        "b2": 0.1 * jax.random.normal(k5, (1, out_c), jnp.float32),
        "wskip": jnp.transpose(ws[:, :, 0, 0], (1, 0)) * ss,          # (Cin, Cout)
    }


# ---------------------------------------------------------------------------
# Pure-JAX f32 reference (exact module semantics) for the correctness check.
# ---------------------------------------------------------------------------
def _blur_kernel_2d():
    k = np.array([1.0, 3.0, 3.0, 1.0], np.float32)
    k2 = np.outer(k, k)
    k2 = k2 / k2.sum()
    return np.ascontiguousarray(k2[::-1, ::-1])   # torch flips before conv2d (symmetric)


def ref_forward(x_nchw, params):
    dn = ("NHWC", "HWIO", "NHWC")
    x = jnp.transpose(x_nchw, (0, 2, 3, 1)).astype(jnp.float32)
    kflip = jnp.asarray(_blur_kernel_2d())

    def blur(v, pad):
        C = v.shape[-1]
        kd = jnp.tile(kflip[:, :, None, None], (1, 1, 1, C))
        return lax.conv_general_dilated(v, kd, (1, 1), [(pad, pad), (pad, pad)],
                                        dimension_numbers=dn,
                                        feature_group_count=C)

    out1 = lax.conv_general_dilated(x, params["w1"], (1, 1), [(1, 1), (1, 1)],
                                    dimension_numbers=dn)
    out1 = _leaky(out1 + params["b1"].reshape(1, 1, 1, -1)) * ACT_SCALE

    out2 = lax.conv_general_dilated(blur(out1, 2), params["w2"], (2, 2),
                                    [(0, 0), (0, 0)], dimension_numbers=dn)
    out2 = _leaky(out2 + params["b2"].reshape(1, 1, 1, -1)) * ACT_SCALE

    skip = blur(x, 1)[:, ::2, ::2, :] @ params["wskip"]
    out = (out2 + skip) * INV_SQRT2
    return jnp.transpose(out, (0, 3, 1, 2))


if __name__ == "__main__":
    key = jax.random.PRNGKey(0)
    kx, kp = jax.random.split(key)
    batch, in_c, out_c, spatial = 2, 4, 8, 16

    x = jax.random.normal(kx, (batch, in_c, spatial, spatial), jnp.float32)
    params = init_params(kp, in_c, out_c)

    out = resblock_forward(x, params)
    out = jax.block_until_ready(out)
    assert out.shape == (batch, out_c, spatial // 2, spatial // 2), out.shape

    ref = ref_forward(x, params)
    # Kernel feeds the MXU bf16 operands (f32 accumulation); reference is pure f32.
    np.testing.assert_allclose(np.asarray(out), np.asarray(ref),
                               rtol=5e-2, atol=5e-2)
    print("KERNEL_OK")
</pallas_src>

<mosaic_0001>
module attributes {stable_mosaic.version = 11 : i64} {
  func.func @resblock_kernel(%arg0: i32, %arg1: memref<1x16x8x4xbf16, #tpu.memory_space<vmem>>, %arg2: memref<1x16x8x4xbf16, #tpu.memory_space<vmem>>, %arg3: memref<3x12x4xbf16, #tpu.memory_space<vmem>>, %arg4: memref<1x4xf32, #tpu.memory_space<vmem>>, %arg5: memref<36x8xbf16, #tpu.memory_space<vmem>>, %arg6: memref<1x8xf32, #tpu.memory_space<vmem>>, %arg7: memref<4x8xbf16, #tpu.memory_space<vmem>>, %arg8: memref<1x8x64xf32, #tpu.memory_space<vmem>>, %arg9: memref<18x10x4xbf16, #tpu.memory_space<vmem>>, %arg10: memref<18x10x4xbf16, #tpu.memory_space<vmem>>, %arg11: memref<20x10x4xbf16, #tpu.memory_space<vmem>>, %arg12: memref<20x10x4xbf16, #tpu.memory_space<vmem>>) attributes {dimension_semantics = [#tpu.dimension_semantics<parallel>], iteration_bounds = array<i64: 2>, scalar_prefetch = 0 : i64, scratch_operands = 4 : i64, tpu.core_type = #tpu.core_type<tc>, window_params = [{transform_indices = @transform_0, window_bounds = array<i64: 1, 16, 8, 4>}, {transform_indices = @transform_1, window_bounds = array<i64: 1, 16, 8, 4>}, {pipeline_mode = #tpu.pipeline_mode<synchronous>, transform_indices = @transform_2, window_bounds = array<i64: 3, 12, 4>}, {pipeline_mode = #tpu.pipeline_mode<synchronous>, transform_indices = @transform_3, window_bounds = array<i64: 1, 4>}, {pipeline_mode = #tpu.pipeline_mode<synchronous>, transform_indices = @transform_4, window_bounds = array<i64: 36, 8>}, {pipeline_mode = #tpu.pipeline_mode<synchronous>, transform_indices = @transform_5, window_bounds = array<i64: 1, 8>}, {pipeline_mode = #tpu.pipeline_mode<synchronous>, transform_indices = @transform_6, window_bounds = array<i64: 4, 8>}, {transform_indices = @transform_7, window_bounds = array<i64: 1, 8, 64>}]} {
    %cst = arith.constant 0.000000e+00 : bf16
    %0 = vector.broadcast %cst : bf16 to vector<1x10x4xbf16>
    %c0 = arith.constant 0 : index
    %c0_0 = arith.constant 0 : index
    %c0_1 = arith.constant 0 : index
    %1 = vector.load %arg9[%c0, %c0_0, %c0_1] : memref<18x10x4xbf16, #tpu.memory_space<vmem>>, vector<1x10x4xbf16>
    tpu.vector_store %arg9[%c0, %c0_0, %c0_1], %0 {strides = array<i32>} : memref<18x10x4xbf16, #tpu.memory_space<vmem>>, vector<1x10x4xbf16>,
    %cst_2 = arith.constant 0.000000e+00 : bf16
    %2 = vector.broadcast %cst_2 : bf16 to vector<1x10x4xbf16>
    %c17 = arith.constant 17 : index
    %c0_3 = arith.constant 0 : index
    %c0_4 = arith.constant 0 : index
    %3 = vector.load %arg9[%c17, %c0_3, %c0_4] : memref<18x10x4xbf16, #tpu.memory_space<vmem>>, vector<1x10x4xbf16>
    tpu.vector_store %arg9[%c17, %c0_3, %c0_4], %2 {strides = array<i32>} : memref<18x10x4xbf16, #tpu.memory_space<vmem>>, vector<1x10x4xbf16>,
    %cst_5 = arith.constant 0.000000e+00 : bf16
    %4 = vector.broadcast %cst_5 : bf16 to vector<18x1x4xbf16>
    %c0_6 = arith.constant 0 : index
    %c0_7 = arith.constant 0 : index
    %c0_8 = arith.constant 0 : index
    %5 = vector.load %arg9[%c0_6, %c0_7, %c0_8] : memref<18x10x4xbf16, #tpu.memory_space<vmem>>, vector<18x1x4xbf16>
    tpu.vector_store %arg9[%c0_6, %c0_7, %c0_8], %4 {strides = array<i32>} : memref<18x10x4xbf16, #tpu.memory_space<vmem>>, vector<18x1x4xbf16>,
    %cst_9 = arith.constant 0.000000e+00 : bf16
    %6 = vector.broadcast %cst_9 : bf16 to vector<18x1x4xbf16>
    %c0_10 = arith.constant 0 : index
    %c9 = arith.constant 9 : index
    %c0_11 = arith.constant 0 : index
    %7 = vector.load %arg9[%c0_10, %c9, %c0_11] : memref<18x10x4xbf16, #tpu.memory_space<vmem>>, vector<18x1x4xbf16>
    tpu.vector_store %arg9[%c0_10, %c9, %c0_11], %6 {strides = array<i32>} : memref<18x10x4xbf16, #tpu.memory_space<vmem>>, vector<18x1x4xbf16>,
    %cst_12 = arith.constant 0.000000e+00 : bf16
    %8 = vector.broadcast %cst_12 : bf16 to vector<1x10x4xbf16>
    %c0_13 = arith.constant 0 : index
    %c0_14 = arith.constant 0 : index
    %c0_15 = arith.constant 0 : index
    %9 = vector.load %arg10[%c0_13, %c0_14, %c0_15] : memref<18x10x4xbf16, #tpu.memory_space<vmem>>, vector<1x10x4xbf16>
    tpu.vector_store %arg10[%c0_13, %c0_14, %c0_15], %8 {strides = array<i32>} : memref<18x10x4xbf16, #tpu.memory_space<vmem>>, vector<1x10x4xbf16>,
    %cst_16 = arith.constant 0.000000e+00 : bf16
    %10 = vector.broadcast %cst_16 : bf16 to vector<1x10x4xbf16>
    %c17_17 = arith.constant 17 : index
    %c0_18 = arith.constant 0 : index
    %c0_19 = arith.constant 0 : index
    %11 = vector.load %arg10[%c17_17, %c0_18, %c0_19] : memref<18x10x4xbf16, #tpu.memory_space<vmem>>, vector<1x10x4xbf16>
    tpu.vector_store %arg10[%c17_17, %c0_18, %c0_19], %10 {strides = array<i32>} : memref<18x10x4xbf16, #tpu.memory_space<vmem>>, vector<1x10x4xbf16>,
    %cst_20 = arith.constant 0.000000e+00 : bf16
    %12 = vector.broadcast %cst_20 : bf16 to vector<18x1x4xbf16>
    %c0_21 = arith.constant 0 : index
    %c0_22 = arith.constant 0 : index
    %c0_23 = arith.constant 0 : index
    %13 = vector.load %arg10[%c0_21, %c0_22, %c0_23] : memref<18x10x4xbf16, #tpu.memory_space<vmem>>, vector<18x1x4xbf16>
    tpu.vector_store %arg10[%c0_21, %c0_22, %c0_23], %12 {strides = array<i32>} : memref<18x10x4xbf16, #tpu.memory_space<vmem>>, vector<18x1x4xbf16>,
    %cst_24 = arith.constant 0.000000e+00 : bf16
    %14 = vector.broadcast %cst_24 : bf16 to vector<18x1x4xbf16>
    %c0_25 = arith.constant 0 : index
    %c9_26 = arith.constant 9 : index
    %c0_27 = arith.constant 0 : index
    %15 = vector.load %arg10[%c0_25, %c9_26, %c0_27] : memref<18x10x4xbf16, #tpu.memory_space<vmem>>, vector<18x1x4xbf16>
    tpu.vector_store %arg10[%c0_25, %c9_26, %c0_27], %14 {strides = array<i32>} : memref<18x10x4xbf16, #tpu.memory_space<vmem>>, vector<18x1x4xbf16>,
    %cst_28 = arith.constant 0.000000e+00 : bf16
    %16 = vector.broadcast %cst_28 : bf16 to vector<2x10x4xbf16>
    %c0_29 = arith.constant 0 : index
    %c0_30 = arith.constant 0 : index
    %c0_31 = arith.constant 0 : index
    %17 = vector.load %arg11[%c0_29, %c0_30, %c0_31] : memref<20x10x4xbf16, #tpu.memory_space<vmem>>, vector<2x10x4xbf16>
    tpu.vector_store %arg11[%c0_29, %c0_30, %c0_31], %16 {strides = array<i32>} : memref<20x10x4xbf16, #tpu.memory_space<vmem>>, vector<2x10x4xbf16>,
    %cst_32 = arith.constant 0.000000e+00 : bf16
    %18 = vector.broadcast %cst_32 : bf16 to vector<2x10x4xbf16>
    %c18 = arith.constant 18 : index
    %c0_33 = arith.constant 0 : index
    %c0_34 = arith.constant 0 : index
    %19 = vector.load %arg11[%c18, %c0_33, %c0_34] : memref<20x10x4xbf16, #tpu.memory_space<vmem>>, vector<2x10x4xbf16>
    tpu.vector_store %arg11[%c18, %c0_33, %c0_34], %18 {strides = array<i32>} : memref<20x10x4xbf16, #tpu.memory_space<vmem>>, vector<2x10x4xbf16>,
    %cst_35 = arith.constant 0.000000e+00 : bf16
    %20 = vector.broadcast %cst_35 : bf16 to vector<20x1x4xbf16>
    %c0_36 = arith.constant 0 : index
    %c0_37 = arith.constant 0 : index
    %c0_38 = arith.constant 0 : index
    %21 = vector.load %arg11[%c0_36, %c0_37, %c0_38] : memref<20x10x4xbf16, #tpu.memory_space<vmem>>, vector<20x1x4xbf16>
    tpu.vector_store %arg11[%c0_36, %c0_37, %c0_38], %20 {strides = array<i32>} : memref<20x10x4xbf16, #tpu.memory_space<vmem>>, vector<20x1x4xbf16>,
    %cst_39 = arith.constant 0.000000e+00 : bf16
    %22 = vector.broadcast %cst_39 : bf16 to vector<20x1x4xbf16>
    %c0_40 = arith.constant 0 : index
    %c9_41 = arith.constant 9 : index
    %c0_42 = arith.constant 0 : index
    %23 = vector.load %arg11[%c0_40, %c9_41, %c0_42] : memref<20x10x4xbf16, #tpu.memory_space<vmem>>, vector<20x1x4xbf16>
    tpu.vector_store %arg11[%c0_40, %c9_41, %c0_42], %22 {strides = array<i32>} : memref<20x10x4xbf16, #tpu.memory_space<vmem>>, vector<20x1x4xbf16>,
    %cst_43 = arith.constant 0.000000e+00 : bf16
    %24 = vector.broadcast %cst_43 : bf16 to vector<2x10x4xbf16>
    %c0_44 = arith.constant 0 : index
    %c0_45 = arith.constant 0 : index
    %c0_46 = arith.constant 0 : index
    %25 = vector.load %arg12[%c0_44, %c0_45, %c0_46] : memref<20x10x4xbf16, #tpu.memory_space<vmem>>, vector<2x10x4xbf16>
    tpu.vector_store %arg12[%c0_44, %c0_45, %c0_46], %24 {strides = array<i32>} : memref<20x10x4xbf16, #tpu.memory_space<vmem>>, vector<2x10x4xbf16>,
    %cst_47 = arith.constant 0.000000e+00 : bf16
    %26 = vector.broadcast %cst_47 : bf16 to vector<2x10x4xbf16>
    %c18_48 = arith.constant 18 : index
    %c0_49 = arith.constant 0 : index
    %c0_50 = arith.constant 0 : index
    %27 = vector.load %arg12[%c18_48, %c0_49, %c0_50] : memref<20x10x4xbf16, #tpu.memory_space<vmem>>, vector<2x10x4xbf16>
    tpu.vector_store %arg12[%c18_48, %c0_49, %c0_50], %26 {strides = array<i32>} : memref<20x10x4xbf16, #tpu.memory_space<vmem>>, vector<2x10x4xbf16>,
    %cst_51 = arith.constant 0.000000e+00 : bf16
    %28 = vector.broadcast %cst_51 : bf16 to vector<20x1x4xbf16>
    %c0_52 = arith.constant 0 : index
    %c0_53 = arith.constant 0 : index
    %c0_54 = arith.constant 0 : index
    %29 = vector.load %arg12[%c0_52, %c0_53, %c0_54] : memref<20x10x4xbf16, #tpu.memory_space<vmem>>, vector<20x1x4xbf16>
    tpu.vector_store %arg12[%c0_52, %c0_53, %c0_54], %28 {strides = array<i32>} : memref<20x10x4xbf16, #tpu.memory_space<vmem>>, vector<20x1x4xbf16>,
    %cst_55 = arith.constant 0.000000e+00 : bf16
    %30 = vector.broadcast %cst_55 : bf16 to vector<20x1x4xbf16>
    %c0_56 = arith.constant 0 : index
    %c9_57 = arith.constant 9 : index
    %c0_58 = arith.constant 0 : index
    %31 = vector.load %arg12[%c0_56, %c9_57, %c0_58] : memref<20x10x4xbf16, #tpu.memory_space<vmem>>, vector<20x1x4xbf16>
    tpu.vector_store %arg12[%c0_56, %c9_57, %c0_58], %30 {strides = array<i32>} : memref<20x10x4xbf16, #tpu.memory_space<vmem>>, vector<20x1x4xbf16>,
    %c0_59 = arith.constant 0 : index
    %c0_60 = arith.constant 0 : index
    %c0_61 = arith.constant 0 : index
    %c0_62 = arith.constant 0 : index
    %32 = vector.load %arg1[%c0_59, %c0_60, %c0_61, %c0_62] : memref<1x16x8x4xbf16, #tpu.memory_space<vmem>>, vector<1x16x8x4xbf16>
    %33 = vector.shape_cast %32 : vector<1x16x8x4xbf16> to vector<16x8x4xbf16>
    %c1 = arith.constant 1 : index
    %c1_63 = arith.constant 1 : index
    %c0_64 = arith.constant 0 : index
    %34 = vector.load %arg9[%c1, %c1_63, %c0_64] : memref<18x10x4xbf16, #tpu.memory_space<vmem>>, vector<16x8x4xbf16>
    tpu.vector_store %arg9[%c1, %c1_63, %c0_64], %33 {strides = array<i32>} : memref<18x10x4xbf16, #tpu.memory_space<vmem>>, vector<16x8x4xbf16>,
    %c0_65 = arith.constant 0 : index
    %c0_66 = arith.constant 0 : index
    %c0_67 = arith.constant 0 : index
    %c0_68 = arith.constant 0 : index
    %35 = vector.load %arg2[%c0_65, %c0_66, %c0_67, %c0_68] : memref<1x16x8x4xbf16, #tpu.memory_space<vmem>>, vector<1x16x8x4xbf16>
    %36 = vector.shape_cast %35 : vector<1x16x8x4xbf16> to vector<16x8x4xbf16>
    %c1_69 = arith.constant 1 : index
    %c1_70 = arith.constant 1 : index
    %c0_71 = arith.constant 0 : index
    %37 = vector.load %arg10[%c1_69, %c1_70, %c0_71] : memref<18x10x4xbf16, #tpu.memory_space<vmem>>, vector<16x8x4xbf16>
    tpu.vector_store %arg10[%c1_69, %c1_70, %c0_71], %36 {strides = array<i32>} : memref<18x10x4xbf16, #tpu.memory_space<vmem>>, vector<16x8x4xbf16>,
    %c0_72 = arith.constant 0 : index
    %c0_73 = arith.constant 0 : index
    %c0_74 = arith.constant 0 : index
    %38 = vector.load %arg9[%c0_72, %c0_73, %c0_74] : memref<18x10x4xbf16, #tpu.memory_space<vmem>>, vector<18x10x4xbf16>
    %c0_75 = arith.constant 0 : index
    %c0_76 = arith.constant 0 : index
    %c0_77 = arith.constant 0 : index
    %39 = vector.load %arg10[%c0_75, %c0_76, %c0_77] : memref<18x10x4xbf16, #tpu.memory_space<vmem>>, vector<18x10x4xbf16>
    %cst_78 = arith.constant 0.000000e+00 : f32
    %40 = vector.broadcast %cst_78 : f32 to vector<256x4xf32>
    %41 = vector.extract_strided_slice %39 {offsets = [0, 0, 0], sizes = [16, 8, 4], strides = [1, 1, 1]} : vector<18x10x4xbf16> to vector<16x8x4xbf16>
    %42 = vector.extract_strided_slice %38 {offsets = [0, 1, 0], sizes = [16, 8, 4], strides = [1, 1, 1]} : vector<18x10x4xbf16> to vector<16x8x4xbf16>
    %43 = vector.extract_strided_slice %39 {offsets = [0, 1, 0], sizes = [16, 8, 4], strides = [1, 1, 1]} : vector<18x10x4xbf16> to vector<16x8x4xbf16>
    %44 = vector.extract_strided_slice %38 {offsets = [0, 2, 0], sizes = [16, 8, 4], strides = [1, 1, 1]} : vector<18x10x4xbf16> to vector<16x8x4xbf16>
    %45 = vector.shape_cast %41 : vector<16x8x4xbf16> to vector<128x4xbf16>
    %46 = vector.shape_cast %42 : vector<16x8x4xbf16> to vector<128x4xbf16>
    %47 = vector.shape_cast %43 : vector<16x8x4xbf16> to vector<128x4xbf16>
    %48 = tpu.concatenate %45, %46, %47 in 1 : vector<128x4xbf16>, vector<128x4xbf16>, vector<128x4xbf16> -> vector<128x12xbf16>
    %49 = vector.shape_cast %42 : vector<16x8x4xbf16> to vector<128x4xbf16>
    %50 = vector.shape_cast %43 : vector<16x8x4xbf16> to vector<128x4xbf16>
    %51 = vector.shape_cast %44 : vector<16x8x4xbf16> to vector<128x4xbf16>
    %52 = tpu.concatenate %49, %50, %51 in 1 : vector<128x4xbf16>, vector<128x4xbf16>, vector<128x4xbf16> -> vector<128x12xbf16>
    %53 = tpu.concatenate %48, %52 in 0 : vector<128x12xbf16>, vector<128x12xbf16> -> vector<256x12xbf16>
    %c0_79 = arith.constant 0 : index
    %c0_80 = arith.constant 0 : index
    %c0_81 = arith.constant 0 : index
    %54 = vector.load %arg3[%c0_79, %c0_80, %c0_81] : memref<3x12x4xbf16, #tpu.memory_space<vmem>>, vector<1x12x4xbf16>
    %55 = vector.shape_cast %54 : vector<1x12x4xbf16> to vector<12x4xbf16>
    %cst_82 = arith.constant dense<0.000000e+00> : vector<256x4xf32>
    %56 = tpu.matmul %53, %55, %cst_82 {dimension_numbers = #tpu.dot_dimension_numbers<[1], [0], [0], [1], [0, 0, 1, 1], [], []>} : vector<256x12xbf16>, vector<12x4xbf16>, vector<256x4xf32> -> vector<256x4xf32>
    %57 = arith.addf %40, %56 : vector<256x4xf32>
    %58 = vector.extract_strided_slice %39 {offsets = [1, 0, 0], sizes = [16, 8, 4], strides = [1, 1, 1]} : vector<18x10x4xbf16> to vector<16x8x4xbf16>
    %59 = vector.extract_strided_slice %38 {offsets = [1, 1, 0], sizes = [16, 8, 4], strides = [1, 1, 1]} : vector<18x10x4xbf16> to vector<16x8x4xbf16>
    %60 = vector.extract_strided_slice %39 {offsets = [1, 1, 0], sizes = [16, 8, 4], strides = [1, 1, 1]} : vector<18x10x4xbf16> to vector<16x8x4xbf16>
    %61 = vector.extract_strided_slice %38 {offsets = [1, 2, 0], sizes = [16, 8, 4], strides = [1, 1, 1]} : vector<18x10x4xbf16> to vector<16x8x4xbf16>
    %62 = vector.shape_cast %58 : vector<16x8x4xbf16> to vector<128x4xbf16>
    %63 = vector.shape_cast %59 : vector<16x8x4xbf16> to vector<128x4xbf16>
    %64 = vector.shape_cast %60 : vector<16x8x4xbf16> to vector<128x4xbf16>
    %65 = tpu.concatenate %62, %63, %64 in 1 : vector<128x4xbf16>, vector<128x4xbf16>, vector<128x4xbf16> -> vector<128x12xbf16>
    %66 = vector.shape_cast %59 : vector<16x8x4xbf16> to vector<128x4xbf16>
    %67 = vector.shape_cast %60 : vector<16x8x4xbf16> to vector<128x4xbf16>
    %68 = vector.shape_cast %61 : vector<16x8x4xbf16> to vector<128x4xbf16>
    %69 = tpu.concatenate %66, %67, %68 in 1 : vector<128x4xbf16>, vector<128x4xbf16>, vector<128x4xbf16> -> vector<128x12xbf16>
    %70 = tpu.concatenate %65, %69 in 0 : vector<128x12xbf16>, vector<128x12xbf16> -> vector<256x12xbf16>
    %c1_83 = arith.constant 1 : index
    %c0_84 = arith.constant 0 : index
    %c0_85 = arith.constant 0 : index
    %71 = vector.load %arg3[%c1_83, %c0_84, %c0_85] : memref<3x12x4xbf16, #tpu.memory_space<vmem>>, vector<1x12x4xbf16>
    %72 = vector.shape_cast %71 : vector<1x12x4xbf16> to vector<12x4xbf16>
    %cst_86 = arith.constant dense<0.000000e+00> : vector<256x4xf32>
    %73 = tpu.matmul %70, %72, %cst_86 {dimension_numbers = #tpu.dot_dimension_numbers<[1], [0], [0], [1], [0, 0, 1, 1], [], []>} : vector<256x12xbf16>, vector<12x4xbf16>, vector<256x4xf32> -> vector<256x4xf32>
    %74 = arith.addf %57, %73 : vector<256x4xf32>
    %75 = vector.extract_strided_slice %39 {offsets = [2, 0, 0], sizes = [16, 8, 4], strides = [1, 1, 1]} : vector<18x10x4xbf16> to vector<16x8x4xbf16>
    %76 = vector.extract_strided_slice %38 {offsets = [2, 1, 0], sizes = [16, 8, 4], strides = [1, 1, 1]} : vector<18x10x4xbf16> to vector<16x8x4xbf16>
    %77 = vector.extract_strided_slice %39 {offsets = [2, 1, 0], sizes = [16, 8, 4], strides = [1, 1, 1]} : vector<18x10x4xbf16> to vector<16x8x4xbf16>
    %78 = vector.extract_strided_slice %38 {offsets = [2, 2, 0], sizes = [16, 8, 4], strides = [1, 1, 1]} : vector<18x10x4xbf16> to vector<16x8x4xbf16>
    %79 = vector.shape_cast %75 : vector<16x8x4xbf16> to vector<128x4xbf16>
    %80 = vector.shape_cast %76 : vector<16x8x4xbf16> to vector<128x4xbf16>
    %81 = vector.shape_cast %77 : vector<16x8x4xbf16> to vector<128x4xbf16>
    %82 = tpu.concatenate %79, %80, %81 in 1 : vector<128x4xbf16>, vector<128x4xbf16>, vector<128x4xbf16> -> vector<128x12xbf16>
    %83 = vector.shape_cast %76 : vector<16x8x4xbf16> to vector<128x4xbf16>
    %84 = vector.shape_cast %77 : vector<16x8x4xbf16> to vector<128x4xbf16>
    %85 = vector.shape_cast %78 : vector<16x8x4xbf16> to vector<128x4xbf16>
    %86 = tpu.concatenate %83, %84, %85 in 1 : vector<128x4xbf16>, vector<128x4xbf16>, vector<128x4xbf16> -> vector<128x12xbf16>
    %87 = tpu.concatenate %82, %86 in 0 : vector<128x12xbf16>, vector<128x12xbf16> -> vector<256x12xbf16>
    %c2 = arith.constant 2 : index
    %c0_87 = arith.constant 0 : index
    %c0_88 = arith.constant 0 : index
    %88 = vector.load %arg3[%c2, %c0_87, %c0_88] : memref<3x12x4xbf16, #tpu.memory_space<vmem>>, vector<1x12x4xbf16>
    %89 = vector.shape_cast %88 : vector<1x12x4xbf16> to vector<12x4xbf16>
    %cst_89 = arith.constant dense<0.000000e+00> : vector<256x4xf32>
    %90 = tpu.matmul %87, %89, %cst_89 {dimension_numbers = #tpu.dot_dimension_numbers<[1], [0], [0], [1], [0, 0, 1, 1], [], []>} : vector<256x12xbf16>, vector<12x4xbf16>, vector<256x4xf32> -> vector<256x4xf32>
    %91 = arith.addf %74, %90 : vector<256x4xf32>
    %c0_90 = arith.constant 0 : index
    %c0_91 = arith.constant 0 : index
    %92 = vector.load %arg4[%c0_90, %c0_91] : memref<1x4xf32, #tpu.memory_space<vmem>>, vector<1x4xf32>
    %93 = vector.broadcast %92 : vector<1x4xf32> to vector<256x4xf32>
    %94 = arith.addf %91, %93 : vector<256x4xf32>
    %cst_92 = arith.constant 0.000000e+00 : f32
    %95 = vector.broadcast %cst_92 : f32 to vector<256x4xf32>
    %96 = arith.cmpf oge, %94, %95 : vector<256x4xf32>
    %cst_93 = arith.constant 2.000000e-01 : f32
    %97 = vector.broadcast %cst_93 : f32 to vector<256x4xf32>
    %98 = arith.mulf %97, %94 : vector<256x4xf32>
    %99 = arith.select %96, %94, %98 : vector<256x4xi1>, vector<256x4xf32>
    %cst_94 = arith.constant 1.41421354 : f32
    %100 = vector.broadcast %cst_94 : f32 to vector<256x4xf32>
    %101 = arith.mulf %99, %100 : vector<256x4xf32>
    %102 = vector.extract_strided_slice %101 {offsets = [0, 0], sizes = [128, 4], strides = [1, 1]} : vector<256x4xf32> to vector<128x4xf32>
    %103 = vector.shape_cast %102 : vector<128x4xf32> to vector<16x8x4xf32>
    %104 = arith.truncf %103 : vector<16x8x4xf32> to vector<16x8x4xbf16>
    %105 = vector.extract_strided_slice %101 {offsets = [128, 0], sizes = [128, 4], strides = [1, 1]} : vector<256x4xf32> to vector<128x4xf32>
    %106 = vector.shape_cast %105 : vector<128x4xf32> to vector<16x8x4xf32>
    %107 = arith.truncf %106 : vector<16x8x4xf32> to vector<16x8x4xbf16>
    %c2_95 = arith.constant 2 : index
    %c1_96 = arith.constant 1 : index
    %c0_97 = arith.constant 0 : index
    %108 = vector.load %arg11[%c2_95, %c1_96, %c0_97] : memref<20x10x4xbf16, #tpu.memory_space<vmem>>, vector<16x8x4xbf16>
    tpu.vector_store %arg11[%c2_95, %c1_96, %c0_97], %104 {strides = array<i32>} : memref<20x10x4xbf16, #tpu.memory_space<vmem>>, vector<16x8x4xbf16>,
    %c2_98 = arith.constant 2 : index
    %c1_99 = arith.constant 1 : index
    %c0_100 = arith.constant 0 : index
    %109 = vector.load %arg12[%c2_98, %c1_99, %c0_100] : memref<20x10x4xbf16, #tpu.memory_space<vmem>>, vector<16x8x4xbf16>
    tpu.vector_store %arg12[%c2_98, %c1_99, %c0_100], %107 {strides = array<i32>} : memref<20x10x4xbf16, #tpu.memory_space<vmem>>, vector<16x8x4xbf16>,
    %c0_101 = arith.constant 0 : index
    %c0_102 = arith.constant 0 : index
    %c0_103 = arith.constant 0 : index
    %110 = vector.load %arg11[%c0_101, %c0_102, %c0_103] : memref<20x10x4xbf16, #tpu.memory_space<vmem>>, vector<20x10x4xbf16>
    %111 = arith.extf %110 : vector<20x10x4xbf16> to vector<20x10x4xf32>
    %c0_104 = arith.constant 0 : index
    %c0_105 = arith.constant 0 : index
    %c0_106 = arith.constant 0 : index
    %112 = vector.load %arg12[%c0_104, %c0_105, %c0_106] : memref<20x10x4xbf16, #tpu.memory_space<vmem>>, vector<20x10x4xbf16>
    %113 = arith.extf %112 : vector<20x10x4xbf16> to vector<20x10x4xf32>
    %114 = vector.extract_strided_slice %111 {offsets = [0, 0, 0], sizes = [20, 9, 4], strides = [1, 1, 1]} : vector<20x10x4xf32> to vector<20x9x4xf32>
    %cst_107 = arith.constant 1.250000e-01 : f32
    %115 = vector.broadcast %cst_107 : f32 to vector<20x9x4xf32>
    %116 = arith.mulf %115, %114 : vector<20x9x4xf32>
    %117 = vector.extract_strided_slice %113 {offsets = [0, 0, 0], sizes = [20, 9, 4], strides = [1, 1, 1]} : vector<20x10x4xf32> to vector<20x9x4xf32>
    %cst_108 = arith.constant 3.750000e-01 : f32
    %118 = vector.broadcast %cst_108 : f32 to vector<20x9x4xf32>
    %119 = arith.mulf %118, %117 : vector<20x9x4xf32>
    %120 = arith.addf %116, %119 : vector<20x9x4xf32>
    %121 = vector.extract_strided_slice %111 {offsets = [0, 1, 0], sizes = [20, 9, 4], strides = [1, 1, 1]} : vector<20x10x4xf32> to vector<20x9x4xf32>
    %cst_109 = arith.constant 3.750000e-01 : f32
    %122 = vector.broadcast %cst_109 : f32 to vector<20x9x4xf32>
    %123 = arith.mulf %122, %121 : vector<20x9x4xf32>
    %124 = arith.addf %120, %123 : vector<20x9x4xf32>
    %125 = vector.extract_strided_slice %113 {offsets = [0, 1, 0], sizes = [20, 9, 4], strides = [1, 1, 1]} : vector<20x10x4xf32> to vector<20x9x4xf32>
    %cst_110 = arith.constant 1.250000e-01 : f32
    %126 = vector.broadcast %cst_110 : f32 to vector<20x9x4xf32>
    %127 = arith.mulf %126, %125 : vector<20x9x4xf32>
    %128 = arith.addf %124, %127 : vector<20x9x4xf32>
    %129 = vector.extract_strided_slice %113 {offsets = [0, 0, 0], sizes = [20, 8, 4], strides = [1, 1, 1]} : vector<20x10x4xf32> to vector<20x8x4xf32>
    %cst_111 = arith.constant 1.250000e-01 : f32
    %130 = vector.broadcast %cst_111 : f32 to vector<20x8x4xf32>
    %131 = arith.mulf %130, %129 : vector<20x8x4xf32>
    %132 = vector.extract_strided_slice %111 {offsets = [0, 1, 0], sizes = [20, 8, 4], strides = [1, 1, 1]} : vector<20x10x4xf32> to vector<20x8x4xf32>
    %cst_112 = arith.constant 3.750000e-01 : f32
    %133 = vector.broadcast %cst_112 : f32 to vector<20x8x4xf32>
    %134 = arith.mulf %133, %132 : vector<20x8x4xf32>
    %135 = arith.addf %131, %134 : vector<20x8x4xf32>
    %136 = vector.extract_strided_slice %113 {offsets = [0, 1, 0], sizes = [20, 8, 4], strides = [1, 1, 1]} : vector<20x10x4xf32> to vector<20x8x4xf32>
    %cst_113 = arith.constant 3.750000e-01 : f32
    %137 = vector.broadcast %cst_113 : f32 to vector<20x8x4xf32>
    %138 = arith.mulf %137, %136 : vector<20x8x4xf32>
    %139 = arith.addf %135, %138 : vector<20x8x4xf32>
    %140 = vector.extract_strided_slice %111 {offsets = [0, 2, 0], sizes = [20, 8, 4], strides = [1, 1, 1]} : vector<20x10x4xf32> to vector<20x8x4xf32>
    %cst_114 = arith.constant 1.250000e-01 : f32
    %141 = vector.broadcast %cst_114 : f32 to vector<20x8x4xf32>
    %142 = arith.mulf %141, %140 : vector<20x8x4xf32>
    %143 = arith.addf %139, %142 : vector<20x8x4xf32>
    %144 = vector.shape_cast %128 : vector<20x9x4xf32> to vector<10x2x9x4xf32>
    %145 = vector.shape_cast %143 : vector<20x8x4xf32> to vector<10x2x8x4xf32>
    %146 = vector.extract_strided_slice %144 {offsets = [0, 0, 0, 0], sizes = [10, 1, 9, 4], strides = [1, 1, 1, 1]} : vector<10x2x9x4xf32> to vector<10x1x9x4xf32>
    %147 = vector.shape_cast %146 : vector<10x1x9x4xf32> to vector<10x9x4xf32>
    %148 = vector.extract_strided_slice %144 {offsets = [0, 1, 0, 0], sizes = [10, 1, 9, 4], strides = [1, 1, 1, 1]} : vector<10x2x9x4xf32> to vector<10x1x9x4xf32>
    %149 = vector.shape_cast %148 : vector<10x1x9x4xf32> to vector<10x9x4xf32>
    %150 = vector.extract_strided_slice %145 {offsets = [0, 0, 0, 0], sizes = [10, 1, 8, 4], strides = [1, 1, 1, 1]} : vector<10x2x8x4xf32> to vector<10x1x8x4xf32>
    %151 = vector.shape_cast %150 : vector<10x1x8x4xf32> to vector<10x8x4xf32>
    %152 = vector.extract_strided_slice %145 {offsets = [0, 1, 0, 0], sizes = [10, 1, 8, 4], strides = [1, 1, 1, 1]} : vector<10x2x8x4xf32> to vector<10x1x8x4xf32>
    %153 = vector.shape_cast %152 : vector<10x1x8x4xf32> to vector<10x8x4xf32>
    %154 = vector.extract_strided_slice %147 {offsets = [0, 0, 0], sizes = [9, 9, 4], strides = [1, 1, 1]} : vector<10x9x4xf32> to vector<9x9x4xf32>
    %cst_115 = arith.constant 1.250000e-01 : f32
    %155 = vector.broadcast %cst_115 : f32 to vector<9x9x4xf32>
    %156 = arith.mulf %155, %154 : vector<9x9x4xf32>
    %157 = vector.extract_strided_slice %149 {offsets = [0, 0, 0], sizes = [9, 9, 4], strides = [1, 1, 1]} : vector<10x9x4xf32> to vector<9x9x4xf32>
    %cst_116 = arith.constant 3.750000e-01 : f32
    %158 = vector.broadcast %cst_116 : f32 to vector<9x9x4xf32>
    %159 = arith.mulf %158, %157 : vector<9x9x4xf32>
    %160 = arith.addf %156, %159 : vector<9x9x4xf32>
    %161 = vector.extract_strided_slice %147 {offsets = [1, 0, 0], sizes = [9, 9, 4], strides = [1, 1, 1]} : vector<10x9x4xf32> to vector<9x9x4xf32>
    %cst_117 = arith.constant 3.750000e-01 : f32
    %162 = vector.broadcast %cst_117 : f32 to vector<9x9x4xf32>
    %163 = arith.mulf %162, %161 : vector<9x9x4xf32>
    %164 = arith.addf %160, %163 : vector<9x9x4xf32>
    %165 = vector.extract_strided_slice %149 {offsets = [1, 0, 0], sizes = [9, 9, 4], strides = [1, 1, 1]} : vector<10x9x4xf32> to vector<9x9x4xf32>
    %cst_118 = arith.constant 1.250000e-01 : f32
    %166 = vector.broadcast %cst_118 : f32 to vector<9x9x4xf32>
    %167 = arith.mulf %166, %165 : vector<9x9x4xf32>
    %168 = arith.addf %164, %167 : vector<9x9x4xf32>
    %169 = arith.truncf %168 : vector<9x9x4xf32> to vector<9x9x4xbf16>
    %170 = vector.extract_strided_slice %149 {offsets = [0, 0, 0], sizes = [8, 9, 4], strides = [1, 1, 1]} : vector<10x9x4xf32> to vector<8x9x4xf32>
    %cst_119 = arith.constant 1.250000e-01 : f32
    %171 = vector.broadcast %cst_119 : f32 to vector<8x9x4xf32>
    %172 = arith.mulf %171, %170 : vector<8x9x4xf32>
    %173 = vector.extract_strided_slice %147 {offsets = [1, 0, 0], sizes = [8, 9, 4], strides = [1, 1, 1]} : vector<10x9x4xf32> to vector<8x9x4xf32>
    %cst_120 = arith.constant 3.750000e-01 : f32
    %174 = vector.broadcast %cst_120 : f32 to vector<8x9x4xf32>
    %175 = arith.mulf %174, %173 : vector<8x9x4xf32>
    %176 = arith.addf %172, %175 : vector<8x9x4xf32>
    %177 = vector.extract_strided_slice %149 {offsets = [1, 0, 0], sizes = [8, 9, 4], strides = [1, 1, 1]} : vector<10x9x4xf32> to vector<8x9x4xf32>
    %cst_121 = arith.constant 3.750000e-01 : f32
    %178 = vector.broadcast %cst_121 : f32 to vector<8x9x4xf32>
    %179 = arith.mulf %178, %177 : vector<8x9x4xf32>
    %180 = arith.addf %176, %179 : vector<8x9x4xf32>
    %181 = vector.extract_strided_slice %147 {offsets = [2, 0, 0], sizes = [8, 9, 4], strides = [1, 1, 1]} : vector<10x9x4xf32> to vector<8x9x4xf32>
    %cst_122 = arith.constant 1.250000e-01 : f32
    %182 = vector.broadcast %cst_122 : f32 to vector<8x9x4xf32>
    %183 = arith.mulf %182, %181 : vector<8x9x4xf32>
    %184 = arith.addf %180, %183 : vector<8x9x4xf32>
    %185 = arith.truncf %184 : vector<8x9x4xf32> to vector<8x9x4xbf16>
    %186 = vector.extract_strided_slice %151 {offsets = [0, 0, 0], sizes = [9, 8, 4], strides = [1, 1, 1]} : vector<10x8x4xf32> to vector<9x8x4xf32>
    %cst_123 = arith.constant 1.250000e-01 : f32
    %187 = vector.broadcast %cst_123 : f32 to vector<9x8x4xf32>
    %188 = arith.mulf %187, %186 : vector<9x8x4xf32>
    %189 = vector.extract_strided_slice %153 {offsets = [0, 0, 0], sizes = [9, 8, 4], strides = [1, 1, 1]} : vector<10x8x4xf32> to vector<9x8x4xf32>
    %cst_124 = arith.constant 3.750000e-01 : f32
    %190 = vector.broadcast %cst_124 : f32 to vector<9x8x4xf32>
    %191 = arith.mulf %190, %189 : vector<9x8x4xf32>
    %192 = arith.addf %188, %191 : vector<9x8x4xf32>
    %193 = vector.extract_strided_slice %151 {offsets = [1, 0, 0], sizes = [9, 8, 4], strides = [1, 1, 1]} : vector<10x8x4xf32> to vector<9x8x4xf32>
    %cst_125 = arith.constant 3.750000e-01 : f32
    %194 = vector.broadcast %cst_125 : f32 to vector<9x8x4xf32>
    %195 = arith.mulf %194, %193 : vector<9x8x4xf32>
    %196 = arith.addf %192, %195 : vector<9x8x4xf32>
    %197 = vector.extract_strided_slice %153 {offsets = [1, 0, 0], sizes = [9, 8, 4], strides = [1, 1, 1]} : vector<10x8x4xf32> to vector<9x8x4xf32>
    %cst_126 = arith.constant 1.250000e-01 : f32
    %198 = vector.broadcast %cst_126 : f32 to vector<9x8x4xf32>
    %199 = arith.mulf %198, %197 : vector<9x8x4xf32>
    %200 = arith.addf %196, %199 : vector<9x8x4xf32>
    %201 = arith.truncf %200 : vector<9x8x4xf32> to vector<9x8x4xbf16>
    %202 = vector.extract_strided_slice %153 {offsets = [0, 0, 0], sizes = [8, 8, 4], strides = [1, 1, 1]} : vector<10x8x4xf32> to vector<8x8x4xf32>
    %cst_127 = arith.constant 1.250000e-01 : f32
    %203 = vector.broadcast %cst_127 : f32 to vector<8x8x4xf32>
    %204 = arith.mulf %203, %202 : vector<8x8x4xf32>
    %205 = vector.extract_strided_slice %151 {offsets = [1, 0, 0], sizes = [8, 8, 4], strides = [1, 1, 1]} : vector<10x8x4xf32> to vector<8x8x4xf32>
    %cst_128 = arith.constant 3.750000e-01 : f32
    %206 = vector.broadcast %cst_128 : f32 to vector<8x8x4xf32>
    %207 = arith.mulf %206, %205 : vector<8x8x4xf32>
    %208 = arith.addf %204, %207 : vector<8x8x4xf32>
    %209 = vector.extract_strided_slice %153 {offsets = [1, 0, 0], sizes = [8, 8, 4], strides = [1, 1, 1]} : vector<10x8x4xf32> to vector<8x8x4xf32>
    %cst_129 = arith.constant 3.750000e-01 : f32
    %210 = vector.broadcast %cst_129 : f32 to vector<8x8x4xf32>
    %211 = arith.mulf %210, %209 : vector<8x8x4xf32>
    %212 = arith.addf %208, %211 : vector<8x8x4xf32>
    %213 = vector.extract_strided_slice %151 {offsets = [2, 0, 0], sizes = [8, 8, 4], strides = [1, 1, 1]} : vector<10x8x4xf32> to vector<8x8x4xf32>
    %cst_130 = arith.constant 1.250000e-01 : f32
    %214 = vector.broadcast %cst_130 : f32 to vector<8x8x4xf32>
    %215 = arith.mulf %214, %213 : vector<8x8x4xf32>
    %216 = arith.addf %212, %215 : vector<8x8x4xf32>
    %217 = arith.truncf %216 : vector<8x8x4xf32> to vector<8x8x4xbf16>
    %218 = vector.extract_strided_slice %169 {offsets = [0, 0, 0], sizes = [8, 8, 4], strides = [1, 1, 1]} : vector<9x9x4xbf16> to vector<8x8x4xbf16>
    %219 = vector.extract_strided_slice %201 {offsets = [0, 0, 0], sizes = [8, 8, 4], strides = [1, 1, 1]} : vector<9x8x4xbf16> to vector<8x8x4xbf16>
    %220 = vector.extract_strided_slice %169 {offsets = [0, 1, 0], sizes = [8, 8, 4], strides = [1, 1, 1]} : vector<9x9x4xbf16> to vector<8x8x4xbf16>
    %221 = vector.extract_strided_slice %185 {offsets = [0, 0, 0], sizes = [8, 8, 4], strides = [1, 1, 1]} : vector<8x9x4xbf16> to vector<8x8x4xbf16>
    %222 = vector.extract_strided_slice %185 {offsets = [0, 1, 0], sizes = [8, 8, 4], strides = [1, 1, 1]} : vector<8x9x4xbf16> to vector<8x8x4xbf16>
    %223 = vector.extract_strided_slice %169 {offsets = [1, 0, 0], sizes = [8, 8, 4], strides = [1, 1, 1]} : vector<9x9x4xbf16> to vector<8x8x4xbf16>
    %224 = vector.extract_strided_slice %201 {offsets = [1, 0, 0], sizes = [8, 8, 4], strides = [1, 1, 1]} : vector<9x8x4xbf16> to vector<8x8x4xbf16>
    %225 = vector.extract_strided_slice %169 {offsets = [1, 1, 0], sizes = [8, 8, 4], strides = [1, 1, 1]} : vector<9x9x4xbf16> to vector<8x8x4xbf16>
    %226 = vector.shape_cast %218 : vector<8x8x4xbf16> to vector<64x4xbf16>
    %227 = vector.shape_cast %219 : vector<8x8x4xbf16> to vector<64x4xbf16>
    %228 = vector.shape_cast %220 : vector<8x8x4xbf16> to vector<64x4xbf16>
    %229 = vector.shape_cast %221 : vector<8x8x4xbf16> to vector<64x4xbf16>
    %230 = vector.shape_cast %217 : vector<8x8x4xbf16> to vector<64x4xbf16>
    %231 = vector.shape_cast %222 : vector<8x8x4xbf16> to vector<64x4xbf16>
    %232 = vector.shape_cast %223 : vector<8x8x4xbf16> to vector<64x4xbf16>
    %233 = vector.shape_cast %224 : vector<8x8x4xbf16> to vector<64x4xbf16>
    %234 = vector.shape_cast %225 : vector<8x8x4xbf16> to vector<64x4xbf16>
    %235 = tpu.concatenate %226, %227, %228, %229, %230, %231, %232, %233, %234 in 1 : vector<64x4xbf16>, vector<64x4xbf16>, vector<64x4xbf16>, vector<64x4xbf16>, vector<64x4xbf16>, vector<64x4xbf16>, vector<64x4xbf16>, vector<64x4xbf16>, vector<64x4xbf16> -> vector<64x36xbf16>
    %c0_131 = arith.constant 0 : index
    %c0_132 = arith.constant 0 : index
    %236 = vector.load %arg5[%c0_131, %c0_132] : memref<36x8xbf16, #tpu.memory_space<vmem>>, vector<36x8xbf16>
    %cst_133 = arith.constant dense<0.000000e+00> : vector<64x8xf32>
    %237 = tpu.matmul %235, %236, %cst_133 {dimension_numbers = #tpu.dot_dimension_numbers<[1], [0], [0], [1], [0, 0, 1, 1], [], []>} : vector<64x36xbf16>, vector<36x8xbf16>, vector<64x8xf32> -> vector<64x8xf32>
    %c0_134 = arith.constant 0 : index
    %c0_135 = arith.constant 0 : index
    %238 = vector.load %arg6[%c0_134, %c0_135] : memref<1x8xf32, #tpu.memory_space<vmem>>, vector<1x8xf32>
    %239 = vector.broadcast %238 : vector<1x8xf32> to vector<64x8xf32>
    %240 = arith.addf %237, %239 : vector<64x8xf32>
    %cst_136 = arith.constant 0.000000e+00 : f32
    %241 = vector.broadcast %cst_136 : f32 to vector<64x8xf32>
    %242 = arith.cmpf oge, %240, %241 : vector<64x8xf32>
    %cst_137 = arith.constant 2.000000e-01 : f32
    %243 = vector.broadcast %cst_137 : f32 to vector<64x8xf32>
    %244 = arith.mulf %243, %240 : vector<64x8xf32>
    %245 = arith.select %242, %240, %244 : vector<64x8xi1>, vector<64x8xf32>
    %cst_138 = arith.constant 1.41421354 : f32
    %246 = vector.broadcast %cst_138 : f32 to vector<64x8xf32>
    %247 = arith.mulf %245, %246 : vector<64x8xf32>
    %248 = arith.extf %38 : vector<18x10x4xbf16> to vector<18x10x4xf32>
    %249 = arith.extf %39 : vector<18x10x4xbf16> to vector<18x10x4xf32>
    %250 = vector.extract_strided_slice %249 {offsets = [0, 0, 0], sizes = [18, 8, 4], strides = [1, 1, 1]} : vector<18x10x4xf32> to vector<18x8x4xf32>
    %cst_139 = arith.constant 1.250000e-01 : f32
    %251 = vector.broadcast %cst_139 : f32 to vector<18x8x4xf32>
    %252 = arith.mulf %251, %250 : vector<18x8x4xf32>
    %253 = vector.extract_strided_slice %248 {offsets = [0, 1, 0], sizes = [18, 8, 4], strides = [1, 1, 1]} : vector<18x10x4xf32> to vector<18x8x4xf32>
    %cst_140 = arith.constant 3.750000e-01 : f32
    %254 = vector.broadcast %cst_140 : f32 to vector<18x8x4xf32>
    %255 = arith.mulf %254, %253 : vector<18x8x4xf32>
    %256 = arith.addf %252, %255 : vector<18x8x4xf32>
    %257 = vector.extract_strided_slice %249 {offsets = [0, 1, 0], sizes = [18, 8, 4], strides = [1, 1, 1]} : vector<18x10x4xf32> to vector<18x8x4xf32>
    %cst_141 = arith.constant 3.750000e-01 : f32
    %258 = vector.broadcast %cst_141 : f32 to vector<18x8x4xf32>
    %259 = arith.mulf %258, %257 : vector<18x8x4xf32>
    %260 = arith.addf %256, %259 : vector<18x8x4xf32>
    %261 = vector.extract_strided_slice %248 {offsets = [0, 2, 0], sizes = [18, 8, 4], strides = [1, 1, 1]} : vector<18x10x4xf32> to vector<18x8x4xf32>
    %cst_142 = arith.constant 1.250000e-01 : f32
    %262 = vector.broadcast %cst_142 : f32 to vector<18x8x4xf32>
    %263 = arith.mulf %262, %261 : vector<18x8x4xf32>
    %264 = arith.addf %260, %263 : vector<18x8x4xf32>
    %265 = vector.shape_cast %264 : vector<18x8x4xf32> to vector<9x2x8x4xf32>
    %266 = vector.extract_strided_slice %265 {offsets = [0, 0, 0, 0], sizes = [9, 1, 8, 4], strides = [1, 1, 1, 1]} : vector<9x2x8x4xf32> to vector<9x1x8x4xf32>
    %267 = vector.shape_cast %266 : vector<9x1x8x4xf32> to vector<9x8x4xf32>
    %268 = vector.extract_strided_slice %265 {offsets = [0, 1, 0, 0], sizes = [9, 1, 8, 4], strides = [1, 1, 1, 1]} : vector<9x2x8x4xf32> to vector<9x1x8x4xf32>
    %269 = vector.shape_cast %268 : vector<9x1x8x4xf32> to vector<9x8x4xf32>
    %270 = vector.extract_strided_slice %267 {offsets = [0, 0, 0], sizes = [8, 8, 4], strides = [1, 1, 1]} : vector<9x8x4xf32> to vector<8x8x4xf32>
    %cst_143 = arith.constant 1.250000e-01 : f32
    %271 = vector.broadcast %cst_143 : f32 to vector<8x8x4xf32>
    %272 = arith.mulf %271, %270 : vector<8x8x4xf32>
    %273 = vector.extract_strided_slice %269 {offsets = [0, 0, 0], sizes = [8, 8, 4], strides = [1, 1, 1]} : vector<9x8x4xf32> to vector<8x8x4xf32>
    %cst_144 = arith.constant 3.750000e-01 : f32
    %274 = vector.broadcast %cst_144 : f32 to vector<8x8x4xf32>
    %275 = arith.mulf %274, %273 : vector<8x8x4xf32>
    %276 = arith.addf %272, %275 : vector<8x8x4xf32>
    %277 = vector.extract_strided_slice %267 {offsets = [1, 0, 0], sizes = [8, 8, 4], strides = [1, 1, 1]} : vector<9x8x4xf32> to vector<8x8x4xf32>
    %cst_145 = arith.constant 3.750000e-01 : f32
    %278 = vector.broadcast %cst_145 : f32 to vector<8x8x4xf32>
    %279 = arith.mulf %278, %277 : vector<8x8x4xf32>
    %280 = arith.addf %276, %279 : vector<8x8x4xf32>
    %281 = vector.extract_strided_slice %269 {offsets = [1, 0, 0], sizes = [8, 8, 4], strides = [1, 1, 1]} : vector<9x8x4xf32> to vector<8x8x4xf32>
    %cst_146 = arith.constant 1.250000e-01 : f32
    %282 = vector.broadcast %cst_146 : f32 to vector<8x8x4xf32>
    %283 = arith.mulf %282, %281 : vector<8x8x4xf32>
    %284 = arith.addf %280, %283 : vector<8x8x4xf32>
    %285 = arith.truncf %284 : vector<8x8x4xf32> to vector<8x8x4xbf16>
    %286 = vector.shape_cast %285 : vector<8x8x4xbf16> to vector<64x4xbf16>
    %c0_147 = arith.constant 0 : index
    %c0_148 = arith.constant 0 : index
    %287 = vector.load %arg7[%c0_147, %c0_148] : memref<4x8xbf16, #tpu.memory_space<vmem>>, vector<4x8xbf16>
    %cst_149 = arith.constant dense<0.000000e+00> : vector<64x8xf32>
    %288 = tpu.matmul %286, %287, %cst_149 {dimension_numbers = #tpu.dot_dimension_numbers<[1], [0], [0], [1], [0, 0, 1, 1], [], []>} : vector<64x4xbf16>, vector<4x8xbf16>, vector<64x8xf32> -> vector<64x8xf32>
    %289 = arith.addf %247, %288 : vector<64x8xf32>
    %cst_150 = arith.constant 0.707106769 : f32
    %290 = vector.broadcast %cst_150 : f32 to vector<64x8xf32>
    %291 = arith.mulf %289, %290 : vector<64x8xf32>
    %292 = tpu.transpose %291, [1, 0] : vector<64x8xf32> -> vector<8x64xf32>
    %c0_151 = arith.constant 0 : index
    %c0_152 = arith.constant 0 : index
    %c0_153 = arith.constant 0 : index
    %293 = vector.load %arg8[%c0_151, %c0_152, %c0_153] : memref<1x8x64xf32, #tpu.memory_space<vmem>>, vector<1x8x64xf32>
    %294 = vector.shape_cast %293 : vector<1x8x64xf32> to vector<8x64xf32>
    %295 = vector.shape_cast %292 : vector<8x64xf32> to vector<1x8x64xf32>
    tpu.vector_store %arg8[%c0_151, %c0_152, %c0_153], %295 {strides = array<i32>} : memref<1x8x64xf32, #tpu.memory_space<vmem>>, vector<1x8x64xf32>,
    return
  }
  func.func @transform_0(%arg0: i32) -> (i32, i32, i32, i32) {
    %c0_i32 = arith.constant 0 : i32
    %c0_i32_0 = arith.constant 0 : i32
    %c0_i32_1 = arith.constant 0 : i32
    %c0_i32_2 = arith.constant 0 : i32
    return %arg0, %c0_i32, %c0_i32_0, %c0_i32_1 : i32, i32, i32, i32
  }
  func.func @transform_1(%arg0: i32) -> (i32, i32, i32, i32) {
    %c0_i32 = arith.constant 0 : i32
    %c0_i32_0 = arith.constant 0 : i32
    %c0_i32_1 = arith.constant 0 : i32
    %c0_i32_2 = arith.constant 0 : i32
    return %arg0, %c0_i32, %c0_i32_0, %c0_i32_1 : i32, i32, i32, i32
  }
  func.func @transform_2(%arg0: i32) -> (i32, i32, i32) {
    %c0_i32 = arith.constant 0 : i32
    %c0_i32_0 = arith.constant 0 : i32
    %c0_i32_1 = arith.constant 0 : i32
    %c0_i32_2 = arith.constant 0 : i32
    return %c0_i32, %c0_i32_0, %c0_i32_1 : i32, i32, i32
  }
  func.func @transform_3(%arg0: i32) -> (i32, i32) {
    %c0_i32 = arith.constant 0 : i32
    %c0_i32_0 = arith.constant 0 : i32
    %c0_i32_1 = arith.constant 0 : i32
    return %c0_i32, %c0_i32_0 : i32, i32
  }
  func.func @transform_4(%arg0: i32) -> (i32, i32) {
    %c0_i32 = arith.constant 0 : i32
    %c0_i32_0 = arith.constant 0 : i32
    %c0_i32_1 = arith.constant 0 : i32
    return %c0_i32, %c0_i32_0 : i32, i32
  }
  func.func @transform_5(%arg0: i32) -> (i32, i32) {
    %c0_i32 = arith.constant 0 : i32
    %c0_i32_0 = arith.constant 0 : i32
    %c0_i32_1 = arith.constant 0 : i32
    return %c0_i32, %c0_i32_0 : i32, i32
  }
  func.func @transform_6(%arg0: i32) -> (i32, i32) {
    %c0_i32 = arith.constant 0 : i32
    %c0_i32_0 = arith.constant 0 : i32
    %c0_i32_1 = arith.constant 0 : i32
    return %c0_i32, %c0_i32_0 : i32, i32
  }
  func.func @transform_7(%arg0: i32) -> (i32, i32, i32) {
    %c0_i32 = arith.constant 0 : i32
    %c0_i32_0 = arith.constant 0 : i32
    %c0_i32_1 = arith.constant 0 : i32
    return %arg0, %c0_i32, %c0_i32_0 : i32, i32, i32
  }
}

</mosaic_0001>

<llo_original>
// kernel: resblock_forward.1
$region0: #{resblock_forward.1}
  #allocation0 [shape = 'u32[]', space=smem, size = 0x4, offset = 0x4, fixed_abs, tag = 'smem constant byte address 0x4 - core index']
  #allocation1 [shape = 'u32[144,128]{1,0:T(1,128)}', space=vmem, size = 0x12000, scoped, tag = 'internal scratch']
  #allocation2 [shape = 'bf16[18,10,4]{2,1,0:T(8,128)(2,1)}', space=vmem, size = 0x12000, scoped, tag = 'scratch operand']
  #allocation3 [shape = 'bf16[18,10,4]{2,1,0:T(8,128)(2,1)}', space=vmem, size = 0x12000, scoped, tag = 'scratch operand']
  #allocation4 [shape = 'bf16[20,10,4]{2,1,0:T(8,128)(2,1)}', space=vmem, size = 0x14000, scoped, tag = 'scratch operand']
  #allocation5 [shape = 'bf16[20,10,4]{2,1,0:T(8,128)(2,1)}', space=vmem, size = 0x14000, scoped, tag = 'scratch operand']
  %s0 = inlined_call_operand.vmem [shape: bf16[2,16,8,4], index: 0, kind: input, shape index: {}]
  %s1 = inlined_call_operand.vmem [shape: bf16[2,16,8,4], index: 1, kind: input, shape index: {}]
  %s2 = inlined_call_operand.vmem [shape: bf16[3,12,4], index: 2, kind: input, shape index: {}]
  %s3 = inlined_call_operand.vmem [shape: f32[1,4], index: 3, kind: input, shape index: {}]
  %s4 = inlined_call_operand.vmem [shape: bf16[36,8], index: 4, kind: input, shape index: {}]
  %s5 = inlined_call_operand.vmem [shape: f32[1,8], index: 5, kind: input, shape index: {}]
  %s6 = inlined_call_operand.vmem [shape: bf16[4,8], index: 6, kind: input, shape index: {}]
  %s7 = inlined_call_operand.vmem [shape: f32[2,8,64], index: 7, kind: output, shape index: {}]
  %s8 = sld [smem:[#allocation0]]
  $region61: #{resblock_forward.1} parent=0
    _
  %s10 = ssub.s32 1, %s8
  %s11 = scalar_select 0, %s10, %s8
  loop: start=0, step=1, limit=4
  $region2: #{resblock_forward.1} parent=0 // loop_pre_header
    _
  $region3: #{resblock_forward.1} parent=0 // loop_header
    %s13 = sphi 0, %s17
    %p14 = scmp.ge.s32.totalorder %s13, 4
    %s23 = sphi 0, %s25
    %s26 = sphi 0, %s23
    %s27 = sphi 0, %s26
    %s43 = sphi 0, %s27
    %s49 = sphi 0, %s51
    %s52 = sphi 0, %s49
    %s53 = sphi 0, %s52
    %s69 = sphi 0, %s53
    %s73 = sphi 0, %s73
    %s75 = sphi 0, %s73
    %s76 = sphi 0, %s75
    %s90 = sphi 0, %s76
    %s94 = sphi 0, %s94
    %s96 = sphi 0, %s94
    %s97 = sphi 0, %s96
    %s111 = sphi 0, %s97
    %s115 = sphi 0, %s115
    %s117 = sphi 0, %s115
    %s118 = sphi 0, %s117
    %s132 = sphi 0, %s118
    %s136 = sphi 0, %s136
    %s138 = sphi 0, %s136
    %s139 = sphi 0, %s138
    %s153 = sphi 0, %s139
    %s157 = sphi 0, %s157
    %s159 = sphi 0, %s157
    %s160 = sphi 0, %s159
    %s174 = sphi 0, %s160
    %s180 = sphi 0, %s182
    %s183 = sphi 0, %s180
    %s184 = sphi 0, %s183
    %s200 = sphi 0, %s184
  $region4: #{resblock_forward.1} parent=0 // loop_header_branch
    %16 = sbr.rel (%p14) target = $region8
  $region5: #{resblock_forward.1} parent=0 // loop_body
    %s18 = ssub.s32 %s13, 1
    %s19 = ssub.s32 %s13, 2
    %s20 = sadd.s32 %s13, 1
    %s21 = ssub.s32 %s13, %s20
    %p22 = scmp.eq.s32.totalorder %s21, 0
    %s24 = sadd.s32 %s23, 1
    %s25 = scalar_select %p22, %s23, %s24
    %p28 = pneg %p22
    %p29 = scmp.eq.s32.totalorder %s13, 1
    %p30 = por %p28, %p29
    %p31 = scmp.ne.s32.totalorder %s23, %s26
    %p32 = scmp.eq.s32.totalorder %s13, 0
    %p33 = por %p31, %p32
    %p34 = scmp.ne.s32.totalorder %s23, %s26
    %p35 = scmp.eq.s32.totalorder %s18, 1
    %p36 = por %p34, %p35
    %p37 = scmp.ne.s32.totalorder %s26, %s27
    %p38 = scmp.eq.s32.totalorder %s18, 0
    %p39 = por %p37, %p38
    %p40 = scmp.ne.s32.totalorder %s26, %s27
    %p41 = scmp.eq.s32.totalorder %s19, 1
    %p42 = por %p40, %p41
    %p44 = scmp.ne.s32.totalorder %s27, %s43
    %p45 = scmp.eq.s32.totalorder %s19, 0
    %p46 = por %p44, %p45
    %s47 = ssub.s32 %s13, %s20
    %p48 = scmp.eq.s32.totalorder %s47, 0
    %s50 = sadd.s32 %s49, 1
    %s51 = scalar_select %p48, %s49, %s50
    %p54 = pneg %p48
    %p55 = scmp.eq.s32.totalorder %s13, 1
    %p56 = por %p54, %p55
    %p57 = scmp.ne.s32.totalorder %s49, %s52
    %p58 = scmp.eq.s32.totalorder %s13, 0
    %p59 = por %p57, %p58
    %p60 = scmp.ne.s32.totalorder %s49, %s52
    %p61 = scmp.eq.s32.totalorder %s18, 1
    %p62 = por %p60, %p61
    %p63 = scmp.ne.s32.totalorder %s52, %s53
    %p64 = scmp.eq.s32.totalorder %s18, 0
    %p65 = por %p63, %p64
    %p66 = scmp.ne.s32.totalorder %s52, %s53
    %p67 = scmp.eq.s32.totalorder %s19, 1
    %p68 = por %p66, %p67
    %p70 = scmp.ne.s32.totalorder %s53, %s69
    %p71 = scmp.eq.s32.totalorder %s19, 0
    %p72 = por %p70, %p71
    %s74 = sadd.s32 %s73, 1
    %p77 = scmp.eq.s32.totalorder %s13, 1
    %p78 = scmp.ne.s32.totalorder %s73, %s75
    %p79 = scmp.eq.s32.totalorder %s13, 0
    %p80 = por %p78, %p79
    %p81 = scmp.ne.s32.totalorder %s73, %s75
    %p82 = scmp.eq.s32.totalorder %s18, 1
    %p83 = por %p81, %p82
    %p84 = scmp.ne.s32.totalorder %s75, %s76
    %p85 = scmp.eq.s32.totalorder %s18, 0
    %p86 = por %p84, %p85
    %p87 = scmp.ne.s32.totalorder %s75, %s76
    %p88 = scmp.eq.s32.totalorder %s19, 1
    %p89 = por %p87, %p88
    %p91 = scmp.ne.s32.totalorder %s76, %s90
    %p92 = scmp.eq.s32.totalorder %s19, 0
    %p93 = por %p91, %p92
    %s95 = sadd.s32 %s94, 1
    %p98 = scmp.eq.s32.totalorder %s13, 1
    %p99 = scmp.ne.s32.totalorder %s94, %s96
    %p100 = scmp.eq.s32.totalorder %s13, 0
    %p101 = por %p99, %p100
    %p102 = scmp.ne.s32.totalorder %s94, %s96
    %p103 = scmp.eq.s32.totalorder %s18, 1
    %p104 = por %p102, %p103
    %p105 = scmp.ne.s32.totalorder %s96, %s97
    %p106 = scmp.eq.s32.totalorder %s18, 0
    %p107 = por %p105, %p106
    %p108 = scmp.ne.s32.totalorder %s96, %s97
    %p109 = scmp.eq.s32.totalorder %s19, 1
    %p110 = por %p108, %p109
    %p112 = scmp.ne.s32.totalorder %s97, %s111
    %p113 = scmp.eq.s32.totalorder %s19, 0
    %p114 = por %p112, %p113
    %s116 = sadd.s32 %s115, 1
    %p119 = scmp.eq.s32.totalorder %s13, 1
    %p120 = scmp.ne.s32.totalorder %s115, %s117
    %p121 = scmp.eq.s32.totalorder %s13, 0
    %p122 = por %p120, %p121
    %p123 = scmp.ne.s32.totalorder %s115, %s117
    %p124 = scmp.eq.s32.totalorder %s18, 1
    %p125 = por %p123, %p124
    %p126 = scmp.ne.s32.totalorder %s117, %s118
    %p127 = scmp.eq.s32.totalorder %s18, 0
    %p128 = por %p126, %p127
    %p129 = scmp.ne.s32.totalorder %s117, %s118
    %p130 = scmp.eq.s32.totalorder %s19, 1
    %p131 = por %p129, %p130
    %p133 = scmp.ne.s32.totalorder %s118, %s132
    %p134 = scmp.eq.s32.totalorder %s19, 0
    %p135 = por %p133, %p134
    %s137 = sadd.s32 %s136, 1
    %p140 = scmp.eq.s32.totalorder %s13, 1
    %p141 = scmp.ne.s32.totalorder %s136, %s138
    %p142 = scmp.eq.s32.totalorder %s13, 0
    %p143 = por %p141, %p142
    %p144 = scmp.ne.s32.totalorder %s136, %s138
    %p145 = scmp.eq.s32.totalorder %s18, 1
    %p146 = por %p144, %p145
    %p147 = scmp.ne.s32.totalorder %s138, %s139
    %p148 = scmp.eq.s32.totalorder %s18, 0
    %p149 = por %p147, %p148
    %p150 = scmp.ne.s32.totalorder %s138, %s139
    %p151 = scmp.eq.s32.totalorder %s19, 1
    %p152 = por %p150, %p151
    %p154 = scmp.ne.s32.totalorder %s139, %s153
    %p155 = scmp.eq.s32.totalorder %s19, 0
    %p156 = por %p154, %p155
    %s158 = sadd.s32 %s157, 1
    %p161 = scmp.eq.s32.totalorder %s13, 1
    %p162 = scmp.ne.s32.totalorder %s157, %s159
    %p163 = scmp.eq.s32.totalorder %s13, 0
    %p164 = por %p162, %p163
    %p165 = scmp.ne.s32.totalorder %s157, %s159
    %p166 = scmp.eq.s32.totalorder %s18, 1
    %p167 = por %p165, %p166
    %p168 = scmp.ne.s32.totalorder %s159, %s160
    %p169 = scmp.eq.s32.totalorder %s18, 0
    %p170 = por %p168, %p169
    %p171 = scmp.ne.s32.totalorder %s159, %s160
    %p172 = scmp.eq.s32.totalorder %s19, 1
    %p173 = por %p171, %p172
    %p175 = scmp.ne.s32.totalorder %s160, %s174
    %p176 = scmp.eq.s32.totalorder %s19, 0
    %p177 = por %p175, %p176
    %s178 = ssub.s32 %s13, %s20
    %p179 = scmp.eq.s32.totalorder %s178, 0
    %s181 = sadd.s32 %s180, 1
    %s182 = scalar_select %p179, %s180, %s181
    %p185 = pneg %p179
    %p186 = scmp.eq.s32.totalorder %s13, 1
    %p187 = por %p185, %p186
    %p188 = scmp.ne.s32.totalorder %s180, %s183
    %p189 = scmp.eq.s32.totalorder %s13, 0
    %p190 = por %p188, %p189
    %p191 = scmp.ne.s32.totalorder %s180, %s183
    %p192 = scmp.eq.s32.totalorder %s18, 1
    %p193 = por %p191, %p192
    %p194 = scmp.ne.s32.totalorder %s183, %s184
    %p195 = scmp.eq.s32.totalorder %s18, 0
    %p196 = por %p194, %p195
    %p197 = scmp.ne.s32.totalorder %s183, %s184
    %p198 = scmp.eq.s32.totalorder %s19, 1
    %p199 = por %p197, %p198
    %p201 = scmp.ne.s32.totalorder %s184, %s200
    %p202 = scmp.eq.s32.totalorder %s19, 0
    %p203 = por %p201, %p202
    %p204 = scmp.le.s32.totalorder 1, %s13
    %p205 = scmp.lt.s32.totalorder %s13, 3
    %p206 = pnand %p204, %p205
    %p207 = pneg %p206
    // Predicated region
    $region9: #{resblock_forward.1} parent=5 // pred_check
      _
    $region10: #{resblock_forward.1} parent=5 // pred_check_branch
      %209 = sbr.rel (%p206) target = $region12
    $region11: #{resblock_forward.1} parent=5 // pred_region
      %s210 = ssub.s32 %s13, 1
      // Predicated region
      $region13: #{resblock_forward.1} parent=11 // pred_check
        %p211 = pneg %p86
      $region14: #{resblock_forward.1} parent=11 // pred_check_branch
        %213 = sbr.rel (%p211) target = $region16
      $region15: #{resblock_forward.1} parent=11 // pred_region
        _
      $region16: #{resblock_forward.1} parent=11 // pred_fallthru
        _
      // Predicated region
      $region17: #{resblock_forward.1} parent=11 // pred_check
        %p214 = pneg %p107
      $region18: #{resblock_forward.1} parent=11 // pred_check_branch
        %216 = sbr.rel (%p214) target = $region20
      $region19: #{resblock_forward.1} parent=11 // pred_region
        _
      $region20: #{resblock_forward.1} parent=11 // pred_fallthru
        _
      // Predicated region
      $region21: #{resblock_forward.1} parent=11 // pred_check
        %p217 = pneg %p128
      $region22: #{resblock_forward.1} parent=11 // pred_check_branch
        %219 = sbr.rel (%p217) target = $region24
      $region23: #{resblock_forward.1} parent=11 // pred_region
        _
      $region24: #{resblock_forward.1} parent=11 // pred_fallthru
        _
      // Predicated region
      $region25: #{resblock_forward.1} parent=11 // pred_check
        %p220 = pneg %p149
      $region26: #{resblock_forward.1} parent=11 // pred_check_branch
        %222 = sbr.rel (%p220) target = $region28
      $region27: #{resblock_forward.1} parent=11 // pred_region
        _
      $region28: #{resblock_forward.1} parent=11 // pred_fallthru
        _
      // Predicated region
      $region29: #{resblock_forward.1} parent=11 // pred_check
        %p223 = pneg %p170
      $region30: #{resblock_forward.1} parent=11 // pred_check_branch
        %225 = sbr.rel (%p223) target = $region32
      $region31: #{resblock_forward.1} parent=11 // pred_region
        _
      $region32: #{resblock_forward.1} parent=11 // pred_fallthru
        _
    $region12: #{resblock_forward.1} parent=5 // pred_fallthru
      _
    %p226 = scmp.lt.s32.totalorder %s13, 2
    // Predicated region
    $region33: #{resblock_forward.1} parent=5 // pred_check
      %p227 = pneg %p226
    $region34: #{resblock_forward.1} parent=5 // pred_check_branch
      %229 = sbr.rel (%p227) target = $region36
    $region35: #{resblock_forward.1} parent=5 // pred_region
      // Predicated region
      $region37: #{resblock_forward.1} parent=35 // pred_check
        %p230 = pneg %p33
      $region38: #{resblock_forward.1} parent=35 // pred_check_branch
        %232 = sbr.rel (%p230) target = $region40
      $region39: #{resblock_forward.1} parent=35 // pred_region
        %p233 = scmp.lt.s32.totalorder %s13, 1
        %s234 = scalar_select %p233, %s13, 1
        %s235 = smul.addr %s234, 16
        %s236 = smul.addr %s235, 4
        %s237 = scalar_lea.vmem %s0, %s236
      $region40: #{resblock_forward.1} parent=35 // pred_fallthru
        _
      // Predicated region
      $region41: #{resblock_forward.1} parent=35 // pred_check
        %p238 = pneg %p59
      $region42: #{resblock_forward.1} parent=35 // pred_check_branch
        %240 = sbr.rel (%p238) target = $region44
      $region43: #{resblock_forward.1} parent=35 // pred_region
        %p241 = scmp.lt.s32.totalorder %s13, 1
        %s242 = scalar_select %p241, %s13, 1
        %s243 = smul.addr %s242, 16
        %s244 = smul.addr %s243, 4
        %s245 = scalar_lea.vmem %s1, %s244
      $region44: #{resblock_forward.1} parent=35 // pred_fallthru
        _
    $region36: #{resblock_forward.1} parent=5 // pred_fallthru
      _
    %p246 = scmp.le.s32.totalorder 1, %s13
    %p247 = scmp.lt.s32.totalorder %s13, 3
    %p248 = pnand %p246, %p247
    %p249 = pneg %p248
    // Predicated region
    $region45: #{resblock_forward.1} parent=5 // pred_check
      _
    $region46: #{resblock_forward.1} parent=5 // pred_check_branch
      %251 = sbr.rel (%p248) target = $region48
    $region47: #{resblock_forward.1} parent=5 // pred_region
      %s252 = ssub.s32 %s13, 1
      %p253 = scmp.lt.s32.totalorder %s18, 1
      %s254 = scalar_select %p253, %s18, 1
      %s255 = smul.addr %s254, 16
      %s256 = smul.addr %s255, 4
      %s257 = scalar_lea.vmem %s0, %s256
      %p258 = pneg %p39
      %p259 = pneg %p36
      %p260 = scmp.lt.s32.totalorder %s18, 1
      %s261 = scalar_select %p260, %s18, 1
      %s262 = smul.addr %s261, 16
      %s263 = smul.addr %s262, 4
      %s264 = scalar_lea.vmem %s1, %s263
      %p265 = pneg %p65
      %p266 = pneg %p62
      %p267 = pneg %p86
      %p268 = pneg %p83
      %p269 = pneg %p107
      %p270 = pneg %p104
      %p271 = pneg %p128
      %p272 = pneg %p125
      %p273 = pneg %p149
      %p274 = pneg %p146
      %p275 = pneg %p170
      %p276 = pneg %p167
      %p277 = pneg %p196
      %p278 = pneg %p193
      %p279 = scmp.lt.s32.totalorder %s18, 1
      %s280 = scalar_select %p279, %s18, 1
      %s281 = smul.addr %s280, 8
      %s282 = scalar_lea.vmem %s7, %s281
      %p283 = scmp.lt.s32.totalorder %s18, 1
      %s284 = scalar_select %p283, %s18, 1
      %s285 = smul.addr %s284, 16
      %s286 = smul.addr %s285, 4
      %s287 = scalar_lea.vmem %s0, %s286
      %p288 = scmp.lt.s32.totalorder %s18, 1
      %s289 = scalar_select %p288, %s18, 1
      %s290 = smul.addr %s289, 16
      %s291 = smul.addr %s290, 4
      %s292 = scalar_lea.vmem %s1, %s291
      %p293 = scmp.lt.s32.totalorder %s18, 1
      %s294 = scalar_select %p293, %s18, 1
      %s295 = smul.addr %s294, 8
      %s296 = scalar_lea.vmem %s7, %s295
      %vm298 = vcmask 27648
      %299 = vst.msk [vmem:[#allocation2] sm:$0xf] %vm298, 0
      %vm300 = vcmask 24576
      %301 = vst.msk [vmem:[#allocation2 + $0x4] sm:$0x1] %vm300, 0
      %s302 = scalar_lea.vmem [#allocation2], 136
      %303 = vst.msk [vmem:[%s302] sm:$0xf] %vm298, 0
      %304 = vst.msk [vmem:[%s302 + $0x4] sm:$0x1] %vm300, 0
      %vm305 = vcmask 24576
      %vm306 = vsmask.f32 256
      %vm307 = vmand %vm305, %vm306
      %v308 = vld [vmem:[#allocation2] sm:$0x1]
      %v309 = vsel %vm307, 0, %v308
      %310 = vst [vmem:[#allocation2] sm:$0x1] %v309
      %v311 = vld [vmem:[#allocation2 + $0x8] sm:$0x1]
      %v312 = vsel %vm307, 0, %v311
      %313 = vst [vmem:[#allocation2 + $0x8] sm:$0x1] %v312
      %v314 = vld [vmem:[#allocation2 + $0x10] sm:$0x1]
      %v315 = vsel %vm307, 0, %v314
      %316 = vst [vmem:[#allocation2 + $0x10] sm:$0x1] %v315
      %v317 = vld [vmem:[#allocation2 + $0x18] sm:$0x1]
      %v318 = vsel %vm307, 0, %v317
      %319 = vst [vmem:[#allocation2 + $0x18] sm:$0x1] %v318
      %v320 = vld [vmem:[#allocation2 + $0x20] sm:$0x1]
      %v321 = vsel %vm307, 0, %v320
      %322 = vst [vmem:[#allocation2 + $0x20] sm:$0x1] %v321
      %v323 = vld [vmem:[#allocation2 + $0x28] sm:$0x1]
      %v324 = vsel %vm307, 0, %v323
      %325 = vst [vmem:[#allocation2 + $0x28] sm:$0x1] %v324
      %v326 = vld [vmem:[#allocation2 + $0x30] sm:$0x1]
      %v327 = vsel %vm307, 0, %v326
      %328 = vst [vmem:[#allocation2 + $0x30] sm:$0x1] %v327
      %v329 = vld [vmem:[#allocation2 + $0x38] sm:$0x1]
      %v330 = vsel %vm307, 0, %v329
      %331 = vst [vmem:[#allocation2 + $0x38] sm:$0x1] %v330
      %v332 = vld [vmem:[#allocation2 + $0x40] sm:$0x1]
      %v333 = vsel %vm307, 0, %v332
      %334 = vst [vmem:[#allocation2 + $0x40] sm:$0x1] %v333
      %v335 = vld [vmem:[#allocation2 + $0x48] sm:$0x1]
      %v336 = vsel %vm307, 0, %v335
      %337 = vst [vmem:[#allocation2 + $0x48] sm:$0x1] %v336
      %v338 = vld [vmem:[#allocation2 + $0x50] sm:$0x1]
      %v339 = vsel %vm307, 0, %v338
      %340 = vst [vmem:[#allocation2 + $0x50] sm:$0x1] %v339
      %v341 = vld [vmem:[#allocation2 + $0x58] sm:$0x1]
      %v342 = vsel %vm307, 0, %v341
      %343 = vst [vmem:[#allocation2 + $0x58] sm:$0x1] %v342
      %v344 = vld [vmem:[#allocation2 + $0x60] sm:$0x1]
      %v345 = vsel %vm307, 0, %v344
      %346 = vst [vmem:[#allocation2 + $0x60] sm:$0x1] %v345
      %v347 = vld [vmem:[#allocation2 + $0x68] sm:$0x1]
      %v348 = vsel %vm307, 0, %v347
      %349 = vst [vmem:[#allocation2 + $0x68] sm:$0x1] %v348
      %v350 = vld [vmem:[#allocation2 + $0x70] sm:$0x1]
      %v351 = vsel %vm307, 0, %v350
      %352 = vst [vmem:[#allocation2 + $0x70] sm:$0x1] %v351
      %v353 = vld [vmem:[#allocation2 + $0x78] sm:$0x1]
      %v354 = vsel %vm307, 0, %v353
      %355 = vst [vmem:[#allocation2 + $0x78] sm:$0x1] %v354
      %v356 = vld [vmem:[#allocation2 + $0x80] sm:$0x1]
      %v357 = vsel %vm307, 0, %v356
      %358 = vst [vmem:[#allocation2 + $0x80] sm:$0x1] %v357
      %v359 = vld [vmem:[#allocation2 + $0x88] sm:$0x1]
      %v360 = vsel %vm307, 0, %v359
      %361 = vst [vmem:[#allocation2 + $0x88] sm:$0x1] %v360
      %vm362 = vsmask.f32 7938
      %vm363 = vmand %vm305, %vm362
      %v364 = vld [vmem:[#allocation2 + $0x4] sm:$0x1]
      %v365 = vsel %vm363, 0, %v364
      %366 = vst [vmem:[#allocation2 + $0x4] sm:$0x1] %v365
      %v367 = vld [vmem:[#allocation2 + $0xc] sm:$0x1]
      %v368 = vsel %vm363, 0, %v367
      %369 = vst [vmem:[#allocation2 + $0xc] sm:$0x1] %v368
      %v370 = vld [vmem:[#allocation2 + $0x14] sm:$0x1]
      %v371 = vsel %vm363, 0, %v370
      %372 = vst [vmem:[#allocation2 + $0x14] sm:$0x1] %v371
      %v373 = vld [vmem:[#allocation2 + $0x1c] sm:$0x1]
      %v374 = vsel %vm363, 0, %v373
      %375 = vst [vmem:[#allocation2 + $0x1c] sm:$0x1] %v374
      %v376 = vld [vmem:[#allocation2 + $0x24] sm:$0x1]
      %v377 = vsel %vm363, 0, %v376
      %378 = vst [vmem:[#allocation2 + $0x24] sm:$0x1] %v377
      %v379 = vld [vmem:[#allocation2 + $0x2c] sm:$0x1]
      %v380 = vsel %vm363, 0, %v379
      %381 = vst [vmem:[#allocation2 + $0x2c] sm:$0x1] %v380
      %v382 = vld [vmem:[#allocation2 + $0x34] sm:$0x1]
      %v383 = vsel %vm363, 0, %v382
      %384 = vst [vmem:[#allocation2 + $0x34] sm:$0x1] %v383
      %v385 = vld [vmem:[#allocation2 + $0x3c] sm:$0x1]
      %v386 = vsel %vm363, 0, %v385
      %387 = vst [vmem:[#allocation2 + $0x3c] sm:$0x1] %v386
      %v388 = vld [vmem:[#allocation2 + $0x44] sm:$0x1]
      %v389 = vsel %vm363, 0, %v388
      %390 = vst [vmem:[#allocation2 + $0x44] sm:$0x1] %v389
      %v391 = vld [vmem:[#allocation2 + $0x4c] sm:$0x1]
      %v392 = vsel %vm363, 0, %v391
      %393 = vst [vmem:[#allocation2 + $0x4c] sm:$0x1] %v392
      %v394 = vld [vmem:[#allocation2 + $0x54] sm:$0x1]
      %v395 = vsel %vm363, 0, %v394
      %396 = vst [vmem:[#allocation2 + $0x54] sm:$0x1] %v395
      %v397 = vld [vmem:[#allocation2 + $0x5c] sm:$0x1]
      %v398 = vsel %vm363, 0, %v397
      %399 = vst [vmem:[#allocation2 + $0x5c] sm:$0x1] %v398
      %v400 = vld [vmem:[#allocation2 + $0x64] sm:$0x1]
      %v401 = vsel %vm363, 0, %v400
      %402 = vst [vmem:[#allocation2 + $0x64] sm:$0x1] %v401
      %v403 = vld [vmem:[#allocation2 + $0x6c] sm:$0x1]
      %v404 = vsel %vm363, 0, %v403
      %405 = vst [vmem:[#allocation2 + $0x6c] sm:$0x1] %v404
      %v406 = vld [vmem:[#allocation2 + $0x74] sm:$0x1]
      %v407 = vsel %vm363, 0, %v406
      %408 = vst [vmem:[#allocation2 + $0x74] sm:$0x1] %v407
      %v409 = vld [vmem:[#allocation2 + $0x7c] sm:$0x1]
      %v410 = vsel %vm363, 0, %v409
      %411 = vst [vmem:[#allocation2 + $0x7c] sm:$0x1] %v410
      %v412 = vld [vmem:[#allocation2 + $0x84] sm:$0x1]
      %v413 = vsel %vm363, 0, %v412
      %414 = vst [vmem:[#allocation2 + $0x84] sm:$0x1] %v413
      %v415 = vld [vmem:[#allocation2 + $0x8c] sm:$0x1]
      %v416 = vsel %vm363, 0, %v415
      %417 = vst [vmem:[#allocation2 + $0x8c] sm:$0x1] %v416
      %418 = vst.msk [vmem:[#allocation3] sm:$0xf] %vm298, 0
      %419 = vst.msk [vmem:[#allocation3 + $0x4] sm:$0x1] %vm300, 0
      %s420 = scalar_lea.vmem [#allocation3], 136
      %421 = vst.msk [vmem:[%s420] sm:$0xf] %vm298, 0
      %422 = vst.msk [vmem:[%s420 + $0x4] sm:$0x1] %vm300, 0
      %v423 = vld [vmem:[#allocation3] sm:$0x1]
      %v424 = vsel %vm307, 0, %v423
      %425 = vst [vmem:[#allocation3] sm:$0x1] %v424
      %v426 = vld [vmem:[#allocation3 + $0x8] sm:$0x1]
      %v427 = vsel %vm307, 0, %v426
      %428 = vst [vmem:[#allocation3 + $0x8] sm:$0x1] %v427
      %v429 = vld [vmem:[#allocation3 + $0x10] sm:$0x1]
      %v430 = vsel %vm307, 0, %v429
      %431 = vst [vmem:[#allocation3 + $0x10] sm:$0x1] %v430
      %v432 = vld [vmem:[#allocation3 + $0x18] sm:$0x1]
      %v433 = vsel %vm307, 0, %v432
      %434 = vst [vmem:[#allocation3 + $0x18] sm:$0x1] %v433
      %v435 = vld [vmem:[#allocation3 + $0x20] sm:$0x1]
      %v436 = vsel %vm307, 0, %v435
      %437 = vst [vmem:[#allocation3 + $0x20] sm:$0x1] %v436
      %v438 = vld [vmem:[#allocation3 + $0x28] sm:$0x1]
      %v439 = vsel %vm307, 0, %v438
      %440 = vst [vmem:[#allocation3 + $0x28] sm:$0x1] %v439
      %v441 = vld [vmem:[#allocation3 + $0x30] sm:$0x1]
      %v442 = vsel %vm307, 0, %v441
      %443 = vst [vmem:[#allocation3 + $0x30] sm:$0x1] %v442
      %v444 = vld [vmem:[#allocation3 + $0x38] sm:$0x1]
      %v445 = vsel %vm307, 0, %v444
      %446 = vst [vmem:[#allocation3 + $0x38] sm:$0x1] %v445
      %v447 = vld [vmem:[#allocation3 + $0x40] sm:$0x1]
      %v448 = vsel %vm307, 0, %v447
      %449 = vst [vmem:[#allocation3 + $0x40] sm:$0x1] %v448
      %v450 = vld [vmem:[#allocation3 + $0x48] sm:$0x1]
      %v451 = vsel %vm307, 0, %v450
      %452 = vst [vmem:[#allocation3 + $0x48] sm:$0x1] %v451
      %v453 = vld [vmem:[#allocation3 + $0x50] sm:$0x1]
      %v454 = vsel %vm307, 0, %v453
      %455 = vst [vmem:[#allocation3 + $0x50] sm:$0x1] %v454
      %v456 = vld [vmem:[#allocation3 + $0x58] sm:$0x1]
      %v457 = vsel %vm307, 0, %v456
      %458 = vst [vmem:[#allocation3 + $0x58] sm:$0x1] %v457
      %v459 = vld [vmem:[#allocation3 + $0x60] sm:$0x1]
      %v460 = vsel %vm307, 0, %v459
      %461 = vst [vmem:[#allocation3 + $0x60] sm:$0x1] %v460
      %v462 = vld [vmem:[#allocation3 + $0x68] sm:$0x1]
      %v463 = vsel %vm307, 0, %v462
      %464 = vst [vmem:[#allocation3 + $0x68] sm:$0x1] %v463
      %v465 = vld [vmem:[#allocation3 + $0x70] sm:$0x1]
      %v466 = vsel %vm307, 0, %v465
      %467 = vst [vmem:[#allocation3 + $0x70] sm:$0x1] %v466
      %v468 = vld [vmem:[#allocation3 + $0x78] sm:$0x1]
      %v469 = vsel %vm307, 0, %v468
      %470 = vst [vmem:[#allocation3 + $0x78] sm:$0x1] %v469
      %v471 = vld [vmem:[#allocation3 + $0x80] sm:$0x1]
      %v472 = vsel %vm307, 0, %v471
      %473 = vst [vmem:[#allocation3 + $0x80] sm:$0x1] %v472
      %v474 = vld [vmem:[#allocation3 + $0x88] sm:$0x1]
      %v475 = vsel %vm307, 0, %v474
      %476 = vst [vmem:[#allocation3 + $0x88] sm:$0x1] %v475
      %v477 = vld [vmem:[#allocation3 + $0x4] sm:$0x1]
      %v478 = vsel %vm363, 0, %v477
      %479 = vst [vmem:[#allocation3 + $0x4] sm:$0x1] %v478
      %v480 = vld [vmem:[#allocation3 + $0xc] sm:$0x1]
      %v481 = vsel %vm363, 0, %v480
      %482 = vst [vmem:[#allocation3 + $0xc] sm:$0x1] %v481
      %v483 = vld [vmem:[#allocation3 + $0x14] sm:$0x1]
      %v484 = vsel %vm363, 0, %v483
      %485 = vst [vmem:[#allocation3 + $0x14] sm:$0x1] %v484
      %v486 = vld [vmem:[#allocation3 + $0x1c] sm:$0x1]
      %v487 = vsel %vm363, 0, %v486
      %488 = vst [vmem:[#allocation3 + $0x1c] sm:$0x1] %v487
      %v489 = vld [vmem:[#allocation3 + $0x24] sm:$0x1]
      %v490 = vsel %vm363, 0, %v489
      %491 = vst [vmem:[#allocation3 + $0x24] sm:$0x1] %v490
      %v492 = vld [vmem:[#allocation3 + $0x2c] sm:$0x1]
      %v493 = vsel %vm363, 0, %v492
      %494 = vst [vmem:[#allocation3 + $0x2c] sm:$0x1] %v493
      %v495 = vld [vmem:[#allocation3 + $0x34] sm:$0x1]
      %v496 = vsel %vm363, 0, %v495
      %497 = vst [vmem:[#allocation3 + $0x34] sm:$0x1] %v496
      %v498 = vld [vmem:[#allocation3 + $0x3c] sm:$0x1]
      %v499 = vsel %vm363, 0, %v498
      %500 = vst [vmem:[#allocation3 + $0x3c] sm:$0x1] %v499
      %v501 = vld [vmem:[#allocation3 + $0x44] sm:$0x1]
      %v502 = vsel %vm363, 0, %v501
      %503 = vst [vmem:[#allocation3 + $0x44] sm:$0x1] %v502
      %v504 = vld [vmem:[#allocation3 + $0x4c] sm:$0x1]
      %v505 = vsel %vm363, 0, %v504
      %506 = vst [vmem:[#allocation3 + $0x4c] sm:$0x1] %v505
      %v507 = vld [vmem:[#allocation3 + $0x54] sm:$0x1]
      %v508 = vsel %vm363, 0, %v507
      %509 = vst [vmem:[#allocation3 + $0x54] sm:$0x1] %v508
      %v510 = vld [vmem:[#allocation3 + $0x5c] sm:$0x1]
      %v511 = vsel %vm363, 0, %v510
      %512 = vst [vmem:[#allocation3 + $0x5c] sm:$0x1] %v511
      %v513 = vld [vmem:[#allocation3 + $0x64] sm:$0x1]
      %v514 = vsel %vm363, 0, %v513
      %515 = vst [vmem:[#allocation3 + $0x64] sm:$0x1] %v514
      %v516 = vld [vmem:[#allocation3 + $0x6c] sm:$0x1]
      %v517 = vsel %vm363, 0, %v516
      %518 = vst [vmem:[#allocation3 + $0x6c] sm:$0x1] %v517
      %v519 = vld [vmem:[#allocation3 + $0x74] sm:$0x1]
      %v520 = vsel %vm363, 0, %v519
      %521 = vst [vmem:[#allocation3 + $0x74] sm:$0x1] %v520
      %v522 = vld [vmem:[#allocation3 + $0x7c] sm:$0x1]
      %v523 = vsel %vm363, 0, %v522
      %524 = vst [vmem:[#allocation3 + $0x7c] sm:$0x1] %v523
      %v525 = vld [vmem:[#allocation3 + $0x84] sm:$0x1]
      %v526 = vsel %vm363, 0, %v525
      %527 = vst [vmem:[#allocation3 + $0x84] sm:$0x1] %v526
      %v528 = vld [vmem:[#allocation3 + $0x8c] sm:$0x1]
      %v529 = vsel %vm363, 0, %v528
      %530 = vst [vmem:[#allocation3 + $0x8c] sm:$0x1] %v529
      %531 = vst.msk [vmem:[#allocation4] sm:$0xf] %vm298, 0
      %532 = vst.msk [vmem:[#allocation4 + $0x4] sm:$0x1] %vm300, 0
      %533 = vst.msk [vmem:[#allocation4 + $0x8] sm:$0xf] %vm298, 0
      %534 = vst.msk [vmem:[#allocation4 + $0xc] sm:$0x1] %vm300, 0
      %s535 = scalar_lea.vmem [#allocation4], 144
      %536 = vst.msk [vmem:[%s535] sm:$0xf] %vm298, 0
      %537 = vst.msk [vmem:[%s535 + $0x4] sm:$0x1] %vm300, 0
      %538 = vst.msk [vmem:[%s535 + $0x8] sm:$0xf] %vm298, 0
      %539 = vst.msk [vmem:[%s535 + $0xc] sm:$0x1] %vm300, 0
      %v540 = vld [vmem:[#allocation4] sm:$0x1]
      %v541 = vsel %vm307, 0, %v540
      %542 = vst [vmem:[#allocation4] sm:$0x1] %v541
      %v543 = vld [vmem:[#allocation4 + $0x8] sm:$0x1]
      %v544 = vsel %vm307, 0, %v543
      %545 = vst [vmem:[#allocation4 + $0x8] sm:$0x1] %v544
      %v546 = vld [vmem:[#allocation4 + $0x10] sm:$0x1]
      %v547 = vsel %vm307, 0, %v546
      %548 = vst [vmem:[#allocation4 + $0x10] sm:$0x1] %v547
      %v549 = vld [vmem:[#allocation4 + $0x18] sm:$0x1]
      %v550 = vsel %vm307, 0, %v549
      %551 = vst [vmem:[#allocation4 + $0x18] sm:$0x1] %v550
      %v552 = vld [vmem:[#allocation4 + $0x20] sm:$0x1]
      %v553 = vsel %vm307, 0, %v552
      %554 = vst [vmem:[#allocation4 + $0x20] sm:$0x1] %v553
      %v555 = vld [vmem:[#allocation4 + $0x28] sm:$0x1]
      %v556 = vsel %vm307, 0, %v555
      %557 = vst [vmem:[#allocation4 + $0x28] sm:$0x1] %v556
      %v558 = vld [vmem:[#allocation4 + $0x30] sm:$0x1]
      %v559 = vsel %vm307, 0, %v558
      %560 = vst [vmem:[#allocation4 + $0x30] sm:$0x1] %v559
      %v561 = vld [vmem:[#allocation4 + $0x38] sm:$0x1]
      %v562 = vsel %vm307, 0, %v561
      %563 = vst [vmem:[#allocation4 + $0x38] sm:$0x1] %v562
      %v564 = vld [vmem:[#allocation4 + $0x40] sm:$0x1]
      %v565 = vsel %vm307, 0, %v564
      %566 = vst [vmem:[#allocation4 + $0x40] sm:$0x1] %v565
      %v567 = vld [vmem:[#allocation4 + $0x48] sm:$0x1]
      %v568 = vsel %vm307, 0, %v567
      %569 = vst [vmem:[#allocation4 + $0x48] sm:$0x1] %v568
      %v570 = vld [vmem:[#allocation4 + $0x50] sm:$0x1]
      %v571 = vsel %vm307, 0, %v570
      %572 = vst [vmem:[#allocation4 + $0x50] sm:$0x1] %v571
      %v573 = vld [vmem:[#allocation4 + $0x58] sm:$0x1]
      %v574 = vsel %vm307, 0, %v573
      %575 = vst [vmem:[#allocation4 + $0x58] sm:$0x1] %v574
      %v576 = vld [vmem:[#allocation4 + $0x60] sm:$0x1]
      %v577 = vsel %vm307, 0, %v576
      %578 = vst [vmem:[#allocation4 + $0x60] sm:$0x1] %v577
      %v579 = vld [vmem:[#allocation4 + $0x68] sm:$0x1]
      %v580 = vsel %vm307, 0, %v579
      %581 = vst [vmem:[#allocation4 + $0x68] sm:$0x1] %v580
      %v582 = vld [vmem:[#allocation4 + $0x70] sm:$0x1]
      %v583 = vsel %vm307, 0, %v582
      %584 = vst [vmem:[#allocation4 + $0x70] sm:$0x1] %v583
      %v585 = vld [vmem:[#allocation4 + $0x78] sm:$0x1]
      %v586 = vsel %vm307, 0, %v585
      %587 = vst [vmem:[#allocation4 + $0x78] sm:$0x1] %v586
      %v588 = vld [vmem:[#allocation4 + $0x80] sm:$0x1]
      %v589 = vsel %vm307, 0, %v588
      %590 = vst [vmem:[#allocation4 + $0x80] sm:$0x1] %v589
      %v591 = vld [vmem:[#allocation4 + $0x88] sm:$0x1]
      %v592 = vsel %vm307, 0, %v591
      %593 = vst [vmem:[#allocation4 + $0x88] sm:$0x1] %v592
      %v594 = vld [vmem:[#allocation4 + $0x90] sm:$0x1]
      %v595 = vsel %vm307, 0, %v594
      %596 = vst [vmem:[#allocation4 + $0x90] sm:$0x1] %v595
      %v597 = vld [vmem:[#allocation4 + $0x98] sm:$0x1]
      %v598 = vsel %vm307, 0, %v597
      %599 = vst [vmem:[#allocation4 + $0x98] sm:$0x1] %v598
      %v600 = vld [vmem:[#allocation4 + $0x4] sm:$0x1]
      %v601 = vsel %vm363, 0, %v600
      %602 = vst [vmem:[#allocation4 + $0x4] sm:$0x1] %v601
      %v603 = vld [vmem:[#allocation4 + $0xc] sm:$0x1]
      %v604 = vsel %vm363, 0, %v603
      %605 = vst [vmem:[#allocation4 + $0xc] sm:$0x1] %v604
      %v606 = vld [vmem:[#allocation4 + $0x14] sm:$0x1]
      %v607 = vsel %vm363, 0, %v606
      %608 = vst [vmem:[#allocation4 + $0x14] sm:$0x1] %v607
      %v609 = vld [vmem:[#allocation4 + $0x1c] sm:$0x1]
      %v610 = vsel %vm363, 0, %v609
      %611 = vst [vmem:[#allocation4 + $0x1c] sm:$0x1] %v610
      %v612 = vld [vmem:[#allocation4 + $0x24] sm:$0x1]
      %v613 = vsel %vm363, 0, %v612
      %614 = vst [vmem:[#allocation4 + $0x24] sm:$0x1] %v613
      %v615 = vld [vmem:[#allocation4 + $0x2c] sm:$0x1]
      %v616 = vsel %vm363, 0, %v615
      %617 = vst [vmem:[#allocation4 + $0x2c] sm:$0x1] %v616
      %v618 = vld [vmem:[#allocation4 + $0x34] sm:$0x1]
      %v619 = vsel %vm363, 0, %v618
      %620 = vst [vmem:[#allocation4 + $0x34] sm:$0x1] %v619
      %v621 = vld [vmem:[#allocation4 + $0x3c] sm:$0x1]
      %v622 = vsel %vm363, 0, %v621
      %623 = vst [vmem:[#allocation4 + $0x3c] sm:$0x1] %v622
      %v624 = vld [vmem:[#allocation4 + $0x44] sm:$0x1]
      %v625 = vsel %vm363, 0, %v624
      %626 = vst [vmem:[#allocation4 + $0x44] sm:$0x1] %v625
      %v627 = vld [vmem:[#allocation4 + $0x4c] sm:$0x1]
      %v628 = vsel %vm363, 0, %v627
      %629 = vst [vmem:[#allocation4 + $0x4c] sm:$0x1] %v628
      %v630 = vld [vmem:[#allocation4 + $0x54] sm:$0x1]
      %v631 = vsel %vm363, 0, %v630
      %632 = vst [vmem:[#allocation4 + $0x54] sm:$0x1] %v631
      %v633 = vld [vmem:[#allocation4 + $0x5c] sm:$0x1]
      %v634 = vsel %vm363, 0, %v633
      %635 = vst [vmem:[#allocation4 + $0x5c] sm:$0x1] %v634
      %v636 = vld [vmem:[#allocation4 + $0x64] sm:$0x1]
      %v637 = vsel %vm363, 0, %v636
      %638 = vst [vmem:[#allocation4 + $0x64] sm:$0x1] %v637
      %v639 = vld [vmem:[#allocation4 + $0x6c] sm:$0x1]
      %v640 = vsel %vm363, 0, %v639
      %641 = vst [vmem:[#allocation4 + $0x6c] sm:$0x1] %v640
      %v642 = vld [vmem:[#allocation4 + $0x74] sm:$0x1]
      %v643 = vsel %vm363, 0, %v642
      %644 = vst [vmem:[#allocation4 + $0x74] sm:$0x1] %v643
      %v645 = vld [vmem:[#allocation4 + $0x7c] sm:$0x1]
      %v646 = vsel %vm363, 0, %v645
      %647 = vst [vmem:[#allocation4 + $0x7c] sm:$0x1] %v646
      %v648 = vld [vmem:[#allocation4 + $0x84] sm:$0x1]
      %v649 = vsel %vm363, 0, %v648
      %650 = vst [vmem:[#allocation4 + $0x84] sm:$0x1] %v649
      %v651 = vld [vmem:[#allocation4 + $0x8c] sm:$0x1]
      %v652 = vsel %vm363, 0, %v651
      %653 = vst [vmem:[#allocation4 + $0x8c] sm:$0x1] %v652
      %v654 = vld [vmem:[#allocation4 + $0x94] sm:$0x1]
      %v655 = vsel %vm363, 0, %v654
      %656 = vst [vmem:[#allocation4 + $0x94] sm:$0x1] %v655
      %v657 = vld [vmem:[#allocation4 + $0x9c] sm:$0x1]
      %v658 = vsel %vm363, 0, %v657
      %659 = vst [vmem:[#allocation4 + $0x9c] sm:$0x1] %v658
      %660 = vst.msk [vmem:[#allocation5] sm:$0xf] %vm298, 0
      %661 = vst.msk [vmem:[#allocation5 + $0x4] sm:$0x1] %vm300, 0
      %662 = vst.msk [vmem:[#allocation5 + $0x8] sm:$0xf] %vm298, 0
      %663 = vst.msk [vmem:[#allocation5 + $0xc] sm:$0x1] %vm300, 0
      %s664 = scalar_lea.vmem [#allocation5], 144
      %665 = vst.msk [vmem:[%s664] sm:$0xf] %vm298, 0
      %666 = vst.msk [vmem:[%s664 + $0x4] sm:$0x1] %vm300, 0
      %667 = vst.msk [vmem:[%s664 + $0x8] sm:$0xf] %vm298, 0
      %668 = vst.msk [vmem:[%s664 + $0xc] sm:$0x1] %vm300, 0
      %v669 = vld [vmem:[#allocation5] sm:$0x1]
      %v670 = vsel %vm307, 0, %v669
      %671 = vst [vmem:[#allocation5] sm:$0x1] %v670
      %v672 = vld [vmem:[#allocation5 + $0x8] sm:$0x1]
      %v673 = vsel %vm307, 0, %v672
      %674 = vst [vmem:[#allocation5 + $0x8] sm:$0x1] %v673
      %v675 = vld [vmem:[#allocation5 + $0x10] sm:$0x1]
      %v676 = vsel %vm307, 0, %v675
      %677 = vst [vmem:[#allocation5 + $0x10] sm:$0x1] %v676
      %v678 = vld [vmem:[#allocation5 + $0x18] sm:$0x1]
      %v679 = vsel %vm307, 0, %v678
      %680 = vst [vmem:[#allocation5 + $0x18] sm:$0x1] %v679
      %v681 = vld [vmem:[#allocation5 + $0x20] sm:$0x1]
      %v682 = vsel %vm307, 0, %v681
      %683 = vst [vmem:[#allocation5 + $0x20] sm:$0x1] %v682
      %v684 = vld [vmem:[#allocation5 + $0x28] sm:$0x1]
      %v685 = vsel %vm307, 0, %v684
      %686 = vst [vmem:[#allocation5 + $0x28] sm:$0x1] %v685
      %v687 = vld [vmem:[#allocation5 + $0x30] sm:$0x1]
      %v688 = vsel %vm307, 0, %v687
      %689 = vst [vmem:[#allocation5 + $0x30] sm:$0x1] %v688
      %v690 = vld [vmem:[#allocation5 + $0x38] sm:$0x1]
      %v691 = vsel %vm307, 0, %v690
      %692 = vst [vmem:[#allocation5 + $0x38] sm:$0x1] %v691
      %v693 = vld [vmem:[#allocation5 + $0x40] sm:$0x1]
      %v694 = vsel %vm307, 0, %v693
      %695 = vst [vmem:[#allocation5 + $0x40] sm:$0x1] %v694
      %v696 = vld [vmem:[#allocation5 + $0x48] sm:$0x1]
      %v697 = vsel %vm307, 0, %v696
      %698 = vst [vmem:[#allocation5 + $0x48] sm:$0x1] %v697
      %v699 = vld [vmem:[#allocation5 + $0x50] sm:$0x1]
      %v700 = vsel %vm307, 0, %v699
      %701 = vst [vmem:[#allocation5 + $0x50] sm:$0x1] %v700
      %v702 = vld [vmem:[#allocation5 + $0x58] sm:$0x1]
      %v703 = vsel %vm307, 0, %v702
      %704 = vst [vmem:[#allocation5 + $0x58] sm:$0x1] %v703
      %v705 = vld [vmem:[#allocation5 + $0x60] sm:$0x1]
      %v706 = vsel %vm307, 0, %v705
      %707 = vst [vmem:[#allocation5 + $0x60] sm:$0x1] %v706
      %v708 = vld [vmem:[#allocation5 + $0x68] sm:$0x1]
      %v709 = vsel %vm307, 0, %v708
      %710 = vst [vmem:[#allocation5 + $0x68] sm:$0x1] %v709
      %v711 = vld [vmem:[#allocation5 + $0x70] sm:$0x1]
      %v712 = vsel %vm307, 0, %v711
      %713 = vst [vmem:[#allocation5 + $0x70] sm:$0x1] %v712
      %v714 = vld [vmem:[#allocation5 + $0x78] sm:$0x1]
      %v715 = vsel %vm307, 0, %v714
      %716 = vst [vmem:[#allocation5 + $0x78] sm:$0x1] %v715
      %v717 = vld [vmem:[#allocation5 + $0x80] sm:$0x1]
      %v718 = vsel %vm307, 0, %v717
      %719 = vst [vmem:[#allocation5 + $0x80] sm:$0x1] %v718
      %v720 = vld [vmem:[#allocation5 + $0x88] sm:$0x1]
      %v721 = vsel %vm307, 0, %v720
      %722 = vst [vmem:[#allocation5 + $0x88] sm:$0x1] %v721
      %v723 = vld [vmem:[#allocation5 + $0x90] sm:$0x1]
      %v724 = vsel %vm307, 0, %v723
      %725 = vst [vmem:[#allocation5 + $0x90] sm:$0x1] %v724
      %v726 = vld [vmem:[#allocation5 + $0x98] sm:$0x1]
      %v727 = vsel %vm307, 0, %v726
      %728 = vst [vmem:[#allocation5 + $0x98] sm:$0x1] %v727
      %v729 = vld [vmem:[#allocation5 + $0x4] sm:$0x1]
      %v730 = vsel %vm363, 0, %v729
      %731 = vst [vmem:[#allocation5 + $0x4] sm:$0x1] %v730
      %v732 = vld [vmem:[#allocation5 + $0xc] sm:$0x1]
      %v733 = vsel %vm363, 0, %v732
      %734 = vst [vmem:[#allocation5 + $0xc] sm:$0x1] %v733
      %v735 = vld [vmem:[#allocation5 + $0x14] sm:$0x1]
      %v736 = vsel %vm363, 0, %v735
      %737 = vst [vmem:[#allocation5 + $0x14] sm:$0x1] %v736
      %v738 = vld [vmem:[#allocation5 + $0x1c] sm:$0x1]
      %v739 = vsel %vm363, 0, %v738
      %740 = vst [vmem:[#allocation5 + $0x1c] sm:$0x1] %v739
      %v741 = vld [vmem:[#allocation5 + $0x24] sm:$0x1]
      %v742 = vsel %vm363, 0, %v741
      %743 = vst [vmem:[#allocation5 + $0x24] sm:$0x1] %v742
      %v744 = vld [vmem:[#allocation5 + $0x2c] sm:$0x1]
      %v745 = vsel %vm363, 0, %v744
      %746 = vst [vmem:[#allocation5 + $0x2c] sm:$0x1] %v745
      %v747 = vld [vmem:[#allocation5 + $0x34] sm:$0x1]
      %v748 = vsel %vm363, 0, %v747
      %749 = vst [vmem:[#allocation5 + $0x34] sm:$0x1] %v748
      %v750 = vld [vmem:[#allocation5 + $0x3c] sm:$0x1]
      %v751 = vsel %vm363, 0, %v750
      %752 = vst [vmem:[#allocation5 + $0x3c] sm:$0x1] %v751
      %v753 = vld [vmem:[#allocation5 + $0x44] sm:$0x1]
      %v754 = vsel %vm363, 0, %v753
      %755 = vst [vmem:[#allocation5 + $0x44] sm:$0x1] %v754
      %v756 = vld [vmem:[#allocation5 + $0x4c] sm:$0x1]
      %v757 = vsel %vm363, 0, %v756
      %758 = vst [vmem:[#allocation5 + $0x4c] sm:$0x1] %v757
      %v759 = vld [vmem:[#allocation5 + $0x54] sm:$0x1]
      %v760 = vsel %vm363, 0, %v759
      %761 = vst [vmem:[#allocation5 + $0x54] sm:$0x1] %v760
      %v762 = vld [vmem:[#allocation5 + $0x5c] sm:$0x1]
      %v763 = vsel %vm363, 0, %v762
      %764 = vst [vmem:[#allocation5 + $0x5c] sm:$0x1] %v763
      %v765 = vld [vmem:[#allocation5 + $0x64] sm:$0x1]
      %v766 = vsel %vm363, 0, %v765
      %767 = vst [vmem:[#allocation5 + $0x64] sm:$0x1] %v766
      %v768 = vld [vmem:[#allocation5 + $0x6c] sm:$0x1]
      %v769 = vsel %vm363, 0, %v768
      %770 = vst [vmem:[#allocation5 + $0x6c] sm:$0x1] %v769
      %v771 = vld [vmem:[#allocation5 + $0x74] sm:$0x1]
      %v772 = vsel %vm363, 0, %v771
      %773 = vst [vmem:[#allocation5 + $0x74] sm:$0x1] %v772
      %v774 = vld [vmem:[#allocation5 + $0x7c] sm:$0x1]
      %v775 = vsel %vm363, 0, %v774
      %776 = vst [vmem:[#allocation5 + $0x7c] sm:$0x1] %v775
      %v777 = vld [vmem:[#allocation5 + $0x84] sm:$0x1]
      %v778 = vsel %vm363, 0, %v777
      %779 = vst [vmem:[#allocation5 + $0x84] sm:$0x1] %v778
      %v780 = vld [vmem:[#allocation5 + $0x8c] sm:$0x1]
      %v781 = vsel %vm363, 0, %v780
      %782 = vst [vmem:[#allocation5 + $0x8c] sm:$0x1] %v781
      %v783 = vld [vmem:[#allocation5 + $0x94] sm:$0x1]
      %v784 = vsel %vm363, 0, %v783
      %785 = vst [vmem:[#allocation5 + $0x94] sm:$0x1] %v784
      %v786 = vld [vmem:[#allocation5 + $0x9c] sm:$0x1]
      %v787 = vsel %vm363, 0, %v786
      %788 = vst [vmem:[#allocation5 + $0x9c] sm:$0x1] %v787
      %v789 = vld [vmem:[%s287] sm:$0xf]
      %v790 = vld [vmem:[%s287 + $0x4] sm:$0xf]
      %v791 = vld [vmem:[%s287 + $0x8] sm:$0xf]
      %v792 = vld [vmem:[%s287 + $0xc] sm:$0xf]
      %v793 = vld [vmem:[%s287 + $0x10] sm:$0xf]
      %v794 = vld [vmem:[%s287 + $0x14] sm:$0xf]
      %v795 = vld [vmem:[%s287 + $0x18] sm:$0xf]
      %v796 = vld [vmem:[%s287 + $0x1c] sm:$0xf]
      %v797 = vld [vmem:[%s287 + $0x20] sm:$0xf]
      %v798 = vld [vmem:[%s287 + $0x24] sm:$0xf]
      %v799 = vld [vmem:[%s287 + $0x28] sm:$0xf]
      %v800 = vld [vmem:[%s287 + $0x2c] sm:$0xf]
      %v801 = vld [vmem:[%s287 + $0x30] sm:$0xf]
      %v802 = vld [vmem:[%s287 + $0x34] sm:$0xf]
      %v803 = vld [vmem:[%s287 + $0x38] sm:$0xf]
      %v804 = vld [vmem:[%s287 + $0x3c] sm:$0xf]
      %v806 = vshrl.u32 %v789, 16
      %v808 = vrot.slane %v806, 7
      %v809 = vshll.u32 %v789, 16
      %v811 = vor.u32 %v808, %v809
      %v812 = vrot.slane %v808, 4
      %v814 = vshrl.u32 %v790, 16
      %v816 = vrot.slane %v814, 7
      %v817 = vshll.u32 %v790, 16
      %v819 = vor.u32 %v816, %v817
      %v820 = vrot.slane %v816, 4
      %v822 = vshrl.u32 %v791, 16
      %v824 = vrot.slane %v822, 7
      %v825 = vshll.u32 %v791, 16
      %v827 = vor.u32 %v824, %v825
      %v828 = vrot.slane %v824, 4
      %v830 = vshrl.u32 %v792, 16
      %v832 = vrot.slane %v830, 7
      %v833 = vshll.u32 %v792, 16
      %v835 = vor.u32 %v832, %v833
      %v836 = vrot.slane %v832, 4
      %v838 = vshrl.u32 %v793, 16
      %v840 = vrot.slane %v838, 7
      %v841 = vshll.u32 %v793, 16
      %v843 = vor.u32 %v840, %v841
      %v844 = vrot.slane %v840, 4
      %v846 = vshrl.u32 %v794, 16
      %v848 = vrot.slane %v846, 7
      %v849 = vshll.u32 %v794, 16
      %v851 = vor.u32 %v848, %v849
      %v852 = vrot.slane %v848, 4
      %v854 = vshrl.u32 %v795, 16
      %v856 = vrot.slane %v854, 7
      %v857 = vshll.u32 %v795, 16
      %v859 = vor.u32 %v856, %v857
      %v860 = vrot.slane %v856, 4
      %v862 = vshrl.u32 %v796, 16
      %v864 = vrot.slane %v862, 7
      %v865 = vshll.u32 %v796, 16
      %v867 = vor.u32 %v864, %v865
      %v868 = vrot.slane %v864, 4
      %v870 = vshrl.u32 %v797, 16
      %v872 = vrot.slane %v870, 7
      %v873 = vshll.u32 %v797, 16
      %v875 = vor.u32 %v872, %v873
      %v876 = vrot.slane %v872, 4
      %v878 = vshrl.u32 %v798, 16
      %v880 = vrot.slane %v878, 7
      %v881 = vshll.u32 %v798, 16
      %v883 = vor.u32 %v880, %v881
      %v884 = vrot.slane %v880, 4
      %v886 = vshrl.u32 %v799, 16
      %v888 = vrot.slane %v886, 7
      %v889 = vshll.u32 %v799, 16
      %v891 = vor.u32 %v888, %v889
      %v892 = vrot.slane %v888, 4
      %v894 = vshrl.u32 %v800, 16
      %v896 = vrot.slane %v894, 7
      %v897 = vshll.u32 %v800, 16
      %v899 = vor.u32 %v896, %v897
      %v900 = vrot.slane %v896, 4
      %v902 = vshrl.u32 %v801, 16
      %v904 = vrot.slane %v902, 7
      %v905 = vshll.u32 %v801, 16
      %v907 = vor.u32 %v904, %v905
      %v908 = vrot.slane %v904, 4
      %v910 = vshrl.u32 %v802, 16
      %v912 = vrot.slane %v910, 7
      %v913 = vshll.u32 %v802, 16
      %v915 = vor.u32 %v912, %v913
      %v916 = vrot.slane %v912, 4
      %v918 = vshrl.u32 %v803, 16
      %v920 = vrot.slane %v918, 7
      %v921 = vshll.u32 %v803, 16
      %v923 = vor.u32 %v920, %v921
      %v924 = vrot.slane %v920, 4
      %v926 = vshrl.u32 %v804, 16
      %v928 = vrot.slane %v926, 7
      %v929 = vshll.u32 %v804, 16
      %v931 = vor.u32 %v928, %v929
      %v932 = vrot.slane %v928, 4
      %s965 = scalar_lea.vmem [#allocation2], 8
      %vm966 = vcmask 27648
      %vm967 = vmand %vm966, %vm362
      %v968 = vld [vmem:[%s965] sm:$0xf]
      %v969 = vsel %vm967, %v811, %v968
      %970 = vst [vmem:[%s965] sm:$0xf] %v969
      %v971 = vld [vmem:[%s965 + $0x4] sm:$0x1]
      %v972 = vsel %vm307, %v812, %v971
      %973 = vst [vmem:[%s965 + $0x4] sm:$0x1] %v972
      %v974 = vld [vmem:[%s965 + $0x8] sm:$0xf]
      %v975 = vsel %vm967, %v819, %v974
      %976 = vst [vmem:[%s965 + $0x8] sm:$0xf] %v975
      %v977 = vld [vmem:[%s965 + $0xc] sm:$0x1]
      %v978 = vsel %vm307, %v820, %v977
      %979 = vst [vmem:[%s965 + $0xc] sm:$0x1] %v978
      %v980 = vld [vmem:[%s965 + $0x10] sm:$0xf]
      %v981 = vsel %vm967, %v827, %v980
      %982 = vst [vmem:[%s965 + $0x10] sm:$0xf] %v981
      %v983 = vld [vmem:[%s965 + $0x14] sm:$0x1]
      %v984 = vsel %vm307, %v828, %v983
      %985 = vst [vmem:[%s965 + $0x14] sm:$0x1] %v984
      %v986 = vld [vmem:[%s965 + $0x18] sm:$0xf]
      %v987 = vsel %vm967, %v835, %v986
      %988 = vst [vmem:[%s965 + $0x18] sm:$0xf] %v987
      %v989 = vld [vmem:[%s965 + $0x1c] sm:$0x1]
      %v990 = vsel %vm307, %v836, %v989
      %991 = vst [vmem:[%s965 + $0x1c] sm:$0x1] %v990
      %v992 = vld [vmem:[%s965 + $0x20] sm:$0xf]
      %v993 = vsel %vm967, %v843, %v992
      %994 = vst [vmem:[%s965 + $0x20] sm:$0xf] %v993
      %v995 = vld [vmem:[%s965 + $0x24] sm:$0x1]
      %v996 = vsel %vm307, %v844, %v995
      %997 = vst [vmem:[%s965 + $0x24] sm:$0x1] %v996
      %v998 = vld [vmem:[%s965 + $0x28] sm:$0xf]
      %v999 = vsel %vm967, %v851, %v998
      %1000 = vst [vmem:[%s965 + $0x28] sm:$0xf] %v999
      %v1001 = vld [vmem:[%s965 + $0x2c] sm:$0x1]
      %v1002 = vsel %vm307, %v852, %v1001
      %1003 = vst [vmem:[%s965 + $0x2c] sm:$0x1] %v1002
      %v1004 = vld [vmem:[%s965 + $0x30] sm:$0xf]
      %v1005 = vsel %vm967, %v859, %v1004
      %1006 = vst [vmem:[%s965 + $0x30] sm:$0xf] %v1005
      %v1007 = vld [vmem:[%s965 + $0x34] sm:$0x1]
      %v1008 = vsel %vm307, %v860, %v1007
      %1009 = vst [vmem:[%s965 + $0x34] sm:$0x1] %v1008
      %v1010 = vld [vmem:[%s965 + $0x38] sm:$0xf]
      %v1011 = vsel %vm967, %v867, %v1010
      %1012 = vst [vmem:[%s965 + $0x38] sm:$0xf] %v1011
      %v1013 = vld [vmem:[%s965 + $0x3c] sm:$0x1]
      %v1014 = vsel %vm307, %v868, %v1013
      %1015 = vst [vmem:[%s965 + $0x3c] sm:$0x1] %v1014
      %v1016 = vld [vmem:[%s965 + $0x40] sm:$0xf]
      %v1017 = vsel %vm967, %v875, %v1016
      %1018 = vst [vmem:[%s965 + $0x40] sm:$0xf] %v1017
      %v1019 = vld [vmem:[%s965 + $0x44] sm:$0x1]
      %v1020 = vsel %vm307, %v876, %v1019
      %1021 = vst [vmem:[%s965 + $0x44] sm:$0x1] %v1020
      %v1022 = vld [vmem:[%s965 + $0x48] sm:$0xf]
      %v1023 = vsel %vm967, %v883, %v1022
      %1024 = vst [vmem:[%s965 + $0x48] sm:$0xf] %v1023
      %v1025 = vld [vmem:[%s965 + $0x4c] sm:$0x1]
      %v1026 = vsel %vm307, %v884, %v1025
      %1027 = vst [vmem:[%s965 + $0x4c] sm:$0x1] %v1026
      %v1028 = vld [vmem:[%s965 + $0x50] sm:$0xf]
      %v1029 = vsel %vm967, %v891, %v1028
      %1030 = vst [vmem:[%s965 + $0x50] sm:$0xf] %v1029
      %v1031 = vld [vmem:[%s965 + $0x54] sm:$0x1]
      %v1032 = vsel %vm307, %v892, %v1031
      %1033 = vst [vmem:[%s965 + $0x54] sm:$0x1] %v1032
      %v1034 = vld [vmem:[%s965 + $0x58] sm:$0xf]
      %v1035 = vsel %vm967, %v899, %v1034
      %1036 = vst [vmem:[%s965 + $0x58] sm:$0xf] %v1035
      %v1037 = vld [vmem:[%s965 + $0x5c] sm:$0x1]
      %v1038 = vsel %vm307, %v900, %v1037
      %1039 = vst [vmem:[%s965 + $0x5c] sm:$0x1] %v1038
      %v1040 = vld [vmem:[%s965 + $0x60] sm:$0xf]
      %v1041 = vsel %vm967, %v907, %v1040
      %1042 = vst [vmem:[%s965 + $0x60] sm:$0xf] %v1041
      %v1043 = vld [vmem:[%s965 + $0x64] sm:$0x1]
      %v1044 = vsel %vm307, %v908, %v1043
      %1045 = vst [vmem:[%s965 + $0x64] sm:$0x1] %v1044
      %v1046 = vld [vmem:[%s965 + $0x68] sm:$0xf]
      %v1047 = vsel %vm967, %v915, %v1046
      %1048 = vst [vmem:[%s965 + $0x68] sm:$0xf] %v1047
      %v1049 = vld [vmem:[%s965 + $0x6c] sm:$0x1]
      %v1050 = vsel %vm307, %v916, %v1049
      %1051 = vst [vmem:[%s965 + $0x6c] sm:$0x1] %v1050
      %v1052 = vld [vmem:[%s965 + $0x70] sm:$0xf]
      %v1053 = vsel %vm967, %v923, %v1052
      %1054 = vst [vmem:[%s965 + $0x70] sm:$0xf] %v1053
      %v1055 = vld [vmem:[%s965 + $0x74] sm:$0x1]
      %v1056 = vsel %vm307, %v924, %v1055
      %1057 = vst [vmem:[%s965 + $0x74] sm:$0x1] %v1056
      %v1058 = vld [vmem:[%s965 + $0x78] sm:$0xf]
      %v1059 = vsel %vm967, %v931, %v1058
      %1060 = vst [vmem:[%s965 + $0x78] sm:$0xf] %v1059
      %v1061 = vld [vmem:[%s965 + $0x7c] sm:$0x1]
      %v1062 = vsel %vm307, %v932, %v1061
      %1063 = vst [vmem:[%s965 + $0x7c] sm:$0x1] %v1062
      %v1064 = vld [vmem:[%s292] sm:$0xf]
      %v1065 = vld [vmem:[%s292 + $0x4] sm:$0xf]
      %v1066 = vld [vmem:[%s292 + $0x8] sm:$0xf]
      %v1067 = vld [vmem:[%s292 + $0xc] sm:$0xf]
      %v1068 = vld [vmem:[%s292 + $0x10] sm:$0xf]
      %v1069 = vld [vmem:[%s292 + $0x14] sm:$0xf]
      %v1070 = vld [vmem:[%s292 + $0x18] sm:$0xf]
      %v1071 = vld [vmem:[%s292 + $0x1c] sm:$0xf]
      %v1072 = vld [vmem:[%s292 + $0x20] sm:$0xf]
      %v1073 = vld [vmem:[%s292 + $0x24] sm:$0xf]
      %v1074 = vld [vmem:[%s292 + $0x28] sm:$0xf]
      %v1075 = vld [vmem:[%s292 + $0x2c] sm:$0xf]
      %v1076 = vld [vmem:[%s292 + $0x30] sm:$0xf]
      %v1077 = vld [vmem:[%s292 + $0x34] sm:$0xf]
      %v1078 = vld [vmem:[%s292 + $0x38] sm:$0xf]
      %v1079 = vld [vmem:[%s292 + $0x3c] sm:$0xf]
      %v1081 = vshrl.u32 %v1064, 16
      %v1083 = vrot.slane %v1081, 7
      %v1084 = vshll.u32 %v1064, 16
      %v1086 = vor.u32 %v1083, %v1084
      %v1087 = vrot.slane %v1083, 4
      %v1089 = vshrl.u32 %v1065, 16
      %v1091 = vrot.slane %v1089, 7
      %v1092 = vshll.u32 %v1065, 16
      %v1094 = vor.u32 %v1091, %v1092
      %v1095 = vrot.slane %v1091, 4
      %v1097 = vshrl.u32 %v1066, 16
      %v1099 = vrot.slane %v1097, 7
      %v1100 = vshll.u32 %v1066, 16
      %v1102 = vor.u32 %v1099, %v1100
      %v1103 = vrot.slane %v1099, 4
      %v1105 = vshrl.u32 %v1067, 16
      %v1107 = vrot.slane %v1105, 7
      %v1108 = vshll.u32 %v1067, 16
      %v1110 = vor.u32 %v1107, %v1108
      %v1111 = vrot.slane %v1107, 4
      %v1113 = vshrl.u32 %v1068, 16
      %v1115 = vrot.slane %v1113, 7
      %v1116 = vshll.u32 %v1068, 16
      %v1118 = vor.u32 %v1115, %v1116
      %v1119 = vrot.slane %v1115, 4
      %v1121 = vshrl.u32 %v1069, 16
      %v1123 = vrot.slane %v1121, 7
      %v1124 = vshll.u32 %v1069, 16
      %v1126 = vor.u32 %v1123, %v1124
      %v1127 = vrot.slane %v1123, 4
      %v1129 = vshrl.u32 %v1070, 16
      %v1131 = vrot.slane %v1129, 7
      %v1132 = vshll.u32 %v1070, 16
      %v1134 = vor.u32 %v1131, %v1132
      %v1135 = vrot.slane %v1131, 4
      %v1137 = vshrl.u32 %v1071, 16
      %v1139 = vrot.slane %v1137, 7
      %v1140 = vshll.u32 %v1071, 16
      %v1142 = vor.u32 %v1139, %v1140
      %v1143 = vrot.slane %v1139, 4
      %v1145 = vshrl.u32 %v1072, 16
      %v1147 = vrot.slane %v1145, 7
      %v1148 = vshll.u32 %v1072, 16
      %v1150 = vor.u32 %v1147, %v1148
      %v1151 = vrot.slane %v1147, 4
      %v1153 = vshrl.u32 %v1073, 16
      %v1155 = vrot.slane %v1153, 7
      %v1156 = vshll.u32 %v1073, 16
      %v1158 = vor.u32 %v1155, %v1156
      %v1159 = vrot.slane %v1155, 4
      %v1161 = vshrl.u32 %v1074, 16
      %v1163 = vrot.slane %v1161, 7
      %v1164 = vshll.u32 %v1074, 16
      %v1166 = vor.u32 %v1163, %v1164
      %v1167 = vrot.slane %v1163, 4
      %v1169 = vshrl.u32 %v1075, 16
      %v1171 = vrot.slane %v1169, 7
      %v1172 = vshll.u32 %v1075, 16
      %v1174 = vor.u32 %v1171, %v1172
      %v1175 = vrot.slane %v1171, 4
      %v1177 = vshrl.u32 %v1076, 16
      %v1179 = vrot.slane %v1177, 7
      %v1180 = vshll.u32 %v1076, 16
      %v1182 = vor.u32 %v1179, %v1180
      %v1183 = vrot.slane %v1179, 4
      %v1185 = vshrl.u32 %v1077, 16
      %v1187 = vrot.slane %v1185, 7
      %v1188 = vshll.u32 %v1077, 16
      %v1190 = vor.u32 %v1187, %v1188
      %v1191 = vrot.slane %v1187, 4
      %v1193 = vshrl.u32 %v1078, 16
      %v1195 = vrot.slane %v1193, 7
      %v1196 = vshll.u32 %v1078, 16
      %v1198 = vor.u32 %v1195, %v1196
      %v1199 = vrot.slane %v1195, 4
      %v1201 = vshrl.u32 %v1079, 16
      %v1203 = vrot.slane %v1201, 7
      %v1204 = vshll.u32 %v1079, 16
      %v1206 = vor.u32 %v1203, %v1204
      %v1207 = vrot.slane %v1203, 4
      %s1240 = scalar_lea.vmem [#allocation3], 8
      %v1241 = vld [vmem:[%s1240] sm:$0xf]
      %v1242 = vsel %vm967, %v1086, %v1241
      %1243 = vst [vmem:[%s1240] sm:$0xf] %v1242
      %v1244 = vld [vmem:[%s1240 + $0x4] sm:$0x1]
      %v1245 = vsel %vm307, %v1087, %v1244
      %1246 = vst [vmem:[%s1240 + $0x4] sm:$0x1] %v1245
      %v1247 = vld [vmem:[%s1240 + $0x8] sm:$0xf]
      %v1248 = vsel %vm967, %v1094, %v1247
      %1249 = vst [vmem:[%s1240 + $0x8] sm:$0xf] %v1248
      %v1250 = vld [vmem:[%s1240 + $0xc] sm:$0x1]
      %v1251 = vsel %vm307, %v1095, %v1250
      %1252 = vst [vmem:[%s1240 + $0xc] sm:$0x1] %v1251
      %v1253 = vld [vmem:[%s1240 + $0x10] sm:$0xf]
      %v1254 = vsel %vm967, %v1102, %v1253
      %1255 = vst [vmem:[%s1240 + $0x10] sm:$0xf] %v1254
      %v1256 = vld [vmem:[%s1240 + $0x14] sm:$0x1]
      %v1257 = vsel %vm307, %v1103, %v1256
      %1258 = vst [vmem:[%s1240 + $0x14] sm:$0x1] %v1257
      %v1259 = vld [vmem:[%s1240 + $0x18] sm:$0xf]
      %v1260 = vsel %vm967, %v1110, %v1259
      %1261 = vst [vmem:[%s1240 + $0x18] sm:$0xf] %v1260
      %v1262 = vld [vmem:[%s1240 + $0x1c] sm:$0x1]
      %v1263 = vsel %vm307, %v1111, %v1262
      %1264 = vst [vmem:[%s1240 + $0x1c] sm:$0x1] %v1263
      %v1265 = vld [vmem:[%s1240 + $0x20] sm:$0xf]
      %v1266 = vsel %vm967, %v1118, %v1265
      %1267 = vst [vmem:[%s1240 + $0x20] sm:$0xf] %v1266
      %v1268 = vld [vmem:[%s1240 + $0x24] sm:$0x1]
      %v1269 = vsel %vm307, %v1119, %v1268
      %1270 = vst [vmem:[%s1240 + $0x24] sm:$0x1] %v1269
      %v1271 = vld [vmem:[%s1240 + $0x28] sm:$0xf]
      %v1272 = vsel %vm967, %v1126, %v1271
      %1273 = vst [vmem:[%s1240 + $0x28] sm:$0xf] %v1272
      %v1274 = vld [vmem:[%s1240 + $0x2c] sm:$0x1]
      %v1275 = vsel %vm307, %v1127, %v1274
      %1276 = vst [vmem:[%s1240 + $0x2c] sm:$0x1] %v1275
      %v1277 = vld [vmem:[%s1240 + $0x30] sm:$0xf]
      %v1278 = vsel %vm967, %v1134, %v1277
      %1279 = vst [vmem:[%s1240 + $0x30] sm:$0xf] %v1278
      %v1280 = vld [vmem:[%s1240 + $0x34] sm:$0x1]
      %v1281 = vsel %vm307, %v1135, %v1280
      %1282 = vst [vmem:[%s1240 + $0x34] sm:$0x1] %v1281
      %v1283 = vld [vmem:[%s1240 + $0x38] sm:$0xf]
      %v1284 = vsel %vm967, %v1142, %v1283
      %1285 = vst [vmem:[%s1240 + $0x38] sm:$0xf] %v1284
      %v1286 = vld [vmem:[%s1240 + $0x3c] sm:$0x1]
      %v1287 = vsel %vm307, %v1143, %v1286
      %1288 = vst [vmem:[%s1240 + $0x3c] sm:$0x1] %v1287
      %v1289 = vld [vmem:[%s1240 + $0x40] sm:$0xf]
      %v1290 = vsel %vm967, %v1150, %v1289
      %1291 = vst [vmem:[%s1240 + $0x40] sm:$0xf] %v1290
      %v1292 = vld [vmem:[%s1240 + $0x44] sm:$0x1]
      %v1293 = vsel %vm307, %v1151, %v1292
      %1294 = vst [vmem:[%s1240 + $0x44] sm:$0x1] %v1293
      %v1295 = vld [vmem:[%s1240 + $0x48] sm:$0xf]
      %v1296 = vsel %vm967, %v1158, %v1295
      %1297 = vst [vmem:[%s1240 + $0x48] sm:$0xf] %v1296
      %v1298 = vld [vmem:[%s1240 + $0x4c] sm:$0x1]
      %v1299 = vsel %vm307, %v1159, %v1298
      %1300 = vst [vmem:[%s1240 + $0x4c] sm:$0x1] %v1299
      %v1301 = vld [vmem:[%s1240 + $0x50] sm:$0xf]
      %v1302 = vsel %vm967, %v1166, %v1301
      %1303 = vst [vmem:[%s1240 + $0x50] sm:$0xf] %v1302
      %v1304 = vld [vmem:[%s1240 + $0x54] sm:$0x1]
      %v1305 = vsel %vm307, %v1167, %v1304
      %1306 = vst [vmem:[%s1240 + $0x54] sm:$0x1] %v1305
      %v1307 = vld [vmem:[%s1240 + $0x58] sm:$0xf]
      %v1308 = vsel %vm967, %v1174, %v1307
      %1309 = vst [vmem:[%s1240 + $0x58] sm:$0xf] %v1308
      %v1310 = vld [vmem:[%s1240 + $0x5c] sm:$0x1]
      %v1311 = vsel %vm307, %v1175, %v1310
      %1312 = vst [vmem:[%s1240 + $0x5c] sm:$0x1] %v1311
      %v1313 = vld [vmem:[%s1240 + $0x60] sm:$0xf]
      %v1314 = vsel %vm967, %v1182, %v1313
      %1315 = vst [vmem:[%s1240 + $0x60] sm:$0xf] %v1314
      %v1316 = vld [vmem:[%s1240 + $0x64] sm:$0x1]
      %v1317 = vsel %vm307, %v1183, %v1316
      %1318 = vst [vmem:[%s1240 + $0x64] sm:$0x1] %v1317
      %v1319 = vld [vmem:[%s1240 + $0x68] sm:$0xf]
      %v1320 = vsel %vm967, %v1190, %v1319
      %1321 = vst [vmem:[%s1240 + $0x68] sm:$0xf] %v1320
      %v1322 = vld [vmem:[%s1240 + $0x6c] sm:$0x1]
      %v1323 = vsel %vm307, %v1191, %v1322
      %1324 = vst [vmem:[%s1240 + $0x6c] sm:$0x1] %v1323
      %v1325 = vld [vmem:[%s1240 + $0x70] sm:$0xf]
      %v1326 = vsel %vm967, %v1198, %v1325
      %1327 = vst [vmem:[%s1240 + $0x70] sm:$0xf] %v1326
      %v1328 = vld [vmem:[%s1240 + $0x74] sm:$0x1]
      %v1329 = vsel %vm307, %v1199, %v1328
      %1330 = vst [vmem:[%s1240 + $0x74] sm:$0x1] %v1329
      %v1331 = vld [vmem:[%s1240 + $0x78] sm:$0xf]
      %v1332 = vsel %vm967, %v1206, %v1331
      %1333 = vst [vmem:[%s1240 + $0x78] sm:$0xf] %v1332
      %v1334 = vld [vmem:[%s1240 + $0x7c] sm:$0x1]
      %v1335 = vsel %vm307, %v1207, %v1334
      %1336 = vst [vmem:[%s1240 + $0x7c] sm:$0x1] %v1335
      %v1337 = vld [vmem:[#allocation2] sm:$0xf]
      %v1338 = vld [vmem:[#allocation2 + $0x4] sm:$0x1]
      %v1339 = vld [vmem:[#allocation2 + $0x8] sm:$0xf]
      %v1340 = vld [vmem:[#allocation2 + $0xc] sm:$0x1]
      %v1341 = vld [vmem:[#allocation2 + $0x10] sm:$0xf]
      %v1342 = vld [vmem:[#allocation2 + $0x14] sm:$0x1]
      %v1343 = vld [vmem:[#allocation2 + $0x18] sm:$0xf]
      %v1344 = vld [vmem:[#allocation2 + $0x1c] sm:$0x1]
      %v1345 = vld [vmem:[#allocation2 + $0x20] sm:$0xf]
      %v1346 = vld [vmem:[#allocation2 + $0x24] sm:$0x1]
      %v1347 = vld [vmem:[#allocation2 + $0x28] sm:$0xf]
      %v1348 = vld [vmem:[#allocation2 + $0x2c] sm:$0x1]
      %v1349 = vld [vmem:[#allocation2 + $0x30] sm:$0xf]
      %v1350 = vld [vmem:[#allocation2 + $0x34] sm:$0x1]
      %v1351 = vld [vmem:[#allocation2 + $0x38] sm:$0xf]
      %v1352 = vld [vmem:[#allocation2 + $0x3c] sm:$0x1]
      %v1353 = vld [vmem:[#allocation2 + $0x40] sm:$0xf]
      %v1354 = vld [vmem:[#allocation2 + $0x44] sm:$0x1]
      %v1355 = vld [vmem:[#allocation2 + $0x48] sm:$0xf]
      %v1356 = vld [vmem:[#allocation2 + $0x4c] sm:$0x1]
      %v1357 = vld [vmem:[#allocation2 + $0x50] sm:$0xf]
      %v1358 = vld [vmem:[#allocation2 + $0x54] sm:$0x1]
      %v1359 = vld [vmem:[#allocation2 + $0x58] sm:$0xf]
      %v1360 = vld [vmem:[#allocation2 + $0x5c] sm:$0x1]
      %v1361 = vld [vmem:[#allocation2 + $0x60] sm:$0xf]
      %v1362 = vld [vmem:[#allocation2 + $0x64] sm:$0x1]
      %v1363 = vld [vmem:[#allocation2 + $0x68] sm:$0xf]
      %v1364 = vld [vmem:[#allocation2 + $0x6c] sm:$0x1]
      %v1365 = vld [vmem:[#allocation2 + $0x70] sm:$0xf]
      %v1366 = vld [vmem:[#allocation2 + $0x74] sm:$0x1]
      %v1367 = vld [vmem:[#allocation2 + $0x78] sm:$0xf]
      %v1368 = vld [vmem:[#allocation2 + $0x7c] sm:$0x1]
      %v1369 = vld [vmem:[#allocation2 + $0x80] sm:$0xf]
      %v1370 = vld [vmem:[#allocation2 + $0x84] sm:$0x1]
      %v1371 = vld [vmem:[#allocation2 + $0x88] sm:$0xf]
      %v1372 = vld [vmem:[#allocation2 + $0x8c] sm:$0x1]
      %v1373 = vld [vmem:[#allocation3] sm:$0xf]
      %v1374 = vld [vmem:[#allocation3 + $0x4] sm:$0x1]
      %v1375 = vld [vmem:[#allocation3 + $0x8] sm:$0xf]
      %v1376 = vld [vmem:[#allocation3 + $0xc] sm:$0x1]
      %v1377 = vld [vmem:[#allocation3 + $0x10] sm:$0xf]
      %v1378 = vld [vmem:[#allocation3 + $0x14] sm:$0x1]
      %v1379 = vld [vmem:[#allocation3 + $0x18] sm:$0xf]
      %v1380 = vld [vmem:[#allocation3 + $0x1c] sm:$0x1]
      %v1381 = vld [vmem:[#allocation3 + $0x20] sm:$0xf]
      %v1382 = vld [vmem:[#allocation3 + $0x24] sm:$0x1]
      %v1383 = vld [vmem:[#allocation3 + $0x28] sm:$0xf]
      %v1384 = vld [vmem:[#allocation3 + $0x2c] sm:$0x1]
      %v1385 = vld [vmem:[#allocation3 + $0x30] sm:$0xf]
      %v1386 = vld [vmem:[#allocation3 + $0x34] sm:$0x1]
      %v1387 = vld [vmem:[#allocation3 + $0x38] sm:$0xf]
      %v1388 = vld [vmem:[#allocation3 + $0x3c] sm:$0x1]
      %v1389 = vld [vmem:[#allocation3 + $0x40] sm:$0xf]
      %v1390 = vld [vmem:[#allocation3 + $0x44] sm:$0x1]
      %v1391 = vld [vmem:[#allocation3 + $0x48] sm:$0xf]
      %v1392 = vld [vmem:[#allocation3 + $0x4c] sm:$0x1]
      %v1393 = vld [vmem:[#allocation3 + $0x50] sm:$0xf]
      %v1394 = vld [vmem:[#allocation3 + $0x54] sm:$0x1]
      %v1395 = vld [vmem:[#allocation3 + $0x58] sm:$0xf]
      %v1396 = vld [vmem:[#allocation3 + $0x5c] sm:$0x1]
      %v1397 = vld [vmem:[#allocation3 + $0x60] sm:$0xf]
      %v1398 = vld [vmem:[#allocation3 + $0x64] sm:$0x1]
      %v1399 = vld [vmem:[#allocation3 + $0x68] sm:$0xf]
      %v1400 = vld [vmem:[#allocation3 + $0x6c] sm:$0x1]
      %v1401 = vld [vmem:[#allocation3 + $0x70] sm:$0xf]
      %v1402 = vld [vmem:[#allocation3 + $0x74] sm:$0x1]
      %v1403 = vld [vmem:[#allocation3 + $0x78] sm:$0xf]
      %v1404 = vld [vmem:[#allocation3 + $0x7c] sm:$0x1]
      %v1405 = vld [vmem:[#allocation3 + $0x80] sm:$0xf]
      %v1406 = vld [vmem:[#allocation3 + $0x84] sm:$0x1]
      %v1407 = vld [vmem:[#allocation3 + $0x88] sm:$0xf]
      %v1408 = vld [vmem:[#allocation3 + $0x8c] sm:$0x1]
      %vm1409 = vsmask.f32 3328
      %vm1410 = vsmask.f32 7440
      %vm1411 = vmor %vm1409, %vm1410
      %v1413 = vshrl.u32 %v1337, 16
      %v1415 = vrot.slane %v1413, 4
      %v1416 = vshll.u32 %v1337, 16
      %v1418 = vrot.slane %v1416, 5
      %v1419 = vor.u32 %v1415, %v1418
      %v1420 = vrot.slane %v1419, 4
      %v1422 = vshll.u32 %v1338, 16
      %v1424 = vrot.slane %v1422, 5
      %v1425 = vsel %vm1411, %v1420, %v1424
      %v1427 = vshrl.u32 %v1339, 16
      %v1429 = vrot.slane %v1427, 4
      %v1430 = vshll.u32 %v1339, 16
      %v1432 = vrot.slane %v1430, 5
      %v1433 = vor.u32 %v1429, %v1432
      %v1434 = vrot.slane %v1433, 4
      %v1436 = vshll.u32 %v1340, 16
      %v1438 = vrot.slane %v1436, 5
      %v1439 = vsel %vm1411, %v1434, %v1438
      %v1441 = vshrl.u32 %v1341, 16
      %v1443 = vrot.slane %v1441, 4
      %v1444 = vshll.u32 %v1341, 16
      %v1446 = vrot.slane %v1444, 5
      %v1447 = vor.u32 %v1443, %v1446
      %v1448 = vrot.slane %v1447, 4
      %v1450 = vshll.u32 %v1342, 16
      %v1452 = vrot.slane %v1450, 5
      %v1453 = vsel %vm1411, %v1448, %v1452
      %v1455 = vshrl.u32 %v1343, 16
      %v1457 = vrot.slane %v1455, 4
      %v1458 = vshll.u32 %v1343, 16
      %v1460 = vrot.slane %v1458, 5
      %v1461 = vor.u32 %v1457, %v1460
      %v1462 = vrot.slane %v1461, 4
      %v1464 = vshll.u32 %v1344, 16
      %v1466 = vrot.slane %v1464, 5
      %v1467 = vsel %vm1411, %v1462, %v1466
      %v1469 = vshrl.u32 %v1345, 16
      %v1471 = vrot.slane %v1469, 4
      %v1472 = vshll.u32 %v1345, 16
      %v1474 = vrot.slane %v1472, 5
      %v1475 = vor.u32 %v1471, %v1474
      %v1476 = vrot.slane %v1475, 4
      %v1478 = vshll.u32 %v1346, 16
      %v1480 = vrot.slane %v1478, 5
      %v1481 = vsel %vm1411, %v1476, %v1480
      %v1483 = vshrl.u32 %v1347, 16
      %v1485 = vrot.slane %v1483, 4
      %v1486 = vshll.u32 %v1347, 16
      %v1488 = vrot.slane %v1486, 5
      %v1489 = vor.u32 %v1485, %v1488
      %v1490 = vrot.slane %v1489, 4
      %v1492 = vshll.u32 %v1348, 16
      %v1494 = vrot.slane %v1492, 5
      %v1495 = vsel %vm1411, %v1490, %v1494
      %v1497 = vshrl.u32 %v1349, 16
      %v1499 = vrot.slane %v1497, 4
      %v1500 = vshll.u32 %v1349, 16
      %v1502 = vrot.slane %v1500, 5
      %v1503 = vor.u32 %v1499, %v1502
      %v1504 = vrot.slane %v1503, 4
      %v1506 = vshll.u32 %v1350, 16
      %v1508 = vrot.slane %v1506, 5
      %v1509 = vsel %vm1411, %v1504, %v1508
      %v1511 = vshrl.u32 %v1351, 16
      %v1513 = vrot.slane %v1511, 4
      %v1514 = vshll.u32 %v1351, 16
      %v1516 = vrot.slane %v1514, 5
      %v1517 = vor.u32 %v1513, %v1516
      %v1518 = vrot.slane %v1517, 4
      %v1520 = vshll.u32 %v1352, 16
      %v1522 = vrot.slane %v1520, 5
      %v1523 = vsel %vm1411, %v1518, %v1522
      %v1525 = vshrl.u32 %v1353, 16
      %v1527 = vrot.slane %v1525, 4
      %v1528 = vshll.u32 %v1353, 16
      %v1530 = vrot.slane %v1528, 5
      %v1531 = vor.u32 %v1527, %v1530
      %v1532 = vrot.slane %v1531, 4
      %v1534 = vshll.u32 %v1354, 16
      %v1536 = vrot.slane %v1534, 5
      %v1537 = vsel %vm1411, %v1532, %v1536
      %v1539 = vshrl.u32 %v1355, 16
      %v1541 = vrot.slane %v1539, 4
      %v1542 = vshll.u32 %v1355, 16
      %v1544 = vrot.slane %v1542, 5
      %v1545 = vor.u32 %v1541, %v1544
      %v1546 = vrot.slane %v1545, 4
      %v1548 = vshll.u32 %v1356, 16
      %v1550 = vrot.slane %v1548, 5
      %v1551 = vsel %vm1411, %v1546, %v1550
      %v1553 = vshrl.u32 %v1357, 16
      %v1555 = vrot.slane %v1553, 4
      %v1556 = vshll.u32 %v1357, 16
      %v1558 = vrot.slane %v1556, 5
      %v1559 = vor.u32 %v1555, %v1558
      %v1560 = vrot.slane %v1559, 4
      %v1562 = vshll.u32 %v1358, 16
      %v1564 = vrot.slane %v1562, 5
      %v1565 = vsel %vm1411, %v1560, %v1564
      %v1567 = vshrl.u32 %v1359, 16
      %v1569 = vrot.slane %v1567, 4
      %v1570 = vshll.u32 %v1359, 16
      %v1572 = vrot.slane %v1570, 5
      %v1573 = vor.u32 %v1569, %v1572
      %v1574 = vrot.slane %v1573, 4
      %v1576 = vshll.u32 %v1360, 16
      %v1578 = vrot.slane %v1576, 5
      %v1579 = vsel %vm1411, %v1574, %v1578
      %v1581 = vshrl.u32 %v1361, 16
      %v1583 = vrot.slane %v1581, 4
      %v1584 = vshll.u32 %v1361, 16
      %v1586 = vrot.slane %v1584, 5
      %v1587 = vor.u32 %v1583, %v1586
      %v1588 = vrot.slane %v1587, 4
      %v1590 = vshll.u32 %v1362, 16
      %v1592 = vrot.slane %v1590, 5
      %v1593 = vsel %vm1411, %v1588, %v1592
      %v1595 = vshrl.u32 %v1363, 16
      %v1597 = vrot.slane %v1595, 4
      %v1598 = vshll.u32 %v1363, 16
      %v1600 = vrot.slane %v1598, 5
      %v1601 = vor.u32 %v1597, %v1600
      %v1602 = vrot.slane %v1601, 4
      %v1604 = vshll.u32 %v1364, 16
      %v1606 = vrot.slane %v1604, 5
      %v1607 = vsel %vm1411, %v1602, %v1606
      %v1609 = vshrl.u32 %v1365, 16
      %v1611 = vrot.slane %v1609, 4
      %v1612 = vshll.u32 %v1365, 16
      %v1614 = vrot.slane %v1612, 5
      %v1615 = vor.u32 %v1611, %v1614
      %v1616 = vrot.slane %v1615, 4
      %v1618 = vshll.u32 %v1366, 16
      %v1620 = vrot.slane %v1618, 5
      %v1621 = vsel %vm1411, %v1616, %v1620
      %v1623 = vshrl.u32 %v1367, 16
      %v1625 = vrot.slane %v1623, 4
      %v1626 = vshll.u32 %v1367, 16
      %v1628 = vrot.slane %v1626, 5
      %v1629 = vor.u32 %v1625, %v1628
      %v1630 = vrot.slane %v1629, 4
      %v1632 = vshll.u32 %v1368, 16
      %v1634 = vrot.slane %v1632, 5
      %v1635 = vsel %vm1411, %v1630, %v1634
      %v1637 = vshrl.u32 %v1373, 16
      %v1639 = vrot.slane %v1637, 4
      %v1640 = vshll.u32 %v1373, 16
      %v1642 = vrot.slane %v1640, 5
      %v1643 = vor.u32 %v1639, %v1642
      %v1644 = vrot.slane %v1643, 4
      %v1646 = vshll.u32 %v1374, 16
      %v1648 = vrot.slane %v1646, 5
      %v1649 = vsel %vm1411, %v1644, %v1648
      %v1651 = vshrl.u32 %v1375, 16
      %v1653 = vrot.slane %v1651, 4
      %v1654 = vshll.u32 %v1375, 16
      %v1656 = vrot.slane %v1654, 5
      %v1657 = vor.u32 %v1653, %v1656
      %v1658 = vrot.slane %v1657, 4
      %v1660 = vshll.u32 %v1376, 16
      %v1662 = vrot.slane %v1660, 5
      %v1663 = vsel %vm1411, %v1658, %v1662
      %v1665 = vshrl.u32 %v1377, 16
      %v1667 = vrot.slane %v1665, 4
      %v1668 = vshll.u32 %v1377, 16
      %v1670 = vrot.slane %v1668, 5
      %v1671 = vor.u32 %v1667, %v1670
      %v1672 = vrot.slane %v1671, 4
      %v1674 = vshll.u32 %v1378, 16
      %v1676 = vrot.slane %v1674, 5
      %v1677 = vsel %vm1411, %v1672, %v1676
      %v1679 = vshrl.u32 %v1379, 16
      %v1681 = vrot.slane %v1679, 4
      %v1682 = vshll.u32 %v1379, 16
      %v1684 = vrot.slane %v1682, 5
      %v1685 = vor.u32 %v1681, %v1684
      %v1686 = vrot.slane %v1685, 4
      %v1688 = vshll.u32 %v1380, 16
      %v1690 = vrot.slane %v1688, 5
      %v1691 = vsel %vm1411, %v1686, %v1690
      %v1693 = vshrl.u32 %v1381, 16
      %v1695 = vrot.slane %v1693, 4
      %v1696 = vshll.u32 %v1381, 16
      %v1698 = vrot.slane %v1696, 5
      %v1699 = vor.u32 %v1695, %v1698
      %v1700 = vrot.slane %v1699, 4
      %v1702 = vshll.u32 %v1382, 16
      %v1704 = vrot.slane %v1702, 5
      %v1705 = vsel %vm1411, %v1700, %v1704
      %v1707 = vshrl.u32 %v1383, 16
      %v1709 = vrot.slane %v1707, 4
      %v1710 = vshll.u32 %v1383, 16
      %v1712 = vrot.slane %v1710, 5
      %v1713 = vor.u32 %v1709, %v1712
      %v1714 = vrot.slane %v1713, 4
      %v1716 = vshll.u32 %v1384, 16
      %v1718 = vrot.slane %v1716, 5
      %v1719 = vsel %vm1411, %v1714, %v1718
      %v1721 = vshrl.u32 %v1385, 16
      %v1723 = vrot.slane %v1721, 4
      %v1724 = vshll.u32 %v1385, 16
      %v1726 = vrot.slane %v1724, 5
      %v1727 = vor.u32 %v1723, %v1726
      %v1728 = vrot.slane %v1727, 4
      %v1730 = vshll.u32 %v1386, 16
      %v1732 = vrot.slane %v1730, 5
      %v1733 = vsel %vm1411, %v1728, %v1732
      %v1735 = vshrl.u32 %v1387, 16
      %v1737 = vrot.slane %v1735, 4
      %v1738 = vshll.u32 %v1387, 16
      %v1740 = vrot.slane %v1738, 5
      %v1741 = vor.u32 %v1737, %v1740
      %v1742 = vrot.slane %v1741, 4
      %v1744 = vshll.u32 %v1388, 16
      %v1746 = vrot.slane %v1744, 5
      %v1747 = vsel %vm1411, %v1742, %v1746
      %v1749 = vshrl.u32 %v1389, 16
      %v1751 = vrot.slane %v1749, 4
      %v1752 = vshll.u32 %v1389, 16
      %v1754 = vrot.slane %v1752, 5
      %v1755 = vor.u32 %v1751, %v1754
      %v1756 = vrot.slane %v1755, 4
      %v1758 = vshll.u32 %v1390, 16
      %v1760 = vrot.slane %v1758, 5
      %v1761 = vsel %vm1411, %v1756, %v1760
      %v1763 = vshrl.u32 %v1391, 16
      %v1765 = vrot.slane %v1763, 4
      %v1766 = vshll.u32 %v1391, 16
      %v1768 = vrot.slane %v1766, 5
      %v1769 = vor.u32 %v1765, %v1768
      %v1770 = vrot.slane %v1769, 4
      %v1772 = vshll.u32 %v1392, 16
      %v1774 = vrot.slane %v1772, 5
      %v1775 = vsel %vm1411, %v1770, %v1774
      %v1777 = vshrl.u32 %v1393, 16
      %v1779 = vrot.slane %v1777, 4
      %v1780 = vshll.u32 %v1393, 16
      %v1782 = vrot.slane %v1780, 5
      %v1783 = vor.u32 %v1779, %v1782
      %v1784 = vrot.slane %v1783, 4
      %v1786 = vshll.u32 %v1394, 16
      %v1788 = vrot.slane %v1786, 5
      %v1789 = vsel %vm1411, %v1784, %v1788
      %v1791 = vshrl.u32 %v1395, 16
      %v1793 = vrot.slane %v1791, 4
      %v1794 = vshll.u32 %v1395, 16
      %v1796 = vrot.slane %v1794, 5
      %v1797 = vor.u32 %v1793, %v1796
      %v1798 = vrot.slane %v1797, 4
      %v1800 = vshll.u32 %v1396, 16
      %v1802 = vrot.slane %v1800, 5
      %v1803 = vsel %vm1411, %v1798, %v1802
      %v1805 = vshrl.u32 %v1397, 16
      %v1807 = vrot.slane %v1805, 4
      %v1808 = vshll.u32 %v1397, 16
      %v1810 = vrot.slane %v1808, 5
      %v1811 = vor.u32 %v1807, %v1810
      %v1812 = vrot.slane %v1811, 4
      %v1814 = vshll.u32 %v1398, 16
      %v1816 = vrot.slane %v1814, 5
      %v1817 = vsel %vm1411, %v1812, %v1816
      %v1819 = vshrl.u32 %v1399, 16
      %v1821 = vrot.slane %v1819, 4
      %v1822 = vshll.u32 %v1399, 16
      %v1824 = vrot.slane %v1822, 5
      %v1825 = vor.u32 %v1821, %v1824
      %v1826 = vrot.slane %v1825, 4
      %v1828 = vshll.u32 %v1400, 16
      %v1830 = vrot.slane %v1828, 5
      %v1831 = vsel %vm1411, %v1826, %v1830
      %v1833 = vshrl.u32 %v1401, 16
      %v1835 = vrot.slane %v1833, 4
      %v1836 = vshll.u32 %v1401, 16
      %v1838 = vrot.slane %v1836, 5
      %v1839 = vor.u32 %v1835, %v1838
      %v1840 = vrot.slane %v1839, 4
      %v1842 = vshll.u32 %v1402, 16
      %v1844 = vrot.slane %v1842, 5
      %v1845 = vsel %vm1411, %v1840, %v1844
      %v1847 = vshrl.u32 %v1403, 16
      %v1849 = vrot.slane %v1847, 4
      %v1850 = vshll.u32 %v1403, 16
      %v1852 = vrot.slane %v1850, 5
      %v1853 = vor.u32 %v1849, %v1852
      %v1854 = vrot.slane %v1853, 4
      %v1856 = vshll.u32 %v1404, 16
      %v1858 = vrot.slane %v1856, 5
      %v1859 = vsel %vm1411, %v1854, %v1858
      %v1876 = vunpack.c.l.b16 %v1373
      %v1877 = vunpack.c.l.b16 %v1375
      %v1878 = vunpack.c.l.b16 %v1377
      %v1879 = vunpack.c.l.b16 %v1379
      %v1880 = vunpack.c.l.b16 %v1381
      %v1881 = vunpack.c.l.b16 %v1383
      %v1882 = vunpack.c.l.b16 %v1385
      %v1883 = vunpack.c.l.b16 %v1387
      %v1884 = vunpack.c.l.b16 %v1389
      %v1885 = vunpack.c.l.b16 %v1391
      %v1886 = vunpack.c.l.b16 %v1393
      %v1887 = vunpack.c.l.b16 %v1395
      %v1888 = vunpack.c.l.b16 %v1397
      %v1889 = vunpack.c.l.b16 %v1399
      %v1890 = vunpack.c.l.b16 %v1401
      %v1891 = vunpack.c.l.b16 %v1403
      %v1892 = vpack.c.b16 %v1877, %v1876
      %v1893 = vpack.c.b16 %v1879, %v1878
      %v1894 = vpack.c.b16 %v1881, %v1880
      %v1895 = vpack.c.b16 %v1883, %v1882
      %v1896 = vpack.c.b16 %v1885, %v1884
      %v1897 = vpack.c.b16 %v1887, %v1886
      %v1898 = vpack.c.b16 %v1889, %v1888
      %v1899 = vpack.c.b16 %v1891, %v1890
      %v1900 = vunpack.c.l.b16 %v1425
      %v1901 = vunpack.c.l.b16 %v1439
      %v1902 = vunpack.c.l.b16 %v1453
      %v1903 = vunpack.c.l.b16 %v1467
      %v1904 = vunpack.c.l.b16 %v1481
      %v1905 = vunpack.c.l.b16 %v1495
      %v1906 = vunpack.c.l.b16 %v1509
      %v1907 = vunpack.c.l.b16 %v1523
      %v1908 = vunpack.c.l.b16 %v1537
      %v1909 = vunpack.c.l.b16 %v1551
      %v1910 = vunpack.c.l.b16 %v1565
      %v1911 = vunpack.c.l.b16 %v1579
      %v1912 = vunpack.c.l.b16 %v1593
      %v1913 = vunpack.c.l.b16 %v1607
      %v1914 = vunpack.c.l.b16 %v1621
      %v1915 = vunpack.c.l.b16 %v1635
      %v1916 = vpack.c.b16 %v1901, %v1900
      %v1917 = vpack.c.b16 %v1903, %v1902
      %v1918 = vpack.c.b16 %v1905, %v1904
      %v1919 = vpack.c.b16 %v1907, %v1906
      %v1920 = vpack.c.b16 %v1909, %v1908
      %v1921 = vpack.c.b16 %v1911, %v1910
      %v1922 = vpack.c.b16 %v1913, %v1912
      %v1923 = vpack.c.b16 %v1915, %v1914
      %1924 = vrot.lane.b32.xlu0 %v1916, 4
      %v1925 = vpop.permute.xlu0 %1924
      %1926 = vrot.lane.b32.xlu0 %v1917, 4
      %v1927 = vpop.permute.xlu0 %1926
      %1928 = vrot.lane.b32.xlu0 %v1918, 4
      %v1929 = vpop.permute.xlu0 %1928
      %1930 = vrot.lane.b32.xlu0 %v1919, 4
      %v1931 = vpop.permute.xlu0 %1930
      %1932 = vrot.lane.b32.xlu0 %v1920, 4
      %v1933 = vpop.permute.xlu0 %1932
      %1934 = vrot.lane.b32.xlu0 %v1921, 4
      %v1935 = vpop.permute.xlu0 %1934
      %1936 = vrot.lane.b32.xlu0 %v1922, 4
      %v1937 = vpop.permute.xlu0 %1936
      %1938 = vrot.lane.b32.xlu0 %v1923, 4
      %v1939 = vpop.permute.xlu0 %1938
      %v1940 = vunpack.c.l.b16 %v1649
      %v1941 = vunpack.c.l.b16 %v1663
      %v1942 = vunpack.c.l.b16 %v1677
      %v1943 = vunpack.c.l.b16 %v1691
      %v1944 = vunpack.c.l.b16 %v1705
      %v1945 = vunpack.c.l.b16 %v1719
      %v1946 = vunpack.c.l.b16 %v1733
      %v1947 = vunpack.c.l.b16 %v1747
      %v1948 = vunpack.c.l.b16 %v1761
      %v1949 = vunpack.c.l.b16 %v1775
      %v1950 = vunpack.c.l.b16 %v1789
      %v1951 = vunpack.c.l.b16 %v1803
      %v1952 = vunpack.c.l.b16 %v1817
      %v1953 = vunpack.c.l.b16 %v1831
      %v1954 = vunpack.c.l.b16 %v1845
      %v1955 = vunpack.c.l.b16 %v1859
      %v1956 = vpack.c.b16 %v1941, %v1940
      %v1957 = vpack.c.b16 %v1943, %v1942
      %v1958 = vpack.c.b16 %v1945, %v1944
      %v1959 = vpack.c.b16 %v1947, %v1946
      %v1960 = vpack.c.b16 %v1949, %v1948
      %v1961 = vpack.c.b16 %v1951, %v1950
      %v1962 = vpack.c.b16 %v1953, %v1952
      %v1963 = vpack.c.b16 %v1955, %v1954
      %1964 = vrot.lane.b32.xlu0 %v1956, 8
      %v1965 = vpop.permute.xlu0 %1964
      %1966 = vrot.lane.b32.xlu0 %v1957, 8
      %v1967 = vpop.permute.xlu0 %1966
      %1968 = vrot.lane.b32.xlu0 %v1958, 8
      %v1969 = vpop.permute.xlu0 %1968
      %1970 = vrot.lane.b32.xlu0 %v1959, 8
      %v1971 = vpop.permute.xlu0 %1970
      %1972 = vrot.lane.b32.xlu0 %v1960, 8
      %v1973 = vpop.permute.xlu0 %1972
      %1974 = vrot.lane.b32.xlu0 %v1961, 8
      %v1975 = vpop.permute.xlu0 %1974
      %1976 = vrot.lane.b32.xlu0 %v1962, 8
      %v1977 = vpop.permute.xlu0 %1976
      %1978 = vrot.lane.b32.xlu0 %v1963, 8
      %v1979 = vpop.permute.xlu0 %1978
      %vm1980 = vcmask 31744
      %v1983 = vsel %vm1980, %v1892, %v1925
      %v1986 = vsel %vm1980, %v1893, %v1927
      %v1989 = vsel %vm1980, %v1894, %v1929
      %v1992 = vsel %vm1980, %v1895, %v1931
      %v1995 = vsel %vm1980, %v1896, %v1933
      %v1998 = vsel %vm1980, %v1897, %v1935
      %v2001 = vsel %vm1980, %v1898, %v1937
      %v2004 = vsel %vm1980, %v1899, %v1939
      %vm2005 = vcmask 64512
      %v2007 = vsel %vm2005, %v1983, %v1965
      %v2009 = vsel %vm2005, %v1986, %v1967
      %v2011 = vsel %vm2005, %v1989, %v1969
      %v2013 = vsel %vm2005, %v1992, %v1971
      %v2015 = vsel %vm2005, %v1995, %v1973
      %v2017 = vsel %vm2005, %v1998, %v1975
      %v2019 = vsel %vm2005, %v2001, %v1977
      %v2021 = vsel %vm2005, %v2004, %v1979
      %vm2054 = vcmask 1042432
      %vm2055 = vcmask 1046532
      %vm2056 = vmor %vm2054, %vm2055
      %v2057 = vrot.slane %v1337, 5
      %v2058 = vrot.slane %v2057, 4
      %v2059 = vrot.slane %v1338, 5
      %v2060 = vsel %vm2056, %v2058, %v2059
      %v2061 = vrot.slane %v1339, 5
      %v2062 = vrot.slane %v2061, 4
      %v2063 = vrot.slane %v1340, 5
      %v2064 = vsel %vm2056, %v2062, %v2063
      %v2065 = vrot.slane %v1341, 5
      %v2066 = vrot.slane %v2065, 4
      %v2067 = vrot.slane %v1342, 5
      %v2068 = vsel %vm2056, %v2066, %v2067
      %v2069 = vrot.slane %v1343, 5
      %v2070 = vrot.slane %v2069, 4
      %v2071 = vrot.slane %v1344, 5
      %v2072 = vsel %vm2056, %v2070, %v2071
      %v2073 = vrot.slane %v1345, 5
      %v2074 = vrot.slane %v2073, 4
      %v2075 = vrot.slane %v1346, 5
      %v2076 = vsel %vm2056, %v2074, %v2075
      %v2077 = vrot.slane %v1347, 5
      %v2078 = vrot.slane %v2077, 4
      %v2079 = vrot.slane %v1348, 5
      %v2080 = vsel %vm2056, %v2078, %v2079
      %v2081 = vrot.slane %v1349, 5
      %v2082 = vrot.slane %v2081, 4
      %v2083 = vrot.slane %v1350, 5
      %v2084 = vsel %vm2056, %v2082, %v2083
      %v2085 = vrot.slane %v1351, 5
      %v2086 = vrot.slane %v2085, 4
      %v2087 = vrot.slane %v1352, 5
      %v2088 = vsel %vm2056, %v2086, %v2087
      %v2089 = vrot.slane %v1353, 5
      %v2090 = vrot.slane %v2089, 4
      %v2091 = vrot.slane %v1354, 5
      %v2092 = vsel %vm2056, %v2090, %v2091
      %v2093 = vrot.slane %v1355, 5
      %v2094 = vrot.slane %v2093, 4
      %v2095 = vrot.slane %v1356, 5
      %v2096 = vsel %vm2056, %v2094, %v2095
      %v2097 = vrot.slane %v1357, 5
      %v2098 = vrot.slane %v2097, 4
      %v2099 = vrot.slane %v1358, 5
      %v2100 = vsel %vm2056, %v2098, %v2099
      %v2101 = vrot.slane %v1359, 5
      %v2102 = vrot.slane %v2101, 4
      %v2103 = vrot.slane %v1360, 5
      %v2104 = vsel %vm2056, %v2102, %v2103
      %v2105 = vrot.slane %v1361, 5
      %v2106 = vrot.slane %v2105, 4
      %v2107 = vrot.slane %v1362, 5
      %v2108 = vsel %vm2056, %v2106, %v2107
      %v2109 = vrot.slane %v1363, 5
      %v2110 = vrot.slane %v2109, 4
      %v2111 = vrot.slane %v1364, 5
      %v2112 = vsel %vm2056, %v2110, %v2111
      %v2113 = vrot.slane %v1365, 5
      %v2114 = vrot.slane %v2113, 4
      %v2115 = vrot.slane %v1366, 5
      %v2116 = vsel %vm2056, %v2114, %v2115
      %v2117 = vrot.slane %v1367, 5
      %v2118 = vrot.slane %v2117, 4
      %v2119 = vrot.slane %v1368, 5
      %v2120 = vsel %vm2056, %v2118, %v2119
      %2121 = vrot.lane.b32.xlu0 %v1956, 4
      %v2122 = vpop.permute.xlu0 %2121
      %2123 = vrot.lane.b32.xlu0 %v1957, 4
      %v2124 = vpop.permute.xlu0 %2123
      %2125 = vrot.lane.b32.xlu0 %v1958, 4
      %v2126 = vpop.permute.xlu0 %2125
      %2127 = vrot.lane.b32.xlu0 %v1959, 4
      %v2128 = vpop.permute.xlu0 %2127
      %2129 = vrot.lane.b32.xlu0 %v1960, 4
      %v2130 = vpop.permute.xlu0 %2129
      %2131 = vrot.lane.b32.xlu0 %v1961, 4
      %v2132 = vpop.permute.xlu0 %2131
      %2133 = vrot.lane.b32.xlu0 %v1962, 4
      %v2134 = vpop.permute.xlu0 %2133
      %2135 = vrot.lane.b32.xlu0 %v1963, 4
      %v2136 = vpop.permute.xlu0 %2135
      %v2137 = vunpack.c.l.b16 %v2060
      %v2138 = vunpack.c.l.b16 %v2064
      %v2139 = vunpack.c.l.b16 %v2068
      %v2140 = vunpack.c.l.b16 %v2072
      %v2141 = vunpack.c.l.b16 %v2076
      %v2142 = vunpack.c.l.b16 %v2080
      %v2143 = vunpack.c.l.b16 %v2084
      %v2144 = vunpack.c.l.b16 %v2088
      %v2145 = vunpack.c.l.b16 %v2092
      %v2146 = vunpack.c.l.b16 %v2096
      %v2147 = vunpack.c.l.b16 %v2100
      %v2148 = vunpack.c.l.b16 %v2104
      %v2149 = vunpack.c.l.b16 %v2108
      %v2150 = vunpack.c.l.b16 %v2112
      %v2151 = vunpack.c.l.b16 %v2116
      %v2152 = vunpack.c.l.b16 %v2120
      %v2153 = vpack.c.b16 %v2138, %v2137
      %v2154 = vpack.c.b16 %v2140, %v2139
      %v2155 = vpack.c.b16 %v2142, %v2141
      %v2156 = vpack.c.b16 %v2144, %v2143
      %v2157 = vpack.c.b16 %v2146, %v2145
      %v2158 = vpack.c.b16 %v2148, %v2147
      %v2159 = vpack.c.b16 %v2150, %v2149
      %v2160 = vpack.c.b16 %v2152, %v2151
      %2161 = vrot.lane.b32.xlu0 %v2153, 8
      %v2162 = vpop.permute.xlu0 %2161
      %2163 = vrot.lane.b32.xlu0 %v2154, 8
      %v2164 = vpop.permute.xlu0 %2163
      %2165 = vrot.lane.b32.xlu0 %v2155, 8
      %v2166 = vpop.permute.xlu0 %2165
      %2167 = vrot.lane.b32.xlu0 %v2156, 8
      %v2168 = vpop.permute.xlu0 %2167
      %2169 = vrot.lane.b32.xlu0 %v2157, 8
      %v2170 = vpop.permute.xlu0 %2169
      %2171 = vrot.lane.b32.xlu0 %v2158, 8
      %v2172 = vpop.permute.xlu0 %2171
      %2173 = vrot.lane.b32.xlu0 %v2159, 8
      %v2174 = vpop.permute.xlu0 %2173
      %2175 = vrot.lane.b32.xlu0 %v2160, 8
      %v2176 = vpop.permute.xlu0 %2175
      %v2179 = vsel %vm1980, %v1916, %v2122
      %v2182 = vsel %vm1980, %v1917, %v2124
      %v2185 = vsel %vm1980, %v1918, %v2126
      %v2188 = vsel %vm1980, %v1919, %v2128
      %v2191 = vsel %vm1980, %v1920, %v2130
      %v2194 = vsel %vm1980, %v1921, %v2132
      %v2197 = vsel %vm1980, %v1922, %v2134
      %v2200 = vsel %vm1980, %v1923, %v2136
      %v2202 = vsel %vm2005, %v2179, %v2162
      %v2204 = vsel %vm2005, %v2182, %v2164
      %v2206 = vsel %vm2005, %v2185, %v2166
      %v2208 = vsel %vm2005, %v2188, %v2168
      %v2210 = vsel %vm2005, %v2191, %v2170
      %v2212 = vsel %vm2005, %v2194, %v2172
      %v2214 = vsel %vm2005, %v2197, %v2174
      %v2216 = vsel %vm2005, %v2200, %v2176
      %v2217 = vld [vmem:[%s2] sm:$0xf]
      %v2218 = vld [vmem:[%s2 + $0x4] sm:$0x3]
      %v2220 = vshrl.u32 %v1369, 16
      %v2222 = vrot.slane %v2220, 4
      %v2223 = vshll.u32 %v1369, 16
      %v2225 = vrot.slane %v2223, 5
      %v2226 = vor.u32 %v2222, %v2225
      %v2227 = vrot.slane %v2226, 4
      %v2229 = vshll.u32 %v1370, 16
      %v2231 = vrot.slane %v2229, 5
      %v2232 = vsel %vm1411, %v2227, %v2231
      %v2234 = vshrl.u32 %v1405, 16
      %v2236 = vrot.slane %v2234, 4
      %v2237 = vshll.u32 %v1405, 16
      %v2239 = vrot.slane %v2237, 5
      %v2240 = vor.u32 %v2236, %v2239
      %v2241 = vrot.slane %v2240, 4
      %v2243 = vshll.u32 %v1406, 16
      %v2245 = vrot.slane %v2243, 5
      %v2246 = vsel %vm1411, %v2241, %v2245
      %v2248 = vunpack.c.l.b16 %v1405
      %v2249 = vpack.c.b16 %v1878, %v1877
      %v2250 = vpack.c.b16 %v1880, %v1879
      %v2251 = vpack.c.b16 %v1882, %v1881
      %v2252 = vpack.c.b16 %v1884, %v1883
      %v2253 = vpack.c.b16 %v1886, %v1885
      %v2254 = vpack.c.b16 %v1888, %v1887
      %v2255 = vpack.c.b16 %v1890, %v1889
      %v2256 = vpack.c.b16 %v2248, %v1891
      %v2257 = vunpack.c.l.b16 %v2232
      %v2258 = vpack.c.b16 %v1902, %v1901
      %v2259 = vpack.c.b16 %v1904, %v1903
      %v2260 = vpack.c.b16 %v1906, %v1905
      %v2261 = vpack.c.b16 %v1908, %v1907
      %v2262 = vpack.c.b16 %v1910, %v1909
      %v2263 = vpack.c.b16 %v1912, %v1911
      %v2264 = vpack.c.b16 %v1914, %v1913
      %v2265 = vpack.c.b16 %v2257, %v1915
      %2266 = vrot.lane.b32.xlu0 %v2258, 4
      %v2267 = vpop.permute.xlu0 %2266
      %2268 = vrot.lane.b32.xlu0 %v2259, 4
      %v2269 = vpop.permute.xlu0 %2268
      %2270 = vrot.lane.b32.xlu0 %v2260, 4
      %v2271 = vpop.permute.xlu0 %2270
      %2272 = vrot.lane.b32.xlu0 %v2261, 4
      %v2273 = vpop.permute.xlu0 %2272
      %2274 = vrot.lane.b32.xlu0 %v2262, 4
      %v2275 = vpop.permute.xlu0 %2274
      %2276 = vrot.lane.b32.xlu0 %v2263, 4
      %v2277 = vpop.permute.xlu0 %2276
      %2278 = vrot.lane.b32.xlu0 %v2264, 4
      %v2279 = vpop.permute.xlu0 %2278
      %2280 = vrot.lane.b32.xlu0 %v2265, 4
      %v2281 = vpop.permute.xlu0 %2280
      %v2282 = vunpack.c.l.b16 %v2246
      %v2283 = vpack.c.b16 %v1942, %v1941
      %v2284 = vpack.c.b16 %v1944, %v1943
      %v2285 = vpack.c.b16 %v1946, %v1945
      %v2286 = vpack.c.b16 %v1948, %v1947
      %v2287 = vpack.c.b16 %v1950, %v1949
      %v2288 = vpack.c.b16 %v1952, %v1951
      %v2289 = vpack.c.b16 %v1954, %v1953
      %v2290 = vpack.c.b16 %v2282, %v1955
      %2291 = vrot.lane.b32.xlu0 %v2283, 8
      %v2292 = vpop.permute.xlu0 %2291
      %2293 = vrot.lane.b32.xlu0 %v2284, 8
      %v2294 = vpop.permute.xlu0 %2293
      %2295 = vrot.lane.b32.xlu0 %v2285, 8
      %v2296 = vpop.permute.xlu0 %2295
      %2297 = vrot.lane.b32.xlu0 %v2286, 8
      %v2298 = vpop.permute.xlu0 %2297
      %2299 = vrot.lane.b32.xlu0 %v2287, 8
      %v2300 = vpop.permute.xlu0 %2299
      %2301 = vrot.lane.b32.xlu0 %v2288, 8
      %v2302 = vpop.permute.xlu0 %2301
      %2303 = vrot.lane.b32.xlu0 %v2289, 8
      %v2304 = vpop.permute.xlu0 %2303
      %2305 = vrot.lane.b32.xlu0 %v2290, 8
      %v2306 = vpop.permute.xlu0 %2305
      %v2309 = vsel %vm1980, %v2249, %v2267
      %v2312 = vsel %vm1980, %v2250, %v2269
      %v2315 = vsel %vm1980, %v2251, %v2271
      %v2318 = vsel %vm1980, %v2252, %v2273
      %v2321 = vsel %vm1980, %v2253, %v2275
      %v2324 = vsel %vm1980, %v2254, %v2277
      %v2327 = vsel %vm1980, %v2255, %v2279
      %v2330 = vsel %vm1980, %v2256, %v2281
      %v2332 = vsel %vm2005, %v2309, %v2292
      %v2334 = vsel %vm2005, %v2312, %v2294
      %v2336 = vsel %vm2005, %v2315, %v2296
      %v2338 = vsel %vm2005, %v2318, %v2298
      %v2340 = vsel %vm2005, %v2321, %v2300
      %v2342 = vsel %vm2005, %v2324, %v2302
      %v2344 = vsel %vm2005, %v2327, %v2304
      %v2346 = vsel %vm2005, %v2330, %v2306
      %v2349 = vrot.slane %v1369, 5
      %v2350 = vrot.slane %v2349, 4
      %v2351 = vrot.slane %v1370, 5
      %v2352 = vsel %vm2056, %v2350, %v2351
      %2353 = vrot.lane.b32.xlu0 %v2283, 4
      %v2354 = vpop.permute.xlu0 %2353
      %2355 = vrot.lane.b32.xlu0 %v2284, 4
      %v2356 = vpop.permute.xlu0 %2355
      %2357 = vrot.lane.b32.xlu0 %v2285, 4
      %v2358 = vpop.permute.xlu0 %2357
      %2359 = vrot.lane.b32.xlu0 %v2286, 4
      %v2360 = vpop.permute.xlu0 %2359
      %2361 = vrot.lane.b32.xlu0 %v2287, 4
      %v2362 = vpop.permute.xlu0 %2361
      %2363 = vrot.lane.b32.xlu0 %v2288, 4
      %v2364 = vpop.permute.xlu0 %2363
      %2365 = vrot.lane.b32.xlu0 %v2289, 4
      %v2366 = vpop.permute.xlu0 %2365
      %2367 = vrot.lane.b32.xlu0 %v2290, 4
      %v2368 = vpop.permute.xlu0 %2367
      %v2369 = vunpack.c.l.b16 %v2352
      %v2370 = vpack.c.b16 %v2139, %v2138
      %v2371 = vpack.c.b16 %v2141, %v2140
      %v2372 = vpack.c.b16 %v2143, %v2142
      %v2373 = vpack.c.b16 %v2145, %v2144
      %v2374 = vpack.c.b16 %v2147, %v2146
      %v2375 = vpack.c.b16 %v2149, %v2148
      %v2376 = vpack.c.b16 %v2151, %v2150
      %v2377 = vpack.c.b16 %v2369, %v2152
      %2378 = vrot.lane.b32.xlu0 %v2370, 8
      %v2379 = vpop.permute.xlu0 %2378
      %2380 = vrot.lane.b32.xlu0 %v2371, 8
      %v2381 = vpop.permute.xlu0 %2380
      %2382 = vrot.lane.b32.xlu0 %v2372, 8
      %v2383 = vpop.permute.xlu0 %2382
      %2384 = vrot.lane.b32.xlu0 %v2373, 8
      %v2385 = vpop.permute.xlu0 %2384
      %2386 = vrot.lane.b32.xlu0 %v2374, 8
      %v2387 = vpop.permute.xlu0 %2386
      %2388 = vrot.lane.b32.xlu0 %v2375, 8
      %v2389 = vpop.permute.xlu0 %2388
      %2390 = vrot.lane.b32.xlu0 %v2376, 8
      %v2391 = vpop.permute.xlu0 %2390
      %2392 = vrot.lane.b32.xlu0 %v2377, 8
      %v2393 = vpop.permute.xlu0 %2392
      %v2396 = vsel %vm1980, %v2258, %v2354
      %v2399 = vsel %vm1980, %v2259, %v2356
      %v2402 = vsel %vm1980, %v2260, %v2358
      %v2405 = vsel %vm1980, %v2261, %v2360
      %v2408 = vsel %vm1980, %v2262, %v2362
      %v2411 = vsel %vm1980, %v2263, %v2364
      %v2414 = vsel %vm1980, %v2264, %v2366
      %v2417 = vsel %vm1980, %v2265, %v2368
      %v2419 = vsel %vm2005, %v2396, %v2379
      %v2421 = vsel %vm2005, %v2399, %v2381
      %v2423 = vsel %vm2005, %v2402, %v2383
      %v2425 = vsel %vm2005, %v2405, %v2385
      %v2427 = vsel %vm2005, %v2408, %v2387
      %v2429 = vsel %vm2005, %v2411, %v2389
      %v2431 = vsel %vm2005, %v2414, %v2391
      %v2433 = vsel %vm2005, %v2417, %v2393
      %s2434 = scalar_lea.vmem %s2, 8
      %v2435 = vld [vmem:[%s2434] sm:$0xf]
      %v2436 = vld [vmem:[%s2434 + $0x4] sm:$0x3]
      %v2439 = vunpack.c.l.b16 %v2435
      %v2440 = vunpack.c.l.b16 %v2436
      %v2441 = vpack.c.b16 %v2440, %v2439
      %vm2442 = vcmask 97280
      %v2443 = vsel %vm2442, %v2332, 0
      %v2445 = vsel %vm2442, %v2334, 0
      %v2447 = vsel %vm2442, %v2336, 0
      %v2449 = vsel %vm2442, %v2338, 0
      %v2451 = vsel %vm2442, %v2340, 0
      %v2453 = vsel %vm2442, %v2342, 0
      %v2455 = vsel %vm2442, %v2344, 0
      %v2457 = vsel %vm2442, %v2346, 0
      %v2459 = vsel %vm2442, %v2419, 0
      %v2461 = vsel %vm2442, %v2421, 0
      %v2463 = vsel %vm2442, %v2423, 0
      %v2465 = vsel %vm2442, %v2425, 0
      %v2467 = vsel %vm2442, %v2427, 0
      %v2469 = vsel %vm2442, %v2429, 0
      %v2471 = vsel %vm2442, %v2431, 0
      %v2473 = vsel %vm2442, %v2433, 0
      %vm2475 = vcmask 1045504
      %v2477 = vsel %vm2475, %v2441, 0
      %2479 = vmatprep.subr.bf16.mxu0 0
      %2480 = vmatpush1.bf16.msra.mxu0 %v2477
      %2481 = vmatprep.subr.bf16.mxu0 0
      %2482 = vmatpush1.bf16.msra.mxu0 0
      %2483 = vmatprep.subr.bf16.mxu0 0
      %2484 = vmatpush1.bf16.msra.mxu0 0
      %2485 = vmatprep.subr.bf16.mxu0 0
      %2486 = vmatpush1.bf16.msra.mxu0 0
      %2487 = vmatprep.subr.bf16.mxu0 0
      %2488 = vmatpush1.bf16.msra.mxu0 0
      %2489 = vmatprep.subr.bf16.mxu0 0
      %2490 = vmatpush1.bf16.msra.mxu0 0
      %2491 = vmatprep.subr.bf16.mxu0 0
      %2492 = vmatpush1.bf16.msra.mxu0 0
      %2493 = vmatprep.subr.bf16.mxu0 0
      %2494 = vmatpush1.bf16.msra.mxu0 0
      %2495 = vmatprep.subr.bf16.mxu0 0
      %2496 = vmatpush1.bf16.msra.mxu0 0
      %2497 = vmatprep.subr.bf16.mxu0 0
      %2498 = vmatpush1.bf16.msra.mxu0 0
      %2499 = vmatprep.subr.bf16.mxu0 0
      %2500 = vmatpush1.bf16.msra.mxu0 0
      %2501 = vmatprep.subr.bf16.mxu0 0
      %2502 = vmatpush1.bf16.msra.mxu0 0
      %2503 = vmatprep.subr.bf16.mxu0 0
      %2504 = vmatpush1.bf16.msra.mxu0 0
      %2505 = vmatprep.subr.bf16.mxu0 0
      %2506 = vmatpush1.bf16.msra.mxu0 0
      %2507 = vmatprep.subr.bf16.mxu0 0
      %2508 = vmatpush1.bf16.msra.mxu0 0
      %2509 = vmatprep.subr.bf16.mxu0 0
      %2510 = vmatpush1.bf16.msra.mxu0 0
      %2511 = vmatprep.mubr.bf16.mxu0 0
      %2512 = vmatmul.mubr.bf16.gmra.mrb[0].mxu0 %v2443
      %v2513 = vpop.f32.mrb[0].mxu0
      %v2514 = vadd.f32 0.0, %v2513
      %v2515 = vpop.f32.mrb[0].mxu0
      %v2516 = vpop.f32.mrb[0].mxu0
      %v2517 = vadd.f32 0.0, %v2516
      %v2518 = vpop.f32.mrb[0].mxu0
      %2519 = vmatprep.mubr.bf16.mxu0 0
      %2520 = vmatmul.mubr.bf16.gmra.mrb[0].mxu0 %v2445
      %v2521 = vpop.f32.mrb[0].mxu0
      %v2522 = vadd.f32 0.0, %v2521
      %v2523 = vpop.f32.mrb[0].mxu0
      %v2524 = vpop.f32.mrb[0].mxu0
      %v2525 = vadd.f32 0.0, %v2524
      %v2526 = vpop.f32.mrb[0].mxu0
      %2527 = vmatprep.mubr.bf16.mxu0 0
      %2528 = vmatmul.mubr.bf16.gmra.mrb[0].mxu0 %v2447
      %v2529 = vpop.f32.mrb[0].mxu0
      %v2530 = vadd.f32 0.0, %v2529
      %v2531 = vpop.f32.mrb[0].mxu0
      %v2532 = vpop.f32.mrb[0].mxu0
      %v2533 = vadd.f32 0.0, %v2532
      %v2534 = vpop.f32.mrb[0].mxu0
      %2535 = vmatprep.mubr.bf16.mxu0 0
      %2536 = vmatmul.mubr.bf16.gmra.mrb[0].mxu0 %v2449
      %v2537 = vpop.f32.mrb[0].mxu0
      %v2538 = vadd.f32 0.0, %v2537
      %v2539 = vpop.f32.mrb[0].mxu0
      %v2540 = vpop.f32.mrb[0].mxu0
      %v2541 = vadd.f32 0.0, %v2540
      %v2542 = vpop.f32.mrb[0].mxu0
      %2543 = vmatprep.mubr.bf16.mxu0 0
      %2544 = vmatmul.mubr.bf16.gmra.mrb[0].mxu0 %v2451
      %v2545 = vpop.f32.mrb[0].mxu0
      %v2546 = vadd.f32 0.0, %v2545
      %v2547 = vpop.f32.mrb[0].mxu0
      %v2548 = vpop.f32.mrb[0].mxu0
      %v2549 = vadd.f32 0.0, %v2548
      %v2550 = vpop.f32.mrb[0].mxu0
      %2551 = vmatprep.mubr.bf16.mxu0 0
      %2552 = vmatmul.mubr.bf16.gmra.mrb[0].mxu0 %v2453
      %v2553 = vpop.f32.mrb[0].mxu0
      %v2554 = vadd.f32 0.0, %v2553
      %v2555 = vpop.f32.mrb[0].mxu0
      %v2556 = vpop.f32.mrb[0].mxu0
      %v2557 = vadd.f32 0.0, %v2556
      %v2558 = vpop.f32.mrb[0].mxu0
      %2559 = vmatprep.mubr.bf16.mxu0 0
      %2560 = vmatmul.mubr.bf16.gmra.mrb[0].mxu0 %v2455
      %v2561 = vpop.f32.mrb[0].mxu0
      %v2562 = vadd.f32 0.0, %v2561
      %v2563 = vpop.f32.mrb[0].mxu0
      %v2564 = vpop.f32.mrb[0].mxu0
      %v2565 = vadd.f32 0.0, %v2564
      %v2566 = vpop.f32.mrb[0].mxu0
      %2567 = vmatprep.mubr.bf16.mxu0 0
      %2568 = vmatmul.mubr.bf16.gmra.mrb[0].mxu0 %v2457
      %v2569 = vpop.f32.mrb[0].mxu0
      %v2570 = vadd.f32 0.0, %v2569
      %v2571 = vpop.f32.mrb[0].mxu0
      %v2572 = vpop.f32.mrb[0].mxu0
      %v2573 = vadd.f32 0.0, %v2572
      %v2574 = vpop.f32.mrb[0].mxu0
      %2575 = vmatprep.mubr.bf16.mxu0 0
      %2576 = vmatmul.mubr.bf16.gmra.mrb[0].mxu0 %v2459
      %v2577 = vpop.f32.mrb[0].mxu0
      %v2578 = vadd.f32 0.0, %v2577
      %v2579 = vpop.f32.mrb[0].mxu0
      %v2580 = vpop.f32.mrb[0].mxu0
      %v2581 = vadd.f32 0.0, %v2580
      %v2582 = vpop.f32.mrb[0].mxu0
      %2583 = vmatprep.mubr.bf16.mxu0 0
      %2584 = vmatmul.mubr.bf16.gmra.mrb[0].mxu0 %v2461
      %v2585 = vpop.f32.mrb[0].mxu0
      %v2586 = vadd.f32 0.0, %v2585
      %v2587 = vpop.f32.mrb[0].mxu0
      %v2588 = vpop.f32.mrb[0].mxu0
      %v2589 = vadd.f32 0.0, %v2588
      %v2590 = vpop.f32.mrb[0].mxu0
      %2591 = vmatprep.mubr.bf16.mxu0 0
      %2592 = vmatmul.mubr.bf16.gmra.mrb[0].mxu0 %v2463
      %v2593 = vpop.f32.mrb[0].mxu0
      %v2594 = vadd.f32 0.0, %v2593
      %v2595 = vpop.f32.mrb[0].mxu0
      %v2596 = vpop.f32.mrb[0].mxu0
      %v2597 = vadd.f32 0.0, %v2596
      %v2598 = vpop.f32.mrb[0].mxu0
      %2599 = vmatprep.mubr.bf16.mxu0 0
      %2600 = vmatmul.mubr.bf16.gmra.mrb[0].mxu0 %v2465
      %v2601 = vpop.f32.mrb[0].mxu0
      %v2602 = vadd.f32 0.0, %v2601
      %v2603 = vpop.f32.mrb[0].mxu0
      %v2604 = vpop.f32.mrb[0].mxu0
      %v2605 = vadd.f32 0.0, %v2604
      %v2606 = vpop.f32.mrb[0].mxu0
      %2607 = vmatprep.mubr.bf16.mxu0 0
      %2608 = vmatmul.mubr.bf16.gmra.mrb[0].mxu0 %v2467
      %v2609 = vpop.f32.mrb[0].mxu0
      %v2610 = vadd.f32 0.0, %v2609
      %v2611 = vpop.f32.mrb[0].mxu0
      %v2612 = vpop.f32.mrb[0].mxu0
      %v2613 = vadd.f32 0.0, %v2612
      %v2614 = vpop.f32.mrb[0].mxu0
      %2615 = vmatprep.mubr.bf16.mxu0 0
      %2616 = vmatmul.mubr.bf16.gmra.mrb[0].mxu0 %v2469
      %v2617 = vpop.f32.mrb[0].mxu0
      %v2618 = vadd.f32 0.0, %v2617
      %v2619 = vpop.f32.mrb[0].mxu0
      %v2620 = vpop.f32.mrb[0].mxu0
      %v2621 = vadd.f32 0.0, %v2620
      %v2622 = vpop.f32.mrb[0].mxu0
      %2623 = vmatprep.mubr.bf16.mxu0 0
      %2624 = vmatmul.mubr.bf16.gmra.mrb[0].mxu0 %v2471
      %v2625 = vpop.f32.mrb[0].mxu0
      %v2626 = vadd.f32 0.0, %v2625
      %v2627 = vpop.f32.mrb[0].mxu0
      %v2628 = vpop.f32.mrb[0].mxu0
      %v2629 = vadd.f32 0.0, %v2628
      %v2630 = vpop.f32.mrb[0].mxu0
      %2631 = vmatprep.mubr.bf16.mxu0 0
      %2632 = vmatmul.mubr.bf16.gmra.mrb[0].mxu0 %v2473
      %v2633 = vpop.f32.mrb[0].mxu0
      %v2634 = vadd.f32 0.0, %v2633
      %v2635 = vpop.f32.mrb[0].mxu0
      %v2636 = vpop.f32.mrb[0].mxu0
      %v2637 = vadd.f32 0.0, %v2636
      %v2638 = vpop.f32.mrb[0].mxu0
      %2639 = vdwg.mxu0
      %v2642 = vunpack.c.l.b16 %v2217
      %v2643 = vunpack.c.l.b16 %v2218
      %v2644 = vpack.c.b16 %v2643, %v2642
      %v2645 = vsel %vm2442, %v2007, 0
      %v2647 = vsel %vm2442, %v2009, 0
      %v2649 = vsel %vm2442, %v2011, 0
      %v2651 = vsel %vm2442, %v2013, 0
      %v2653 = vsel %vm2442, %v2015, 0
      %v2655 = vsel %vm2442, %v2017, 0
      %v2657 = vsel %vm2442, %v2019, 0
      %v2659 = vsel %vm2442, %v2021, 0
      %v2661 = vsel %vm2442, %v2202, 0
      %v2663 = vsel %vm2442, %v2204, 0
      %v2665 = vsel %vm2442, %v2206, 0
      %v2667 = vsel %vm2442, %v2208, 0
      %v2669 = vsel %vm2442, %v2210, 0
      %v2671 = vsel %vm2442, %v2212, 0
      %v2673 = vsel %vm2442, %v2214, 0
      %v2675 = vsel %vm2442, %v2216, 0
      %v2678 = vsel %vm2475, %v2644, 0
      %2680 = vmatprep.subr.bf16.mxu0 0
      %2681 = vmatpush1.bf16.msra.mxu0 %v2678
      %2682 = vmatprep.subr.bf16.mxu0 0
      %2683 = vmatpush1.bf16.msra.mxu0 0
      %2684 = vmatprep.subr.bf16.mxu0 0
      %2685 = vmatpush1.bf16.msra.mxu0 0
      %2686 = vmatprep.subr.bf16.mxu0 0
      %2687 = vmatpush1.bf16.msra.mxu0 0
      %2688 = vmatprep.subr.bf16.mxu0 0
      %2689 = vmatpush1.bf16.msra.mxu0 0
      %2690 = vmatprep.subr.bf16.mxu0 0
      %2691 = vmatpush1.bf16.msra.mxu0 0
      %2692 = vmatprep.subr.bf16.mxu0 0
      %2693 = vmatpush1.bf16.msra.mxu0 0
      %2694 = vmatprep.subr.bf16.mxu0 0
      %2695 = vmatpush1.bf16.msra.mxu0 0
      %2696 = vmatprep.subr.bf16.mxu0 0
      %2697 = vmatpush1.bf16.msra.mxu0 0
      %2698 = vmatprep.subr.bf16.mxu0 0
      %2699 = vmatpush1.bf16.msra.mxu0 0
      %2700 = vmatprep.subr.bf16.mxu0 0
      %2701 = vmatpush1.bf16.msra.mxu0 0
      %2702 = vmatprep.subr.bf16.mxu0 0
      %2703 = vmatpush1.bf16.msra.mxu0 0
      %2704 = vmatprep.subr.bf16.mxu0 0
      %2705 = vmatpush1.bf16.msra.mxu0 0
      %2706 = vmatprep.subr.bf16.mxu0 0
      %2707 = vmatpush1.bf16.msra.mxu0 0
      %2708 = vmatprep.subr.bf16.mxu0 0
      %2709 = vmatpush1.bf16.msra.mxu0 0
      %2710 = vmatprep.subr.bf16.mxu0 0
      %2711 = vmatpush1.bf16.msra.mxu0 0
      %2712 = vmatprep.mubr.bf16.mxu0 0
      %2713 = vmatmul.mubr.bf16.gmra.mrb[0].mxu0 %v2645
      %v2714 = vpop.f32.mrb[0].mxu0
      %v2715 = vadd.f32 %v2514, %v2714
      %v2716 = vpop.f32.mrb[0].mxu0
      %v2717 = vpop.f32.mrb[0].mxu0
      %v2718 = vadd.f32 %v2517, %v2717
      %v2719 = vpop.f32.mrb[0].mxu0
      %2720 = vmatprep.mubr.bf16.mxu0 0
      %2721 = vmatmul.mubr.bf16.gmra.mrb[0].mxu0 %v2647
      %v2722 = vpop.f32.mrb[0].mxu0
      %v2723 = vadd.f32 %v2522, %v2722
      %v2724 = vpop.f32.mrb[0].mxu0
      %v2725 = vpop.f32.mrb[0].mxu0
      %v2726 = vadd.f32 %v2525, %v2725
      %v2727 = vpop.f32.mrb[0].mxu0
      %2728 = vmatprep.mubr.bf16.mxu0 0
      %2729 = vmatmul.mubr.bf16.gmra.mrb[0].mxu0 %v2649
      %v2730 = vpop.f32.mrb[0].mxu0
      %v2731 = vadd.f32 %v2530, %v2730
      %v2732 = vpop.f32.mrb[0].mxu0
      %v2733 = vpop.f32.mrb[0].mxu0
      %v2734 = vadd.f32 %v2533, %v2733
      %v2735 = vpop.f32.mrb[0].mxu0
      %2736 = vmatprep.mubr.bf16.mxu0 0
      %2737 = vmatmul.mubr.bf16.gmra.mrb[0].mxu0 %v2651
      %v2738 = vpop.f32.mrb[0].mxu0
      %v2739 = vadd.f32 %v2538, %v2738
      %v2740 = vpop.f32.mrb[0].mxu0
      %v2741 = vpop.f32.mrb[0].mxu0
      %v2742 = vadd.f32 %v2541, %v2741
      %v2743 = vpop.f32.mrb[0].mxu0
      %2744 = vmatprep.mubr.bf16.mxu0 0
      %2745 = vmatmul.mubr.bf16.gmra.mrb[0].mxu0 %v2653
      %v2746 = vpop.f32.mrb[0].mxu0
      %v2747 = vadd.f32 %v2546, %v2746
      %v2748 = vpop.f32.mrb[0].mxu0
      %v2749 = vpop.f32.mrb[0].mxu0
      %v2750 = vadd.f32 %v2549, %v2749
      %v2751 = vpop.f32.mrb[0].mxu0
      %2752 = vmatprep.mubr.bf16.mxu0 0
      %2753 = vmatmul.mubr.bf16.gmra.mrb[0].mxu0 %v2655
      %v2754 = vpop.f32.mrb[0].mxu0
      %v2755 = vadd.f32 %v2554, %v2754
      %v2756 = vpop.f32.mrb[0].mxu0
      %v2757 = vpop.f32.mrb[0].mxu0
      %v2758 = vadd.f32 %v2557, %v2757
      %v2759 = vpop.f32.mrb[0].mxu0
      %2760 = vmatprep.mubr.bf16.mxu0 0
      %2761 = vmatmul.mubr.bf16.gmra.mrb[0].mxu0 %v2657
      %v2762 = vpop.f32.mrb[0].mxu0
      %v2763 = vadd.f32 %v2562, %v2762
      %v2764 = vpop.f32.mrb[0].mxu0
      %v2765 = vpop.f32.mrb[0].mxu0
      %v2766 = vadd.f32 %v2565, %v2765
      %v2767 = vpop.f32.mrb[0].mxu0
      %2768 = vmatprep.mubr.bf16.mxu0 0
      %2769 = vmatmul.mubr.bf16.gmra.mrb[0].mxu0 %v2659
      %v2770 = vpop.f32.mrb[0].mxu0
      %v2771 = vadd.f32 %v2570, %v2770
      %v2772 = vpop.f32.mrb[0].mxu0
      %v2773 = vpop.f32.mrb[0].mxu0
      %v2774 = vadd.f32 %v2573, %v2773
      %v2775 = vpop.f32.mrb[0].mxu0
      %2776 = vmatprep.mubr.bf16.mxu0 0
      %2777 = vmatmul.mubr.bf16.gmra.mrb[0].mxu0 %v2661
      %v2778 = vpop.f32.mrb[0].mxu0
      %v2779 = vadd.f32 %v2578, %v2778
      %v2780 = vpop.f32.mrb[0].mxu0
      %v2781 = vpop.f32.mrb[0].mxu0
      %v2782 = vadd.f32 %v2581, %v2781
      %v2783 = vpop.f32.mrb[0].mxu0
      %2784 = vmatprep.mubr.bf16.mxu0 0
      %2785 = vmatmul.mubr.bf16.gmra.mrb[0].mxu0 %v2663
      %v2786 = vpop.f32.mrb[0].mxu0
      %v2787 = vadd.f32 %v2586, %v2786
      %v2788 = vpop.f32.mrb[0].mxu0
      %v2789 = vpop.f32.mrb[0].mxu0
      %v2790 = vadd.f32 %v2589, %v2789
      %v2791 = vpop.f32.mrb[0].mxu0
      %2792 = vmatprep.mubr.bf16.mxu0 0
      %2793 = vmatmul.mubr.bf16.gmra.mrb[0].mxu0 %v2665
      %v2794 = vpop.f32.mrb[0].mxu0
      %v2795 = vadd.f32 %v2594, %v2794
      %v2796 = vpop.f32.mrb[0].mxu0
      %v2797 = vpop.f32.mrb[0].mxu0
      %v2798 = vadd.f32 %v2597, %v2797
      %v2799 = vpop.f32.mrb[0].mxu0
      %2800 = vmatprep.mubr.bf16.mxu0 0
      %2801 = vmatmul.mubr.bf16.gmra.mrb[0].mxu0 %v2667
      %v2802 = vpop.f32.mrb[0].mxu0
      %v2803 = vadd.f32 %v2602, %v2802
      %v2804 = vpop.f32.mrb[0].mxu0
      %v2805 = vpop.f32.mrb[0].mxu0
      %v2806 = vadd.f32 %v2605, %v2805
      %v2807 = vpop.f32.mrb[0].mxu0
      %2808 = vmatprep.mubr.bf16.mxu0 0
      %2809 = vmatmul.mubr.bf16.gmra.mrb[0].mxu0 %v2669
      %v2810 = vpop.f32.mrb[0].mxu0
      %v2811 = vadd.f32 %v2610, %v2810
      %v2812 = vpop.f32.mrb[0].mxu0
      %v2813 = vpop.f32.mrb[0].mxu0
      %v2814 = vadd.f32 %v2613, %v2813
      %v2815 = vpop.f32.mrb[0].mxu0
      %2816 = vmatprep.mubr.bf16.mxu0 0
      %2817 = vmatmul.mubr.bf16.gmra.mrb[0].mxu0 %v2671
      %v2818 = vpop.f32.mrb[0].mxu0
      %v2819 = vadd.f32 %v2618, %v2818
      %v2820 = vpop.f32.mrb[0].mxu0
      %v2821 = vpop.f32.mrb[0].mxu0
      %v2822 = vadd.f32 %v2621, %v2821
      %v2823 = vpop.f32.mrb[0].mxu0
      %2824 = vmatprep.mubr.bf16.mxu0 0
      %2825 = vmatmul.mubr.bf16.gmra.mrb[0].mxu0 %v2673
      %v2826 = vpop.f32.mrb[0].mxu0
      %v2827 = vadd.f32 %v2626, %v2826
      %v2828 = vpop.f32.mrb[0].mxu0
      %v2829 = vpop.f32.mrb[0].mxu0
      %v2830 = vadd.f32 %v2629, %v2829
      %v2831 = vpop.f32.mrb[0].mxu0
      %2832 = vmatprep.mubr.bf16.mxu0 0
      %2833 = vmatmul.mubr.bf16.gmra.mrb[0].mxu0 %v2675
      %v2834 = vpop.f32.mrb[0].mxu0
      %v2835 = vadd.f32 %v2634, %v2834
      %v2836 = vpop.f32.mrb[0].mxu0
      %v2837 = vpop.f32.mrb[0].mxu0
      %v2838 = vadd.f32 %v2637, %v2837
      %v2839 = vpop.f32.mrb[0].mxu0
      %2840 = vdwg.mxu0
      %v2842 = vshrl.u32 %v1371, 16
      %v2844 = vrot.slane %v2842, 4
      %v2845 = vshll.u32 %v1371, 16
      %v2847 = vrot.slane %v2845, 5
      %v2848 = vor.u32 %v2844, %v2847
      %v2849 = vrot.slane %v2848, 4
      %v2851 = vshll.u32 %v1372, 16
      %v2853 = vrot.slane %v2851, 5
      %v2854 = vsel %vm1411, %v2849, %v2853
      %v2856 = vshrl.u32 %v1407, 16
      %v2858 = vrot.slane %v2856, 4
      %v2859 = vshll.u32 %v1407, 16
      %v2861 = vrot.slane %v2859, 5
      %v2862 = vor.u32 %v2858, %v2861
      %v2863 = vrot.slane %v2862, 4
      %v2865 = vshll.u32 %v1408, 16
      %v2867 = vrot.slane %v2865, 5
      %v2868 = vsel %vm1411, %v2863, %v2867
      %v2870 = vunpack.c.l.b16 %v1407
      %v2871 = vpack.c.b16 %v2870, %v2248
      %v2872 = vunpack.c.l.b16 %v2854
      %v2873 = vpack.c.b16 %v2872, %v2257
      %2874 = vrot.lane.b32.xlu0 %v2873, 4
      %v2875 = vpop.permute.xlu0 %2874
      %v2876 = vunpack.c.l.b16 %v2868
      %v2877 = vpack.c.b16 %v2876, %v2282
      %2878 = vrot.lane.b32.xlu0 %v2877, 8
      %v2879 = vpop.permute.xlu0 %2878
      %v2882 = vsel %vm1980, %v2871, %v2875
      %v2884 = vsel %vm2005, %v2882, %v2879
      %v2887 = vrot.slane %v1371, 5
      %v2888 = vrot.slane %v2887, 4
      %v2889 = vrot.slane %v1372, 5
      %v2890 = vsel %vm2056, %v2888, %v2889
      %2891 = vrot.lane.b32.xlu0 %v2877, 4
      %v2892 = vpop.permute.xlu0 %2891
      %v2893 = vunpack.c.l.b16 %v2890
      %v2894 = vpack.c.b16 %v2893, %v2369
      %2895 = vrot.lane.b32.xlu0 %v2894, 8
      %v2896 = vpop.permute.xlu0 %2895
      %v2899 = vsel %vm1980, %v2873, %v2892
      %v2901 = vsel %vm2005, %v2899, %v2896
      %s2902 = scalar_lea.vmem %s2, 16
      %v2903 = vld [vmem:[%s2902] sm:$0xf]
      %v2904 = vld [vmem:[%s2902 + $0x4] sm:$0x3]
      %v2907 = vunpack.c.l.b16 %v2903
      %v2908 = vunpack.c.l.b16 %v2904
      %v2909 = vpack.c.b16 %v2908, %v2907
      %v2910 = vsel %vm2442, %v2884, 0
      %v2912 = vsel %vm2442, %v2901, 0
      %v2915 = vsel %vm2475, %v2909, 0
      %2917 = vmatprep.subr.bf16.mxu0 0
      %2918 = vmatpush1.bf16.msra.mxu0 %v2915
      %2919 = vmatprep.subr.bf16.mxu0 0
      %2920 = vmatpush1.bf16.msra.mxu0 0
      %2921 = vmatprep.subr.bf16.mxu0 0
      %2922 = vmatpush1.bf16.msra.mxu0 0
      %2923 = vmatprep.subr.bf16.mxu0 0
      %2924 = vmatpush1.bf16.msra.mxu0 0
      %2925 = vmatprep.subr.bf16.mxu0 0
      %2926 = vmatpush1.bf16.msra.mxu0 0
      %2927 = vmatprep.subr.bf16.mxu0 0
      %2928 = vmatpush1.bf16.msra.mxu0 0
      %2929 = vmatprep.subr.bf16.mxu0 0
      %2930 = vmatpush1.bf16.msra.mxu0 0
      %2931 = vmatprep.subr.bf16.mxu0 0
      %2932 = vmatpush1.bf16.msra.mxu0 0
      %2933 = vmatprep.subr.bf16.mxu0 0
      %2934 = vmatpush1.bf16.msra.mxu0 0
      %2935 = vmatprep.subr.bf16.mxu0 0
      %2936 = vmatpush1.bf16.msra.mxu0 0
      %2937 = vmatprep.subr.bf16.mxu0 0
      %2938 = vmatpush1.bf16.msra.mxu0 0
      %2939 = vmatprep.subr.bf16.mxu0 0
      %2940 = vmatpush1.bf16.msra.mxu0 0
      %2941 = vmatprep.subr.bf16.mxu0 0
      %2942 = vmatpush1.bf16.msra.mxu0 0
      %2943 = vmatprep.subr.bf16.mxu0 0
      %2944 = vmatpush1.bf16.msra.mxu0 0
      %2945 = vmatprep.subr.bf16.mxu0 0
      %2946 = vmatpush1.bf16.msra.mxu0 0
      %2947 = vmatprep.subr.bf16.mxu0 0
      %2948 = vmatpush1.bf16.msra.mxu0 0
      %2949 = vmatprep.mubr.bf16.mxu0 0
      %2950 = vmatmul.mubr.bf16.gmra.mrb[0].mxu0 %v2647
      %v2951 = vpop.f32.mrb[0].mxu0
      %v2952 = vadd.f32 0.0, %v2951
      %v2953 = vpop.f32.mrb[0].mxu0
      %v2954 = vpop.f32.mrb[0].mxu0
      %v2955 = vadd.f32 0.0, %v2954
      %v2956 = vpop.f32.mrb[0].mxu0
      %2957 = vmatprep.mubr.bf16.mxu0 0
      %2958 = vmatmul.mubr.bf16.gmra.mrb[0].mxu0 %v2649
      %v2959 = vpop.f32.mrb[0].mxu0
      %v2960 = vadd.f32 0.0, %v2959
      %v2961 = vpop.f32.mrb[0].mxu0
      %v2962 = vpop.f32.mrb[0].mxu0
      %v2963 = vadd.f32 0.0, %v2962
      %v2964 = vpop.f32.mrb[0].mxu0
      %2965 = vmatprep.mubr.bf16.mxu0 0
      %2966 = vmatmul.mubr.bf16.gmra.mrb[0].mxu0 %v2651
      %v2967 = vpop.f32.mrb[0].mxu0
      %v2968 = vadd.f32 0.0, %v2967
      %v2969 = vpop.f32.mrb[0].mxu0
      %v2970 = vpop.f32.mrb[0].mxu0
      %v2971 = vadd.f32 0.0, %v2970
      %v2972 = vpop.f32.mrb[0].mxu0
      %2973 = vmatprep.mubr.bf16.mxu0 0
      %2974 = vmatmul.mubr.bf16.gmra.mrb[0].mxu0 %v2653
      %v2975 = vpop.f32.mrb[0].mxu0
      %v2976 = vadd.f32 0.0, %v2975
      %v2977 = vpop.f32.mrb[0].mxu0
      %v2978 = vpop.f32.mrb[0].mxu0
      %v2979 = vadd.f32 0.0, %v2978
      %v2980 = vpop.f32.mrb[0].mxu0
      %2981 = vmatprep.mubr.bf16.mxu0 0
      %2982 = vmatmul.mubr.bf16.gmra.mrb[0].mxu0 %v2655
      %v2983 = vpop.f32.mrb[0].mxu0
      %v2984 = vadd.f32 0.0, %v2983
      %v2985 = vpop.f32.mrb[0].mxu0
      %v2986 = vpop.f32.mrb[0].mxu0
      %v2987 = vadd.f32 0.0, %v2986
      %v2988 = vpop.f32.mrb[0].mxu0
      %2989 = vmatprep.mubr.bf16.mxu0 0
      %2990 = vmatmul.mubr.bf16.gmra.mrb[0].mxu0 %v2657
      %v2991 = vpop.f32.mrb[0].mxu0
      %v2992 = vadd.f32 0.0, %v2991
      %v2993 = vpop.f32.mrb[0].mxu0
      %v2994 = vpop.f32.mrb[0].mxu0
      %v2995 = vadd.f32 0.0, %v2994
      %v2996 = vpop.f32.mrb[0].mxu0
      %2997 = vmatprep.mubr.bf16.mxu0 0
      %2998 = vmatmul.mubr.bf16.gmra.mrb[0].mxu0 %v2659
      %v2999 = vpop.f32.mrb[0].mxu0
      %v3000 = vadd.f32 0.0, %v2999
      %v3001 = vpop.f32.mrb[0].mxu0
      %v3002 = vpop.f32.mrb[0].mxu0
      %v3003 = vadd.f32 0.0, %v3002
      %v3004 = vpop.f32.mrb[0].mxu0
      %3005 = vmatprep.mubr.bf16.mxu0 0
      %3006 = vmatmul.mubr.bf16.gmra.mrb[0].mxu0 %v2910
      %v3007 = vpop.f32.mrb[0].mxu0
      %v3008 = vadd.f32 0.0, %v3007
      %v3009 = vpop.f32.mrb[0].mxu0
      %v3010 = vpop.f32.mrb[0].mxu0
      %v3011 = vadd.f32 0.0, %v3010
      %v3012 = vpop.f32.mrb[0].mxu0
      %3013 = vmatprep.mubr.bf16.mxu0 0
      %3014 = vmatmul.mubr.bf16.gmra.mrb[0].mxu0 %v2663
      %v3015 = vpop.f32.mrb[0].mxu0
      %v3016 = vadd.f32 0.0, %v3015
      %v3017 = vpop.f32.mrb[0].mxu0
      %v3018 = vpop.f32.mrb[0].mxu0
      %v3019 = vadd.f32 0.0, %v3018
      %v3020 = vpop.f32.mrb[0].mxu0
      %3021 = vmatprep.mubr.bf16.mxu0 0
      %3022 = vmatmul.mubr.bf16.gmra.mrb[0].mxu0 %v2665
      %v3023 = vpop.f32.mrb[0].mxu0
      %v3024 = vadd.f32 0.0, %v3023
      %v3025 = vpop.f32.mrb[0].mxu0
      %v3026 = vpop.f32.mrb[0].mxu0
      %v3027 = vadd.f32 0.0, %v3026
      %v3028 = vpop.f32.mrb[0].mxu0
      %3029 = vmatprep.mubr.bf16.mxu0 0
      %3030 = vmatmul.mubr.bf16.gmra.mrb[0].mxu0 %v2667
      %v3031 = vpop.f32.mrb[0].mxu0
      %v3032 = vadd.f32 0.0, %v3031
      %v3033 = vpop.f32.mrb[0].mxu0
      %v3034 = vpop.f32.mrb[0].mxu0
      %v3035 = vadd.f32 0.0, %v3034
      %v3036 = vpop.f32.mrb[0].mxu0
      %3037 = vmatprep.mubr.bf16.mxu0 0
      %3038 = vmatmul.mubr.bf16.gmra.mrb[0].mxu0 %v2669
      %v3039 = vpop.f32.mrb[0].mxu0
      %v3040 = vadd.f32 0.0, %v3039
      %v3041 = vpop.f32.mrb[0].mxu0
      %v3042 = vpop.f32.mrb[0].mxu0
      %v3043 = vadd.f32 0.0, %v3042
      %v3044 = vpop.f32.mrb[0].mxu0
      %3045 = vmatprep.mubr.bf16.mxu0 0
      %3046 = vmatmul.mubr.bf16.gmra.mrb[0].mxu0 %v2671
      %v3047 = vpop.f32.mrb[0].mxu0
      %v3048 = vadd.f32 0.0, %v3047
      %v3049 = vpop.f32.mrb[0].mxu0
      %v3050 = vpop.f32.mrb[0].mxu0
      %v3051 = vadd.f32 0.0, %v3050
      %v3052 = vpop.f32.mrb[0].mxu0
      %3053 = vmatprep.mubr.bf16.mxu0 0
      %3054 = vmatmul.mubr.bf16.gmra.mrb[0].mxu0 %v2673
      %v3055 = vpop.f32.mrb[0].mxu0
      %v3056 = vadd.f32 0.0, %v3055
      %v3057 = vpop.f32.mrb[0].mxu0
      %v3058 = vpop.f32.mrb[0].mxu0
      %v3059 = vadd.f32 0.0, %v3058
      %v3060 = vpop.f32.mrb[0].mxu0
      %3061 = vmatprep.mubr.bf16.mxu0 0
      %3062 = vmatmul.mubr.bf16.gmra.mrb[0].mxu0 %v2675
      %v3063 = vpop.f32.mrb[0].mxu0
      %v3064 = vadd.f32 0.0, %v3063
      %v3065 = vpop.f32.mrb[0].mxu0
      %v3066 = vpop.f32.mrb[0].mxu0
      %v3067 = vadd.f32 0.0, %v3066
      %v3068 = vpop.f32.mrb[0].mxu0
      %3069 = vmatprep.mubr.bf16.mxu0 0
      %3070 = vmatmul.mubr.bf16.gmra.mrb[0].mxu0 %v2912
      %v3071 = vpop.f32.mrb[0].mxu0
      %v3072 = vadd.f32 0.0, %v3071
      %v3073 = vpop.f32.mrb[0].mxu0
      %v3074 = vpop.f32.mrb[0].mxu0
      %v3075 = vadd.f32 0.0, %v3074
      %v3076 = vpop.f32.mrb[0].mxu0
      %3077 = vdwg.mxu0
      %v3078 = vadd.f32 %v2715, %v2952
      %v3079 = vadd.f32 %v2718, %v2955
      %v3080 = vadd.f32 %v2723, %v2960
      %v3081 = vadd.f32 %v2726, %v2963
      %v3082 = vadd.f32 %v2731, %v2968
      %v3083 = vadd.f32 %v2734, %v2971
      %v3084 = vadd.f32 %v2739, %v2976
      %v3085 = vadd.f32 %v2742, %v2979
      %v3086 = vadd.f32 %v2747, %v2984
      %v3087 = vadd.f32 %v2750, %v2987
      %v3088 = vadd.f32 %v2755, %v2992
      %v3089 = vadd.f32 %v2758, %v2995
      %v3090 = vadd.f32 %v2763, %v3000
      %v3091 = vadd.f32 %v2766, %v3003
      %v3092 = vadd.f32 %v2771, %v3008
      %v3093 = vadd.f32 %v2774, %v3011
      %v3094 = vadd.f32 %v2779, %v3016
      %v3095 = vadd.f32 %v2782, %v3019
      %v3096 = vadd.f32 %v2787, %v3024
      %v3097 = vadd.f32 %v2790, %v3027
      %v3098 = vadd.f32 %v2795, %v3032
      %v3099 = vadd.f32 %v2798, %v3035
      %v3100 = vadd.f32 %v2803, %v3040
      %v3101 = vadd.f32 %v2806, %v3043
      %v3102 = vadd.f32 %v2811, %v3048
      %v3103 = vadd.f32 %v2814, %v3051
      %v3104 = vadd.f32 %v2819, %v3056
      %v3105 = vadd.f32 %v2822, %v3059
      %v3106 = vadd.f32 %v2827, %v3064
      %v3107 = vadd.f32 %v2830, %v3067
      %v3108 = vadd.f32 %v2835, %v3072
      %v3109 = vadd.f32 %v2838, %v3075
      %v3110 = vld [vmem:[%s3] sm:$0x1]
      %v3112 = vlaneseq
      %v3113 = vshrl.u32 %v3112, 7
      %v3114 = vsub.s32 0, %v3113
      %v3115 = vrot.slane %v3110, %v3114
      %v3117 = vadd.f32 %v3078, %v3115
      %v3118 = vadd.f32 %v3079, %v3115
      %v3119 = vadd.f32 %v3080, %v3115
      %v3120 = vadd.f32 %v3081, %v3115
      %v3121 = vadd.f32 %v3082, %v3115
      %v3122 = vadd.f32 %v3083, %v3115
      %v3123 = vadd.f32 %v3084, %v3115
      %v3124 = vadd.f32 %v3085, %v3115
      %v3125 = vadd.f32 %v3086, %v3115
      %v3126 = vadd.f32 %v3087, %v3115
      %v3127 = vadd.f32 %v3088, %v3115
      %v3128 = vadd.f32 %v3089, %v3115
      %v3129 = vadd.f32 %v3090, %v3115
      %v3130 = vadd.f32 %v3091, %v3115
      %v3131 = vadd.f32 %v3092, %v3115
      %v3132 = vadd.f32 %v3093, %v3115
      %v3133 = vadd.f32 %v3094, %v3115
      %v3134 = vadd.f32 %v3095, %v3115
      %v3135 = vadd.f32 %v3096, %v3115
      %v3136 = vadd.f32 %v3097, %v3115
      %v3137 = vadd.f32 %v3098, %v3115
      %v3138 = vadd.f32 %v3099, %v3115
      %v3139 = vadd.f32 %v3100, %v3115
      %v3140 = vadd.f32 %v3101, %v3115
      %v3141 = vadd.f32 %v3102, %v3115
      %v3142 = vadd.f32 %v3103, %v3115
      %v3143 = vadd.f32 %v3104, %v3115
      %v3144 = vadd.f32 %v3105, %v3115
      %v3145 = vadd.f32 %v3106, %v3115
      %v3146 = vadd.f32 %v3107, %v3115
      %v3147 = vadd.f32 %v3108, %v3115
      %v3148 = vadd.f32 %v3109, %v3115
      %vm3149 = vcmp.ge.f32.partialorder %v3117, 0.0
      %vm3150 = vcmp.ge.f32.partialorder %v3118, 0.0
      %vm3151 = vcmp.ge.f32.partialorder %v3119, 0.0
      %vm3152 = vcmp.ge.f32.partialorder %v3120, 0.0
      %vm3153 = vcmp.ge.f32.partialorder %v3121, 0.0
      %vm3154 = vcmp.ge.f32.partialorder %v3122, 0.0
      %vm3155 = vcmp.ge.f32.partialorder %v3123, 0.0
      %vm3156 = vcmp.ge.f32.partialorder %v3124, 0.0
      %vm3157 = vcmp.ge.f32.partialorder %v3125, 0.0
      %vm3158 = vcmp.ge.f32.partialorder %v3126, 0.0
      %vm3159 = vcmp.ge.f32.partialorder %v3127, 0.0
      %vm3160 = vcmp.ge.f32.partialorder %v3128, 0.0
      %vm3161 = vcmp.ge.f32.partialorder %v3129, 0.0
      %vm3162 = vcmp.ge.f32.partialorder %v3130, 0.0
      %vm3163 = vcmp.ge.f32.partialorder %v3131, 0.0
      %vm3164 = vcmp.ge.f32.partialorder %v3132, 0.0
      %vm3165 = vcmp.ge.f32.partialorder %v3133, 0.0
      %vm3166 = vcmp.ge.f32.partialorder %v3134, 0.0
      %vm3167 = vcmp.ge.f32.partialorder %v3135, 0.0
      %vm3168 = vcmp.ge.f32.partialorder %v3136, 0.0
      %vm3169 = vcmp.ge.f32.partialorder %v3137, 0.0
      %vm3170 = vcmp.ge.f32.partialorder %v3138, 0.0
      %vm3171 = vcmp.ge.f32.partialorder %v3139, 0.0
      %vm3172 = vcmp.ge.f32.partialorder %v3140, 0.0
      %vm3173 = vcmp.ge.f32.partialorder %v3141, 0.0
      %vm3174 = vcmp.ge.f32.partialorder %v3142, 0.0
      %vm3175 = vcmp.ge.f32.partialorder %v3143, 0.0
      %vm3176 = vcmp.ge.f32.partialorder %v3144, 0.0
      %vm3177 = vcmp.ge.f32.partialorder %v3145, 0.0
      %vm3178 = vcmp.ge.f32.partialorder %v3146, 0.0
      %vm3179 = vcmp.ge.f32.partialorder %v3147, 0.0
      %vm3180 = vcmp.ge.f32.partialorder %v3148, 0.0
      %v3181 = vmul.f32 %v3117, 0.2
      %v3182 = vmul.f32 %v3118, 0.2
      %v3183 = vmul.f32 %v3119, 0.2
      %v3184 = vmul.f32 %v3120, 0.2
      %v3185 = vmul.f32 %v3121, 0.2
      %v3186 = vmul.f32 %v3122, 0.2
      %v3187 = vmul.f32 %v3123, 0.2
      %v3188 = vmul.f32 %v3124, 0.2
      %v3189 = vmul.f32 %v3125, 0.2
      %v3190 = vmul.f32 %v3126, 0.2
      %v3191 = vmul.f32 %v3127, 0.2
      %v3192 = vmul.f32 %v3128, 0.2
      %v3193 = vmul.f32 %v3129, 0.2
      %v3194 = vmul.f32 %v3130, 0.2
      %v3195 = vmul.f32 %v3131, 0.2
      %v3196 = vmul.f32 %v3132, 0.2
      %v3197 = vmul.f32 %v3133, 0.2
      %v3198 = vmul.f32 %v3134, 0.2
      %v3199 = vmul.f32 %v3135, 0.2
      %v3200 = vmul.f32 %v3136, 0.2
      %v3201 = vmul.f32 %v3137, 0.2
      %v3202 = vmul.f32 %v3138, 0.2
      %v3203 = vmul.f32 %v3139, 0.2
      %v3204 = vmul.f32 %v3140, 0.2
      %v3205 = vmul.f32 %v3141, 0.2
      %v3206 = vmul.f32 %v3142, 0.2
      %v3207 = vmul.f32 %v3143, 0.2
      %v3208 = vmul.f32 %v3144, 0.2
      %v3209 = vmul.f32 %v3145, 0.2
      %v3210 = vmul.f32 %v3146, 0.2
      %v3211 = vmul.f32 %v3147, 0.2
      %v3212 = vmul.f32 %v3148, 0.2
      %v3213 = vsel %vm3149, %v3117, %v3181
      %v3214 = vsel %vm3150, %v3118, %v3182
      %v3215 = vsel %vm3151, %v3119, %v3183
      %v3216 = vsel %vm3152, %v3120, %v3184
      %v3217 = vsel %vm3153, %v3121, %v3185
      %v3218 = vsel %vm3154, %v3122, %v3186
      %v3219 = vsel %vm3155, %v3123, %v3187
      %v3220 = vsel %vm3156, %v3124, %v3188
      %v3221 = vsel %vm3157, %v3125, %v3189
      %v3222 = vsel %vm3158, %v3126, %v3190
      %v3223 = vsel %vm3159, %v3127, %v3191
      %v3224 = vsel %vm3160, %v3128, %v3192
      %v3225 = vsel %vm3161, %v3129, %v3193
      %v3226 = vsel %vm3162, %v3130, %v3194
      %v3227 = vsel %vm3163, %v3131, %v3195
      %v3228 = vsel %vm3164, %v3132, %v3196
      %v3229 = vsel %vm3165, %v3133, %v3197
      %v3230 = vsel %vm3166, %v3134, %v3198
      %v3231 = vsel %vm3167, %v3135, %v3199
      %v3232 = vsel %vm3168, %v3136, %v3200
      %v3233 = vsel %vm3169, %v3137, %v3201
      %v3234 = vsel %vm3170, %v3138, %v3202
      %v3235 = vsel %vm3171, %v3139, %v3203
      %v3236 = vsel %vm3172, %v3140, %v3204
      %v3237 = vsel %vm3173, %v3141, %v3205
      %v3238 = vsel %vm3174, %v3142, %v3206
      %v3239 = vsel %vm3175, %v3143, %v3207
      %v3240 = vsel %vm3176, %v3144, %v3208
      %v3241 = vsel %vm3177, %v3145, %v3209
      %v3242 = vsel %vm3178, %v3146, %v3210
      %v3243 = vsel %vm3179, %v3147, %v3211
      %v3244 = vsel %vm3180, %v3148, %v3212
      %v3245 = vmul.f32 %v3213, 1.4142135
      %v3246 = vmul.f32 %v3214, 1.4142135
      %v3247 = vmul.f32 %v3215, 1.4142135
      %v3248 = vmul.f32 %v3216, 1.4142135
      %v3249 = vmul.f32 %v3217, 1.4142135
      %v3250 = vmul.f32 %v3218, 1.4142135
      %v3251 = vmul.f32 %v3219, 1.4142135
      %v3252 = vmul.f32 %v3220, 1.4142135
      %v3253 = vmul.f32 %v3221, 1.4142135
      %v3254 = vmul.f32 %v3222, 1.4142135
      %v3255 = vmul.f32 %v3223, 1.4142135
      %v3256 = vmul.f32 %v3224, 1.4142135
      %v3257 = vmul.f32 %v3225, 1.4142135
      %v3258 = vmul.f32 %v3226, 1.4142135
      %v3259 = vmul.f32 %v3227, 1.4142135
      %v3260 = vmul.f32 %v3228, 1.4142135
      %v3261 = vmul.f32 %v3229, 1.4142135
      %v3262 = vmul.f32 %v3230, 1.4142135
      %v3263 = vmul.f32 %v3231, 1.4142135
      %v3264 = vmul.f32 %v3232, 1.4142135
      %v3265 = vmul.f32 %v3233, 1.4142135
      %v3266 = vmul.f32 %v3234, 1.4142135
      %v3267 = vmul.f32 %v3235, 1.4142135
      %v3268 = vmul.f32 %v3236, 1.4142135
      %v3269 = vmul.f32 %v3237, 1.4142135
      %v3270 = vmul.f32 %v3238, 1.4142135
      %v3271 = vmul.f32 %v3239, 1.4142135
      %v3272 = vmul.f32 %v3240, 1.4142135
      %v3273 = vmul.f32 %v3241, 1.4142135
      %v3274 = vmul.f32 %v3242, 1.4142135
      %v3275 = vmul.f32 %v3243, 1.4142135
      %v3276 = vmul.f32 %v3244, 1.4142135
      %v3277 = vpack.c.bf16 %v3245, %v3245
      %v3278 = vpack.c.bf16 %v3246, %v3246
      %v3279 = vpack.c.bf16 %v3247, %v3247
      %v3280 = vpack.c.bf16 %v3248, %v3248
      %v3281 = vpack.c.bf16 %v3249, %v3249
      %v3282 = vpack.c.bf16 %v3250, %v3250
      %v3283 = vpack.c.bf16 %v3251, %v3251
      %v3284 = vpack.c.bf16 %v3252, %v3252
      %v3285 = vpack.c.bf16 %v3253, %v3253
      %v3286 = vpack.c.bf16 %v3254, %v3254
      %v3287 = vpack.c.bf16 %v3255, %v3255
      %v3288 = vpack.c.bf16 %v3256, %v3256
      %v3289 = vpack.c.bf16 %v3257, %v3257
      %v3290 = vpack.c.bf16 %v3258, %v3258
      %v3291 = vpack.c.bf16 %v3259, %v3259
      %v3292 = vpack.c.bf16 %v3260, %v3260
      %v3293 = vpack.c.bf16 %v3261, %v3261
      %v3294 = vpack.c.bf16 %v3262, %v3262
      %v3295 = vpack.c.bf16 %v3263, %v3263
      %v3296 = vpack.c.bf16 %v3264, %v3264
      %v3297 = vpack.c.bf16 %v3265, %v3265
      %v3298 = vpack.c.bf16 %v3266, %v3266
      %v3299 = vpack.c.bf16 %v3267, %v3267
      %v3300 = vpack.c.bf16 %v3268, %v3268
      %v3301 = vpack.c.bf16 %v3269, %v3269
      %v3302 = vpack.c.bf16 %v3270, %v3270
      %v3303 = vpack.c.bf16 %v3271, %v3271
      %v3304 = vpack.c.bf16 %v3272, %v3272
      %v3305 = vpack.c.bf16 %v3273, %v3273
      %v3306 = vpack.c.bf16 %v3274, %v3274
      %v3307 = vpack.c.bf16 %v3275, %v3275
      %v3308 = vpack.c.bf16 %v3276, %v3276
      %v3325 = vunpack.c.l.b16 %v3277
      %v3326 = vunpack.c.l.b16 %v3278
      %v3327 = vunpack.c.l.b16 %v3279
      %v3328 = vunpack.c.l.b16 %v3280
      %v3329 = vunpack.c.l.b16 %v3281
      %v3330 = vunpack.c.l.b16 %v3282
      %v3331 = vunpack.c.l.b16 %v3283
      %v3332 = vunpack.c.l.b16 %v3284
      %v3333 = vunpack.c.l.b16 %v3285
      %v3334 = vunpack.c.l.b16 %v3286
      %v3335 = vunpack.c.l.b16 %v3287
      %v3336 = vunpack.c.l.b16 %v3288
      %v3337 = vunpack.c.l.b16 %v3289
      %v3338 = vunpack.c.l.b16 %v3290
      %v3339 = vunpack.c.l.b16 %v3291
      %v3340 = vunpack.c.l.b16 %v3292
      %v3341 = vpack.c.b16 %v3325, %v3325
      %v3342 = vpack.c.b16 %v3326, %v3326
      %v3343 = vpack.c.b16 %v3327, %v3327
      %v3344 = vpack.c.b16 %v3328, %v3328
      %v3345 = vpack.c.b16 %v3329, %v3329
      %v3346 = vpack.c.b16 %v3330, %v3330
      %v3347 = vpack.c.b16 %v3331, %v3331
      %v3348 = vpack.c.b16 %v3332, %v3332
      %v3349 = vpack.c.b16 %v3333, %v3333
      %v3350 = vpack.c.b16 %v3334, %v3334
      %v3351 = vpack.c.b16 %v3335, %v3335
      %v3352 = vpack.c.b16 %v3336, %v3336
      %v3353 = vpack.c.b16 %v3337, %v3337
      %v3354 = vpack.c.b16 %v3338, %v3338
      %v3355 = vpack.c.b16 %v3339, %v3339
      %v3356 = vpack.c.b16 %v3340, %v3340
      %v3358 = vshrl.u32 %v3341, 16
      %v3360 = vrot.slane %v3358, 7
      %v3361 = vshll.u32 %v3341, 16
      %v3363 = vor.u32 %v3360, %v3361
      %v3364 = vrot.slane %v3360, 4
      %v3366 = vshrl.u32 %v3342, 16
      %v3368 = vrot.slane %v3366, 7
      %v3369 = vshll.u32 %v3342, 16
      %v3371 = vor.u32 %v3368, %v3369
      %v3372 = vrot.slane %v3368, 4
      %v3374 = vshrl.u32 %v3343, 16
      %v3376 = vrot.slane %v3374, 7
      %v3377 = vshll.u32 %v3343, 16
      %v3379 = vor.u32 %v3376, %v3377
      %v3380 = vrot.slane %v3376, 4
      %v3382 = vshrl.u32 %v3344, 16
      %v3384 = vrot.slane %v3382, 7
      %v3385 = vshll.u32 %v3344, 16
      %v3387 = vor.u32 %v3384, %v3385
      %v3388 = vrot.slane %v3384, 4
      %v3390 = vshrl.u32 %v3345, 16
      %v3392 = vrot.slane %v3390, 7
      %v3393 = vshll.u32 %v3345, 16
      %v3395 = vor.u32 %v3392, %v3393
      %v3396 = vrot.slane %v3392, 4
      %v3398 = vshrl.u32 %v3346, 16
      %v3400 = vrot.slane %v3398, 7
      %v3401 = vshll.u32 %v3346, 16
      %v3403 = vor.u32 %v3400, %v3401
      %v3404 = vrot.slane %v3400, 4
      %v3406 = vshrl.u32 %v3347, 16
      %v3408 = vrot.slane %v3406, 7
      %v3409 = vshll.u32 %v3347, 16
      %v3411 = vor.u32 %v3408, %v3409
      %v3412 = vrot.slane %v3408, 4
      %v3414 = vshrl.u32 %v3348, 16
      %v3416 = vrot.slane %v3414, 7
      %v3417 = vshll.u32 %v3348, 16
      %v3419 = vor.u32 %v3416, %v3417
      %v3420 = vrot.slane %v3416, 4
      %v3422 = vshrl.u32 %v3349, 16
      %v3424 = vrot.slane %v3422, 7
      %v3425 = vshll.u32 %v3349, 16
      %v3427 = vor.u32 %v3424, %v3425
      %v3428 = vrot.slane %v3424, 4
      %v3430 = vshrl.u32 %v3350, 16
      %v3432 = vrot.slane %v3430, 7
      %v3433 = vshll.u32 %v3350, 16
      %v3435 = vor.u32 %v3432, %v3433
      %v3436 = vrot.slane %v3432, 4
      %v3438 = vshrl.u32 %v3351, 16
      %v3440 = vrot.slane %v3438, 7
      %v3441 = vshll.u32 %v3351, 16
      %v3443 = vor.u32 %v3440, %v3441
      %v3444 = vrot.slane %v3440, 4
      %v3446 = vshrl.u32 %v3352, 16
      %v3448 = vrot.slane %v3446, 7
      %v3449 = vshll.u32 %v3352, 16
      %v3451 = vor.u32 %v3448, %v3449
      %v3452 = vrot.slane %v3448, 4
      %v3454 = vshrl.u32 %v3353, 16
      %v3456 = vrot.slane %v3454, 7
      %v3457 = vshll.u32 %v3353, 16
      %v3459 = vor.u32 %v3456, %v3457
      %v3460 = vrot.slane %v3456, 4
      %v3462 = vshrl.u32 %v3354, 16
      %v3464 = vrot.slane %v3462, 7
      %v3465 = vshll.u32 %v3354, 16
      %v3467 = vor.u32 %v3464, %v3465
      %v3468 = vrot.slane %v3464, 4
      %v3470 = vshrl.u32 %v3355, 16
      %v3472 = vrot.slane %v3470, 7
      %v3473 = vshll.u32 %v3355, 16
      %v3475 = vor.u32 %v3472, %v3473
      %v3476 = vrot.slane %v3472, 4
      %v3478 = vshrl.u32 %v3356, 16
      %v3480 = vrot.slane %v3478, 7
      %v3481 = vshll.u32 %v3356, 16
      %v3483 = vor.u32 %v3480, %v3481
      %v3484 = vrot.slane %v3480, 4
      %s3517 = scalar_lea.vmem [#allocation4], 16
      %v3518 = vld [vmem:[%s3517] sm:$0xf]
      %v3519 = vsel %vm967, %v3363, %v3518
      %3520 = vst [vmem:[%s3517] sm:$0xf] %v3519
      %v3521 = vld [vmem:[%s3517 + $0x4] sm:$0x1]
      %v3522 = vsel %vm307, %v3364, %v3521
      %3523 = vst [vmem:[%s3517 + $0x4] sm:$0x1] %v3522
      %v3524 = vld [vmem:[%s3517 + $0x8] sm:$0xf]
      %v3525 = vsel %vm967, %v3371, %v3524
      %3526 = vst [vmem:[%s3517 + $0x8] sm:$0xf] %v3525
      %v3527 = vld [vmem:[%s3517 + $0xc] sm:$0x1]
      %v3528 = vsel %vm307, %v3372, %v3527
      %3529 = vst [vmem:[%s3517 + $0xc] sm:$0x1] %v3528
      %v3530 = vld [vmem:[%s3517 + $0x10] sm:$0xf]
      %v3531 = vsel %vm967, %v3379, %v3530
      %3532 = vst [vmem:[%s3517 + $0x10] sm:$0xf] %v3531
      %v3533 = vld [vmem:[%s3517 + $0x14] sm:$0x1]
      %v3534 = vsel %vm307, %v3380, %v3533
      %3535 = vst [vmem:[%s3517 + $0x14] sm:$0x1] %v3534
      %v3536 = vld [vmem:[%s3517 + $0x18] sm:$0xf]
      %v3537 = vsel %vm967, %v3387, %v3536
      %3538 = vst [vmem:[%s3517 + $0x18] sm:$0xf] %v3537
      %v3539 = vld [vmem:[%s3517 + $0x1c] sm:$0x1]
      %v3540 = vsel %vm307, %v3388, %v3539
      %3541 = vst [vmem:[%s3517 + $0x1c] sm:$0x1] %v3540
      %v3542 = vld [vmem:[%s3517 + $0x20] sm:$0xf]
      %v3543 = vsel %vm967, %v3395, %v3542
      %3544 = vst [vmem:[%s3517 + $0x20] sm:$0xf] %v3543
      %v3545 = vld [vmem:[%s3517 + $0x24] sm:$0x1]
      %v3546 = vsel %vm307, %v3396, %v3545
      %3547 = vst [vmem:[%s3517 + $0x24] sm:$0x1] %v3546
      %v3548 = vld [vmem:[%s3517 + $0x28] sm:$0xf]
      %v3549 = vsel %vm967, %v3403, %v3548
      %3550 = vst [vmem:[%s3517 + $0x28] sm:$0xf] %v3549
      %v3551 = vld [vmem:[%s3517 + $0x2c] sm:$0x1]
      %v3552 = vsel %vm307, %v3404, %v3551
      %3553 = vst [vmem:[%s3517 + $0x2c] sm:$0x1] %v3552
      %v3554 = vld [vmem:[%s3517 + $0x30] sm:$0xf]
      %v3555 = vsel %vm967, %v3411, %v3554
      %3556 = vst [vmem:[%s3517 + $0x30] sm:$0xf] %v3555
      %v3557 = vld [vmem:[%s3517 + $0x34] sm:$0x1]
      %v3558 = vsel %vm307, %v3412, %v3557
      %3559 = vst [vmem:[%s3517 + $0x34] sm:$0x1] %v3558
      %v3560 = vld [vmem:[%s3517 + $0x38] sm:$0xf]
      %v3561 = vsel %vm967, %v3419, %v3560
      %3562 = vst [vmem:[%s3517 + $0x38] sm:$0xf] %v3561
      %v3563 = vld [vmem:[%s3517 + $0x3c] sm:$0x1]
      %v3564 = vsel %vm307, %v3420, %v3563
      %3565 = vst [vmem:[%s3517 + $0x3c] sm:$0x1] %v3564
      %v3566 = vld [vmem:[%s3517 + $0x40] sm:$0xf]
      %v3567 = vsel %vm967, %v3427, %v3566
      %3568 = vst [vmem:[%s3517 + $0x40] sm:$0xf] %v3567
      %v3569 = vld [vmem:[%s3517 + $0x44] sm:$0x1]
      %v3570 = vsel %vm307, %v3428, %v3569
      %3571 = vst [vmem:[%s3517 + $0x44] sm:$0x1] %v3570
      %v3572 = vld [vmem:[%s3517 + $0x48] sm:$0xf]
      %v3573 = vsel %vm967, %v3435, %v3572
      %3574 = vst [vmem:[%s3517 + $0x48] sm:$0xf] %v3573
      %v3575 = vld [vmem:[%s3517 + $0x4c] sm:$0x1]
      %v3576 = vsel %vm307, %v3436, %v3575
      %3577 = vst [vmem:[%s3517 + $0x4c] sm:$0x1] %v3576
      %v3578 = vld [vmem:[%s3517 + $0x50] sm:$0xf]
      %v3579 = vsel %vm967, %v3443, %v3578
      %3580 = vst [vmem:[%s3517 + $0x50] sm:$0xf] %v3579
      %v3581 = vld [vmem:[%s3517 + $0x54] sm:$0x1]
      %v3582 = vsel %vm307, %v3444, %v3581
      %3583 = vst [vmem:[%s3517 + $0x54] sm:$0x1] %v3582
      %v3584 = vld [vmem:[%s3517 + $0x58] sm:$0xf]
      %v3585 = vsel %vm967, %v3451, %v3584
      %3586 = vst [vmem:[%s3517 + $0x58] sm:$0xf] %v3585
      %v3587 = vld [vmem:[%s3517 + $0x5c] sm:$0x1]
      %v3588 = vsel %vm307, %v3452, %v3587
      %3589 = vst [vmem:[%s3517 + $0x5c] sm:$0x1] %v3588
      %v3590 = vld [vmem:[%s3517 + $0x60] sm:$0xf]
      %v3591 = vsel %vm967, %v3459, %v3590
      %3592 = vst [vmem:[%s3517 + $0x60] sm:$0xf] %v3591
      %v3593 = vld [vmem:[%s3517 + $0x64] sm:$0x1]
      %v3594 = vsel %vm307, %v3460, %v3593
      %3595 = vst [vmem:[%s3517 + $0x64] sm:$0x1] %v3594
      %v3596 = vld [vmem:[%s3517 + $0x68] sm:$0xf]
      %v3597 = vsel %vm967, %v3467, %v3596
      %3598 = vst [vmem:[%s3517 + $0x68] sm:$0xf] %v3597
      %v3599 = vld [vmem:[%s3517 + $0x6c] sm:$0x1]
      %v3600 = vsel %vm307, %v3468, %v3599
      %3601 = vst [vmem:[%s3517 + $0x6c] sm:$0x1] %v3600
      %v3602 = vld [vmem:[%s3517 + $0x70] sm:$0xf]
      %v3603 = vsel %vm967, %v3475, %v3602
      %3604 = vst [vmem:[%s3517 + $0x70] sm:$0xf] %v3603
      %v3605 = vld [vmem:[%s3517 + $0x74] sm:$0x1]
      %v3606 = vsel %vm307, %v3476, %v3605
      %3607 = vst [vmem:[%s3517 + $0x74] sm:$0x1] %v3606
      %v3608 = vld [vmem:[%s3517 + $0x78] sm:$0xf]
      %v3609 = vsel %vm967, %v3483, %v3608
      %3610 = vst [vmem:[%s3517 + $0x78] sm:$0xf] %v3609
      %v3611 = vld [vmem:[%s3517 + $0x7c] sm:$0x1]
      %v3612 = vsel %vm307, %v3484, %v3611
      %3613 = vst [vmem:[%s3517 + $0x7c] sm:$0x1] %v3612
      %v3630 = vunpack.c.l.b16 %v3293
      %v3631 = vunpack.c.l.b16 %v3294
      %v3632 = vunpack.c.l.b16 %v3295
      %v3633 = vunpack.c.l.b16 %v3296
      %v3634 = vunpack.c.l.b16 %v3297
      %v3635 = vunpack.c.l.b16 %v3298
      %v3636 = vunpack.c.l.b16 %v3299
      %v3637 = vunpack.c.l.b16 %v3300
      %v3638 = vunpack.c.l.b16 %v3301
      %v3639 = vunpack.c.l.b16 %v3302
      %v3640 = vunpack.c.l.b16 %v3303
      %v3641 = vunpack.c.l.b16 %v3304
      %v3642 = vunpack.c.l.b16 %v3305
      %v3643 = vunpack.c.l.b16 %v3306
      %v3644 = vunpack.c.l.b16 %v3307
      %v3645 = vunpack.c.l.b16 %v3308
      %v3646 = vpack.c.b16 %v3630, %v3630
      %v3647 = vpack.c.b16 %v3631, %v3631
      %v3648 = vpack.c.b16 %v3632, %v3632
      %v3649 = vpack.c.b16 %v3633, %v3633
      %v3650 = vpack.c.b16 %v3634, %v3634
      %v3651 = vpack.c.b16 %v3635, %v3635
      %v3652 = vpack.c.b16 %v3636, %v3636
      %v3653 = vpack.c.b16 %v3637, %v3637
      %v3654 = vpack.c.b16 %v3638, %v3638
      %v3655 = vpack.c.b16 %v3639, %v3639
      %v3656 = vpack.c.b16 %v3640, %v3640
      %v3657 = vpack.c.b16 %v3641, %v3641
      %v3658 = vpack.c.b16 %v3642, %v3642
      %v3659 = vpack.c.b16 %v3643, %v3643
      %v3660 = vpack.c.b16 %v3644, %v3644
      %v3661 = vpack.c.b16 %v3645, %v3645
      %v3663 = vshrl.u32 %v3646, 16
      %v3665 = vrot.slane %v3663, 7
      %v3666 = vshll.u32 %v3646, 16
      %v3668 = vor.u32 %v3665, %v3666
      %v3669 = vrot.slane %v3665, 4
      %v3671 = vshrl.u32 %v3647, 16
      %v3673 = vrot.slane %v3671, 7
      %v3674 = vshll.u32 %v3647, 16
      %v3676 = vor.u32 %v3673, %v3674
      %v3677 = vrot.slane %v3673, 4
      %v3679 = vshrl.u32 %v3648, 16
      %v3681 = vrot.slane %v3679, 7
      %v3682 = vshll.u32 %v3648, 16
      %v3684 = vor.u32 %v3681, %v3682
      %v3685 = vrot.slane %v3681, 4
      %v3687 = vshrl.u32 %v3649, 16
      %v3689 = vrot.slane %v3687, 7
      %v3690 = vshll.u32 %v3649, 16
      %v3692 = vor.u32 %v3689, %v3690
      %v3693 = vrot.slane %v3689, 4
      %v3695 = vshrl.u32 %v3650, 16
      %v3697 = vrot.slane %v3695, 7
      %v3698 = vshll.u32 %v3650, 16
      %v3700 = vor.u32 %v3697, %v3698
      %v3701 = vrot.slane %v3697, 4
      %v3703 = vshrl.u32 %v3651, 16
      %v3705 = vrot.slane %v3703, 7
      %v3706 = vshll.u32 %v3651, 16
      %v3708 = vor.u32 %v3705, %v3706
      %v3709 = vrot.slane %v3705, 4
      %v3711 = vshrl.u32 %v3652, 16
      %v3713 = vrot.slane %v3711, 7
      %v3714 = vshll.u32 %v3652, 16
      %v3716 = vor.u32 %v3713, %v3714
      %v3717 = vrot.slane %v3713, 4
      %v3719 = vshrl.u32 %v3653, 16
      %v3721 = vrot.slane %v3719, 7
      %v3722 = vshll.u32 %v3653, 16
      %v3724 = vor.u32 %v3721, %v3722
      %v3725 = vrot.slane %v3721, 4
      %v3727 = vshrl.u32 %v3654, 16
      %v3729 = vrot.slane %v3727, 7
      %v3730 = vshll.u32 %v3654, 16
      %v3732 = vor.u32 %v3729, %v3730
      %v3733 = vrot.slane %v3729, 4
      %v3735 = vshrl.u32 %v3655, 16
      %v3737 = vrot.slane %v3735, 7
      %v3738 = vshll.u32 %v3655, 16
      %v3740 = vor.u32 %v3737, %v3738
      %v3741 = vrot.slane %v3737, 4
      %v3743 = vshrl.u32 %v3656, 16
      %v3745 = vrot.slane %v3743, 7
      %v3746 = vshll.u32 %v3656, 16
      %v3748 = vor.u32 %v3745, %v3746
      %v3749 = vrot.slane %v3745, 4
      %v3751 = vshrl.u32 %v3657, 16
      %v3753 = vrot.slane %v3751, 7
      %v3754 = vshll.u32 %v3657, 16
      %v3756 = vor.u32 %v3753, %v3754
      %v3757 = vrot.slane %v3753, 4
      %v3759 = vshrl.u32 %v3658, 16
      %v3761 = vrot.slane %v3759, 7
      %v3762 = vshll.u32 %v3658, 16
      %v3764 = vor.u32 %v3761, %v3762
      %v3765 = vrot.slane %v3761, 4
      %v3767 = vshrl.u32 %v3659, 16
      %v3769 = vrot.slane %v3767, 7
      %v3770 = vshll.u32 %v3659, 16
      %v3772 = vor.u32 %v3769, %v3770
      %v3773 = vrot.slane %v3769, 4
      %v3775 = vshrl.u32 %v3660, 16
      %v3777 = vrot.slane %v3775, 7
      %v3778 = vshll.u32 %v3660, 16
      %v3780 = vor.u32 %v3777, %v3778
      %v3781 = vrot.slane %v3777, 4
      %v3783 = vshrl.u32 %v3661, 16
      %v3785 = vrot.slane %v3783, 7
      %v3786 = vshll.u32 %v3661, 16
      %v3788 = vor.u32 %v3785, %v3786
      %v3789 = vrot.slane %v3785, 4
      %s3822 = scalar_lea.vmem [#allocation5], 16
      %v3823 = vld [vmem:[%s3822] sm:$0xf]
      %v3824 = vsel %vm967, %v3668, %v3823
      %3825 = vst [vmem:[%s3822] sm:$0xf] %v3824
      %v3826 = vld [vmem:[%s3822 + $0x4] sm:$0x1]
      %v3827 = vsel %vm307, %v3669, %v3826
      %3828 = vst [vmem:[%s3822 + $0x4] sm:$0x1] %v3827
      %v3829 = vld [vmem:[%s3822 + $0x8] sm:$0xf]
      %v3830 = vsel %vm967, %v3676, %v3829
      %3831 = vst [vmem:[%s3822 + $0x8] sm:$0xf] %v3830
      %v3832 = vld [vmem:[%s3822 + $0xc] sm:$0x1]
      %v3833 = vsel %vm307, %v3677, %v3832
      %3834 = vst [vmem:[%s3822 + $0xc] sm:$0x1] %v3833
      %v3835 = vld [vmem:[%s3822 + $0x10] sm:$0xf]
      %v3836 = vsel %vm967, %v3684, %v3835
      %3837 = vst [vmem:[%s3822 + $0x10] sm:$0xf] %v3836
      %v3838 = vld [vmem:[%s3822 + $0x14] sm:$0x1]
      %v3839 = vsel %vm307, %v3685, %v3838
      %3840 = vst [vmem:[%s3822 + $0x14] sm:$0x1] %v3839
      %v3841 = vld [vmem:[%s3822 + $0x18] sm:$0xf]
      %v3842 = vsel %vm967, %v3692, %v3841
      %3843 = vst [vmem:[%s3822 + $0x18] sm:$0xf] %v3842
      %v3844 = vld [vmem:[%s3822 + $0x1c] sm:$0x1]
      %v3845 = vsel %vm307, %v3693, %v3844
      %3846 = vst [vmem:[%s3822 + $0x1c] sm:$0x1] %v3845
      %v3847 = vld [vmem:[%s3822 + $0x20] sm:$0xf]
      %v3848 = vsel %vm967, %v3700, %v3847
      %3849 = vst [vmem:[%s3822 + $0x20] sm:$0xf] %v3848
      %v3850 = vld [vmem:[%s3822 + $0x24] sm:$0x1]
      %v3851 = vsel %vm307, %v3701, %v3850
      %3852 = vst [vmem:[%s3822 + $0x24] sm:$0x1] %v3851
      %v3853 = vld [vmem:[%s3822 + $0x28] sm:$0xf]
      %v3854 = vsel %vm967, %v3708, %v3853
      %3855 = vst [vmem:[%s3822 + $0x28] sm:$0xf] %v3854
      %v3856 = vld [vmem:[%s3822 + $0x2c] sm:$0x1]
      %v3857 = vsel %vm307, %v3709, %v3856
      %3858 = vst [vmem:[%s3822 + $0x2c] sm:$0x1] %v3857
      %v3859 = vld [vmem:[%s3822 + $0x30] sm:$0xf]
      %v3860 = vsel %vm967, %v3716, %v3859
      %3861 = vst [vmem:[%s3822 + $0x30] sm:$0xf] %v3860
      %v3862 = vld [vmem:[%s3822 + $0x34] sm:$0x1]
      %v3863 = vsel %vm307, %v3717, %v3862
      %3864 = vst [vmem:[%s3822 + $0x34] sm:$0x1] %v3863
      %v3865 = vld [vmem:[%s3822 + $0x38] sm:$0xf]
      %v3866 = vsel %vm967, %v3724, %v3865
      %3867 = vst [vmem:[%s3822 + $0x38] sm:$0xf] %v3866
      %v3868 = vld [vmem:[%s3822 + $0x3c] sm:$0x1]
      %v3869 = vsel %vm307, %v3725, %v3868
      %3870 = vst [vmem:[%s3822 + $0x3c] sm:$0x1] %v3869
      %v3871 = vld [vmem:[%s3822 + $0x40] sm:$0xf]
      %v3872 = vsel %vm967, %v3732, %v3871
      %3873 = vst [vmem:[%s3822 + $0x40] sm:$0xf] %v3872
      %v3874 = vld [vmem:[%s3822 + $0x44] sm:$0x1]
      %v3875 = vsel %vm307, %v3733, %v3874
      %3876 = vst [vmem:[%s3822 + $0x44] sm:$0x1] %v3875
      %v3877 = vld [vmem:[%s3822 + $0x48] sm:$0xf]
      %v3878 = vsel %vm967, %v3740, %v3877
      %3879 = vst [vmem:[%s3822 + $0x48] sm:$0xf] %v3878
      %v3880 = vld [vmem:[%s3822 + $0x4c] sm:$0x1]
      %v3881 = vsel %vm307, %v3741, %v3880
      %3882 = vst [vmem:[%s3822 + $0x4c] sm:$0x1] %v3881
      %v3883 = vld [vmem:[%s3822 + $0x50] sm:$0xf]
      %v3884 = vsel %vm967, %v3748, %v3883
      %3885 = vst [vmem:[%s3822 + $0x50] sm:$0xf] %v3884
      %v3886 = vld [vmem:[%s3822 + $0x54] sm:$0x1]
      %v3887 = vsel %vm307, %v3749, %v3886
      %3888 = vst [vmem:[%s3822 + $0x54] sm:$0x1] %v3887
      %v3889 = vld [vmem:[%s3822 + $0x58] sm:$0xf]
      %v3890 = vsel %vm967, %v3756, %v3889
      %3891 = vst [vmem:[%s3822 + $0x58] sm:$0xf] %v3890
      %v3892 = vld [vmem:[%s3822 + $0x5c] sm:$0x1]
      %v3893 = vsel %vm307, %v3757, %v3892
      %3894 = vst [vmem:[%s3822 + $0x5c] sm:$0x1] %v3893
      %v3895 = vld [vmem:[%s3822 + $0x60] sm:$0xf]
      %v3896 = vsel %vm967, %v3764, %v3895
      %3897 = vst [vmem:[%s3822 + $0x60] sm:$0xf] %v3896
      %v3898 = vld [vmem:[%s3822 + $0x64] sm:$0x1]
      %v3899 = vsel %vm307, %v3765, %v3898
      %3900 = vst [vmem:[%s3822 + $0x64] sm:$0x1] %v3899
      %v3901 = vld [vmem:[%s3822 + $0x68] sm:$0xf]
      %v3902 = vsel %vm967, %v3772, %v3901
      %3903 = vst [vmem:[%s3822 + $0x68] sm:$0xf] %v3902
      %v3904 = vld [vmem:[%s3822 + $0x6c] sm:$0x1]
      %v3905 = vsel %vm307, %v3773, %v3904
      %3906 = vst [vmem:[%s3822 + $0x6c] sm:$0x1] %v3905
      %v3907 = vld [vmem:[%s3822 + $0x70] sm:$0xf]
      %v3908 = vsel %vm967, %v3780, %v3907
      %3909 = vst [vmem:[%s3822 + $0x70] sm:$0xf] %v3908
      %v3910 = vld [vmem:[%s3822 + $0x74] sm:$0x1]
      %v3911 = vsel %vm307, %v3781, %v3910
      %3912 = vst [vmem:[%s3822 + $0x74] sm:$0x1] %v3911
      %v3913 = vld [vmem:[%s3822 + $0x78] sm:$0xf]
      %v3914 = vsel %vm967, %v3788, %v3913
      %3915 = vst [vmem:[%s3822 + $0x78] sm:$0xf] %v3914
      %v3916 = vld [vmem:[%s3822 + $0x7c] sm:$0x1]
      %v3917 = vsel %vm307, %v3789, %v3916
      %3918 = vst [vmem:[%s3822 + $0x7c] sm:$0x1] %v3917
      %v3919 = vld [vmem:[#allocation4] sm:$0xf]
      %v3920 = vld [vmem:[#allocation4 + $0x4] sm:$0x1]
      %v3921 = vld [vmem:[#allocation4 + $0x8] sm:$0xf]
      %v3922 = vld [vmem:[#allocation4 + $0xc] sm:$0x1]
      %v3923 = vld [vmem:[#allocation4 + $0x10] sm:$0xf]
      %v3924 = vld [vmem:[#allocation4 + $0x14] sm:$0x1]
      %v3925 = vld [vmem:[#allocation4 + $0x18] sm:$0xf]
      %v3926 = vld [vmem:[#allocation4 + $0x1c] sm:$0x1]
      %v3927 = vld [vmem:[#allocation4 + $0x20] sm:$0xf]
      %v3928 = vld [vmem:[#allocation4 + $0x24] sm:$0x1]
      %v3929 = vld [vmem:[#allocation4 + $0x28] sm:$0xf]
      %v3930 = vld [vmem:[#allocation4 + $0x2c] sm:$0x1]
      %v3931 = vld [vmem:[#allocation4 + $0x30] sm:$0xf]
      %v3932 = vld [vmem:[#allocation4 + $0x34] sm:$0x1]
      %v3933 = vld [vmem:[#allocation4 + $0x38] sm:$0xf]
      %v3934 = vld [vmem:[#allocation4 + $0x3c] sm:$0x1]
      %v3935 = vld [vmem:[#allocation4 + $0x40] sm:$0xf]
      %v3936 = vld [vmem:[#allocation4 + $0x44] sm:$0x1]
      %v3937 = vld [vmem:[#allocation4 + $0x48] sm:$0xf]
      %v3938 = vld [vmem:[#allocation4 + $0x4c] sm:$0x1]
      %v3939 = vld [vmem:[#allocation4 + $0x50] sm:$0xf]
      %v3940 = vld [vmem:[#allocation4 + $0x54] sm:$0x1]
      %v3941 = vld [vmem:[#allocation4 + $0x58] sm:$0xf]
      %v3942 = vld [vmem:[#allocation4 + $0x5c] sm:$0x1]
      %v3943 = vld [vmem:[#allocation4 + $0x60] sm:$0xf]
      %v3944 = vld [vmem:[#allocation4 + $0x64] sm:$0x1]
      %v3945 = vld [vmem:[#allocation4 + $0x68] sm:$0xf]
      %v3946 = vld [vmem:[#allocation4 + $0x6c] sm:$0x1]
      %v3947 = vld [vmem:[#allocation4 + $0x70] sm:$0xf]
      %v3948 = vld [vmem:[#allocation4 + $0x74] sm:$0x1]
      %v3949 = vld [vmem:[#allocation4 + $0x78] sm:$0xf]
      %v3950 = vld [vmem:[#allocation4 + $0x7c] sm:$0x1]
      %v3951 = vld [vmem:[#allocation4 + $0x80] sm:$0xf]
      %v3952 = vld [vmem:[#allocation4 + $0x84] sm:$0x1]
      %v3953 = vld [vmem:[#allocation4 + $0x88] sm:$0xf]
      %v3954 = vld [vmem:[#allocation4 + $0x8c] sm:$0x1]
      %v3955 = vld [vmem:[#allocation4 + $0x90] sm:$0xf]
      %v3956 = vld [vmem:[#allocation4 + $0x94] sm:$0x1]
      %v3957 = vld [vmem:[#allocation4 + $0x98] sm:$0xf]
      %v3958 = vld [vmem:[#allocation4 + $0x9c] sm:$0x1]
      %v3959 = vunpack.c.l.bf16 %v3919
      %v3960 = vunpack.c.l.bf16 %v3920
      %v3961 = vunpack.c.l.bf16 %v3921
      %v3962 = vunpack.c.l.bf16 %v3922
      %v3963 = vunpack.c.l.bf16 %v3923
      %v3964 = vunpack.c.l.bf16 %v3924
      %v3965 = vunpack.c.l.bf16 %v3925
      %v3966 = vunpack.c.l.bf16 %v3926
      %v3967 = vunpack.c.l.bf16 %v3927
      %v3968 = vunpack.c.l.bf16 %v3928
      %v3969 = vunpack.c.l.bf16 %v3929
      %v3970 = vunpack.c.l.bf16 %v3930
      %v3971 = vunpack.c.l.bf16 %v3931
      %v3972 = vunpack.c.l.bf16 %v3932
      %v3973 = vunpack.c.l.bf16 %v3933
      %v3974 = vunpack.c.l.bf16 %v3934
      %v3975 = vunpack.c.l.bf16 %v3935
      %v3976 = vunpack.c.l.bf16 %v3936
      %v3977 = vunpack.c.l.bf16 %v3937
      %v3978 = vunpack.c.l.bf16 %v3938
      %v3979 = vunpack.c.l.bf16 %v3939
      %v3980 = vunpack.c.l.bf16 %v3940
      %v3981 = vunpack.c.l.bf16 %v3941
      %v3982 = vunpack.c.l.bf16 %v3942
      %v3983 = vunpack.c.l.bf16 %v3943
      %v3984 = vunpack.c.l.bf16 %v3944
      %v3985 = vunpack.c.l.bf16 %v3945
      %v3986 = vunpack.c.l.bf16 %v3946
      %v3987 = vunpack.c.l.bf16 %v3947
      %v3988 = vunpack.c.l.bf16 %v3948
      %v3989 = vunpack.c.l.bf16 %v3949
      %v3990 = vunpack.c.l.bf16 %v3950
      %v3991 = vunpack.c.l.bf16 %v3951
      %v3992 = vunpack.c.l.bf16 %v3952
      %v3993 = vunpack.c.l.bf16 %v3953
      %v3994 = vunpack.c.l.bf16 %v3954
      %v3995 = vunpack.c.l.bf16 %v3955
      %v3996 = vunpack.c.l.bf16 %v3956
      %v3997 = vunpack.c.l.bf16 %v3957
      %v3998 = vunpack.c.l.bf16 %v3958
      %v3999 = vld [vmem:[#allocation5] sm:$0xf]
      %v4000 = vld [vmem:[#allocation5 + $0x4] sm:$0x1]
      %v4001 = vld [vmem:[#allocation5 + $0x8] sm:$0xf]
      %v4002 = vld [vmem:[#allocation5 + $0xc] sm:$0x1]
      %v4003 = vld [vmem:[#allocation5 + $0x10] sm:$0xf]
      %v4004 = vld [vmem:[#allocation5 + $0x14] sm:$0x1]
      %v4005 = vld [vmem:[#allocation5 + $0x18] sm:$0xf]
      %v4006 = vld [vmem:[#allocation5 + $0x1c] sm:$0x1]
      %v4007 = vld [vmem:[#allocation5 + $0x20] sm:$0xf]
      %v4008 = vld [vmem:[#allocation5 + $0x24] sm:$0x1]
      %v4009 = vld [vmem:[#allocation5 + $0x28] sm:$0xf]
      %v4010 = vld [vmem:[#allocation5 + $0x2c] sm:$0x1]
      %v4011 = vld [vmem:[#allocation5 + $0x30] sm:$0xf]
      %v4012 = vld [vmem:[#allocation5 + $0x34] sm:$0x1]
      %v4013 = vld [vmem:[#allocation5 + $0x38] sm:$0xf]
      %v4014 = vld [vmem:[#allocation5 + $0x3c] sm:$0x1]
      %v4015 = vld [vmem:[#allocation5 + $0x40] sm:$0xf]
      %v4016 = vld [vmem:[#allocation5 + $0x44] sm:$0x1]
      %v4017 = vld [vmem:[#allocation5 + $0x48] sm:$0xf]
      %v4018 = vld [vmem:[#allocation5 + $0x4c] sm:$0x1]
      %v4019 = vld [vmem:[#allocation5 + $0x50] sm:$0xf]
      %v4020 = vld [vmem:[#allocation5 + $0x54] sm:$0x1]
      %v4021 = vld [vmem:[#allocation5 + $0x58] sm:$0xf]
      %v4022 = vld [vmem:[#allocation5 + $0x5c] sm:$0x1]
      %v4023 = vld [vmem:[#allocation5 + $0x60] sm:$0xf]
      %v4024 = vld [vmem:[#allocation5 + $0x64] sm:$0x1]
      %v4025 = vld [vmem:[#allocation5 + $0x68] sm:$0xf]
      %v4026 = vld [vmem:[#allocation5 + $0x6c] sm:$0x1]
      %v4027 = vld [vmem:[#allocation5 + $0x70] sm:$0xf]
      %v4028 = vld [vmem:[#allocation5 + $0x74] sm:$0x1]
      %v4029 = vld [vmem:[#allocation5 + $0x78] sm:$0xf]
      %v4030 = vld [vmem:[#allocation5 + $0x7c] sm:$0x1]
      %v4031 = vld [vmem:[#allocation5 + $0x80] sm:$0xf]
      %v4032 = vld [vmem:[#allocation5 + $0x84] sm:$0x1]
      %v4033 = vld [vmem:[#allocation5 + $0x88] sm:$0xf]
      %v4034 = vld [vmem:[#allocation5 + $0x8c] sm:$0x1]
      %v4035 = vld [vmem:[#allocation5 + $0x90] sm:$0xf]
      %v4036 = vld [vmem:[#allocation5 + $0x94] sm:$0x1]
      %v4037 = vld [vmem:[#allocation5 + $0x98] sm:$0xf]
      %v4038 = vld [vmem:[#allocation5 + $0x9c] sm:$0x1]
      %v4039 = vunpack.c.l.bf16 %v3999
      %v4040 = vunpack.c.l.bf16 %v4000
      %v4041 = vunpack.c.l.bf16 %v4001
      %v4042 = vunpack.c.l.bf16 %v4002
      %v4043 = vunpack.c.l.bf16 %v4003
      %v4044 = vunpack.c.l.bf16 %v4004
      %v4045 = vunpack.c.l.bf16 %v4005
      %v4046 = vunpack.c.l.bf16 %v4006
      %v4047 = vunpack.c.l.bf16 %v4007
      %v4048 = vunpack.c.l.bf16 %v4008
      %v4049 = vunpack.c.l.bf16 %v4009
      %v4050 = vunpack.c.l.bf16 %v4010
      %v4051 = vunpack.c.l.bf16 %v4011
      %v4052 = vunpack.c.l.bf16 %v4012
      %v4053 = vunpack.c.l.bf16 %v4013
      %v4054 = vunpack.c.l.bf16 %v4014
      %v4055 = vunpack.c.l.bf16 %v4015
      %v4056 = vunpack.c.l.bf16 %v4016
      %v4057 = vunpack.c.l.bf16 %v4017
      %v4058 = vunpack.c.l.bf16 %v4018
      %v4059 = vunpack.c.l.bf16 %v4019
      %v4060 = vunpack.c.l.bf16 %v4020
      %v4061 = vunpack.c.l.bf16 %v4021
      %v4062 = vunpack.c.l.bf16 %v4022
      %v4063 = vunpack.c.l.bf16 %v4023
      %v4064 = vunpack.c.l.bf16 %v4024
      %v4065 = vunpack.c.l.bf16 %v4025
      %v4066 = vunpack.c.l.bf16 %v4026
      %v4067 = vunpack.c.l.bf16 %v4027
      %v4068 = vunpack.c.l.bf16 %v4028
      %v4069 = vunpack.c.l.bf16 %v4029
      %v4070 = vunpack.c.l.bf16 %v4030
      %v4071 = vunpack.c.l.bf16 %v4031
      %v4072 = vunpack.c.l.bf16 %v4032
      %v4073 = vunpack.c.l.bf16 %v4033
      %v4074 = vunpack.c.l.bf16 %v4034
      %v4075 = vunpack.c.l.bf16 %v4035
      %v4076 = vunpack.c.l.bf16 %v4036
      %v4077 = vunpack.c.l.bf16 %v4037
      %v4078 = vunpack.c.l.bf16 %v4038
      %v4079 = vmul.f32 %v3959, 0.125
      %v4080 = vmul.f32 %v3960, 0.125
      %v4081 = vmul.f32 %v3961, 0.125
      %v4082 = vmul.f32 %v3962, 0.125
      %v4083 = vmul.f32 %v3963, 0.125
      %v4084 = vmul.f32 %v3964, 0.125
      %v4085 = vmul.f32 %v3965, 0.125
      %v4086 = vmul.f32 %v3966, 0.125
      %v4087 = vmul.f32 %v3967, 0.125
      %v4088 = vmul.f32 %v3968, 0.125
      %v4089 = vmul.f32 %v3969, 0.125
      %v4090 = vmul.f32 %v3970, 0.125
      %v4091 = vmul.f32 %v3971, 0.125
      %v4092 = vmul.f32 %v3972, 0.125
      %v4093 = vmul.f32 %v3973, 0.125
      %v4094 = vmul.f32 %v3974, 0.125
      %v4095 = vmul.f32 %v3975, 0.125
      %v4096 = vmul.f32 %v3976, 0.125
      %v4097 = vmul.f32 %v3977, 0.125
      %v4098 = vmul.f32 %v3978, 0.125
      %v4099 = vmul.f32 %v3979, 0.125
      %v4100 = vmul.f32 %v3980, 0.125
      %v4101 = vmul.f32 %v3981, 0.125
      %v4102 = vmul.f32 %v3982, 0.125
      %v4103 = vmul.f32 %v3983, 0.125
      %v4104 = vmul.f32 %v3984, 0.125
      %v4105 = vmul.f32 %v3985, 0.125
      %v4106 = vmul.f32 %v3986, 0.125
      %v4107 = vmul.f32 %v3987, 0.125
      %v4108 = vmul.f32 %v3988, 0.125
      %v4109 = vmul.f32 %v3989, 0.125
      %v4110 = vmul.f32 %v3990, 0.125
      %v4111 = vmul.f32 %v3991, 0.125
      %v4112 = vmul.f32 %v3992, 0.125
      %v4113 = vmul.f32 %v3993, 0.125
      %v4114 = vmul.f32 %v3994, 0.125
      %v4115 = vmul.f32 %v3995, 0.125
      %v4116 = vmul.f32 %v3996, 0.125
      %v4117 = vmul.f32 %v3997, 0.125
      %v4118 = vmul.f32 %v3998, 0.125
      %v4119 = vmul.f32 %v4039, 0.375
      %v4120 = vmul.f32 %v4040, 0.375
      %v4121 = vmul.f32 %v4041, 0.375
      %v4122 = vmul.f32 %v4042, 0.375
      %v4123 = vmul.f32 %v4043, 0.375
      %v4124 = vmul.f32 %v4044, 0.375
      %v4125 = vmul.f32 %v4045, 0.375
      %v4126 = vmul.f32 %v4046, 0.375
      %v4127 = vmul.f32 %v4047, 0.375
      %v4128 = vmul.f32 %v4048, 0.375
      %v4129 = vmul.f32 %v4049, 0.375
      %v4130 = vmul.f32 %v4050, 0.375
      %v4131 = vmul.f32 %v4051, 0.375
      %v4132 = vmul.f32 %v4052, 0.375
      %v4133 = vmul.f32 %v4053, 0.375
      %v4134 = vmul.f32 %v4054, 0.375
      %v4135 = vmul.f32 %v4055, 0.375
      %v4136 = vmul.f32 %v4056, 0.375
      %v4137 = vmul.f32 %v4057, 0.375
      %v4138 = vmul.f32 %v4058, 0.375
      %v4139 = vmul.f32 %v4059, 0.375
      %v4140 = vmul.f32 %v4060, 0.375
      %v4141 = vmul.f32 %v4061, 0.375
      %v4142 = vmul.f32 %v4062, 0.375
      %v4143 = vmul.f32 %v4063, 0.375
      %v4144 = vmul.f32 %v4064, 0.375
      %v4145 = vmul.f32 %v4065, 0.375
      %v4146 = vmul.f32 %v4066, 0.375
      %v4147 = vmul.f32 %v4067, 0.375
      %v4148 = vmul.f32 %v4068, 0.375
      %v4149 = vmul.f32 %v4069, 0.375
      %v4150 = vmul.f32 %v4070, 0.375
      %v4151 = vmul.f32 %v4071, 0.375
      %v4152 = vmul.f32 %v4072, 0.375
      %v4153 = vmul.f32 %v4073, 0.375
      %v4154 = vmul.f32 %v4074, 0.375
      %v4155 = vmul.f32 %v4075, 0.375
      %v4156 = vmul.f32 %v4076, 0.375
      %v4157 = vmul.f32 %v4077, 0.375
      %v4158 = vmul.f32 %v4078, 0.375
      %v4159 = vadd.f32 %v4079, %v4119
      %v4160 = vadd.f32 %v4080, %v4120
      %v4161 = vadd.f32 %v4081, %v4121
      %v4162 = vadd.f32 %v4082, %v4122
      %v4163 = vadd.f32 %v4083, %v4123
      %v4164 = vadd.f32 %v4084, %v4124
      %v4165 = vadd.f32 %v4085, %v4125
      %v4166 = vadd.f32 %v4086, %v4126
      %v4167 = vadd.f32 %v4087, %v4127
      %v4168 = vadd.f32 %v4088, %v4128
      %v4169 = vadd.f32 %v4089, %v4129
      %v4170 = vadd.f32 %v4090, %v4130
      %v4171 = vadd.f32 %v4091, %v4131
      %v4172 = vadd.f32 %v4092, %v4132
      %v4173 = vadd.f32 %v4093, %v4133
      %v4174 = vadd.f32 %v4094, %v4134
      %v4175 = vadd.f32 %v4095, %v4135
      %v4176 = vadd.f32 %v4096, %v4136
      %v4177 = vadd.f32 %v4097, %v4137
      %v4178 = vadd.f32 %v4098, %v4138
      %v4179 = vadd.f32 %v4099, %v4139
      %v4180 = vadd.f32 %v4100, %v4140
      %v4181 = vadd.f32 %v4101, %v4141
      %v4182 = vadd.f32 %v4102, %v4142
      %v4183 = vadd.f32 %v4103, %v4143
      %v4184 = vadd.f32 %v4104, %v4144
      %v4185 = vadd.f32 %v4105, %v4145
      %v4186 = vadd.f32 %v4106, %v4146
      %v4187 = vadd.f32 %v4107, %v4147
      %v4188 = vadd.f32 %v4108, %v4148
      %v4189 = vadd.f32 %v4109, %v4149
      %v4190 = vadd.f32 %v4110, %v4150
      %v4191 = vadd.f32 %v4111, %v4151
      %v4192 = vadd.f32 %v4112, %v4152
      %v4193 = vadd.f32 %v4113, %v4153
      %v4194 = vadd.f32 %v4114, %v4154
      %v4195 = vadd.f32 %v4115, %v4155
      %v4196 = vadd.f32 %v4116, %v4156
      %v4197 = vadd.f32 %v4117, %v4157
      %v4198 = vadd.f32 %v4118, %v4158
      %v4199 = vmul.f32 %v3959, 0.375
      %v4200 = vmul.f32 %v3960, 0.375
      %v4201 = vmul.f32 %v3961, 0.375
      %v4202 = vmul.f32 %v3962, 0.375
      %v4203 = vmul.f32 %v3963, 0.375
      %v4204 = vmul.f32 %v3964, 0.375
      %v4205 = vmul.f32 %v3965, 0.375
      %v4206 = vmul.f32 %v3966, 0.375
      %v4207 = vmul.f32 %v3967, 0.375
      %v4208 = vmul.f32 %v3968, 0.375
      %v4209 = vmul.f32 %v3969, 0.375
      %v4210 = vmul.f32 %v3970, 0.375
      %v4211 = vmul.f32 %v3971, 0.375
      %v4212 = vmul.f32 %v3972, 0.375
      %v4213 = vmul.f32 %v3973, 0.375
      %v4214 = vmul.f32 %v3974, 0.375
      %v4215 = vmul.f32 %v3975, 0.375
      %v4216 = vmul.f32 %v3976, 0.375
      %v4217 = vmul.f32 %v3977, 0.375
      %v4218 = vmul.f32 %v3978, 0.375
      %v4219 = vmul.f32 %v3979, 0.375
      %v4220 = vmul.f32 %v3980, 0.375
      %v4221 = vmul.f32 %v3981, 0.375
      %v4222 = vmul.f32 %v3982, 0.375
      %v4223 = vmul.f32 %v3983, 0.375
      %v4224 = vmul.f32 %v3984, 0.375
      %v4225 = vmul.f32 %v3985, 0.375
      %v4226 = vmul.f32 %v3986, 0.375
      %v4227 = vmul.f32 %v3987, 0.375
      %v4228 = vmul.f32 %v3988, 0.375
      %v4229 = vmul.f32 %v3989, 0.375
      %v4230 = vmul.f32 %v3990, 0.375
      %v4231 = vmul.f32 %v3991, 0.375
      %v4232 = vmul.f32 %v3992, 0.375
      %v4233 = vmul.f32 %v3993, 0.375
      %v4234 = vmul.f32 %v3994, 0.375
      %v4235 = vmul.f32 %v3995, 0.375
      %v4236 = vmul.f32 %v3996, 0.375
      %v4237 = vmul.f32 %v3997, 0.375
      %v4238 = vmul.f32 %v3998, 0.375
      %vm4279 = vcmask 1046528
      %v4280 = vrot.slane %v4199, 1
      %v4281 = vrot.slane %v4200, 1
      %v4282 = vsel %vm4279, %v4280, %v4281
      %v4283 = vrot.slane %v4201, 1
      %v4284 = vrot.slane %v4202, 1
      %v4285 = vsel %vm4279, %v4283, %v4284
      %v4286 = vrot.slane %v4203, 1
      %v4287 = vrot.slane %v4204, 1
      %v4288 = vsel %vm4279, %v4286, %v4287
      %v4289 = vrot.slane %v4205, 1
      %v4290 = vrot.slane %v4206, 1
      %v4291 = vsel %vm4279, %v4289, %v4290
      %v4292 = vrot.slane %v4207, 1
      %v4293 = vrot.slane %v4208, 1
      %v4294 = vsel %vm4279, %v4292, %v4293
      %v4295 = vrot.slane %v4209, 1
      %v4296 = vrot.slane %v4210, 1
      %v4297 = vsel %vm4279, %v4295, %v4296
      %v4298 = vrot.slane %v4211, 1
      %v4299 = vrot.slane %v4212, 1
      %v4300 = vsel %vm4279, %v4298, %v4299
      %v4301 = vrot.slane %v4213, 1
      %v4302 = vrot.slane %v4214, 1
      %v4303 = vsel %vm4279, %v4301, %v4302
      %v4304 = vrot.slane %v4215, 1
      %v4305 = vrot.slane %v4216, 1
      %v4306 = vsel %vm4279, %v4304, %v4305
      %v4307 = vrot.slane %v4217, 1
      %v4308 = vrot.slane %v4218, 1
      %v4309 = vsel %vm4279, %v4307, %v4308
      %v4310 = vrot.slane %v4219, 1
      %v4311 = vrot.slane %v4220, 1
      %v4312 = vsel %vm4279, %v4310, %v4311
      %v4313 = vrot.slane %v4221, 1
      %v4314 = vrot.slane %v4222, 1
      %v4315 = vsel %vm4279, %v4313, %v4314
      %v4316 = vrot.slane %v4223, 1
      %v4317 = vrot.slane %v4224, 1
      %v4318 = vsel %vm4279, %v4316, %v4317
      %v4319 = vrot.slane %v4225, 1
      %v4320 = vrot.slane %v4226, 1
      %v4321 = vsel %vm4279, %v4319, %v4320
      %v4322 = vrot.slane %v4227, 1
      %v4323 = vrot.slane %v4228, 1
      %v4324 = vsel %vm4279, %v4322, %v4323
      %v4325 = vrot.slane %v4229, 1
      %v4326 = vrot.slane %v4230, 1
      %v4327 = vsel %vm4279, %v4325, %v4326
      %v4328 = vrot.slane %v4231, 1
      %v4329 = vrot.slane %v4232, 1
      %v4330 = vsel %vm4279, %v4328, %v4329
      %v4331 = vrot.slane %v4233, 1
      %v4332 = vrot.slane %v4234, 1
      %v4333 = vsel %vm4279, %v4331, %v4332
      %v4334 = vrot.slane %v4235, 1
      %v4335 = vrot.slane %v4236, 1
      %v4336 = vsel %vm4279, %v4334, %v4335
      %v4337 = vrot.slane %v4237, 1
      %v4338 = vrot.slane %v4238, 1
      %v4339 = vsel %vm4279, %v4337, %v4338
      %v4380 = vadd.f32 %v4159, %v4282
      %v4381 = vadd.f32 %v4160, %v4281
      %v4382 = vadd.f32 %v4161, %v4285
      %v4383 = vadd.f32 %v4162, %v4284
      %v4384 = vadd.f32 %v4163, %v4288
      %v4385 = vadd.f32 %v4164, %v4287
      %v4386 = vadd.f32 %v4165, %v4291
      %v4387 = vadd.f32 %v4166, %v4290
      %v4388 = vadd.f32 %v4167, %v4294
      %v4389 = vadd.f32 %v4168, %v4293
      %v4390 = vadd.f32 %v4169, %v4297
      %v4391 = vadd.f32 %v4170, %v4296
      %v4392 = vadd.f32 %v4171, %v4300
      %v4393 = vadd.f32 %v4172, %v4299
      %v4394 = vadd.f32 %v4173, %v4303
      %v4395 = vadd.f32 %v4174, %v4302
      %v4396 = vadd.f32 %v4175, %v4306
      %v4397 = vadd.f32 %v4176, %v4305
      %v4398 = vadd.f32 %v4177, %v4309
      %v4399 = vadd.f32 %v4178, %v4308
      %v4400 = vadd.f32 %v4179, %v4312
      %v4401 = vadd.f32 %v4180, %v4311
      %v4402 = vadd.f32 %v4181, %v4315
      %v4403 = vadd.f32 %v4182, %v4314
      %v4404 = vadd.f32 %v4183, %v4318
      %v4405 = vadd.f32 %v4184, %v4317
      %v4406 = vadd.f32 %v4185, %v4321
      %v4407 = vadd.f32 %v4186, %v4320
      %v4408 = vadd.f32 %v4187, %v4324
      %v4409 = vadd.f32 %v4188, %v4323
      %v4410 = vadd.f32 %v4189, %v4327
      %v4411 = vadd.f32 %v4190, %v4326
      %v4412 = vadd.f32 %v4191, %v4330
      %v4413 = vadd.f32 %v4192, %v4329
      %v4414 = vadd.f32 %v4193, %v4333
      %v4415 = vadd.f32 %v4194, %v4332
      %v4416 = vadd.f32 %v4195, %v4336
      %v4417 = vadd.f32 %v4196, %v4335
      %v4418 = vadd.f32 %v4197, %v4339
      %v4419 = vadd.f32 %v4198, %v4338
      %v4420 = vmul.f32 %v4039, 0.125
      %v4421 = vmul.f32 %v4040, 0.125
      %v4422 = vmul.f32 %v4041, 0.125
      %v4423 = vmul.f32 %v4042, 0.125
      %v4424 = vmul.f32 %v4043, 0.125
      %v4425 = vmul.f32 %v4044, 0.125
      %v4426 = vmul.f32 %v4045, 0.125
      %v4427 = vmul.f32 %v4046, 0.125
      %v4428 = vmul.f32 %v4047, 0.125
      %v4429 = vmul.f32 %v4048, 0.125
      %v4430 = vmul.f32 %v4049, 0.125
      %v4431 = vmul.f32 %v4050, 0.125
      %v4432 = vmul.f32 %v4051, 0.125
      %v4433 = vmul.f32 %v4052, 0.125
      %v4434 = vmul.f32 %v4053, 0.125
      %v4435 = vmul.f32 %v4054, 0.125
      %v4436 = vmul.f32 %v4055, 0.125
      %v4437 = vmul.f32 %v4056, 0.125
      %v4438 = vmul.f32 %v4057, 0.125
      %v4439 = vmul.f32 %v4058, 0.125
      %v4440 = vmul.f32 %v4059, 0.125
      %v4441 = vmul.f32 %v4060, 0.125
      %v4442 = vmul.f32 %v4061, 0.125
      %v4443 = vmul.f32 %v4062, 0.125
      %v4444 = vmul.f32 %v4063, 0.125
      %v4445 = vmul.f32 %v4064, 0.125
      %v4446 = vmul.f32 %v4065, 0.125
      %v4447 = vmul.f32 %v4066, 0.125
      %v4448 = vmul.f32 %v4067, 0.125
      %v4449 = vmul.f32 %v4068, 0.125
      %v4450 = vmul.f32 %v4069, 0.125
      %v4451 = vmul.f32 %v4070, 0.125
      %v4452 = vmul.f32 %v4071, 0.125
      %v4453 = vmul.f32 %v4072, 0.125
      %v4454 = vmul.f32 %v4073, 0.125
      %v4455 = vmul.f32 %v4074, 0.125
      %v4456 = vmul.f32 %v4075, 0.125
      %v4457 = vmul.f32 %v4076, 0.125
      %v4458 = vmul.f32 %v4077, 0.125
      %v4459 = vmul.f32 %v4078, 0.125
      %v4500 = vrot.slane %v4420, 1
      %v4501 = vrot.slane %v4421, 1
      %v4502 = vsel %vm4279, %v4500, %v4501
      %v4503 = vrot.slane %v4422, 1
      %v4504 = vrot.slane %v4423, 1
      %v4505 = vsel %vm4279, %v4503, %v4504
      %v4506 = vrot.slane %v4424, 1
      %v4507 = vrot.slane %v4425, 1
      %v4508 = vsel %vm4279, %v4506, %v4507
      %v4509 = vrot.slane %v4426, 1
      %v4510 = vrot.slane %v4427, 1
      %v4511 = vsel %vm4279, %v4509, %v4510
      %v4512 = vrot.slane %v4428, 1
      %v4513 = vrot.slane %v4429, 1
      %v4514 = vsel %vm4279, %v4512, %v4513
      %v4515 = vrot.slane %v4430, 1
      %v4516 = vrot.slane %v4431, 1
      %v4517 = vsel %vm4279, %v4515, %v4516
      %v4518 = vrot.slane %v4432, 1
      %v4519 = vrot.slane %v4433, 1
      %v4520 = vsel %vm4279, %v4518, %v4519
      %v4521 = vrot.slane %v4434, 1
      %v4522 = vrot.slane %v4435, 1
      %v4523 = vsel %vm4279, %v4521, %v4522
      %v4524 = vrot.slane %v4436, 1
      %v4525 = vrot.slane %v4437, 1
      %v4526 = vsel %vm4279, %v4524, %v4525
      %v4527 = vrot.slane %v4438, 1
      %v4528 = vrot.slane %v4439, 1
      %v4529 = vsel %vm4279, %v4527, %v4528
      %v4530 = vrot.slane %v4440, 1
      %v4531 = vrot.slane %v4441, 1
      %v4532 = vsel %vm4279, %v4530, %v4531
      %v4533 = vrot.slane %v4442, 1
      %v4534 = vrot.slane %v4443, 1
      %v4535 = vsel %vm4279, %v4533, %v4534
      %v4536 = vrot.slane %v4444, 1
      %v4537 = vrot.slane %v4445, 1
      %v4538 = vsel %vm4279, %v4536, %v4537
      %v4539 = vrot.slane %v4446, 1
      %v4540 = vrot.slane %v4447, 1
      %v4541 = vsel %vm4279, %v4539, %v4540
      %v4542 = vrot.slane %v4448, 1
      %v4543 = vrot.slane %v4449, 1
      %v4544 = vsel %vm4279, %v4542, %v4543
      %v4545 = vrot.slane %v4450, 1
      %v4546 = vrot.slane %v4451, 1
      %v4547 = vsel %vm4279, %v4545, %v4546
      %v4548 = vrot.slane %v4452, 1
      %v4549 = vrot.slane %v4453, 1
      %v4550 = vsel %vm4279, %v4548, %v4549
      %v4551 = vrot.slane %v4454, 1
      %v4552 = vrot.slane %v4455, 1
      %v4553 = vsel %vm4279, %v4551, %v4552
      %v4554 = vrot.slane %v4456, 1
      %v4555 = vrot.slane %v4457, 1
      %v4556 = vsel %vm4279, %v4554, %v4555
      %v4557 = vrot.slane %v4458, 1
      %v4558 = vrot.slane %v4459, 1
      %v4559 = vsel %vm4279, %v4557, %v4558
      %v4600 = vadd.f32 %v4380, %v4502
      %v4601 = vadd.f32 %v4381, %v4501
      %v4602 = vadd.f32 %v4382, %v4505
      %v4603 = vadd.f32 %v4383, %v4504
      %v4604 = vadd.f32 %v4384, %v4508
      %v4605 = vadd.f32 %v4385, %v4507
      %v4606 = vadd.f32 %v4386, %v4511
      %v4607 = vadd.f32 %v4387, %v4510
      %v4608 = vadd.f32 %v4388, %v4514
      %v4609 = vadd.f32 %v4389, %v4513
      %v4610 = vadd.f32 %v4390, %v4517
      %v4611 = vadd.f32 %v4391, %v4516
      %v4612 = vadd.f32 %v4392, %v4520
      %v4613 = vadd.f32 %v4393, %v4519
      %v4614 = vadd.f32 %v4394, %v4523
      %v4615 = vadd.f32 %v4395, %v4522
      %v4616 = vadd.f32 %v4396, %v4526
      %v4617 = vadd.f32 %v4397, %v4525
      %v4618 = vadd.f32 %v4398, %v4529
      %v4619 = vadd.f32 %v4399, %v4528
      %v4620 = vadd.f32 %v4400, %v4532
      %v4621 = vadd.f32 %v4401, %v4531
      %v4622 = vadd.f32 %v4402, %v4535
      %v4623 = vadd.f32 %v4403, %v4534
      %v4624 = vadd.f32 %v4404, %v4538
      %v4625 = vadd.f32 %v4405, %v4537
      %v4626 = vadd.f32 %v4406, %v4541
      %v4627 = vadd.f32 %v4407, %v4540
      %v4628 = vadd.f32 %v4408, %v4544
      %v4629 = vadd.f32 %v4409, %v4543
      %v4630 = vadd.f32 %v4410, %v4547
      %v4631 = vadd.f32 %v4411, %v4546
      %v4632 = vadd.f32 %v4412, %v4550
      %v4633 = vadd.f32 %v4413, %v4549
      %v4634 = vadd.f32 %v4414, %v4553
      %v4635 = vadd.f32 %v4415, %v4552
      %v4636 = vadd.f32 %v4416, %v4556
      %v4637 = vadd.f32 %v4417, %v4555
      %v4638 = vadd.f32 %v4418, %v4559
      %v4639 = vadd.f32 %v4419, %v4558
      %v4640 = vadd.f32 %v4420, %v4282
      %v4641 = vadd.f32 %v4422, %v4285
      %v4642 = vadd.f32 %v4424, %v4288
      %v4643 = vadd.f32 %v4426, %v4291
      %v4644 = vadd.f32 %v4428, %v4294
      %v4645 = vadd.f32 %v4430, %v4297
      %v4646 = vadd.f32 %v4432, %v4300
      %v4647 = vadd.f32 %v4434, %v4303
      %v4648 = vadd.f32 %v4436, %v4306
      %v4649 = vadd.f32 %v4438, %v4309
      %v4650 = vadd.f32 %v4440, %v4312
      %v4651 = vadd.f32 %v4442, %v4315
      %v4652 = vadd.f32 %v4444, %v4318
      %v4653 = vadd.f32 %v4446, %v4321
      %v4654 = vadd.f32 %v4448, %v4324
      %v4655 = vadd.f32 %v4450, %v4327
      %v4656 = vadd.f32 %v4452, %v4330
      %v4657 = vadd.f32 %v4454, %v4333
      %v4658 = vadd.f32 %v4456, %v4336
      %v4659 = vadd.f32 %v4458, %v4339
      %v4700 = vrot.slane %v4119, 1
      %v4701 = vrot.slane %v4120, 1
      %v4702 = vsel %vm4279, %v4700, %v4701
      %v4703 = vrot.slane %v4121, 1
      %v4704 = vrot.slane %v4122, 1
      %v4705 = vsel %vm4279, %v4703, %v4704
      %v4706 = vrot.slane %v4123, 1
      %v4707 = vrot.slane %v4124, 1
      %v4708 = vsel %vm4279, %v4706, %v4707
      %v4709 = vrot.slane %v4125, 1
      %v4710 = vrot.slane %v4126, 1
      %v4711 = vsel %vm4279, %v4709, %v4710
      %v4712 = vrot.slane %v4127, 1
      %v4713 = vrot.slane %v4128, 1
      %v4714 = vsel %vm4279, %v4712, %v4713
      %v4715 = vrot.slane %v4129, 1
      %v4716 = vrot.slane %v4130, 1
      %v4717 = vsel %vm4279, %v4715, %v4716
      %v4718 = vrot.slane %v4131, 1
      %v4719 = vrot.slane %v4132, 1
      %v4720 = vsel %vm4279, %v4718, %v4719
      %v4721 = vrot.slane %v4133, 1
      %v4722 = vrot.slane %v4134, 1
      %v4723 = vsel %vm4279, %v4721, %v4722
      %v4724 = vrot.slane %v4135, 1
      %v4725 = vrot.slane %v4136, 1
      %v4726 = vsel %vm4279, %v4724, %v4725
      %v4727 = vrot.slane %v4137, 1
      %v4728 = vrot.slane %v4138, 1
      %v4729 = vsel %vm4279, %v4727, %v4728
      %v4730 = vrot.slane %v4139, 1
      %v4731 = vrot.slane %v4140, 1
      %v4732 = vsel %vm4279, %v4730, %v4731
      %v4733 = vrot.slane %v4141, 1
      %v4734 = vrot.slane %v4142, 1
      %v4735 = vsel %vm4279, %v4733, %v4734
      %v4736 = vrot.slane %v4143, 1
      %v4737 = vrot.slane %v4144, 1
      %v4738 = vsel %vm4279, %v4736, %v4737
      %v4739 = vrot.slane %v4145, 1
      %v4740 = vrot.slane %v4146, 1
      %v4741 = vsel %vm4279, %v4739, %v4740
      %v4742 = vrot.slane %v4147, 1
      %v4743 = vrot.slane %v4148, 1
      %v4744 = vsel %vm4279, %v4742, %v4743
      %v4745 = vrot.slane %v4149, 1
      %v4746 = vrot.slane %v4150, 1
      %v4747 = vsel %vm4279, %v4745, %v4746
      %v4748 = vrot.slane %v4151, 1
      %v4749 = vrot.slane %v4152, 1
      %v4750 = vsel %vm4279, %v4748, %v4749
      %v4751 = vrot.slane %v4153, 1
      %v4752 = vrot.slane %v4154, 1
      %v4753 = vsel %vm4279, %v4751, %v4752
      %v4754 = vrot.slane %v4155, 1
      %v4755 = vrot.slane %v4156, 1
      %v4756 = vsel %vm4279, %v4754, %v4755
      %v4757 = vrot.slane %v4157, 1
      %v4758 = vrot.slane %v4158, 1
      %v4759 = vsel %vm4279, %v4757, %v4758
      %v4780 = vadd.f32 %v4640, %v4702
      %v4781 = vadd.f32 %v4641, %v4705
      %v4782 = vadd.f32 %v4642, %v4708
      %v4783 = vadd.f32 %v4643, %v4711
      %v4784 = vadd.f32 %v4644, %v4714
      %v4785 = vadd.f32 %v4645, %v4717
      %v4786 = vadd.f32 %v4646, %v4720
      %v4787 = vadd.f32 %v4647, %v4723
      %v4788 = vadd.f32 %v4648, %v4726
      %v4789 = vadd.f32 %v4649, %v4729
      %v4790 = vadd.f32 %v4650, %v4732
      %v4791 = vadd.f32 %v4651, %v4735
      %v4792 = vadd.f32 %v4652, %v4738
      %v4793 = vadd.f32 %v4653, %v4741
      %v4794 = vadd.f32 %v4654, %v4744
      %v4795 = vadd.f32 %v4655, %v4747
      %v4796 = vadd.f32 %v4656, %v4750
      %v4797 = vadd.f32 %v4657, %v4753
      %v4798 = vadd.f32 %v4658, %v4756
      %v4799 = vadd.f32 %v4659, %v4759
      %v4840 = vrot.slane %v4079, 2
      %v4841 = vrot.slane %v4080, 2
      %v4842 = vsel %vm2475, %v4840, %v4841
      %v4843 = vrot.slane %v4081, 2
      %v4844 = vrot.slane %v4082, 2
      %v4845 = vsel %vm2475, %v4843, %v4844
      %v4846 = vrot.slane %v4083, 2
      %v4847 = vrot.slane %v4084, 2
      %v4848 = vsel %vm2475, %v4846, %v4847
      %v4849 = vrot.slane %v4085, 2
      %v4850 = vrot.slane %v4086, 2
      %v4851 = vsel %vm2475, %v4849, %v4850
      %v4852 = vrot.slane %v4087, 2
      %v4853 = vrot.slane %v4088, 2
      %v4854 = vsel %vm2475, %v4852, %v4853
      %v4855 = vrot.slane %v4089, 2
      %v4856 = vrot.slane %v4090, 2
      %v4857 = vsel %vm2475, %v4855, %v4856
      %v4858 = vrot.slane %v4091, 2
      %v4859 = vrot.slane %v4092, 2
      %v4860 = vsel %vm2475, %v4858, %v4859
      %v4861 = vrot.slane %v4093, 2
      %v4862 = vrot.slane %v4094, 2
      %v4863 = vsel %vm2475, %v4861, %v4862
      %v4864 = vrot.slane %v4095, 2
      %v4865 = vrot.slane %v4096, 2
      %v4866 = vsel %vm2475, %v4864, %v4865
      %v4867 = vrot.slane %v4097, 2
      %v4868 = vrot.slane %v4098, 2
      %v4869 = vsel %vm2475, %v4867, %v4868
      %v4870 = vrot.slane %v4099, 2
      %v4871 = vrot.slane %v4100, 2
      %v4872 = vsel %vm2475, %v4870, %v4871
      %v4873 = vrot.slane %v4101, 2
      %v4874 = vrot.slane %v4102, 2
      %v4875 = vsel %vm2475, %v4873, %v4874
      %v4876 = vrot.slane %v4103, 2
      %v4877 = vrot.slane %v4104, 2
      %v4878 = vsel %vm2475, %v4876, %v4877
      %v4879 = vrot.slane %v4105, 2
      %v4880 = vrot.slane %v4106, 2
      %v4881 = vsel %vm2475, %v4879, %v4880
      %v4882 = vrot.slane %v4107, 2
      %v4883 = vrot.slane %v4108, 2
      %v4884 = vsel %vm2475, %v4882, %v4883
      %v4885 = vrot.slane %v4109, 2
      %v4886 = vrot.slane %v4110, 2
      %v4887 = vsel %vm2475, %v4885, %v4886
      %v4888 = vrot.slane %v4111, 2
      %v4889 = vrot.slane %v4112, 2
      %v4890 = vsel %vm2475, %v4888, %v4889
      %v4891 = vrot.slane %v4113, 2
      %v4892 = vrot.slane %v4114, 2
      %v4893 = vsel %vm2475, %v4891, %v4892
      %v4894 = vrot.slane %v4115, 2
      %v4895 = vrot.slane %v4116, 2
      %v4896 = vsel %vm2475, %v4894, %v4895
      %v4897 = vrot.slane %v4117, 2
      %v4898 = vrot.slane %v4118, 2
      %v4899 = vsel %vm2475, %v4897, %v4898
      %v4920 = vadd.f32 %v4780, %v4842
      %v4921 = vadd.f32 %v4781, %v4845
      %v4922 = vadd.f32 %v4782, %v4848
      %v4923 = vadd.f32 %v4783, %v4851
      %v4924 = vadd.f32 %v4784, %v4854
      %v4925 = vadd.f32 %v4785, %v4857
      %v4926 = vadd.f32 %v4786, %v4860
      %v4927 = vadd.f32 %v4787, %v4863
      %v4928 = vadd.f32 %v4788, %v4866
      %v4929 = vadd.f32 %v4789, %v4869
      %v4930 = vadd.f32 %v4790, %v4872
      %v4931 = vadd.f32 %v4791, %v4875
      %v4932 = vadd.f32 %v4792, %v4878
      %v4933 = vadd.f32 %v4793, %v4881
      %v4934 = vadd.f32 %v4794, %v4884
      %v4935 = vadd.f32 %v4795, %v4887
      %v4936 = vadd.f32 %v4796, %v4890
      %v4937 = vadd.f32 %v4797, %v4893
      %v4938 = vadd.f32 %v4798, %v4896
      %v4939 = vadd.f32 %v4799, %v4899
      %v4940 = vmul.f32 %v4600, 0.125
      %v4941 = vmul.f32 %v4601, 0.125
      %v4942 = vmul.f32 %v4604, 0.125
      %v4943 = vmul.f32 %v4605, 0.125
      %v4944 = vmul.f32 %v4608, 0.125
      %v4945 = vmul.f32 %v4609, 0.125
      %v4946 = vmul.f32 %v4612, 0.125
      %v4947 = vmul.f32 %v4613, 0.125
      %v4948 = vmul.f32 %v4616, 0.125
      %v4949 = vmul.f32 %v4617, 0.125
      %v4950 = vmul.f32 %v4620, 0.125
      %v4951 = vmul.f32 %v4621, 0.125
      %v4952 = vmul.f32 %v4624, 0.125
      %v4953 = vmul.f32 %v4625, 0.125
      %v4954 = vmul.f32 %v4628, 0.125
      %v4955 = vmul.f32 %v4629, 0.125
      %v4956 = vmul.f32 %v4632, 0.125
      %v4957 = vmul.f32 %v4633, 0.125
      %v4958 = vmul.f32 %v4602, 0.375
      %v4959 = vmul.f32 %v4603, 0.375
      %v4960 = vmul.f32 %v4606, 0.375
      %v4961 = vmul.f32 %v4607, 0.375
      %v4962 = vmul.f32 %v4610, 0.375
      %v4963 = vmul.f32 %v4611, 0.375
      %v4964 = vmul.f32 %v4614, 0.375
      %v4965 = vmul.f32 %v4615, 0.375
      %v4966 = vmul.f32 %v4618, 0.375
      %v4967 = vmul.f32 %v4619, 0.375
      %v4968 = vmul.f32 %v4622, 0.375
      %v4969 = vmul.f32 %v4623, 0.375
      %v4970 = vmul.f32 %v4626, 0.375
      %v4971 = vmul.f32 %v4627, 0.375
      %v4972 = vmul.f32 %v4630, 0.375
      %v4973 = vmul.f32 %v4631, 0.375
      %v4974 = vmul.f32 %v4634, 0.375
      %v4975 = vmul.f32 %v4635, 0.375
      %v4976 = vadd.f32 %v4940, %v4958
      %v4977 = vadd.f32 %v4941, %v4959
      %v4978 = vadd.f32 %v4942, %v4960
      %v4979 = vadd.f32 %v4943, %v4961
      %v4980 = vadd.f32 %v4944, %v4962
      %v4981 = vadd.f32 %v4945, %v4963
      %v4982 = vadd.f32 %v4946, %v4964
      %v4983 = vadd.f32 %v4947, %v4965
      %v4984 = vadd.f32 %v4948, %v4966
      %v4985 = vadd.f32 %v4949, %v4967
      %v4986 = vadd.f32 %v4950, %v4968
      %v4987 = vadd.f32 %v4951, %v4969
      %v4988 = vadd.f32 %v4952, %v4970
      %v4989 = vadd.f32 %v4953, %v4971
      %v4990 = vadd.f32 %v4954, %v4972
      %v4991 = vadd.f32 %v4955, %v4973
      %v4992 = vadd.f32 %v4956, %v4974
      %v4993 = vadd.f32 %v4957, %v4975
      %v4994 = vmul.f32 %v4604, 0.375
      %v4995 = vmul.f32 %v4605, 0.375
      %v4996 = vmul.f32 %v4608, 0.375
      %v4997 = vmul.f32 %v4609, 0.375
      %v4998 = vmul.f32 %v4612, 0.375
      %v4999 = vmul.f32 %v4613, 0.375
      %v5000 = vmul.f32 %v4616, 0.375
      %v5001 = vmul.f32 %v4617, 0.375
      %v5002 = vmul.f32 %v4620, 0.375
      %v5003 = vmul.f32 %v4621, 0.375
      %v5004 = vmul.f32 %v4624, 0.375
      %v5005 = vmul.f32 %v4625, 0.375
      %v5006 = vmul.f32 %v4628, 0.375
      %v5007 = vmul.f32 %v4629, 0.375
      %v5008 = vmul.f32 %v4632, 0.375
      %v5009 = vmul.f32 %v4633, 0.375
      %v5010 = vmul.f32 %v4636, 0.375
      %v5011 = vmul.f32 %v4637, 0.375
      %v5012 = vadd.f32 %v4976, %v4994
      %v5013 = vadd.f32 %v4977, %v4995
      %v5014 = vadd.f32 %v4978, %v4996
      %v5015 = vadd.f32 %v4979, %v4997
      %v5016 = vadd.f32 %v4980, %v4998
      %v5017 = vadd.f32 %v4981, %v4999
      %v5018 = vadd.f32 %v4982, %v5000
      %v5019 = vadd.f32 %v4983, %v5001
      %v5020 = vadd.f32 %v4984, %v5002
      %v5021 = vadd.f32 %v4985, %v5003
      %v5022 = vadd.f32 %v4986, %v5004
      %v5023 = vadd.f32 %v4987, %v5005
      %v5024 = vadd.f32 %v4988, %v5006
      %v5025 = vadd.f32 %v4989, %v5007
      %v5026 = vadd.f32 %v4990, %v5008
      %v5027 = vadd.f32 %v4991, %v5009
      %v5028 = vadd.f32 %v4992, %v5010
      %v5029 = vadd.f32 %v4993, %v5011
      %v5030 = vmul.f32 %v4606, 0.125
      %v5031 = vmul.f32 %v4607, 0.125
      %v5032 = vmul.f32 %v4610, 0.125
      %v5033 = vmul.f32 %v4611, 0.125
      %v5034 = vmul.f32 %v4614, 0.125
      %v5035 = vmul.f32 %v4615, 0.125
      %v5036 = vmul.f32 %v4618, 0.125
      %v5037 = vmul.f32 %v4619, 0.125
      %v5038 = vmul.f32 %v4622, 0.125
      %v5039 = vmul.f32 %v4623, 0.125
      %v5040 = vmul.f32 %v4626, 0.125
      %v5041 = vmul.f32 %v4627, 0.125
      %v5042 = vmul.f32 %v4630, 0.125
      %v5043 = vmul.f32 %v4631, 0.125
      %v5044 = vmul.f32 %v4634, 0.125
      %v5045 = vmul.f32 %v4635, 0.125
      %v5046 = vmul.f32 %v4638, 0.125
      %v5047 = vmul.f32 %v4639, 0.125
      %v5048 = vadd.f32 %v5012, %v5030
      %v5049 = vadd.f32 %v5013, %v5031
      %v5050 = vadd.f32 %v5014, %v5032
      %v5051 = vadd.f32 %v5015, %v5033
      %v5052 = vadd.f32 %v5016, %v5034
      %v5053 = vadd.f32 %v5017, %v5035
      %v5054 = vadd.f32 %v5018, %v5036
      %v5055 = vadd.f32 %v5019, %v5037
      %v5056 = vadd.f32 %v5020, %v5038
      %v5057 = vadd.f32 %v5021, %v5039
      %v5058 = vadd.f32 %v5022, %v5040
      %v5059 = vadd.f32 %v5023, %v5041
      %v5060 = vadd.f32 %v5024, %v5042
      %v5061 = vadd.f32 %v5025, %v5043
      %v5062 = vadd.f32 %v5026, %v5044
      %v5063 = vadd.f32 %v5027, %v5045
      %v5064 = vadd.f32 %v5028, %v5046
      %v5065 = vadd.f32 %v5029, %v5047
      %v5066 = vpack.c.bf16 %v5049, %v5048
      %v5067 = vpack.c.bf16 %v5051, %v5050
      %v5068 = vpack.c.bf16 %v5053, %v5052
      %v5069 = vpack.c.bf16 %v5055, %v5054
      %v5070 = vpack.c.bf16 %v5057, %v5056
      %v5071 = vpack.c.bf16 %v5059, %v5058
      %v5072 = vpack.c.bf16 %v5061, %v5060
      %v5073 = vpack.c.bf16 %v5063, %v5062
      %v5074 = vpack.c.bf16 %v5065, %v5064
      %v5075 = vmul.f32 %v4602, 0.125
      %v5076 = vmul.f32 %v4603, 0.125
      %v5077 = vadd.f32 %v5075, %v4994
      %v5078 = vadd.f32 %v5076, %v4995
      %v5079 = vadd.f32 %v5030, %v4996
      %v5080 = vadd.f32 %v5031, %v4997
      %v5081 = vadd.f32 %v5032, %v4998
      %v5082 = vadd.f32 %v5033, %v4999
      %v5083 = vadd.f32 %v5034, %v5000
      %v5084 = vadd.f32 %v5035, %v5001
      %v5085 = vadd.f32 %v5036, %v5002
      %v5086 = vadd.f32 %v5037, %v5003
      %v5087 = vadd.f32 %v5038, %v5004
      %v5088 = vadd.f32 %v5039, %v5005
      %v5089 = vadd.f32 %v5040, %v5006
      %v5090 = vadd.f32 %v5041, %v5007
      %v5091 = vadd.f32 %v5042, %v5008
      %v5092 = vadd.f32 %v5043, %v5009
      %v5093 = vadd.f32 %v5077, %v4960
      %v5094 = vadd.f32 %v5078, %v4961
      %v5095 = vadd.f32 %v5079, %v4962
      %v5096 = vadd.f32 %v5080, %v4963
      %v5097 = vadd.f32 %v5081, %v4964
      %v5098 = vadd.f32 %v5082, %v4965
      %v5099 = vadd.f32 %v5083, %v4966
      %v5100 = vadd.f32 %v5084, %v4967
      %v5101 = vadd.f32 %v5085, %v4968
      %v5102 = vadd.f32 %v5086, %v4969
      %v5103 = vadd.f32 %v5087, %v4970
      %v5104 = vadd.f32 %v5088, %v4971
      %v5105 = vadd.f32 %v5089, %v4972
      %v5106 = vadd.f32 %v5090, %v4973
      %v5107 = vadd.f32 %v5091, %v4974
      %v5108 = vadd.f32 %v5092, %v4975
      %v5109 = vmul.f32 %v4636, 0.125
      %v5110 = vmul.f32 %v4637, 0.125
      %v5111 = vadd.f32 %v5093, %v4944
      %v5112 = vadd.f32 %v5094, %v4945
      %v5113 = vadd.f32 %v5095, %v4946
      %v5114 = vadd.f32 %v5096, %v4947
      %v5115 = vadd.f32 %v5097, %v4948
      %v5116 = vadd.f32 %v5098, %v4949
      %v5117 = vadd.f32 %v5099, %v4950
      %v5118 = vadd.f32 %v5100, %v4951
      %v5119 = vadd.f32 %v5101, %v4952
      %v5120 = vadd.f32 %v5102, %v4953
      %v5121 = vadd.f32 %v5103, %v4954
      %v5122 = vadd.f32 %v5104, %v4955
      %v5123 = vadd.f32 %v5105, %v4956
      %v5124 = vadd.f32 %v5106, %v4957
      %v5125 = vadd.f32 %v5107, %v5109
      %v5126 = vadd.f32 %v5108, %v5110
      %v5127 = vpack.c.bf16 %v5112, %v5111
      %v5128 = vpack.c.bf16 %v5114, %v5113
      %v5129 = vpack.c.bf16 %v5116, %v5115
      %v5130 = vpack.c.bf16 %v5118, %v5117
      %v5131 = vpack.c.bf16 %v5120, %v5119
      %v5132 = vpack.c.bf16 %v5122, %v5121
      %v5133 = vpack.c.bf16 %v5124, %v5123
      %v5134 = vpack.c.bf16 %v5126, %v5125
      %v5135 = vmul.f32 %v4920, 0.125
      %v5136 = vmul.f32 %v4922, 0.125
      %v5137 = vmul.f32 %v4924, 0.125
      %v5138 = vmul.f32 %v4926, 0.125
      %v5139 = vmul.f32 %v4928, 0.125
      %v5140 = vmul.f32 %v4930, 0.125
      %v5141 = vmul.f32 %v4932, 0.125
      %v5142 = vmul.f32 %v4934, 0.125
      %v5143 = vmul.f32 %v4936, 0.125
      %v5144 = vmul.f32 %v4921, 0.375
      %v5145 = vmul.f32 %v4923, 0.375
      %v5146 = vmul.f32 %v4925, 0.375
      %v5147 = vmul.f32 %v4927, 0.375
      %v5148 = vmul.f32 %v4929, 0.375
      %v5149 = vmul.f32 %v4931, 0.375
      %v5150 = vmul.f32 %v4933, 0.375
      %v5151 = vmul.f32 %v4935, 0.375
      %v5152 = vmul.f32 %v4937, 0.375
      %v5153 = vadd.f32 %v5135, %v5144
      %v5154 = vadd.f32 %v5136, %v5145
      %v5155 = vadd.f32 %v5137, %v5146
      %v5156 = vadd.f32 %v5138, %v5147
      %v5157 = vadd.f32 %v5139, %v5148
      %v5158 = vadd.f32 %v5140, %v5149
      %v5159 = vadd.f32 %v5141, %v5150
      %v5160 = vadd.f32 %v5142, %v5151
      %v5161 = vadd.f32 %v5143, %v5152
      %v5162 = vmul.f32 %v4922, 0.375
      %v5163 = vmul.f32 %v4924, 0.375
      %v5164 = vmul.f32 %v4926, 0.375
      %v5165 = vmul.f32 %v4928, 0.375
      %v5166 = vmul.f32 %v4930, 0.375
      %v5167 = vmul.f32 %v4932, 0.375
      %v5168 = vmul.f32 %v4934, 0.375
      %v5169 = vmul.f32 %v4936, 0.375
      %v5170 = vmul.f32 %v4938, 0.375
      %v5171 = vadd.f32 %v5153, %v5162
      %v5172 = vadd.f32 %v5154, %v5163
      %v5173 = vadd.f32 %v5155, %v5164
      %v5174 = vadd.f32 %v5156, %v5165
      %v5175 = vadd.f32 %v5157, %v5166
      %v5176 = vadd.f32 %v5158, %v5167
      %v5177 = vadd.f32 %v5159, %v5168
      %v5178 = vadd.f32 %v5160, %v5169
      %v5179 = vadd.f32 %v5161, %v5170
      %v5180 = vmul.f32 %v4923, 0.125
      %v5181 = vmul.f32 %v4925, 0.125
      %v5182 = vmul.f32 %v4927, 0.125
      %v5183 = vmul.f32 %v4929, 0.125
      %v5184 = vmul.f32 %v4931, 0.125
      %v5185 = vmul.f32 %v4933, 0.125
      %v5186 = vmul.f32 %v4935, 0.125
      %v5187 = vmul.f32 %v4937, 0.125
      %v5188 = vmul.f32 %v4939, 0.125
      %v5189 = vadd.f32 %v5171, %v5180
      %v5190 = vadd.f32 %v5172, %v5181
      %v5191 = vadd.f32 %v5173, %v5182
      %v5192 = vadd.f32 %v5174, %v5183
      %v5193 = vadd.f32 %v5175, %v5184
      %v5194 = vadd.f32 %v5176, %v5185
      %v5195 = vadd.f32 %v5177, %v5186
      %v5196 = vadd.f32 %v5178, %v5187
      %v5197 = vadd.f32 %v5179, %v5188
      %v5198 = vpack.c.bf16 %v5189, %v5189
      %v5199 = vpack.c.bf16 %v5190, %v5190
      %v5200 = vpack.c.bf16 %v5191, %v5191
      %v5201 = vpack.c.bf16 %v5192, %v5192
      %v5202 = vpack.c.bf16 %v5193, %v5193
      %v5203 = vpack.c.bf16 %v5194, %v5194
      %v5204 = vpack.c.bf16 %v5195, %v5195
      %v5205 = vpack.c.bf16 %v5196, %v5196
      %v5206 = vpack.c.bf16 %v5197, %v5197
      %v5207 = vmul.f32 %v4921, 0.125
      %v5208 = vadd.f32 %v5207, %v5162
      %v5209 = vadd.f32 %v5180, %v5163
      %v5210 = vadd.f32 %v5181, %v5164
      %v5211 = vadd.f32 %v5182, %v5165
      %v5212 = vadd.f32 %v5183, %v5166
      %v5213 = vadd.f32 %v5184, %v5167
      %v5214 = vadd.f32 %v5185, %v5168
      %v5215 = vadd.f32 %v5186, %v5169
      %v5216 = vadd.f32 %v5208, %v5145
      %v5217 = vadd.f32 %v5209, %v5146
      %v5218 = vadd.f32 %v5210, %v5147
      %v5219 = vadd.f32 %v5211, %v5148
      %v5220 = vadd.f32 %v5212, %v5149
      %v5221 = vadd.f32 %v5213, %v5150
      %v5222 = vadd.f32 %v5214, %v5151
      %v5223 = vadd.f32 %v5215, %v5152
      %v5224 = vmul.f32 %v4938, 0.125
      %v5225 = vadd.f32 %v5216, %v5137
      %v5226 = vadd.f32 %v5217, %v5138
      %v5227 = vadd.f32 %v5218, %v5139
      %v5228 = vadd.f32 %v5219, %v5140
      %v5229 = vadd.f32 %v5220, %v5141
      %v5230 = vadd.f32 %v5221, %v5142
      %v5231 = vadd.f32 %v5222, %v5143
      %v5232 = vadd.f32 %v5223, %v5224
      %v5233 = vpack.c.bf16 %v5225, %v5225
      %v5234 = vpack.c.bf16 %v5226, %v5226
      %v5235 = vpack.c.bf16 %v5227, %v5227
      %v5236 = vpack.c.bf16 %v5228, %v5228
      %v5237 = vpack.c.bf16 %v5229, %v5229
      %v5238 = vpack.c.bf16 %v5230, %v5230
      %v5239 = vpack.c.bf16 %v5231, %v5231
      %v5240 = vpack.c.bf16 %v5232, %v5232
      %v5249 = vunpack.c.l.b16 %v5066
      %v5250 = vunpack.c.h.b16 %v5066
      %v5251 = vunpack.c.l.b16 %v5067
      %v5252 = vunpack.c.h.b16 %v5067
      %v5253 = vunpack.c.l.b16 %v5068
      %v5254 = vunpack.c.h.b16 %v5068
      %v5255 = vunpack.c.l.b16 %v5069
      %v5256 = vunpack.c.h.b16 %v5069
      %v5257 = vunpack.c.l.b16 %v5070
      %v5258 = vunpack.c.h.b16 %v5070
      %v5259 = vunpack.c.l.b16 %v5071
      %v5260 = vunpack.c.h.b16 %v5071
      %v5261 = vunpack.c.l.b16 %v5072
      %v5262 = vunpack.c.h.b16 %v5072
      %v5263 = vunpack.c.l.b16 %v5073
      %v5264 = vunpack.c.h.b16 %v5073
      %v5265 = vpack.c.b16 %v5249, %v5249
      %v5266 = vpack.c.b16 %v5250, %v5250
      %v5267 = vpack.c.b16 %v5251, %v5251
      %v5268 = vpack.c.b16 %v5252, %v5252
      %v5269 = vpack.c.b16 %v5253, %v5253
      %v5270 = vpack.c.b16 %v5254, %v5254
      %v5271 = vpack.c.b16 %v5255, %v5255
      %v5272 = vpack.c.b16 %v5256, %v5256
      %v5273 = vpack.c.b16 %v5257, %v5257
      %v5274 = vpack.c.b16 %v5258, %v5258
      %v5275 = vpack.c.b16 %v5259, %v5259
      %v5276 = vpack.c.b16 %v5260, %v5260
      %v5277 = vpack.c.b16 %v5261, %v5261
      %v5278 = vpack.c.b16 %v5262, %v5262
      %v5279 = vpack.c.b16 %v5263, %v5263
      %v5280 = vpack.c.b16 %v5264, %v5264
      %v5282 = vshrl.u32 %v5265, 16
      %v5284 = vrot.slane %v5282, 4
      %v5285 = vshll.u32 %v5265, 16
      %v5287 = vrot.slane %v5285, 5
      %v5288 = vor.u32 %v5284, %v5287
      %v5289 = vrot.slane %v5288, 4
      %v5291 = vshll.u32 %v5266, 16
      %v5293 = vrot.slane %v5291, 5
      %v5294 = vsel %vm1411, %v5289, %v5293
      %v5296 = vshrl.u32 %v5267, 16
      %v5298 = vrot.slane %v5296, 4
      %v5299 = vshll.u32 %v5267, 16
      %v5301 = vrot.slane %v5299, 5
      %v5302 = vor.u32 %v5298, %v5301
      %v5303 = vrot.slane %v5302, 4
      %v5305 = vshll.u32 %v5268, 16
      %v5307 = vrot.slane %v5305, 5
      %v5308 = vsel %vm1411, %v5303, %v5307
      %v5310 = vshrl.u32 %v5269, 16
      %v5312 = vrot.slane %v5310, 4
      %v5313 = vshll.u32 %v5269, 16
      %v5315 = vrot.slane %v5313, 5
      %v5316 = vor.u32 %v5312, %v5315
      %v5317 = vrot.slane %v5316, 4
      %v5319 = vshll.u32 %v5270, 16
      %v5321 = vrot.slane %v5319, 5
      %v5322 = vsel %vm1411, %v5317, %v5321
      %v5324 = vshrl.u32 %v5271, 16
      %v5326 = vrot.slane %v5324, 4
      %v5327 = vshll.u32 %v5271, 16
      %v5329 = vrot.slane %v5327, 5
      %v5330 = vor.u32 %v5326, %v5329
      %v5331 = vrot.slane %v5330, 4
      %v5333 = vshll.u32 %v5272, 16
      %v5335 = vrot.slane %v5333, 5
      %v5336 = vsel %vm1411, %v5331, %v5335
      %v5338 = vshrl.u32 %v5273, 16
      %v5340 = vrot.slane %v5338, 4
      %v5341 = vshll.u32 %v5273, 16
      %v5343 = vrot.slane %v5341, 5
      %v5344 = vor.u32 %v5340, %v5343
      %v5345 = vrot.slane %v5344, 4
      %v5347 = vshll.u32 %v5274, 16
      %v5349 = vrot.slane %v5347, 5
      %v5350 = vsel %vm1411, %v5345, %v5349
      %v5352 = vshrl.u32 %v5275, 16
      %v5354 = vrot.slane %v5352, 4
      %v5355 = vshll.u32 %v5275, 16
      %v5357 = vrot.slane %v5355, 5
      %v5358 = vor.u32 %v5354, %v5357
      %v5359 = vrot.slane %v5358, 4
      %v5361 = vshll.u32 %v5276, 16
      %v5363 = vrot.slane %v5361, 5
      %v5364 = vsel %vm1411, %v5359, %v5363
      %v5366 = vshrl.u32 %v5277, 16
      %v5368 = vrot.slane %v5366, 4
      %v5369 = vshll.u32 %v5277, 16
      %v5371 = vrot.slane %v5369, 5
      %v5372 = vor.u32 %v5368, %v5371
      %v5373 = vrot.slane %v5372, 4
      %v5375 = vshll.u32 %v5278, 16
      %v5377 = vrot.slane %v5375, 5
      %v5378 = vsel %vm1411, %v5373, %v5377
      %v5380 = vshrl.u32 %v5279, 16
      %v5382 = vrot.slane %v5380, 4
      %v5383 = vshll.u32 %v5279, 16
      %v5385 = vrot.slane %v5383, 5
      %v5386 = vor.u32 %v5382, %v5385
      %v5387 = vrot.slane %v5386, 4
      %v5389 = vshll.u32 %v5280, 16
      %v5391 = vrot.slane %v5389, 5
      %v5392 = vsel %vm1411, %v5387, %v5391
      %v5401 = vunpack.c.l.b16 %v5127
      %v5402 = vunpack.c.h.b16 %v5127
      %v5403 = vunpack.c.l.b16 %v5128
      %v5404 = vunpack.c.h.b16 %v5128
      %v5405 = vunpack.c.l.b16 %v5129
      %v5406 = vunpack.c.h.b16 %v5129
      %v5407 = vunpack.c.l.b16 %v5130
      %v5408 = vunpack.c.h.b16 %v5130
      %v5409 = vunpack.c.l.b16 %v5131
      %v5410 = vunpack.c.h.b16 %v5131
      %v5411 = vunpack.c.l.b16 %v5132
      %v5412 = vunpack.c.h.b16 %v5132
      %v5413 = vunpack.c.l.b16 %v5133
      %v5414 = vunpack.c.h.b16 %v5133
      %v5415 = vunpack.c.l.b16 %v5134
      %v5416 = vunpack.c.h.b16 %v5134
      %v5417 = vpack.c.b16 %v5401, %v5401
      %v5418 = vpack.c.b16 %v5402, %v5402
      %v5419 = vpack.c.b16 %v5403, %v5403
      %v5420 = vpack.c.b16 %v5404, %v5404
      %v5421 = vpack.c.b16 %v5405, %v5405
      %v5422 = vpack.c.b16 %v5406, %v5406
      %v5423 = vpack.c.b16 %v5407, %v5407
      %v5424 = vpack.c.b16 %v5408, %v5408
      %v5425 = vpack.c.b16 %v5409, %v5409
      %v5426 = vpack.c.b16 %v5410, %v5410
      %v5427 = vpack.c.b16 %v5411, %v5411
      %v5428 = vpack.c.b16 %v5412, %v5412
      %v5429 = vpack.c.b16 %v5413, %v5413
      %v5430 = vpack.c.b16 %v5414, %v5414
      %v5431 = vpack.c.b16 %v5415, %v5415
      %v5432 = vpack.c.b16 %v5416, %v5416
      %v5434 = vshrl.u32 %v5417, 16
      %v5436 = vrot.slane %v5434, 4
      %v5437 = vshll.u32 %v5417, 16
      %v5439 = vrot.slane %v5437, 5
      %v5440 = vor.u32 %v5436, %v5439
      %v5441 = vrot.slane %v5440, 4
      %v5443 = vshll.u32 %v5418, 16
      %v5445 = vrot.slane %v5443, 5
      %v5446 = vsel %vm1411, %v5441, %v5445
      %v5448 = vshrl.u32 %v5419, 16
      %v5450 = vrot.slane %v5448, 4
      %v5451 = vshll.u32 %v5419, 16
      %v5453 = vrot.slane %v5451, 5
      %v5454 = vor.u32 %v5450, %v5453
      %v5455 = vrot.slane %v5454, 4
      %v5457 = vshll.u32 %v5420, 16
      %v5459 = vrot.slane %v5457, 5
      %v5460 = vsel %vm1411, %v5455, %v5459
      %v5462 = vshrl.u32 %v5421, 16
      %v5464 = vrot.slane %v5462, 4
      %v5465 = vshll.u32 %v5421, 16
      %v5467 = vrot.slane %v5465, 5
      %v5468 = vor.u32 %v5464, %v5467
      %v5469 = vrot.slane %v5468, 4
      %v5471 = vshll.u32 %v5422, 16
      %v5473 = vrot.slane %v5471, 5
      %v5474 = vsel %vm1411, %v5469, %v5473
      %v5476 = vshrl.u32 %v5423, 16
      %v5478 = vrot.slane %v5476, 4
      %v5479 = vshll.u32 %v5423, 16
      %v5481 = vrot.slane %v5479, 5
      %v5482 = vor.u32 %v5478, %v5481
      %v5483 = vrot.slane %v5482, 4
      %v5485 = vshll.u32 %v5424, 16
      %v5487 = vrot.slane %v5485, 5
      %v5488 = vsel %vm1411, %v5483, %v5487
      %v5490 = vshrl.u32 %v5425, 16
      %v5492 = vrot.slane %v5490, 4
      %v5493 = vshll.u32 %v5425, 16
      %v5495 = vrot.slane %v5493, 5
      %v5496 = vor.u32 %v5492, %v5495
      %v5497 = vrot.slane %v5496, 4
      %v5499 = vshll.u32 %v5426, 16
      %v5501 = vrot.slane %v5499, 5
      %v5502 = vsel %vm1411, %v5497, %v5501
      %v5504 = vshrl.u32 %v5427, 16
      %v5506 = vrot.slane %v5504, 4
      %v5507 = vshll.u32 %v5427, 16
      %v5509 = vrot.slane %v5507, 5
      %v5510 = vor.u32 %v5506, %v5509
      %v5511 = vrot.slane %v5510, 4
      %v5513 = vshll.u32 %v5428, 16
      %v5515 = vrot.slane %v5513, 5
      %v5516 = vsel %vm1411, %v5511, %v5515
      %v5518 = vshrl.u32 %v5429, 16
      %v5520 = vrot.slane %v5518, 4
      %v5521 = vshll.u32 %v5429, 16
      %v5523 = vrot.slane %v5521, 5
      %v5524 = vor.u32 %v5520, %v5523
      %v5525 = vrot.slane %v5524, 4
      %v5527 = vshll.u32 %v5430, 16
      %v5529 = vrot.slane %v5527, 5
      %v5530 = vsel %vm1411, %v5525, %v5529
      %v5532 = vshrl.u32 %v5431, 16
      %v5534 = vrot.slane %v5532, 4
      %v5535 = vshll.u32 %v5431, 16
      %v5537 = vrot.slane %v5535, 5
      %v5538 = vor.u32 %v5534, %v5537
      %v5539 = vrot.slane %v5538, 4
      %v5541 = vshll.u32 %v5432, 16
      %v5543 = vrot.slane %v5541, 5
      %v5544 = vsel %vm1411, %v5539, %v5543
      %v5546 = vunpack.c.l.b16 %v5074
      %v5547 = vunpack.c.h.b16 %v5074
      %v5548 = vpack.c.b16 %v5546, %v5546
      %v5549 = vpack.c.b16 %v5547, %v5547
      %v5551 = vshrl.u32 %v5548, 16
      %v5553 = vrot.slane %v5551, 4
      %v5554 = vshll.u32 %v5548, 16
      %v5556 = vrot.slane %v5554, 5
      %v5557 = vor.u32 %v5553, %v5556
      %v5558 = vrot.slane %v5557, 4
      %v5560 = vshll.u32 %v5549, 16
      %v5562 = vrot.slane %v5560, 5
      %v5563 = vsel %vm1411, %v5558, %v5562
      %v5564 = vpack.c.b16 %v5251, %v5249
      %v5565 = vpack.c.b16 %v5255, %v5253
      %v5566 = vpack.c.b16 %v5259, %v5257
      %v5567 = vpack.c.b16 %v5263, %v5261
      %v5576 = vunpack.c.l.b16 %v5198
      %v5577 = vunpack.c.l.b16 %v5199
      %v5578 = vunpack.c.l.b16 %v5200
      %v5579 = vunpack.c.l.b16 %v5201
      %v5580 = vunpack.c.l.b16 %v5202
      %v5581 = vunpack.c.l.b16 %v5203
      %v5582 = vunpack.c.l.b16 %v5204
      %v5583 = vunpack.c.l.b16 %v5205
      %v5584 = vpack.c.b16 %v5577, %v5576
      %v5585 = vpack.c.b16 %v5579, %v5578
      %v5586 = vpack.c.b16 %v5581, %v5580
      %v5587 = vpack.c.b16 %v5583, %v5582
      %5588 = vrot.lane.b32.xlu0 %v5584, 4
      %v5589 = vpop.permute.xlu0 %5588
      %5590 = vrot.lane.b32.xlu0 %v5585, 4
      %v5591 = vpop.permute.xlu0 %5590
      %5592 = vrot.lane.b32.xlu0 %v5586, 4
      %v5593 = vpop.permute.xlu0 %5592
      %5594 = vrot.lane.b32.xlu0 %v5587, 4
      %v5595 = vpop.permute.xlu0 %5594
      %v5596 = vunpack.c.l.b16 %v5294
      %v5597 = vunpack.c.l.b16 %v5308
      %v5598 = vunpack.c.l.b16 %v5322
      %v5599 = vunpack.c.l.b16 %v5336
      %v5600 = vunpack.c.l.b16 %v5350
      %v5601 = vunpack.c.l.b16 %v5364
      %v5602 = vunpack.c.l.b16 %v5378
      %v5603 = vunpack.c.l.b16 %v5392
      %v5604 = vpack.c.b16 %v5597, %v5596
      %v5605 = vpack.c.b16 %v5599, %v5598
      %v5606 = vpack.c.b16 %v5601, %v5600
      %v5607 = vpack.c.b16 %v5603, %v5602
      %5608 = vrot.lane.b32.xlu0 %v5604, 8
      %v5609 = vpop.permute.xlu0 %5608
      %5610 = vrot.lane.b32.xlu0 %v5605, 8
      %v5611 = vpop.permute.xlu0 %5610
      %5612 = vrot.lane.b32.xlu0 %v5606, 8
      %v5613 = vpop.permute.xlu0 %5612
      %5614 = vrot.lane.b32.xlu0 %v5607, 8
      %v5615 = vpop.permute.xlu0 %5614
      %v5616 = vpack.c.b16 %v5403, %v5401
      %v5617 = vpack.c.b16 %v5407, %v5405
      %v5618 = vpack.c.b16 %v5411, %v5409
      %v5619 = vpack.c.b16 %v5415, %v5413
      %5620 = vrot.lane.b32.xlu0 %v5616, 12
      %v5621 = vpop.permute.xlu0 %5620
      %5622 = vrot.lane.b32.xlu0 %v5617, 12
      %v5623 = vpop.permute.xlu0 %5622
      %5624 = vrot.lane.b32.xlu0 %v5618, 12
      %v5625 = vpop.permute.xlu0 %5624
      %5626 = vrot.lane.b32.xlu0 %v5619, 12
      %v5627 = vpop.permute.xlu0 %5626
      %v5636 = vunpack.c.l.b16 %v5233
      %v5637 = vunpack.c.l.b16 %v5234
      %v5638 = vunpack.c.l.b16 %v5235
      %v5639 = vunpack.c.l.b16 %v5236
      %v5640 = vunpack.c.l.b16 %v5237
      %v5641 = vunpack.c.l.b16 %v5238
      %v5642 = vunpack.c.l.b16 %v5239
      %v5643 = vunpack.c.l.b16 %v5240
      %v5644 = vpack.c.b16 %v5637, %v5636
      %v5645 = vpack.c.b16 %v5639, %v5638
      %v5646 = vpack.c.b16 %v5641, %v5640
      %v5647 = vpack.c.b16 %v5643, %v5642
      %5648 = vrot.lane.b32.xlu0 %v5644, 16
      %v5649 = vpop.permute.xlu0 %5648
      %5650 = vrot.lane.b32.xlu0 %v5645, 16
      %v5651 = vpop.permute.xlu0 %5650
      %5652 = vrot.lane.b32.xlu0 %v5646, 16
      %v5653 = vpop.permute.xlu0 %5652
      %5654 = vrot.lane.b32.xlu0 %v5647, 16
      %v5655 = vpop.permute.xlu0 %5654
      %v5656 = vunpack.c.l.b16 %v5446
      %v5657 = vunpack.c.l.b16 %v5460
      %v5658 = vunpack.c.l.b16 %v5474
      %v5659 = vunpack.c.l.b16 %v5488
      %v5660 = vunpack.c.l.b16 %v5502
      %v5661 = vunpack.c.l.b16 %v5516
      %v5662 = vunpack.c.l.b16 %v5530
      %v5663 = vunpack.c.l.b16 %v5544
      %v5664 = vpack.c.b16 %v5657, %v5656
      %v5665 = vpack.c.b16 %v5659, %v5658
      %v5666 = vpack.c.b16 %v5661, %v5660
      %v5667 = vpack.c.b16 %v5663, %v5662
      %5668 = vrot.lane.b32.xlu0 %v5664, 20
      %v5669 = vpop.permute.xlu0 %5668
      %5670 = vrot.lane.b32.xlu0 %v5665, 20
      %v5671 = vpop.permute.xlu0 %5670
      %5672 = vrot.lane.b32.xlu0 %v5666, 20
      %v5673 = vpop.permute.xlu0 %5672
      %5674 = vrot.lane.b32.xlu0 %v5667, 20
      %v5675 = vpop.permute.xlu0 %5674
      %v5676 = vpack.c.b16 %v5253, %v5251
      %v5677 = vpack.c.b16 %v5257, %v5255
      %v5678 = vpack.c.b16 %v5261, %v5259
      %v5679 = vpack.c.b16 %v5546, %v5263
      %5680 = vrot.lane.b32.xlu0 %v5676, 24
      %v5681 = vpop.permute.xlu0 %5680
      %5682 = vrot.lane.b32.xlu0 %v5677, 24
      %v5683 = vpop.permute.xlu0 %5682
      %5684 = vrot.lane.b32.xlu0 %v5678, 24
      %v5685 = vpop.permute.xlu0 %5684
      %5686 = vrot.lane.b32.xlu0 %v5679, 24
      %v5687 = vpop.permute.xlu0 %5686
      %v5689 = vunpack.c.l.b16 %v5206
      %v5690 = vpack.c.b16 %v5578, %v5577
      %v5691 = vpack.c.b16 %v5580, %v5579
      %v5692 = vpack.c.b16 %v5582, %v5581
      %v5693 = vpack.c.b16 %v5689, %v5583
      %5694 = vrot.lane.b32.xlu0 %v5690, 28
      %v5695 = vpop.permute.xlu0 %5694
      %5696 = vrot.lane.b32.xlu0 %v5691, 28
      %v5697 = vpop.permute.xlu0 %5696
      %5698 = vrot.lane.b32.xlu0 %v5692, 28
      %v5699 = vpop.permute.xlu0 %5698
      %5700 = vrot.lane.b32.xlu0 %v5693, 28
      %v5701 = vpop.permute.xlu0 %5700
      %v5702 = vunpack.c.l.b16 %v5563
      %v5703 = vpack.c.b16 %v5598, %v5597
      %v5704 = vpack.c.b16 %v5600, %v5599
      %v5705 = vpack.c.b16 %v5602, %v5601
      %v5706 = vpack.c.b16 %v5702, %v5603
      %5707 = vrot.lane.b32.xlu0 %v5703, 32
      %v5708 = vpop.permute.xlu0 %5707
      %5709 = vrot.lane.b32.xlu0 %v5704, 32
      %v5710 = vpop.permute.xlu0 %5709
      %5711 = vrot.lane.b32.xlu0 %v5705, 32
      %v5712 = vpop.permute.xlu0 %5711
      %5713 = vrot.lane.b32.xlu0 %v5706, 32
      %v5714 = vpop.permute.xlu0 %5713
      %v5717 = vsel %vm1980, %v5564, %v5589
      %v5720 = vsel %vm1980, %v5565, %v5591
      %v5723 = vsel %vm1980, %v5566, %v5593
      %v5726 = vsel %vm1980, %v5567, %v5595
      %v5728 = vsel %vm2005, %v5717, %v5609
      %v5730 = vsel %vm2005, %v5720, %v5611
      %v5732 = vsel %vm2005, %v5723, %v5613
      %v5734 = vsel %vm2005, %v5726, %v5615
      %v5736 = vsel %vm2442, %v5728, %v5621
      %v5738 = vsel %vm2442, %v5730, %v5623
      %v5740 = vsel %vm2442, %v5732, %v5625
      %v5742 = vsel %vm2442, %v5734, %v5627
      %vm5743 = vcmask 130048
      %v5745 = vsel %vm5743, %v5736, %v5649
      %v5747 = vsel %vm5743, %v5738, %v5651
      %v5749 = vsel %vm5743, %v5740, %v5653
      %v5751 = vsel %vm5743, %v5742, %v5655
      %vm5752 = vcmask 162816
      %v5754 = vsel %vm5752, %v5745, %v5669
      %v5756 = vsel %vm5752, %v5747, %v5671
      %v5758 = vsel %vm5752, %v5749, %v5673
      %v5760 = vsel %vm5752, %v5751, %v5675
      %vm5761 = vcmask 195584
      %v5763 = vsel %vm5761, %v5754, %v5681
      %v5765 = vsel %vm5761, %v5756, %v5683
      %v5767 = vsel %vm5761, %v5758, %v5685
      %v5769 = vsel %vm5761, %v5760, %v5687
      %vm5770 = vcmask 228352
      %v5772 = vsel %vm5770, %v5763, %v5695
      %v5774 = vsel %vm5770, %v5765, %v5697
      %v5776 = vsel %vm5770, %v5767, %v5699
      %v5778 = vsel %vm5770, %v5769, %v5701
      %vm5779 = vcmask 261120
      %v5781 = vsel %vm5779, %v5772, %v5708
      %v5783 = vsel %vm5779, %v5774, %v5710
      %v5785 = vsel %vm5779, %v5776, %v5712
      %v5787 = vsel %vm5779, %v5778, %v5714
      %v5788 = vld [vmem:[%s4] sm:$0xf]
      %v5789 = vld [vmem:[%s4 + $0x4] sm:$0xf]
      %v5790 = vld [vmem:[%s4 + $0x8] sm:$0xf]
      %v5791 = vld [vmem:[%s4 + $0xc] sm:$0xf]
      %v5792 = vld [vmem:[%s4 + $0x10] sm:$0x3]
      %v5793 = vld [vmem:[%s5] sm:$0x1]
      %v5795 = vlaneseq
      %v5796 = vshrl.u32 %v5795, 7
      %v5797 = vsub.s32 0, %v5796
      %v5798 = vrot.slane %v5793, %v5797
      %v5805 = vunpack.c.l.b16 %v5788
      %v5806 = vunpack.c.l.b16 %v5789
      %v5807 = vunpack.c.l.b16 %v5790
      %v5808 = vunpack.c.l.b16 %v5791
      %v5809 = vunpack.c.l.b16 %v5792
      %v5810 = vpack.c.b16 %v5806, %v5805
      %v5811 = vpack.c.b16 %v5808, %v5807
      %v5812 = vpack.c.b16 %v5809, %v5809
      %vm5815 = vcmask 293888
      %v5816 = vsel %vm5815, %v5781, 0
      %v5818 = vsel %vm5815, %v5783, 0
      %v5820 = vsel %vm5815, %v5785, 0
      %v5822 = vsel %vm5815, %v5787, 0
      %vm5824 = vcmask 1041408
      %v5826 = vsel %vm5824, %v5812, 0
      %5828 = vmatprep.subr.bf16.mxu0 0
      %5829 = vmatpush1.bf16.msra.mxu0 %v5810
      %5830 = vmatprep.subr.bf16.mxu0 0
      %5831 = vmatpush1.bf16.msra.mxu0 %v5811
      %5832 = vmatprep.subr.bf16.mxu0 0
      %5833 = vmatpush1.bf16.msra.mxu0 %v5826
      %5834 = vmatprep.subr.bf16.mxu0 0
      %5835 = vmatpush1.bf16.msra.mxu0 0
      %5836 = vmatprep.subr.bf16.mxu0 0
      %5837 = vmatpush1.bf16.msra.mxu0 0
      %5838 = vmatprep.subr.bf16.mxu0 0
      %5839 = vmatpush1.bf16.msra.mxu0 0
      %5840 = vmatprep.subr.bf16.mxu0 0
      %5841 = vmatpush1.bf16.msra.mxu0 0
      %5842 = vmatprep.subr.bf16.mxu0 0
      %5843 = vmatpush1.bf16.msra.mxu0 0
      %5844 = vmatprep.subr.bf16.mxu0 0
      %5845 = vmatpush1.bf16.msra.mxu0 0
      %5846 = vmatprep.subr.bf16.mxu0 0
      %5847 = vmatpush1.bf16.msra.mxu0 0
      %5848 = vmatprep.subr.bf16.mxu0 0
      %5849 = vmatpush1.bf16.msra.mxu0 0
      %5850 = vmatprep.subr.bf16.mxu0 0
      %5851 = vmatpush1.bf16.msra.mxu0 0
      %5852 = vmatprep.subr.bf16.mxu0 0
      %5853 = vmatpush1.bf16.msra.mxu0 0
      %5854 = vmatprep.subr.bf16.mxu0 0
      %5855 = vmatpush1.bf16.msra.mxu0 0
      %5856 = vmatprep.subr.bf16.mxu0 0
      %5857 = vmatpush1.bf16.msra.mxu0 0
      %5858 = vmatprep.subr.bf16.mxu0 0
      %5859 = vmatpush1.bf16.msra.mxu0 0
      %5860 = vmatprep.mubr.bf16.mxu0 0
      %5861 = vmatmul.mubr.bf16.gmra.mrb[0].mxu0 %v5816
      %v5862 = vpop.f32.mrb[0].mxu0
      %v5863 = vadd.f32 %v5798, %v5862
      %v5864 = vpop.f32.mrb[0].mxu0
      %v5865 = vpop.f32.mrb[0].mxu0
      %v5866 = vadd.f32 %v5798, %v5865
      %v5867 = vpop.f32.mrb[0].mxu0
      %5868 = vmatprep.mubr.bf16.mxu0 0
      %5869 = vmatmul.mubr.bf16.gmra.mrb[0].mxu0 %v5818
      %v5870 = vpop.f32.mrb[0].mxu0
      %v5871 = vadd.f32 %v5798, %v5870
      %v5872 = vpop.f32.mrb[0].mxu0
      %v5873 = vpop.f32.mrb[0].mxu0
      %v5874 = vadd.f32 %v5798, %v5873
      %v5875 = vpop.f32.mrb[0].mxu0
      %5876 = vmatprep.mubr.bf16.mxu0 0
      %5877 = vmatmul.mubr.bf16.gmra.mrb[0].mxu0 %v5820
      %v5878 = vpop.f32.mrb[0].mxu0
      %v5879 = vadd.f32 %v5798, %v5878
      %v5880 = vpop.f32.mrb[0].mxu0
      %v5881 = vpop.f32.mrb[0].mxu0
      %v5882 = vadd.f32 %v5798, %v5881
      %v5883 = vpop.f32.mrb[0].mxu0
      %5884 = vmatprep.mubr.bf16.mxu0 0
      %5885 = vmatmul.mubr.bf16.gmra.mrb[0].mxu0 %v5822
      %v5886 = vpop.f32.mrb[0].mxu0
      %v5887 = vadd.f32 %v5798, %v5886
      %v5888 = vpop.f32.mrb[0].mxu0
      %v5889 = vpop.f32.mrb[0].mxu0
      %v5890 = vadd.f32 %v5798, %v5889
      %v5891 = vpop.f32.mrb[0].mxu0
      %5892 = vdwg.mxu0
      %vm5893 = vcmp.ge.f32.partialorder %v5863, 0.0
      %vm5894 = vcmp.ge.f32.partialorder %v5866, 0.0
      %vm5895 = vcmp.ge.f32.partialorder %v5871, 0.0
      %vm5896 = vcmp.ge.f32.partialorder %v5874, 0.0
      %vm5897 = vcmp.ge.f32.partialorder %v5879, 0.0
      %vm5898 = vcmp.ge.f32.partialorder %v5882, 0.0
      %vm5899 = vcmp.ge.f32.partialorder %v5887, 0.0
      %vm5900 = vcmp.ge.f32.partialorder %v5890, 0.0
      %v5901 = vmul.f32 %v5863, 0.2
      %v5902 = vmul.f32 %v5866, 0.2
      %v5903 = vmul.f32 %v5871, 0.2
      %v5904 = vmul.f32 %v5874, 0.2
      %v5905 = vmul.f32 %v5879, 0.2
      %v5906 = vmul.f32 %v5882, 0.2
      %v5907 = vmul.f32 %v5887, 0.2
      %v5908 = vmul.f32 %v5890, 0.2
      %v5909 = vsel %vm5893, %v5863, %v5901
      %v5910 = vsel %vm5894, %v5866, %v5902
      %v5911 = vsel %vm5895, %v5871, %v5903
      %v5912 = vsel %vm5896, %v5874, %v5904
      %v5913 = vsel %vm5897, %v5879, %v5905
      %v5914 = vsel %vm5898, %v5882, %v5906
      %v5915 = vsel %vm5899, %v5887, %v5907
      %v5916 = vsel %vm5900, %v5890, %v5908
      %v5917 = vmul.f32 %v5909, 1.4142135
      %v5918 = vmul.f32 %v5910, 1.4142135
      %v5919 = vmul.f32 %v5911, 1.4142135
      %v5920 = vmul.f32 %v5912, 1.4142135
      %v5921 = vmul.f32 %v5913, 1.4142135
      %v5922 = vmul.f32 %v5914, 1.4142135
      %v5923 = vmul.f32 %v5915, 1.4142135
      %v5924 = vmul.f32 %v5916, 1.4142135
      %v5925 = vunpack.c.l.bf16 %v1337
      %v5926 = vunpack.c.l.bf16 %v1338
      %v5927 = vunpack.c.l.bf16 %v1339
      %v5928 = vunpack.c.l.bf16 %v1340
      %v5929 = vunpack.c.l.bf16 %v1341
      %v5930 = vunpack.c.l.bf16 %v1342
      %v5931 = vunpack.c.l.bf16 %v1343
      %v5932 = vunpack.c.l.bf16 %v1344
      %v5933 = vunpack.c.l.bf16 %v1345
      %v5934 = vunpack.c.l.bf16 %v1346
      %v5935 = vunpack.c.l.bf16 %v1347
      %v5936 = vunpack.c.l.bf16 %v1348
      %v5937 = vunpack.c.l.bf16 %v1349
      %v5938 = vunpack.c.l.bf16 %v1350
      %v5939 = vunpack.c.l.bf16 %v1351
      %v5940 = vunpack.c.l.bf16 %v1352
      %v5941 = vunpack.c.l.bf16 %v1353
      %v5942 = vunpack.c.l.bf16 %v1354
      %v5943 = vunpack.c.l.bf16 %v1355
      %v5944 = vunpack.c.l.bf16 %v1356
      %v5945 = vunpack.c.l.bf16 %v1357
      %v5946 = vunpack.c.l.bf16 %v1358
      %v5947 = vunpack.c.l.bf16 %v1359
      %v5948 = vunpack.c.l.bf16 %v1360
      %v5949 = vunpack.c.l.bf16 %v1361
      %v5950 = vunpack.c.l.bf16 %v1362
      %v5951 = vunpack.c.l.bf16 %v1363
      %v5952 = vunpack.c.l.bf16 %v1364
      %v5953 = vunpack.c.l.bf16 %v1365
      %v5954 = vunpack.c.l.bf16 %v1366
      %v5955 = vunpack.c.l.bf16 %v1367
      %v5956 = vunpack.c.l.bf16 %v1368
      %v5957 = vunpack.c.l.bf16 %v1369
      %v5958 = vunpack.c.l.bf16 %v1370
      %v5959 = vunpack.c.l.bf16 %v1371
      %v5960 = vunpack.c.l.bf16 %v1372
      %v5961 = vunpack.c.l.bf16 %v1373
      %v5962 = vunpack.c.l.bf16 %v1374
      %v5963 = vunpack.c.l.bf16 %v1375
      %v5964 = vunpack.c.l.bf16 %v1376
      %v5965 = vunpack.c.l.bf16 %v1377
      %v5966 = vunpack.c.l.bf16 %v1378
      %v5967 = vunpack.c.l.bf16 %v1379
      %v5968 = vunpack.c.l.bf16 %v1380
      %v5969 = vunpack.c.l.bf16 %v1381
      %v5970 = vunpack.c.l.bf16 %v1382
      %v5971 = vunpack.c.l.bf16 %v1383
      %v5972 = vunpack.c.l.bf16 %v1384
      %v5973 = vunpack.c.l.bf16 %v1385
      %v5974 = vunpack.c.l.bf16 %v1386
      %v5975 = vunpack.c.l.bf16 %v1387
      %v5976 = vunpack.c.l.bf16 %v1388
      %v5977 = vunpack.c.l.bf16 %v1389
      %v5978 = vunpack.c.l.bf16 %v1390
      %v5979 = vunpack.c.l.bf16 %v1391
      %v5980 = vunpack.c.l.bf16 %v1392
      %v5981 = vunpack.c.l.bf16 %v1393
      %v5982 = vunpack.c.l.bf16 %v1394
      %v5983 = vunpack.c.l.bf16 %v1395
      %v5984 = vunpack.c.l.bf16 %v1396
      %v5985 = vunpack.c.l.bf16 %v1397
      %v5986 = vunpack.c.l.bf16 %v1398
      %v5987 = vunpack.c.l.bf16 %v1399
      %v5988 = vunpack.c.l.bf16 %v1400
      %v5989 = vunpack.c.l.bf16 %v1401
      %v5990 = vunpack.c.l.bf16 %v1402
      %v5991 = vunpack.c.l.bf16 %v1403
      %v5992 = vunpack.c.l.bf16 %v1404
      %v5993 = vunpack.c.l.bf16 %v1405
      %v5994 = vunpack.c.l.bf16 %v1406
      %v5995 = vunpack.c.l.bf16 %v1407
      %v5996 = vunpack.c.l.bf16 %v1408
      %v5997 = vmul.f32 %v5961, 0.125
      %v5998 = vmul.f32 %v5963, 0.125
      %v5999 = vmul.f32 %v5965, 0.125
      %v6000 = vmul.f32 %v5967, 0.125
      %v6001 = vmul.f32 %v5969, 0.125
      %v6002 = vmul.f32 %v5971, 0.125
      %v6003 = vmul.f32 %v5973, 0.125
      %v6004 = vmul.f32 %v5975, 0.125
      %v6005 = vmul.f32 %v5977, 0.125
      %v6006 = vmul.f32 %v5979, 0.125
      %v6007 = vmul.f32 %v5981, 0.125
      %v6008 = vmul.f32 %v5983, 0.125
      %v6009 = vmul.f32 %v5985, 0.125
      %v6010 = vmul.f32 %v5987, 0.125
      %v6011 = vmul.f32 %v5989, 0.125
      %v6012 = vmul.f32 %v5991, 0.125
      %v6013 = vmul.f32 %v5993, 0.125
      %v6014 = vmul.f32 %v5995, 0.125
      %v6015 = vmul.f32 %v5925, 0.375
      %v6016 = vmul.f32 %v5926, 0.375
      %v6017 = vmul.f32 %v5927, 0.375
      %v6018 = vmul.f32 %v5928, 0.375
      %v6019 = vmul.f32 %v5929, 0.375
      %v6020 = vmul.f32 %v5930, 0.375
      %v6021 = vmul.f32 %v5931, 0.375
      %v6022 = vmul.f32 %v5932, 0.375
      %v6023 = vmul.f32 %v5933, 0.375
      %v6024 = vmul.f32 %v5934, 0.375
      %v6025 = vmul.f32 %v5935, 0.375
      %v6026 = vmul.f32 %v5936, 0.375
      %v6027 = vmul.f32 %v5937, 0.375
      %v6028 = vmul.f32 %v5938, 0.375
      %v6029 = vmul.f32 %v5939, 0.375
      %v6030 = vmul.f32 %v5940, 0.375
      %v6031 = vmul.f32 %v5941, 0.375
      %v6032 = vmul.f32 %v5942, 0.375
      %v6033 = vmul.f32 %v5943, 0.375
      %v6034 = vmul.f32 %v5944, 0.375
      %v6035 = vmul.f32 %v5945, 0.375
      %v6036 = vmul.f32 %v5946, 0.375
      %v6037 = vmul.f32 %v5947, 0.375
      %v6038 = vmul.f32 %v5948, 0.375
      %v6039 = vmul.f32 %v5949, 0.375
      %v6040 = vmul.f32 %v5950, 0.375
      %v6041 = vmul.f32 %v5951, 0.375
      %v6042 = vmul.f32 %v5952, 0.375
      %v6043 = vmul.f32 %v5953, 0.375
      %v6044 = vmul.f32 %v5954, 0.375
      %v6045 = vmul.f32 %v5955, 0.375
      %v6046 = vmul.f32 %v5956, 0.375
      %v6047 = vmul.f32 %v5957, 0.375
      %v6048 = vmul.f32 %v5958, 0.375
      %v6049 = vmul.f32 %v5959, 0.375
      %v6050 = vmul.f32 %v5960, 0.375
      %v6087 = vrot.slane %v6015, 1
      %v6088 = vrot.slane %v6016, 1
      %v6089 = vsel %vm4279, %v6087, %v6088
      %v6090 = vrot.slane %v6017, 1
      %v6091 = vrot.slane %v6018, 1
      %v6092 = vsel %vm4279, %v6090, %v6091
      %v6093 = vrot.slane %v6019, 1
      %v6094 = vrot.slane %v6020, 1
      %v6095 = vsel %vm4279, %v6093, %v6094
      %v6096 = vrot.slane %v6021, 1
      %v6097 = vrot.slane %v6022, 1
      %v6098 = vsel %vm4279, %v6096, %v6097
      %v6099 = vrot.slane %v6023, 1
      %v6100 = vrot.slane %v6024, 1
      %v6101 = vsel %vm4279, %v6099, %v6100
      %v6102 = vrot.slane %v6025, 1
      %v6103 = vrot.slane %v6026, 1
      %v6104 = vsel %vm4279, %v6102, %v6103
      %v6105 = vrot.slane %v6027, 1
      %v6106 = vrot.slane %v6028, 1
      %v6107 = vsel %vm4279, %v6105, %v6106
      %v6108 = vrot.slane %v6029, 1
      %v6109 = vrot.slane %v6030, 1
      %v6110 = vsel %vm4279, %v6108, %v6109
      %v6111 = vrot.slane %v6031, 1
      %v6112 = vrot.slane %v6032, 1
      %v6113 = vsel %vm4279, %v6111, %v6112
      %v6114 = vrot.slane %v6033, 1
      %v6115 = vrot.slane %v6034, 1
      %v6116 = vsel %vm4279, %v6114, %v6115
      %v6117 = vrot.slane %v6035, 1
      %v6118 = vrot.slane %v6036, 1
      %v6119 = vsel %vm4279, %v6117, %v6118
      %v6120 = vrot.slane %v6037, 1
      %v6121 = vrot.slane %v6038, 1
      %v6122 = vsel %vm4279, %v6120, %v6121
      %v6123 = vrot.slane %v6039, 1
      %v6124 = vrot.slane %v6040, 1
      %v6125 = vsel %vm4279, %v6123, %v6124
      %v6126 = vrot.slane %v6041, 1
      %v6127 = vrot.slane %v6042, 1
      %v6128 = vsel %vm4279, %v6126, %v6127
      %v6129 = vrot.slane %v6043, 1
      %v6130 = vrot.slane %v6044, 1
      %v6131 = vsel %vm4279, %v6129, %v6130
      %v6132 = vrot.slane %v6045, 1
      %v6133 = vrot.slane %v6046, 1
      %v6134 = vsel %vm4279, %v6132, %v6133
      %v6135 = vrot.slane %v6047, 1
      %v6136 = vrot.slane %v6048, 1
      %v6137 = vsel %vm4279, %v6135, %v6136
      %v6138 = vrot.slane %v6049, 1
      %v6139 = vrot.slane %v6050, 1
      %v6140 = vsel %vm4279, %v6138, %v6139
      %v6159 = vadd.f32 %v5997, %v6089
      %v6160 = vadd.f32 %v5998, %v6092
      %v6161 = vadd.f32 %v5999, %v6095
      %v6162 = vadd.f32 %v6000, %v6098
      %v6163 = vadd.f32 %v6001, %v6101
      %v6164 = vadd.f32 %v6002, %v6104
      %v6165 = vadd.f32 %v6003, %v6107
      %v6166 = vadd.f32 %v6004, %v6110
      %v6167 = vadd.f32 %v6005, %v6113
      %v6168 = vadd.f32 %v6006, %v6116
      %v6169 = vadd.f32 %v6007, %v6119
      %v6170 = vadd.f32 %v6008, %v6122
      %v6171 = vadd.f32 %v6009, %v6125
      %v6172 = vadd.f32 %v6010, %v6128
      %v6173 = vadd.f32 %v6011, %v6131
      %v6174 = vadd.f32 %v6012, %v6134
      %v6175 = vadd.f32 %v6013, %v6137
      %v6176 = vadd.f32 %v6014, %v6140
      %v6177 = vmul.f32 %v5961, 0.375
      %v6178 = vmul.f32 %v5962, 0.375
      %v6179 = vmul.f32 %v5963, 0.375
      %v6180 = vmul.f32 %v5964, 0.375
      %v6181 = vmul.f32 %v5965, 0.375
      %v6182 = vmul.f32 %v5966, 0.375
      %v6183 = vmul.f32 %v5967, 0.375
      %v6184 = vmul.f32 %v5968, 0.375
      %v6185 = vmul.f32 %v5969, 0.375
      %v6186 = vmul.f32 %v5970, 0.375
      %v6187 = vmul.f32 %v5971, 0.375
      %v6188 = vmul.f32 %v5972, 0.375
      %v6189 = vmul.f32 %v5973, 0.375
      %v6190 = vmul.f32 %v5974, 0.375
      %v6191 = vmul.f32 %v5975, 0.375
      %v6192 = vmul.f32 %v5976, 0.375
      %v6193 = vmul.f32 %v5977, 0.375
      %v6194 = vmul.f32 %v5978, 0.375
      %v6195 = vmul.f32 %v5979, 0.375
      %v6196 = vmul.f32 %v5980, 0.375
      %v6197 = vmul.f32 %v5981, 0.375
      %v6198 = vmul.f32 %v5982, 0.375
      %v6199 = vmul.f32 %v5983, 0.375
      %v6200 = vmul.f32 %v5984, 0.375
      %v6201 = vmul.f32 %v5985, 0.375
      %v6202 = vmul.f32 %v5986, 0.375
      %v6203 = vmul.f32 %v5987, 0.375
      %v6204 = vmul.f32 %v5988, 0.375
      %v6205 = vmul.f32 %v5989, 0.375
      %v6206 = vmul.f32 %v5990, 0.375
      %v6207 = vmul.f32 %v5991, 0.375
      %v6208 = vmul.f32 %v5992, 0.375
      %v6209 = vmul.f32 %v5993, 0.375
      %v6210 = vmul.f32 %v5994, 0.375
      %v6211 = vmul.f32 %v5995, 0.375
      %v6212 = vmul.f32 %v5996, 0.375
      %v6249 = vrot.slane %v6177, 1
      %v6250 = vrot.slane %v6178, 1
      %v6251 = vsel %vm4279, %v6249, %v6250
      %v6252 = vrot.slane %v6179, 1
      %v6253 = vrot.slane %v6180, 1
      %v6254 = vsel %vm4279, %v6252, %v6253
      %v6255 = vrot.slane %v6181, 1
      %v6256 = vrot.slane %v6182, 1
      %v6257 = vsel %vm4279, %v6255, %v6256
      %v6258 = vrot.slane %v6183, 1
      %v6259 = vrot.slane %v6184, 1
      %v6260 = vsel %vm4279, %v6258, %v6259
      %v6261 = vrot.slane %v6185, 1
      %v6262 = vrot.slane %v6186, 1
      %v6263 = vsel %vm4279, %v6261, %v6262
      %v6264 = vrot.slane %v6187, 1
      %v6265 = vrot.slane %v6188, 1
      %v6266 = vsel %vm4279, %v6264, %v6265
      %v6267 = vrot.slane %v6189, 1
      %v6268 = vrot.slane %v6190, 1
      %v6269 = vsel %vm4279, %v6267, %v6268
      %v6270 = vrot.slane %v6191, 1
      %v6271 = vrot.slane %v6192, 1
      %v6272 = vsel %vm4279, %v6270, %v6271
      %v6273 = vrot.slane %v6193, 1
      %v6274 = vrot.slane %v6194, 1
      %v6275 = vsel %vm4279, %v6273, %v6274
      %v6276 = vrot.slane %v6195, 1
      %v6277 = vrot.slane %v6196, 1
      %v6278 = vsel %vm4279, %v6276, %v6277
      %v6279 = vrot.slane %v6197, 1
      %v6280 = vrot.slane %v6198, 1
      %v6281 = vsel %vm4279, %v6279, %v6280
      %v6282 = vrot.slane %v6199, 1
      %v6283 = vrot.slane %v6200, 1
      %v6284 = vsel %vm4279, %v6282, %v6283
      %v6285 = vrot.slane %v6201, 1
      %v6286 = vrot.slane %v6202, 1
      %v6287 = vsel %vm4279, %v6285, %v6286
      %v6288 = vrot.slane %v6203, 1
      %v6289 = vrot.slane %v6204, 1
      %v6290 = vsel %vm4279, %v6288, %v6289
      %v6291 = vrot.slane %v6205, 1
      %v6292 = vrot.slane %v6206, 1
      %v6293 = vsel %vm4279, %v6291, %v6292
      %v6294 = vrot.slane %v6207, 1
      %v6295 = vrot.slane %v6208, 1
      %v6296 = vsel %vm4279, %v6294, %v6295
      %v6297 = vrot.slane %v6209, 1
      %v6298 = vrot.slane %v6210, 1
      %v6299 = vsel %vm4279, %v6297, %v6298
      %v6300 = vrot.slane %v6211, 1
      %v6301 = vrot.slane %v6212, 1
      %v6302 = vsel %vm4279, %v6300, %v6301
      %v6321 = vadd.f32 %v6159, %v6251
      %v6322 = vadd.f32 %v6160, %v6254
      %v6323 = vadd.f32 %v6161, %v6257
      %v6324 = vadd.f32 %v6162, %v6260
      %v6325 = vadd.f32 %v6163, %v6263
      %v6326 = vadd.f32 %v6164, %v6266
      %v6327 = vadd.f32 %v6165, %v6269
      %v6328 = vadd.f32 %v6166, %v6272
      %v6329 = vadd.f32 %v6167, %v6275
      %v6330 = vadd.f32 %v6168, %v6278
      %v6331 = vadd.f32 %v6169, %v6281
      %v6332 = vadd.f32 %v6170, %v6284
      %v6333 = vadd.f32 %v6171, %v6287
      %v6334 = vadd.f32 %v6172, %v6290
      %v6335 = vadd.f32 %v6173, %v6293
      %v6336 = vadd.f32 %v6174, %v6296
      %v6337 = vadd.f32 %v6175, %v6299
      %v6338 = vadd.f32 %v6176, %v6302
      %v6339 = vmul.f32 %v5925, 0.125
      %v6340 = vmul.f32 %v5926, 0.125
      %v6341 = vmul.f32 %v5927, 0.125
      %v6342 = vmul.f32 %v5928, 0.125
      %v6343 = vmul.f32 %v5929, 0.125
      %v6344 = vmul.f32 %v5930, 0.125
      %v6345 = vmul.f32 %v5931, 0.125
      %v6346 = vmul.f32 %v5932, 0.125
      %v6347 = vmul.f32 %v5933, 0.125
      %v6348 = vmul.f32 %v5934, 0.125
      %v6349 = vmul.f32 %v5935, 0.125
      %v6350 = vmul.f32 %v5936, 0.125
      %v6351 = vmul.f32 %v5937, 0.125
      %v6352 = vmul.f32 %v5938, 0.125
      %v6353 = vmul.f32 %v5939, 0.125
      %v6354 = vmul.f32 %v5940, 0.125
      %v6355 = vmul.f32 %v5941, 0.125
      %v6356 = vmul.f32 %v5942, 0.125
      %v6357 = vmul.f32 %v5943, 0.125
      %v6358 = vmul.f32 %v5944, 0.125
      %v6359 = vmul.f32 %v5945, 0.125
      %v6360 = vmul.f32 %v5946, 0.125
      %v6361 = vmul.f32 %v5947, 0.125
      %v6362 = vmul.f32 %v5948, 0.125
      %v6363 = vmul.f32 %v5949, 0.125
      %v6364 = vmul.f32 %v5950, 0.125
      %v6365 = vmul.f32 %v5951, 0.125
      %v6366 = vmul.f32 %v5952, 0.125
      %v6367 = vmul.f32 %v5953, 0.125
      %v6368 = vmul.f32 %v5954, 0.125
      %v6369 = vmul.f32 %v5955, 0.125
      %v6370 = vmul.f32 %v5956, 0.125
      %v6371 = vmul.f32 %v5957, 0.125
      %v6372 = vmul.f32 %v5958, 0.125
      %v6373 = vmul.f32 %v5959, 0.125
      %v6374 = vmul.f32 %v5960, 0.125
      %v6411 = vrot.slane %v6339, 2
      %v6412 = vrot.slane %v6340, 2
      %v6413 = vsel %vm2475, %v6411, %v6412
      %v6414 = vrot.slane %v6341, 2
      %v6415 = vrot.slane %v6342, 2
      %v6416 = vsel %vm2475, %v6414, %v6415
      %v6417 = vrot.slane %v6343, 2
      %v6418 = vrot.slane %v6344, 2
      %v6419 = vsel %vm2475, %v6417, %v6418
      %v6420 = vrot.slane %v6345, 2
      %v6421 = vrot.slane %v6346, 2
      %v6422 = vsel %vm2475, %v6420, %v6421
      %v6423 = vrot.slane %v6347, 2
      %v6424 = vrot.slane %v6348, 2
      %v6425 = vsel %vm2475, %v6423, %v6424
      %v6426 = vrot.slane %v6349, 2
      %v6427 = vrot.slane %v6350, 2
      %v6428 = vsel %vm2475, %v6426, %v6427
      %v6429 = vrot.slane %v6351, 2
      %v6430 = vrot.slane %v6352, 2
      %v6431 = vsel %vm2475, %v6429, %v6430
      %v6432 = vrot.slane %v6353, 2
      %v6433 = vrot.slane %v6354, 2
      %v6434 = vsel %vm2475, %v6432, %v6433
      %v6435 = vrot.slane %v6355, 2
      %v6436 = vrot.slane %v6356, 2
      %v6437 = vsel %vm2475, %v6435, %v6436
      %v6438 = vrot.slane %v6357, 2
      %v6439 = vrot.slane %v6358, 2
      %v6440 = vsel %vm2475, %v6438, %v6439
      %v6441 = vrot.slane %v6359, 2
      %v6442 = vrot.slane %v6360, 2
      %v6443 = vsel %vm2475, %v6441, %v6442
      %v6444 = vrot.slane %v6361, 2
      %v6445 = vrot.slane %v6362, 2
      %v6446 = vsel %vm2475, %v6444, %v6445
      %v6447 = vrot.slane %v6363, 2
      %v6448 = vrot.slane %v6364, 2
      %v6449 = vsel %vm2475, %v6447, %v6448
      %v6450 = vrot.slane %v6365, 2
      %v6451 = vrot.slane %v6366, 2
      %v6452 = vsel %vm2475, %v6450, %v6451
      %v6453 = vrot.slane %v6367, 2
      %v6454 = vrot.slane %v6368, 2
      %v6455 = vsel %vm2475, %v6453, %v6454
      %v6456 = vrot.slane %v6369, 2
      %v6457 = vrot.slane %v6370, 2
      %v6458 = vsel %vm2475, %v6456, %v6457
      %v6459 = vrot.slane %v6371, 2
      %v6460 = vrot.slane %v6372, 2
      %v6461 = vsel %vm2475, %v6459, %v6460
      %v6462 = vrot.slane %v6373, 2
      %v6463 = vrot.slane %v6374, 2
      %v6464 = vsel %vm2475, %v6462, %v6463
      %v6483 = vadd.f32 %v6321, %v6413
      %v6484 = vadd.f32 %v6322, %v6416
      %v6485 = vadd.f32 %v6323, %v6419
      %v6486 = vadd.f32 %v6324, %v6422
      %v6487 = vadd.f32 %v6325, %v6425
      %v6488 = vadd.f32 %v6326, %v6428
      %v6489 = vadd.f32 %v6327, %v6431
      %v6490 = vadd.f32 %v6328, %v6434
      %v6491 = vadd.f32 %v6329, %v6437
      %v6492 = vadd.f32 %v6330, %v6440
      %v6493 = vadd.f32 %v6331, %v6443
      %v6494 = vadd.f32 %v6332, %v6446
      %v6495 = vadd.f32 %v6333, %v6449
      %v6496 = vadd.f32 %v6334, %v6452
      %v6497 = vadd.f32 %v6335, %v6455
      %v6498 = vadd.f32 %v6336, %v6458
      %v6499 = vadd.f32 %v6337, %v6461
      %v6500 = vadd.f32 %v6338, %v6464
      %v6501 = vmul.f32 %v6483, 0.125
      %v6502 = vmul.f32 %v6485, 0.125
      %v6503 = vmul.f32 %v6487, 0.125
      %v6504 = vmul.f32 %v6489, 0.125
      %v6505 = vmul.f32 %v6491, 0.125
      %v6506 = vmul.f32 %v6493, 0.125
      %v6507 = vmul.f32 %v6495, 0.125
      %v6508 = vmul.f32 %v6497, 0.125
      %v6509 = vmul.f32 %v6484, 0.375
      %v6510 = vmul.f32 %v6486, 0.375
      %v6511 = vmul.f32 %v6488, 0.375
      %v6512 = vmul.f32 %v6490, 0.375
      %v6513 = vmul.f32 %v6492, 0.375
      %v6514 = vmul.f32 %v6494, 0.375
      %v6515 = vmul.f32 %v6496, 0.375
      %v6516 = vmul.f32 %v6498, 0.375
      %v6517 = vadd.f32 %v6501, %v6509
      %v6518 = vadd.f32 %v6502, %v6510
      %v6519 = vadd.f32 %v6503, %v6511
      %v6520 = vadd.f32 %v6504, %v6512
      %v6521 = vadd.f32 %v6505, %v6513
      %v6522 = vadd.f32 %v6506, %v6514
      %v6523 = vadd.f32 %v6507, %v6515
      %v6524 = vadd.f32 %v6508, %v6516
      %v6525 = vmul.f32 %v6485, 0.375
      %v6526 = vmul.f32 %v6487, 0.375
      %v6527 = vmul.f32 %v6489, 0.375
      %v6528 = vmul.f32 %v6491, 0.375
      %v6529 = vmul.f32 %v6493, 0.375
      %v6530 = vmul.f32 %v6495, 0.375
      %v6531 = vmul.f32 %v6497, 0.375
      %v6532 = vmul.f32 %v6499, 0.375
      %v6533 = vadd.f32 %v6517, %v6525
      %v6534 = vadd.f32 %v6518, %v6526
      %v6535 = vadd.f32 %v6519, %v6527
      %v6536 = vadd.f32 %v6520, %v6528
      %v6537 = vadd.f32 %v6521, %v6529
      %v6538 = vadd.f32 %v6522, %v6530
      %v6539 = vadd.f32 %v6523, %v6531
      %v6540 = vadd.f32 %v6524, %v6532
      %v6541 = vmul.f32 %v6486, 0.125
      %v6542 = vmul.f32 %v6488, 0.125
      %v6543 = vmul.f32 %v6490, 0.125
      %v6544 = vmul.f32 %v6492, 0.125
      %v6545 = vmul.f32 %v6494, 0.125
      %v6546 = vmul.f32 %v6496, 0.125
      %v6547 = vmul.f32 %v6498, 0.125
      %v6548 = vmul.f32 %v6500, 0.125
      %v6549 = vadd.f32 %v6533, %v6541
      %v6550 = vadd.f32 %v6534, %v6542
      %v6551 = vadd.f32 %v6535, %v6543
      %v6552 = vadd.f32 %v6536, %v6544
      %v6553 = vadd.f32 %v6537, %v6545
      %v6554 = vadd.f32 %v6538, %v6546
      %v6555 = vadd.f32 %v6539, %v6547
      %v6556 = vadd.f32 %v6540, %v6548
      %v6557 = vpack.c.bf16 %v6549, %v6549
      %v6558 = vpack.c.bf16 %v6550, %v6550
      %v6559 = vpack.c.bf16 %v6551, %v6551
      %v6560 = vpack.c.bf16 %v6552, %v6552
      %v6561 = vpack.c.bf16 %v6553, %v6553
      %v6562 = vpack.c.bf16 %v6554, %v6554
      %v6563 = vpack.c.bf16 %v6555, %v6555
      %v6564 = vpack.c.bf16 %v6556, %v6556
      %v6565 = vld [vmem:[%s6] sm:$0x3]
      %v6574 = vunpack.c.l.b16 %v6557
      %v6575 = vunpack.c.l.b16 %v6558
      %v6576 = vunpack.c.l.b16 %v6559
      %v6577 = vunpack.c.l.b16 %v6560
      %v6578 = vunpack.c.l.b16 %v6561
      %v6579 = vunpack.c.l.b16 %v6562
      %v6580 = vunpack.c.l.b16 %v6563
      %v6581 = vunpack.c.l.b16 %v6564
      %v6582 = vpack.c.b16 %v6575, %v6574
      %v6583 = vpack.c.b16 %v6577, %v6576
      %v6584 = vpack.c.b16 %v6579, %v6578
      %v6585 = vpack.c.b16 %v6581, %v6580
      %v6587 = vsel %vm1980, %v6582, 0
      %v6590 = vsel %vm1980, %v6583, 0
      %v6593 = vsel %vm1980, %v6584, 0
      %v6596 = vsel %vm1980, %v6585, 0
      %v6599 = vsel %vm5824, %v6565, 0
      %6601 = vmatprep.subr.bf16.mxu0 0
      %6602 = vmatpush1.bf16.msra.mxu0 %v6599
      %6603 = vmatprep.subr.bf16.mxu0 0
      %6604 = vmatpush1.bf16.msra.mxu0 0
      %6605 = vmatprep.subr.bf16.mxu0 0
      %6606 = vmatpush1.bf16.msra.mxu0 0
      %6607 = vmatprep.subr.bf16.mxu0 0
      %6608 = vmatpush1.bf16.msra.mxu0 0
      %6609 = vmatprep.subr.bf16.mxu0 0
      %6610 = vmatpush1.bf16.msra.mxu0 0
      %6611 = vmatprep.subr.bf16.mxu0 0
      %6612 = vmatpush1.bf16.msra.mxu0 0
      %6613 = vmatprep.subr.bf16.mxu0 0
      %6614 = vmatpush1.bf16.msra.mxu0 0
      %6615 = vmatprep.subr.bf16.mxu0 0
      %6616 = vmatpush1.bf16.msra.mxu0 0
      %6617 = vmatprep.subr.bf16.mxu0 0
      %6618 = vmatpush1.bf16.msra.mxu0 0
      %6619 = vmatprep.subr.bf16.mxu0 0
      %6620 = vmatpush1.bf16.msra.mxu0 0
      %6621 = vmatprep.subr.bf16.mxu0 0
      %6622 = vmatpush1.bf16.msra.mxu0 0
      %6623 = vmatprep.subr.bf16.mxu0 0
      %6624 = vmatpush1.bf16.msra.mxu0 0
      %6625 = vmatprep.subr.bf16.mxu0 0
      %6626 = vmatpush1.bf16.msra.mxu0 0
      %6627 = vmatprep.subr.bf16.mxu0 0
      %6628 = vmatpush1.bf16.msra.mxu0 0
      %6629 = vmatprep.subr.bf16.mxu0 0
      %6630 = vmatpush1.bf16.msra.mxu0 0
      %6631 = vmatprep.subr.bf16.mxu0 0
      %6632 = vmatpush1.bf16.msra.mxu0 0
      %6633 = vmatprep.mubr.bf16.mxu0 0
      %6634 = vmatmul.mubr.bf16.gmra.mrb[0].mxu0 %v6587
      %v6635 = vpop.f32.mrb[0].mxu0
      %v6636 = vadd.f32 0.0, %v6635
      %v6637 = vpop.f32.mrb[0].mxu0
      %v6638 = vpop.f32.mrb[0].mxu0
      %v6639 = vadd.f32 0.0, %v6638
      %v6640 = vpop.f32.mrb[0].mxu0
      %6641 = vmatprep.mubr.bf16.mxu0 0
      %6642 = vmatmul.mubr.bf16.gmra.mrb[0].mxu0 %v6590
      %v6643 = vpop.f32.mrb[0].mxu0
      %v6644 = vadd.f32 0.0, %v6643
      %v6645 = vpop.f32.mrb[0].mxu0
      %v6646 = vpop.f32.mrb[0].mxu0
      %v6647 = vadd.f32 0.0, %v6646
      %v6648 = vpop.f32.mrb[0].mxu0
      %6649 = vmatprep.mubr.bf16.mxu0 0
      %6650 = vmatmul.mubr.bf16.gmra.mrb[0].mxu0 %v6593
      %v6651 = vpop.f32.mrb[0].mxu0
      %v6652 = vadd.f32 0.0, %v6651
      %v6653 = vpop.f32.mrb[0].mxu0
      %v6654 = vpop.f32.mrb[0].mxu0
      %v6655 = vadd.f32 0.0, %v6654
      %v6656 = vpop.f32.mrb[0].mxu0
      %6657 = vmatprep.mubr.bf16.mxu0 0
      %6658 = vmatmul.mubr.bf16.gmra.mrb[0].mxu0 %v6596
      %v6659 = vpop.f32.mrb[0].mxu0
      %v6660 = vadd.f32 0.0, %v6659
      %v6661 = vpop.f32.mrb[0].mxu0
      %v6662 = vpop.f32.mrb[0].mxu0
      %v6663 = vadd.f32 0.0, %v6662
      %v6664 = vpop.f32.mrb[0].mxu0
      %6665 = vdwg.mxu0
      %v6666 = vadd.f32 %v5917, %v6636
      %v6667 = vadd.f32 %v5918, %v6639
      %v6668 = vadd.f32 %v5919, %v6644
      %v6669 = vadd.f32 %v5920, %v6647
      %v6670 = vadd.f32 %v5921, %v6652
      %v6671 = vadd.f32 %v5922, %v6655
      %v6672 = vadd.f32 %v5923, %v6660
      %v6673 = vadd.f32 %v5924, %v6663
      %v6674 = vmul.f32 %v6666, 0.70710677
      %v6675 = vmul.f32 %v6667, 0.70710677
      %v6676 = vmul.f32 %v6668, 0.70710677
      %v6677 = vmul.f32 %v6669, 0.70710677
      %v6678 = vmul.f32 %v6670, 0.70710677
      %v6679 = vmul.f32 %v6671, 0.70710677
      %v6680 = vmul.f32 %v6672, 0.70710677
      %v6681 = vmul.f32 %v6673, 0.70710677
      %6682 = vxpose.xlu0.b32.start [1/16] %v6674, 128
      %6683 = vxpose.xlu0.b32.cont [2/16] %v6675, 128
      %6684 = vxpose.xlu0.b32.cont [3/16] %v6676, 128
      %6685 = vxpose.xlu0.b32.cont [4/16] %v6677, 128
      %6686 = vxpose.xlu0.b32.cont [5/16] %v6678, 128
      %6687 = vxpose.xlu0.b32.cont [6/16] %v6679, 128
      %6688 = vxpose.xlu0.b32.cont [7/16] %v6680, 128
      %6689 = vxpose.xlu0.b32.cont [8/16] %v6681, 128
      %6690 = vxpose.xlu0.b32.cont [9/16] 0.0, 128
      %6691 = vxpose.xlu0.b32.cont [10/16] 0.0, 128
      %6692 = vxpose.xlu0.b32.cont [11/16] 0.0, 128
      %6693 = vxpose.xlu0.b32.cont [12/16] 0.0, 128
      %6694 = vxpose.xlu0.b32.cont [13/16] 0.0, 128
      %6695 = vxpose.xlu0.b32.cont [14/16] 0.0, 128
      %6696 = vxpose.xlu0.b32.cont [15/16] 0.0, 128
      %6697 = vxpose.xlu0.b32.end [16/16] 0.0, 128
      %v6698 = vpop.trf.xlu0
      %v6699 = vpop.trf.xlu0
      %v6700 = vpop.trf.xlu0
      %v6701 = vpop.trf.xlu0
      %v6702 = vpop.trf.xlu0
      %v6703 = vpop.trf.xlu0
      %v6704 = vpop.trf.xlu0
      %v6705 = vpop.trf.xlu0
      %v6706 = vpop.trf.xlu0
      %v6707 = vpop.trf.xlu0
      %v6708 = vpop.trf.xlu0
      %v6709 = vpop.trf.xlu0
      %v6710 = vpop.trf.xlu0
      %v6711 = vpop.trf.xlu0
      %v6712 = vpop.trf.xlu0
      %v6713 = vpop.trf.xlu0
      %vm6714 = vcmask 523264
      %6715 = vst.msk [vmem:[%s296] sm:$0xff] %vm6714, %v6698
      %p6716 = scmp.lt.s32.totalorder %s18, 1
      %s6717 = scalar_select %p6716, %s18, 1
      %s6718 = smul.addr %s6717, 8
      %s6719 = scalar_lea.vmem %s7, %s6718
      // Predicated region
      $region49: #{resblock_forward.1} parent=47 // pred_check
        %p6720 = pneg %p193
      $region50: #{resblock_forward.1} parent=47 // pred_check_branch
        %6722 = sbr.rel (%p6720) target = $region52
      $region51: #{resblock_forward.1} parent=47 // pred_region
        _
      $region52: #{resblock_forward.1} parent=47 // pred_fallthru
        _
    $region48: #{resblock_forward.1} parent=5 // pred_fallthru
      _
    %p6723 = scmp.le.s32.totalorder 2, %s13
    // Predicated region
    $region53: #{resblock_forward.1} parent=5 // pred_check
      %p6724 = pneg %p6723
    $region54: #{resblock_forward.1} parent=5 // pred_check_branch
      %6726 = sbr.rel (%p6724) target = $region56
    $region55: #{resblock_forward.1} parent=5 // pred_region
      %s6727 = ssub.s32 %s13, 2
      // Predicated region
      $region57: #{resblock_forward.1} parent=55 // pred_check
        %p6728 = pneg %p199
      $region58: #{resblock_forward.1} parent=55 // pred_check_branch
        %6730 = sbr.rel (%p6728) target = $region60
      $region59: #{resblock_forward.1} parent=55 // pred_region
        %p6731 = scmp.lt.s32.totalorder %s19, 1
        %s6732 = scalar_select %p6731, %s19, 1
        %s6733 = smul.addr %s6732, 8
        %s6734 = scalar_lea.vmem %s7, %s6733
      $region60: #{resblock_forward.1} parent=55 // pred_fallthru
        _
    $region56: #{resblock_forward.1} parent=5 // pred_fallthru
      _
  $region6: #{resblock_forward.1} parent=0 // loop_footer
    %s17 = sadd.s32 1, %s13
  $region7: #{resblock_forward.1} parent=0 // loop_footer_branch
    %12 = sbr.rel target = $region3
  $region8: #{resblock_forward.1} parent=0 // loop_exit
    _

</llo_original>
